<compile_context>
chip_gen: v5e
topology: v5e:2x2
jax: 0.10.0
libtpu: 0.0.40
codegen_flags: <defaults>
</compile_context>

<pallas_src>
import math

import jax
import jax.numpy as jnp
from jax.experimental import pallas as pl
from jax.experimental.pallas import tpu as pltpu

LANE = 128  # TPU lane width; kernel outputs are padded to a multiple of it.


def _pick_tile(n, target):
    """Largest row tile <= target that divides n and keeps the sublane dim
    8-aligned; falls back to the full extent (always a legal block shape)."""
    if n <= target:
        return n
    for t in range(target, 7, -1):
        if n % t == 0 and t % 8 == 0:
            return t
    return n


# ----------------------------------------------------------------------------
# float32 erf rational approximation (XLA ErfImpl32 form; VPU mul/add plus one
# reciprocal that is routed to the EUP slot).
# ----------------------------------------------------------------------------
_ERF_ALPHA = (-2.72614225801306e-10, 2.77068142495902e-08, -2.10102402082508e-06,
              -5.69250639462346e-05, -7.34990630326855e-04, -2.95459980854025e-03,
              -1.60960333262415e-02)
_ERF_BETA = (-1.45660718464996e-05, -2.13374055278905e-04, -1.68282697438203e-03,
             -7.37332916720468e-03, -1.42647390514189e-02)


def _erf_f32(x):
    x = jnp.clip(x, -4.0, 4.0)
    x2 = x * x
    p = jnp.full_like(x2, _ERF_ALPHA[0])
    for c in _ERF_ALPHA[1:]:
        p = p * x2 + c
    q = jnp.full_like(x2, _ERF_BETA[0])
    for c in _ERF_BETA[1:]:
        q = q * x2 + c
    # Divide moved off the VALU onto the EUP reciprocal path (approx per review;
    # error bounded well below the test tolerance).
    return jnp.clip(x * p * pl.reciprocal(q, approx=True), -1.0, 1.0)


# ----------------------------------------------------------------------------
# Pallas kernels
# ----------------------------------------------------------------------------
def _bn_gelu_kernel(y_ref, scale_ref, shift_ref, o_ref):
    # BatchNorm with pre-folded scale/shift + exact GELU, fused, lane-dense.
    yhat = y_ref[...].astype(jnp.float32) * scale_ref[...] + shift_ref[...]
    o_ref[...] = (0.5 * yhat * (1.0 + _erf_f32(yhat * 0.7071067811865476))
                  ).astype(o_ref.dtype)


def _deform_conv_kernel(x_ref, off_ref, w_ref, ey_ref, ex_ref,
                        y_ref, stats_ref, xw_ref):
    """Fused deformable 3x3 conv (bf16 MXU, f32 accum) + BN partial statistics.

    x_ref:     (1, HW, C)   bf16  full input feature map of this batch item
    off_ref:   (1, tm, 18)  f32   absolute sample coords (py, px) per kernel pt
    w_ref:     (9, C, Np)   bf16  conv weights per kernel point, lane padded
    ey_ref:    (H, HW)      bf16  0/1 row-expansion pattern  EY[y, y*W + x] = 1
    ex_ref:    (W, HW)      bf16  0/1 col-expansion pattern  EX[x, y*W + x] = 1
    y_ref:     (1, tm, Np)  bf16  conv output tile
    stats_ref: (1, 2, Np)   f32   per-batch partial [sum(y), sum(y*y)]
    xw_ref:    (9, HW, Np)  bf16  scratch: x @ w_k, precomputed once per batch
    """
    first_tile = pl.program_id(1) == 0
    n_k = w_ref.shape[0]

    # Weight folding: precompute xw_k = x @ w_k once per batch item so the
    # bilinear gather matmul writes the conv output channels directly (full
    # 128-lane MXU pass) and the tiny-K (K=C) second matmul is eliminated.
    @pl.when(first_tile)
    def _precompute_xw():
        x = x_ref[0]                                               # (HW, C)
        for k in range(n_k):
            xw_ref[k] = jnp.dot(
                x, w_ref[k], preferred_element_type=jnp.float32
            ).astype(xw_ref.dtype)

    off = off_ref[0]                                               # (tm, 18)
    tm = off.shape[0]
    H = ey_ref.shape[0]
    W = ex_ref.shape[0]
    npad = y_ref.shape[-1]
    ey = ey_ref[...]
    ex = ex_ref[...]

    # Row / col index grids (f32), hoisted out of the kernel-point loop.
    iyf = jax.lax.broadcasted_iota(jnp.int32, (tm, H), 1).astype(jnp.float32)
    ixf = jax.lax.broadcasted_iota(jnp.int32, (tm, W), 1).astype(jnp.float32)

    acc = jnp.zeros((tm, npad), jnp.float32)
    for k in range(n_k):
        py = off[:, 2 * k:2 * k + 1]                               # (tm, 1)
        px = off[:, 2 * k + 1:2 * k + 2]
        # Separable bilinear weights on the small domains: the 1-D hat
        # max(0, 1 - |i - p|) equals hy at y0, ly at y0+1, 0 elsewhere, and
        # out-of-image rows/cols get zero weight (deform-conv v1 semantics).
        wy = jnp.maximum(1.0 - jnp.abs(iyf - py), 0.0).astype(jnp.bfloat16)
        wx = jnp.maximum(1.0 - jnp.abs(ixf - px), 0.0).astype(jnp.bfloat16)
        # Expand to the flat H*W axis with two exact 0/1 pattern matmuls (MXU),
        # then one multiply + one cast: ~2 VPU passes over (tm, HW) per k
        # instead of ~12 with the previous per-corner one-hot construction.
        wy_e = jnp.dot(wy, ey, preferred_element_type=jnp.float32)  # (tm, HW)
        wx_e = jnp.dot(wx, ex, preferred_element_type=jnp.float32)
        interp = (wy_e * wx_e).astype(jnp.bfloat16)
        acc = acc + jnp.dot(interp, xw_ref[k],
                            preferred_element_type=jnp.float32)     # (tm, Np)

    y_ref[0] = acc.astype(y_ref.dtype)

    # Per-batch BatchNorm partial sums in f32 (kept per batch item so the batch
    # grid axis can be "parallel" on v7x megacore; reduced over B on the host).
    # TODO(synk): E[y^2]-E[y]^2 can cancel for channels with |mean| >> std;
    # switch to shifted / Welford partials if that regime shows up.
    ssum = jnp.sum(acc, axis=0, keepdims=True)                       # (1, Np)
    ssq = jnp.sum(acc * acc, axis=0, keepdims=True)                  # (1, Np)
    tile_stats = jnp.concatenate([ssum, ssq], axis=0)[None]          # (1, 2, Np)

    @pl.when(first_tile)
    def _init_stats():
        stats_ref[...] = tile_stats

    @pl.when(jnp.logical_not(first_tile))
    def _acc_stats():
        stats_ref[...] = stats_ref[...] + tile_stats


# ----------------------------------------------------------------------------
# Pallas wrappers
# ----------------------------------------------------------------------------
def pallas_deform_conv_bn_stats(x_flat, offset, w9, ey, ex, tm_target=128):
    """Fused deformable conv + BN partial statistics.

    Returns y (B, HoWo, Np) bf16 and stats (B, 2, Np) f32 per-batch partials.
    """
    B, HW, C = x_flat.shape
    _, HoWo, _ = offset.shape
    nk, _, Np = w9.shape
    H, W = ey.shape[0], ex.shape[0]
    tm = _pick_tile(HoWo, tm_target)
    # VMEM budget (review item for v7x: 64 MiB physical / 32 MiB default scoped):
    #   xw scratch 9*HW*Np*2B (single buffer), x block HW*C*2B (x2 buffers),
    #   w9 9*C*Np*2B (x2), ey/ex (H+W)*HW*2B, off/y tiles ~tm*Np*6B (x2),
    #   plus ~3*tm*HW*4B of interp spill scratch.  At production DTM sizes
    #   (H=W=56, C=96, tm=128) this is ~12-16 MiB, inside the 32 MiB limit we
    #   pin below; shrink tm_target first if C or HW grow beyond that.
    return pl.pallas_call(
        _deform_conv_kernel,
        out_shape=(jax.ShapeDtypeStruct((B, HoWo, Np), jnp.bfloat16),
                   jax.ShapeDtypeStruct((B, 2, Np), jnp.float32)),
        grid=(B, HoWo // tm),
        in_specs=[
            pl.BlockSpec((1, HW, C), lambda b, i: (b, 0, 0)),
            pl.BlockSpec((1, tm, 2 * nk), lambda b, i: (b, i, 0)),
            pl.BlockSpec((nk, C, Np), lambda b, i: (0, 0, 0)),
            pl.BlockSpec((H, HW), lambda b, i: (0, 0)),
            pl.BlockSpec((W, HW), lambda b, i: (0, 0)),
        ],
        out_specs=(pl.BlockSpec((1, tm, Np), lambda b, i: (b, i, 0)),
                   pl.BlockSpec((1, 2, Np), lambda b, i: (b, 0, 0))),
        scratch_shapes=[pltpu.VMEM((nk, HW, Np), jnp.bfloat16)],
        # Batch axis parallel (v7x megacore: per-batch stats partials make this
        # safe); row-tile axis carries the resident stats block -> arbitrary.
        compiler_params=pltpu.CompilerParams(
            dimension_semantics=("parallel", "arbitrary"),
            vmem_limit_bytes=32 * 1024 * 1024),
    )(x_flat, offset, w9, ey, ex)


def pallas_bn_gelu(y, scale, shift, tm_target=1024):
    M, Np = y.shape
    tm = _pick_tile(M, tm_target)
    return pl.pallas_call(
        _bn_gelu_kernel,
        out_shape=jax.ShapeDtypeStruct((M, Np), jnp.float32),
        grid=(M // tm,),
        in_specs=[
            pl.BlockSpec((tm, Np), lambda i: (i, 0)),
            pl.BlockSpec((1, Np), lambda i: (0, 0)),
            pl.BlockSpec((1, Np), lambda i: (0, 0)),
        ],
        out_specs=pl.BlockSpec((tm, Np), lambda i: (i, 0)),
        compiler_params=pltpu.CompilerParams(dimension_semantics=("parallel",)),
    )(y, scale.reshape(1, Np), shift.reshape(1, Np))


# ----------------------------------------------------------------------------
# DTM forward (Pallas path)
# ----------------------------------------------------------------------------
def dtm_forward(x_nchw, w_off, b_off, w_dcn, gamma, beta, eps=1e-5):
    B, C, H, W = x_nchw.shape
    ks, stride, pad = 3, 2, 1
    nk = ks * ks
    Ho = (H + 2 * pad - ks) // stride + 1
    Wo = (W + 2 * pad - ks) // stride + 1
    HoWo, HW = Ho * Wo, H * W
    Np = ((C + LANE - 1) // LANE) * LANE

    # --- Stage 1: conv2_offset.  Tiny 18-channel conv, left to XLA's native
    # convolution per perf review (no im2col HBM blow-up feeding a K=9C matmul).
    off_map = jax.lax.conv_general_dilated(
        x_nchw, w_off, window_strides=(stride, stride),
        padding=((pad, pad), (pad, pad)),
        dimension_numbers=("NCHW", "OIHW", "NCHW"),
        precision=jax.lax.Precision.HIGHEST)
    off_map = off_map + b_off[None, :, None, None]
    offset = jnp.transpose(off_map, (0, 2, 3, 1)).reshape(B, HoWo, 2 * nk)

    # Fold the absolute sampling grid into the offsets (mmcv DeformConv layout:
    # interleaved (dy, dx) per kernel point, row-major over the 3x3 kernel).
    oy, ox = jnp.divmod(jnp.arange(HoWo, dtype=jnp.int32), Wo)
    kh = jnp.arange(nk, dtype=jnp.int32) // ks
    kw = jnp.arange(nk, dtype=jnp.int32) % ks
    fold_y = (oy * stride - pad)[:, None] + kh[None, :]
    fold_x = (ox * stride - pad)[:, None] + kw[None, :]
    fold = jnp.stack([fold_y, fold_x], axis=-1).reshape(HoWo, 2 * nk)
    offset = offset + fold.astype(jnp.float32)[None]

    # --- Stage 2: fused deformable conv + BN partial statistics.
    x_nhwc = jnp.transpose(x_nchw, (0, 2, 3, 1))
    x_flat = x_nhwc.reshape(B, HW, C).astype(jnp.bfloat16)
    w9 = jnp.transpose(w_dcn, (2, 3, 1, 0)).reshape(nk, C, C)
    w9 = jnp.pad(w9, ((0, 0), (0, 0), (0, Np - C))).astype(jnp.bfloat16)
    jj = jnp.arange(HW, dtype=jnp.int32)
    ey = (jj[None, :] // W == jnp.arange(H, dtype=jnp.int32)[:, None]
          ).astype(jnp.bfloat16)                                    # (H, HW)
    ex = (jj[None, :] % W == jnp.arange(W, dtype=jnp.int32)[:, None]
          ).astype(jnp.bfloat16)                                    # (W, HW)

    y, stats = pallas_deform_conv_bn_stats(x_flat, offset, w9, ey, ex)

    # --- Fold BatchNorm2d (training-mode batch stats, biased var) on the host.
    M = B * HoWo
    stats_tot = jnp.sum(stats, axis=0)                              # (2, Np)
    mean = stats_tot[0, :C] / M
    var = jnp.maximum(stats_tot[1, :C] / M - mean * mean, 0.0)
    scale = gamma * jax.lax.rsqrt(var + eps)
    shift = beta - mean * scale
    scale_p = jnp.pad(scale, (0, Np - C))
    shift_p = jnp.pad(shift, (0, Np - C))

    out = pallas_bn_gelu(y.reshape(M, Np), scale_p, shift_p)        # (M, Np) f32
    out = out[:, :C].reshape(B, Ho, Wo, C)
    return jnp.transpose(out, (0, 3, 1, 2))                         # NCHW


# ----------------------------------------------------------------------------
# Pure-JAX reference (same math; mirrors the kernel's bf16 rounding points in
# the deformable-conv stage so the comparison is tight).
# ----------------------------------------------------------------------------
def _im2col_ref(x_nhwc, ksize=3, stride=2, pad=1):
    B, H, W, C = x_nhwc.shape
    Ho = (H + 2 * pad - ksize) // stride + 1
    Wo = (W + 2 * pad - ksize) // stride + 1
    xp = jnp.pad(x_nhwc, ((0, 0), (pad, pad), (pad, pad), (0, 0)))
    cols = []
    for kh in range(ksize):
        for kw in range(ksize):
            cols.append(xp[:, kh:kh + stride * Ho:stride,
                           kw:kw + stride * Wo:stride, :])
    patches = jnp.stack(cols, axis=3)            # (B, Ho, Wo, 9, C)
    return patches.reshape(B * Ho * Wo, ksize * ksize * C), Ho, Wo


def dtm_forward_ref(x_nchw, w_off, b_off, w_dcn, gamma, beta, eps=1e-5):
    B, C, H, W = x_nchw.shape
    ks, stride, pad = 3, 2, 1
    nk = ks * ks
    x_nhwc = jnp.transpose(x_nchw, (0, 2, 3, 1))
    HW = H * W

    # Offsets via explicit im2col matmul (independent of the main path's conv).
    cols, Ho, Wo = _im2col_ref(x_nhwc, ks, stride, pad)
    HoWo = Ho * Wo
    w_off_m = jnp.transpose(w_off, (2, 3, 1, 0)).reshape(nk * C, 2 * nk)
    off = (jnp.dot(cols, w_off_m, precision=jax.lax.Precision.HIGHEST) + b_off
           ).reshape(B, HoWo, 2 * nk)

    oy, ox = jnp.divmod(jnp.arange(HoWo, dtype=jnp.int32), Wo)
    kh = jnp.arange(nk, dtype=jnp.int32) // ks
    kw = jnp.arange(nk, dtype=jnp.int32) % ks
    fold_y = (oy * stride - pad)[:, None] + kh[None, :]
    fold_x = (ox * stride - pad)[:, None] + kw[None, :]
    fold = jnp.stack([fold_y, fold_x], axis=-1).reshape(HoWo, 2 * nk)
    off = off + fold.astype(jnp.float32)[None]

    # Deformable conv, mirroring the kernel's bf16 rounding points.
    x_q = x_nhwc.astype(jnp.bfloat16).reshape(B, HW, C)
    w9 = jnp.transpose(w_dcn, (2, 3, 1, 0)).reshape(nk, C, C).astype(jnp.bfloat16)
    iy = jnp.arange(H, dtype=jnp.float32)
    ix = jnp.arange(W, dtype=jnp.float32)
    y = jnp.zeros((B, HoWo, C), jnp.float32)
    for k in range(nk):
        xw_k = jnp.einsum('bhc,cd->bhd', x_q, w9[k],
                          preferred_element_type=jnp.float32).astype(jnp.bfloat16)
        py = off[..., 2 * k]
        px = off[..., 2 * k + 1]
        wy = jnp.maximum(1.0 - jnp.abs(iy[None, None, :] - py[..., None]), 0.0
                         ).astype(jnp.bfloat16)                     # (B, M, H)
        wx = jnp.maximum(1.0 - jnp.abs(ix[None, None, :] - px[..., None]), 0.0
                         ).astype(jnp.bfloat16)                     # (B, M, W)
        interp = (wy[..., :, None] * wx[..., None, :]).reshape(B, HoWo, HW)
        y = y + jnp.einsum('bmh,bhc->bmc', interp, xw_k,
                           preferred_element_type=jnp.float32)

    M = B * HoWo
    yf = y.reshape(M, C)
    mean = jnp.mean(yf, axis=0)
    var = jnp.maximum(jnp.mean(yf * yf, axis=0) - mean * mean, 0.0)
    scale = gamma * jax.lax.rsqrt(var + eps)
    shift = beta - mean * scale
    yb = yf.astype(jnp.bfloat16).astype(jnp.float32)   # mirror bf16 y writeback
    out = jax.nn.gelu(yb * scale + shift, approximate=False)
    return jnp.transpose(out.reshape(B, Ho, Wo, C), (0, 3, 1, 2))


if __name__ == "__main__":
    key = jax.random.PRNGKey(0)
    B, C, H, W = 2, 8, 16, 16                  # dim = 8, input_resolution = (16, 16)
    k0, k1, k2, k3, k4, k5 = jax.random.split(key, 6)

    x = jax.random.normal(k0, (B, C, H, W), jnp.float32)
    w_off = 0.1 * jax.random.normal(k1, (18, C, 3, 3), jnp.float32)   # conv2_offset.weight
    b_off = 0.1 * jax.random.normal(k2, (18,), jnp.float32)           # conv2_offset.bias
    w_dcn = jax.random.normal(k3, (C, C, 3, 3), jnp.float32) / math.sqrt(9 * C)  # conv2.weight
    gamma = 1.0 + 0.1 * jax.random.normal(k4, (C,), jnp.float32)      # norm_layer.weight
    beta = 0.1 * jax.random.normal(k5, (C,), jnp.float32)             # norm_layer.bias

    out = jax.block_until_ready(jax.jit(dtm_forward)(x, w_off, b_off, w_dcn, gamma, beta))
    assert out.shape == (B, C, H // 2, W // 2), out.shape

    ref = jax.block_until_ready(jax.jit(dtm_forward_ref)(x, w_off, b_off, w_dcn, gamma, beta))
    err = float(jnp.max(jnp.abs(out - ref)))
    # bf16 MXU sampling path (mirrored in the reference) + rational-erf /
    # approx-reciprocal GELU in the kernel vs exact GELU in the reference.
    assert jnp.allclose(out, ref, atol=2e-2, rtol=2e-2), err

    print("KERNEL_OK")
</pallas_src>

<mosaic_0001>
module attributes {stable_mosaic.version = 11 : i64} {
  func.func @_deform_conv_kernel(%arg0: i32, %arg1: i32, %arg2: memref<1x256x8xbf16, #tpu.memory_space<vmem>>, %arg3: memref<1x64x18xf32, #tpu.memory_space<vmem>>, %arg4: memref<9x8x128xbf16, #tpu.memory_space<vmem>>, %arg5: memref<16x256xbf16, #tpu.memory_space<vmem>>, %arg6: memref<16x256xbf16, #tpu.memory_space<vmem>>, %arg7: memref<1x64x128xbf16, #tpu.memory_space<vmem>>, %arg8: memref<1x2x128xf32, #tpu.memory_space<vmem>>, %arg9: memref<9x256x128xbf16, #tpu.memory_space<vmem>>) attributes {dimension_semantics = [#tpu.dimension_semantics<parallel>, #tpu.dimension_semantics<arbitrary>], iteration_bounds = array<i64: 2, 1>, scalar_prefetch = 0 : i64, scratch_operands = 1 : i64, tpu.core_type = #tpu.core_type<tc>, window_params = [{transform_indices = @transform_0, window_bounds = array<i64: 1, 256, 8>}, {transform_indices = @transform_1, window_bounds = array<i64: 1, 64, 18>}, {pipeline_mode = #tpu.pipeline_mode<synchronous>, transform_indices = @transform_2, window_bounds = array<i64: 9, 8, 128>}, {pipeline_mode = #tpu.pipeline_mode<synchronous>, transform_indices = @transform_3, window_bounds = array<i64: 16, 256>}, {pipeline_mode = #tpu.pipeline_mode<synchronous>, transform_indices = @transform_4, window_bounds = array<i64: 16, 256>}, {transform_indices = @transform_5, window_bounds = array<i64: 1, 64, 128>}, {transform_indices = @transform_6, window_bounds = array<i64: 1, 2, 128>}]} {
    %c0_i32 = arith.constant 0 : i32
    %0 = arith.cmpi eq, %arg1, %c0_i32 : i32
    %1 = arith.extui %0 : i1 to i32
    %c0_i32_0 = arith.constant 0 : i32
    %2 = arith.cmpi ne, %1, %c0_i32_0 : i32
    scf.if %2 {
      %c0_96 = arith.constant 0 : index
      %c0_97 = arith.constant 0 : index
      %c0_98 = arith.constant 0 : index
      %262 = vector.load %arg2[%c0_96, %c0_97, %c0_98] : memref<1x256x8xbf16, #tpu.memory_space<vmem>>, vector<1x256x8xbf16>
      %263 = vector.shape_cast %262 : vector<1x256x8xbf16> to vector<256x8xbf16>
      %c0_99 = arith.constant 0 : index
      %c0_100 = arith.constant 0 : index
      %c0_101 = arith.constant 0 : index
      %264 = vector.load %arg4[%c0_99, %c0_100, %c0_101] : memref<9x8x128xbf16, #tpu.memory_space<vmem>>, vector<1x8x128xbf16>
      %265 = vector.shape_cast %264 : vector<1x8x128xbf16> to vector<8x128xbf16>
      %cst_102 = arith.constant dense<0.000000e+00> : vector<256x128xf32>
      %266 = tpu.matmul %263, %265, %cst_102 {dimension_numbers = #tpu.dot_dimension_numbers<[1], [0], [0], [1], [0, 0, 1, 1], [], []>} : vector<256x8xbf16>, vector<8x128xbf16>, vector<256x128xf32> -> vector<256x128xf32>
      %267 = arith.truncf %266 : vector<256x128xf32> to vector<256x128xbf16>
      %c0_103 = arith.constant 0 : index
      %c0_104 = arith.constant 0 : index
      %c0_105 = arith.constant 0 : index
      %268 = vector.load %arg9[%c0_103, %c0_104, %c0_105] : memref<9x256x128xbf16, #tpu.memory_space<vmem>>, vector<1x256x128xbf16>
      %269 = vector.shape_cast %268 : vector<1x256x128xbf16> to vector<256x128xbf16>
      %270 = vector.shape_cast %267 : vector<256x128xbf16> to vector<1x256x128xbf16>
      tpu.vector_store %arg9[%c0_103, %c0_104, %c0_105], %270 {strides = array<i32>} : memref<9x256x128xbf16, #tpu.memory_space<vmem>>, vector<1x256x128xbf16>,
      %c1_106 = arith.constant 1 : index
      %c0_107 = arith.constant 0 : index
      %c0_108 = arith.constant 0 : index
      %271 = vector.load %arg4[%c1_106, %c0_107, %c0_108] : memref<9x8x128xbf16, #tpu.memory_space<vmem>>, vector<1x8x128xbf16>
      %272 = vector.shape_cast %271 : vector<1x8x128xbf16> to vector<8x128xbf16>
      %cst_109 = arith.constant dense<0.000000e+00> : vector<256x128xf32>
      %273 = tpu.matmul %263, %272, %cst_109 {dimension_numbers = #tpu.dot_dimension_numbers<[1], [0], [0], [1], [0, 0, 1, 1], [], []>} : vector<256x8xbf16>, vector<8x128xbf16>, vector<256x128xf32> -> vector<256x128xf32>
      %274 = arith.truncf %273 : vector<256x128xf32> to vector<256x128xbf16>
      %c1_110 = arith.constant 1 : index
      %c0_111 = arith.constant 0 : index
      %c0_112 = arith.constant 0 : index
      %275 = vector.load %arg9[%c1_110, %c0_111, %c0_112] : memref<9x256x128xbf16, #tpu.memory_space<vmem>>, vector<1x256x128xbf16>
      %276 = vector.shape_cast %275 : vector<1x256x128xbf16> to vector<256x128xbf16>
      %277 = vector.shape_cast %274 : vector<256x128xbf16> to vector<1x256x128xbf16>
      tpu.vector_store %arg9[%c1_110, %c0_111, %c0_112], %277 {strides = array<i32>} : memref<9x256x128xbf16, #tpu.memory_space<vmem>>, vector<1x256x128xbf16>,
      %c2_113 = arith.constant 2 : index
      %c0_114 = arith.constant 0 : index
      %c0_115 = arith.constant 0 : index
      %278 = vector.load %arg4[%c2_113, %c0_114, %c0_115] : memref<9x8x128xbf16, #tpu.memory_space<vmem>>, vector<1x8x128xbf16>
      %279 = vector.shape_cast %278 : vector<1x8x128xbf16> to vector<8x128xbf16>
      %cst_116 = arith.constant dense<0.000000e+00> : vector<256x128xf32>
      %280 = tpu.matmul %263, %279, %cst_116 {dimension_numbers = #tpu.dot_dimension_numbers<[1], [0], [0], [1], [0, 0, 1, 1], [], []>} : vector<256x8xbf16>, vector<8x128xbf16>, vector<256x128xf32> -> vector<256x128xf32>
      %281 = arith.truncf %280 : vector<256x128xf32> to vector<256x128xbf16>
      %c2_117 = arith.constant 2 : index
      %c0_118 = arith.constant 0 : index
      %c0_119 = arith.constant 0 : index
      %282 = vector.load %arg9[%c2_117, %c0_118, %c0_119] : memref<9x256x128xbf16, #tpu.memory_space<vmem>>, vector<1x256x128xbf16>
      %283 = vector.shape_cast %282 : vector<1x256x128xbf16> to vector<256x128xbf16>
      %284 = vector.shape_cast %281 : vector<256x128xbf16> to vector<1x256x128xbf16>
      tpu.vector_store %arg9[%c2_117, %c0_118, %c0_119], %284 {strides = array<i32>} : memref<9x256x128xbf16, #tpu.memory_space<vmem>>, vector<1x256x128xbf16>,
      %c3_120 = arith.constant 3 : index
      %c0_121 = arith.constant 0 : index
      %c0_122 = arith.constant 0 : index
      %285 = vector.load %arg4[%c3_120, %c0_121, %c0_122] : memref<9x8x128xbf16, #tpu.memory_space<vmem>>, vector<1x8x128xbf16>
      %286 = vector.shape_cast %285 : vector<1x8x128xbf16> to vector<8x128xbf16>
      %cst_123 = arith.constant dense<0.000000e+00> : vector<256x128xf32>
      %287 = tpu.matmul %263, %286, %cst_123 {dimension_numbers = #tpu.dot_dimension_numbers<[1], [0], [0], [1], [0, 0, 1, 1], [], []>} : vector<256x8xbf16>, vector<8x128xbf16>, vector<256x128xf32> -> vector<256x128xf32>
      %288 = arith.truncf %287 : vector<256x128xf32> to vector<256x128xbf16>
      %c3_124 = arith.constant 3 : index
      %c0_125 = arith.constant 0 : index
      %c0_126 = arith.constant 0 : index
      %289 = vector.load %arg9[%c3_124, %c0_125, %c0_126] : memref<9x256x128xbf16, #tpu.memory_space<vmem>>, vector<1x256x128xbf16>
      %290 = vector.shape_cast %289 : vector<1x256x128xbf16> to vector<256x128xbf16>
      %291 = vector.shape_cast %288 : vector<256x128xbf16> to vector<1x256x128xbf16>
      tpu.vector_store %arg9[%c3_124, %c0_125, %c0_126], %291 {strides = array<i32>} : memref<9x256x128xbf16, #tpu.memory_space<vmem>>, vector<1x256x128xbf16>,
      %c4_127 = arith.constant 4 : index
      %c0_128 = arith.constant 0 : index
      %c0_129 = arith.constant 0 : index
      %292 = vector.load %arg4[%c4_127, %c0_128, %c0_129] : memref<9x8x128xbf16, #tpu.memory_space<vmem>>, vector<1x8x128xbf16>
      %293 = vector.shape_cast %292 : vector<1x8x128xbf16> to vector<8x128xbf16>
      %cst_130 = arith.constant dense<0.000000e+00> : vector<256x128xf32>
      %294 = tpu.matmul %263, %293, %cst_130 {dimension_numbers = #tpu.dot_dimension_numbers<[1], [0], [0], [1], [0, 0, 1, 1], [], []>} : vector<256x8xbf16>, vector<8x128xbf16>, vector<256x128xf32> -> vector<256x128xf32>
      %295 = arith.truncf %294 : vector<256x128xf32> to vector<256x128xbf16>
      %c4_131 = arith.constant 4 : index
      %c0_132 = arith.constant 0 : index
      %c0_133 = arith.constant 0 : index
      %296 = vector.load %arg9[%c4_131, %c0_132, %c0_133] : memref<9x256x128xbf16, #tpu.memory_space<vmem>>, vector<1x256x128xbf16>
      %297 = vector.shape_cast %296 : vector<1x256x128xbf16> to vector<256x128xbf16>
      %298 = vector.shape_cast %295 : vector<256x128xbf16> to vector<1x256x128xbf16>
      tpu.vector_store %arg9[%c4_131, %c0_132, %c0_133], %298 {strides = array<i32>} : memref<9x256x128xbf16, #tpu.memory_space<vmem>>, vector<1x256x128xbf16>,
      %c5_134 = arith.constant 5 : index
      %c0_135 = arith.constant 0 : index
      %c0_136 = arith.constant 0 : index
      %299 = vector.load %arg4[%c5_134, %c0_135, %c0_136] : memref<9x8x128xbf16, #tpu.memory_space<vmem>>, vector<1x8x128xbf16>
      %300 = vector.shape_cast %299 : vector<1x8x128xbf16> to vector<8x128xbf16>
      %cst_137 = arith.constant dense<0.000000e+00> : vector<256x128xf32>
      %301 = tpu.matmul %263, %300, %cst_137 {dimension_numbers = #tpu.dot_dimension_numbers<[1], [0], [0], [1], [0, 0, 1, 1], [], []>} : vector<256x8xbf16>, vector<8x128xbf16>, vector<256x128xf32> -> vector<256x128xf32>
      %302 = arith.truncf %301 : vector<256x128xf32> to vector<256x128xbf16>
      %c5_138 = arith.constant 5 : index
      %c0_139 = arith.constant 0 : index
      %c0_140 = arith.constant 0 : index
      %303 = vector.load %arg9[%c5_138, %c0_139, %c0_140] : memref<9x256x128xbf16, #tpu.memory_space<vmem>>, vector<1x256x128xbf16>
      %304 = vector.shape_cast %303 : vector<1x256x128xbf16> to vector<256x128xbf16>
      %305 = vector.shape_cast %302 : vector<256x128xbf16> to vector<1x256x128xbf16>
      tpu.vector_store %arg9[%c5_138, %c0_139, %c0_140], %305 {strides = array<i32>} : memref<9x256x128xbf16, #tpu.memory_space<vmem>>, vector<1x256x128xbf16>,
      %c6_141 = arith.constant 6 : index
      %c0_142 = arith.constant 0 : index
      %c0_143 = arith.constant 0 : index
      %306 = vector.load %arg4[%c6_141, %c0_142, %c0_143] : memref<9x8x128xbf16, #tpu.memory_space<vmem>>, vector<1x8x128xbf16>
      %307 = vector.shape_cast %306 : vector<1x8x128xbf16> to vector<8x128xbf16>
      %cst_144 = arith.constant dense<0.000000e+00> : vector<256x128xf32>
      %308 = tpu.matmul %263, %307, %cst_144 {dimension_numbers = #tpu.dot_dimension_numbers<[1], [0], [0], [1], [0, 0, 1, 1], [], []>} : vector<256x8xbf16>, vector<8x128xbf16>, vector<256x128xf32> -> vector<256x128xf32>
      %309 = arith.truncf %308 : vector<256x128xf32> to vector<256x128xbf16>
      %c6_145 = arith.constant 6 : index
      %c0_146 = arith.constant 0 : index
      %c0_147 = arith.constant 0 : index
      %310 = vector.load %arg9[%c6_145, %c0_146, %c0_147] : memref<9x256x128xbf16, #tpu.memory_space<vmem>>, vector<1x256x128xbf16>
      %311 = vector.shape_cast %310 : vector<1x256x128xbf16> to vector<256x128xbf16>
      %312 = vector.shape_cast %309 : vector<256x128xbf16> to vector<1x256x128xbf16>
      tpu.vector_store %arg9[%c6_145, %c0_146, %c0_147], %312 {strides = array<i32>} : memref<9x256x128xbf16, #tpu.memory_space<vmem>>, vector<1x256x128xbf16>,
      %c7_148 = arith.constant 7 : index
      %c0_149 = arith.constant 0 : index
      %c0_150 = arith.constant 0 : index
      %313 = vector.load %arg4[%c7_148, %c0_149, %c0_150] : memref<9x8x128xbf16, #tpu.memory_space<vmem>>, vector<1x8x128xbf16>
      %314 = vector.shape_cast %313 : vector<1x8x128xbf16> to vector<8x128xbf16>
      %cst_151 = arith.constant dense<0.000000e+00> : vector<256x128xf32>
      %315 = tpu.matmul %263, %314, %cst_151 {dimension_numbers = #tpu.dot_dimension_numbers<[1], [0], [0], [1], [0, 0, 1, 1], [], []>} : vector<256x8xbf16>, vector<8x128xbf16>, vector<256x128xf32> -> vector<256x128xf32>
      %316 = arith.truncf %315 : vector<256x128xf32> to vector<256x128xbf16>
      %c7_152 = arith.constant 7 : index
      %c0_153 = arith.constant 0 : index
      %c0_154 = arith.constant 0 : index
      %317 = vector.load %arg9[%c7_152, %c0_153, %c0_154] : memref<9x256x128xbf16, #tpu.memory_space<vmem>>, vector<1x256x128xbf16>
      %318 = vector.shape_cast %317 : vector<1x256x128xbf16> to vector<256x128xbf16>
      %319 = vector.shape_cast %316 : vector<256x128xbf16> to vector<1x256x128xbf16>
      tpu.vector_store %arg9[%c7_152, %c0_153, %c0_154], %319 {strides = array<i32>} : memref<9x256x128xbf16, #tpu.memory_space<vmem>>, vector<1x256x128xbf16>,
      %c8_155 = arith.constant 8 : index
      %c0_156 = arith.constant 0 : index
      %c0_157 = arith.constant 0 : index
      %320 = vector.load %arg4[%c8_155, %c0_156, %c0_157] : memref<9x8x128xbf16, #tpu.memory_space<vmem>>, vector<1x8x128xbf16>
      %321 = vector.shape_cast %320 : vector<1x8x128xbf16> to vector<8x128xbf16>
      %cst_158 = arith.constant dense<0.000000e+00> : vector<256x128xf32>
      %322 = tpu.matmul %263, %321, %cst_158 {dimension_numbers = #tpu.dot_dimension_numbers<[1], [0], [0], [1], [0, 0, 1, 1], [], []>} : vector<256x8xbf16>, vector<8x128xbf16>, vector<256x128xf32> -> vector<256x128xf32>
      %323 = arith.truncf %322 : vector<256x128xf32> to vector<256x128xbf16>
      %c8_159 = arith.constant 8 : index
      %c0_160 = arith.constant 0 : index
      %c0_161 = arith.constant 0 : index
      %324 = vector.load %arg9[%c8_159, %c0_160, %c0_161] : memref<9x256x128xbf16, #tpu.memory_space<vmem>>, vector<1x256x128xbf16>
      %325 = vector.shape_cast %324 : vector<1x256x128xbf16> to vector<256x128xbf16>
      %326 = vector.shape_cast %323 : vector<256x128xbf16> to vector<1x256x128xbf16>
      tpu.vector_store %arg9[%c8_159, %c0_160, %c0_161], %326 {strides = array<i32>} : memref<9x256x128xbf16, #tpu.memory_space<vmem>>, vector<1x256x128xbf16>,
    } else {
    }
    %c0 = arith.constant 0 : index
    %c0_1 = arith.constant 0 : index
    %c0_2 = arith.constant 0 : index
    %3 = vector.load %arg3[%c0, %c0_1, %c0_2] : memref<1x64x18xf32, #tpu.memory_space<vmem>>, vector<1x64x18xf32>
    %4 = vector.shape_cast %3 : vector<1x64x18xf32> to vector<64x18xf32>
    %c0_3 = arith.constant 0 : index
    %c0_4 = arith.constant 0 : index
    %5 = vector.load %arg5[%c0_3, %c0_4] : memref<16x256xbf16, #tpu.memory_space<vmem>>, vector<16x256xbf16>
    %c0_5 = arith.constant 0 : index
    %c0_6 = arith.constant 0 : index
    %6 = vector.load %arg6[%c0_5, %c0_6] : memref<16x256xbf16, #tpu.memory_space<vmem>>, vector<16x256xbf16>
    %7 = tpu.iota {dimensions = array<i32: 1>} : vector<64x16xi32>
    %8 = arith.sitofp %7 : vector<64x16xi32> to vector<64x16xf32>
    %9 = tpu.iota {dimensions = array<i32: 1>} : vector<64x16xi32>
    %10 = arith.sitofp %9 : vector<64x16xi32> to vector<64x16xf32>
    %cst = arith.constant 0.000000e+00 : f32
    %11 = vector.broadcast %cst : f32 to vector<64x128xf32>
    %12 = vector.extract_strided_slice %4 {offsets = [0, 0], sizes = [64, 1], strides = [1, 1]} : vector<64x18xf32> to vector<64x1xf32>
    %13 = vector.extract_strided_slice %4 {offsets = [0, 1], sizes = [64, 1], strides = [1, 1]} : vector<64x18xf32> to vector<64x1xf32>
    %14 = vector.broadcast %12 : vector<64x1xf32> to vector<64x16xf32>
    %15 = arith.subf %8, %14 : vector<64x16xf32>
    %16 = math.absf %15 : vector<64x16xf32>
    %cst_7 = arith.constant 1.000000e+00 : f32
    %17 = vector.broadcast %cst_7 : f32 to vector<64x16xf32>
    %18 = arith.subf %17, %16 : vector<64x16xf32>
    %cst_8 = arith.constant 0.000000e+00 : f32
    %19 = vector.broadcast %cst_8 : f32 to vector<64x16xf32>
    %20 = arith.maximumf %18, %19 : vector<64x16xf32>
    %21 = arith.truncf %20 : vector<64x16xf32> to vector<64x16xbf16>
    %22 = vector.broadcast %13 : vector<64x1xf32> to vector<64x16xf32>
    %23 = arith.subf %10, %22 : vector<64x16xf32>
    %24 = math.absf %23 : vector<64x16xf32>
    %cst_9 = arith.constant 1.000000e+00 : f32
    %25 = vector.broadcast %cst_9 : f32 to vector<64x16xf32>
    %26 = arith.subf %25, %24 : vector<64x16xf32>
    %cst_10 = arith.constant 0.000000e+00 : f32
    %27 = vector.broadcast %cst_10 : f32 to vector<64x16xf32>
    %28 = arith.maximumf %26, %27 : vector<64x16xf32>
    %29 = arith.truncf %28 : vector<64x16xf32> to vector<64x16xbf16>
    %cst_11 = arith.constant dense<0.000000e+00> : vector<64x256xf32>
    %30 = tpu.matmul %21, %5, %cst_11 {dimension_numbers = #tpu.dot_dimension_numbers<[1], [0], [0], [1], [0, 0, 1, 1], [], []>} : vector<64x16xbf16>, vector<16x256xbf16>, vector<64x256xf32> -> vector<64x256xf32>
    %cst_12 = arith.constant dense<0.000000e+00> : vector<64x256xf32>
    %31 = tpu.matmul %29, %6, %cst_12 {dimension_numbers = #tpu.dot_dimension_numbers<[1], [0], [0], [1], [0, 0, 1, 1], [], []>} : vector<64x16xbf16>, vector<16x256xbf16>, vector<64x256xf32> -> vector<64x256xf32>
    %32 = arith.mulf %30, %31 : vector<64x256xf32>
    %33 = arith.truncf %32 : vector<64x256xf32> to vector<64x256xbf16>
    %c0_13 = arith.constant 0 : index
    %c0_14 = arith.constant 0 : index
    %c0_15 = arith.constant 0 : index
    %34 = vector.load %arg9[%c0_13, %c0_14, %c0_15] : memref<9x256x128xbf16, #tpu.memory_space<vmem>>, vector<1x256x128xbf16>
    %35 = vector.shape_cast %34 : vector<1x256x128xbf16> to vector<256x128xbf16>
    %cst_16 = arith.constant dense<0.000000e+00> : vector<64x128xf32>
    %36 = tpu.matmul %33, %35, %cst_16 {dimension_numbers = #tpu.dot_dimension_numbers<[1], [0], [0], [1], [0, 0, 1, 1], [], []>} : vector<64x256xbf16>, vector<256x128xbf16>, vector<64x128xf32> -> vector<64x128xf32>
    %37 = arith.addf %11, %36 : vector<64x128xf32>
    %38 = vector.extract_strided_slice %4 {offsets = [0, 2], sizes = [64, 1], strides = [1, 1]} : vector<64x18xf32> to vector<64x1xf32>
    %39 = vector.extract_strided_slice %4 {offsets = [0, 3], sizes = [64, 1], strides = [1, 1]} : vector<64x18xf32> to vector<64x1xf32>
    %40 = vector.broadcast %38 : vector<64x1xf32> to vector<64x16xf32>
    %41 = arith.subf %8, %40 : vector<64x16xf32>
    %42 = math.absf %41 : vector<64x16xf32>
    %cst_17 = arith.constant 1.000000e+00 : f32
    %43 = vector.broadcast %cst_17 : f32 to vector<64x16xf32>
    %44 = arith.subf %43, %42 : vector<64x16xf32>
    %cst_18 = arith.constant 0.000000e+00 : f32
    %45 = vector.broadcast %cst_18 : f32 to vector<64x16xf32>
    %46 = arith.maximumf %44, %45 : vector<64x16xf32>
    %47 = arith.truncf %46 : vector<64x16xf32> to vector<64x16xbf16>
    %48 = vector.broadcast %39 : vector<64x1xf32> to vector<64x16xf32>
    %49 = arith.subf %10, %48 : vector<64x16xf32>
    %50 = math.absf %49 : vector<64x16xf32>
    %cst_19 = arith.constant 1.000000e+00 : f32
    %51 = vector.broadcast %cst_19 : f32 to vector<64x16xf32>
    %52 = arith.subf %51, %50 : vector<64x16xf32>
    %cst_20 = arith.constant 0.000000e+00 : f32
    %53 = vector.broadcast %cst_20 : f32 to vector<64x16xf32>
    %54 = arith.maximumf %52, %53 : vector<64x16xf32>
    %55 = arith.truncf %54 : vector<64x16xf32> to vector<64x16xbf16>
    %cst_21 = arith.constant dense<0.000000e+00> : vector<64x256xf32>
    %56 = tpu.matmul %47, %5, %cst_21 {dimension_numbers = #tpu.dot_dimension_numbers<[1], [0], [0], [1], [0, 0, 1, 1], [], []>} : vector<64x16xbf16>, vector<16x256xbf16>, vector<64x256xf32> -> vector<64x256xf32>
    %cst_22 = arith.constant dense<0.000000e+00> : vector<64x256xf32>
    %57 = tpu.matmul %55, %6, %cst_22 {dimension_numbers = #tpu.dot_dimension_numbers<[1], [0], [0], [1], [0, 0, 1, 1], [], []>} : vector<64x16xbf16>, vector<16x256xbf16>, vector<64x256xf32> -> vector<64x256xf32>
    %58 = arith.mulf %56, %57 : vector<64x256xf32>
    %59 = arith.truncf %58 : vector<64x256xf32> to vector<64x256xbf16>
    %c1 = arith.constant 1 : index
    %c0_23 = arith.constant 0 : index
    %c0_24 = arith.constant 0 : index
    %60 = vector.load %arg9[%c1, %c0_23, %c0_24] : memref<9x256x128xbf16, #tpu.memory_space<vmem>>, vector<1x256x128xbf16>
    %61 = vector.shape_cast %60 : vector<1x256x128xbf16> to vector<256x128xbf16>
    %cst_25 = arith.constant dense<0.000000e+00> : vector<64x128xf32>
    %62 = tpu.matmul %59, %61, %cst_25 {dimension_numbers = #tpu.dot_dimension_numbers<[1], [0], [0], [1], [0, 0, 1, 1], [], []>} : vector<64x256xbf16>, vector<256x128xbf16>, vector<64x128xf32> -> vector<64x128xf32>
    %63 = arith.addf %37, %62 : vector<64x128xf32>
    %64 = vector.extract_strided_slice %4 {offsets = [0, 4], sizes = [64, 1], strides = [1, 1]} : vector<64x18xf32> to vector<64x1xf32>
    %65 = vector.extract_strided_slice %4 {offsets = [0, 5], sizes = [64, 1], strides = [1, 1]} : vector<64x18xf32> to vector<64x1xf32>
    %66 = vector.broadcast %64 : vector<64x1xf32> to vector<64x16xf32>
    %67 = arith.subf %8, %66 : vector<64x16xf32>
    %68 = math.absf %67 : vector<64x16xf32>
    %cst_26 = arith.constant 1.000000e+00 : f32
    %69 = vector.broadcast %cst_26 : f32 to vector<64x16xf32>
    %70 = arith.subf %69, %68 : vector<64x16xf32>
    %cst_27 = arith.constant 0.000000e+00 : f32
    %71 = vector.broadcast %cst_27 : f32 to vector<64x16xf32>
    %72 = arith.maximumf %70, %71 : vector<64x16xf32>
    %73 = arith.truncf %72 : vector<64x16xf32> to vector<64x16xbf16>
    %74 = vector.broadcast %65 : vector<64x1xf32> to vector<64x16xf32>
    %75 = arith.subf %10, %74 : vector<64x16xf32>
    %76 = math.absf %75 : vector<64x16xf32>
    %cst_28 = arith.constant 1.000000e+00 : f32
    %77 = vector.broadcast %cst_28 : f32 to vector<64x16xf32>
    %78 = arith.subf %77, %76 : vector<64x16xf32>
    %cst_29 = arith.constant 0.000000e+00 : f32
    %79 = vector.broadcast %cst_29 : f32 to vector<64x16xf32>
    %80 = arith.maximumf %78, %79 : vector<64x16xf32>
    %81 = arith.truncf %80 : vector<64x16xf32> to vector<64x16xbf16>
    %cst_30 = arith.constant dense<0.000000e+00> : vector<64x256xf32>
    %82 = tpu.matmul %73, %5, %cst_30 {dimension_numbers = #tpu.dot_dimension_numbers<[1], [0], [0], [1], [0, 0, 1, 1], [], []>} : vector<64x16xbf16>, vector<16x256xbf16>, vector<64x256xf32> -> vector<64x256xf32>
    %cst_31 = arith.constant dense<0.000000e+00> : vector<64x256xf32>
    %83 = tpu.matmul %81, %6, %cst_31 {dimension_numbers = #tpu.dot_dimension_numbers<[1], [0], [0], [1], [0, 0, 1, 1], [], []>} : vector<64x16xbf16>, vector<16x256xbf16>, vector<64x256xf32> -> vector<64x256xf32>
    %84 = arith.mulf %82, %83 : vector<64x256xf32>
    %85 = arith.truncf %84 : vector<64x256xf32> to vector<64x256xbf16>
    %c2 = arith.constant 2 : index
    %c0_32 = arith.constant 0 : index
    %c0_33 = arith.constant 0 : index
    %86 = vector.load %arg9[%c2, %c0_32, %c0_33] : memref<9x256x128xbf16, #tpu.memory_space<vmem>>, vector<1x256x128xbf16>
    %87 = vector.shape_cast %86 : vector<1x256x128xbf16> to vector<256x128xbf16>
    %cst_34 = arith.constant dense<0.000000e+00> : vector<64x128xf32>
    %88 = tpu.matmul %85, %87, %cst_34 {dimension_numbers = #tpu.dot_dimension_numbers<[1], [0], [0], [1], [0, 0, 1, 1], [], []>} : vector<64x256xbf16>, vector<256x128xbf16>, vector<64x128xf32> -> vector<64x128xf32>
    %89 = arith.addf %63, %88 : vector<64x128xf32>
    %90 = vector.extract_strided_slice %4 {offsets = [0, 6], sizes = [64, 1], strides = [1, 1]} : vector<64x18xf32> to vector<64x1xf32>
    %91 = vector.extract_strided_slice %4 {offsets = [0, 7], sizes = [64, 1], strides = [1, 1]} : vector<64x18xf32> to vector<64x1xf32>
    %92 = vector.broadcast %90 : vector<64x1xf32> to vector<64x16xf32>
    %93 = arith.subf %8, %92 : vector<64x16xf32>
    %94 = math.absf %93 : vector<64x16xf32>
    %cst_35 = arith.constant 1.000000e+00 : f32
    %95 = vector.broadcast %cst_35 : f32 to vector<64x16xf32>
    %96 = arith.subf %95, %94 : vector<64x16xf32>
    %cst_36 = arith.constant 0.000000e+00 : f32
    %97 = vector.broadcast %cst_36 : f32 to vector<64x16xf32>
    %98 = arith.maximumf %96, %97 : vector<64x16xf32>
    %99 = arith.truncf %98 : vector<64x16xf32> to vector<64x16xbf16>
    %100 = vector.broadcast %91 : vector<64x1xf32> to vector<64x16xf32>
    %101 = arith.subf %10, %100 : vector<64x16xf32>
    %102 = math.absf %101 : vector<64x16xf32>
    %cst_37 = arith.constant 1.000000e+00 : f32
    %103 = vector.broadcast %cst_37 : f32 to vector<64x16xf32>
    %104 = arith.subf %103, %102 : vector<64x16xf32>
    %cst_38 = arith.constant 0.000000e+00 : f32
    %105 = vector.broadcast %cst_38 : f32 to vector<64x16xf32>
    %106 = arith.maximumf %104, %105 : vector<64x16xf32>
    %107 = arith.truncf %106 : vector<64x16xf32> to vector<64x16xbf16>
    %cst_39 = arith.constant dense<0.000000e+00> : vector<64x256xf32>
    %108 = tpu.matmul %99, %5, %cst_39 {dimension_numbers = #tpu.dot_dimension_numbers<[1], [0], [0], [1], [0, 0, 1, 1], [], []>} : vector<64x16xbf16>, vector<16x256xbf16>, vector<64x256xf32> -> vector<64x256xf32>
    %cst_40 = arith.constant dense<0.000000e+00> : vector<64x256xf32>
    %109 = tpu.matmul %107, %6, %cst_40 {dimension_numbers = #tpu.dot_dimension_numbers<[1], [0], [0], [1], [0, 0, 1, 1], [], []>} : vector<64x16xbf16>, vector<16x256xbf16>, vector<64x256xf32> -> vector<64x256xf32>
    %110 = arith.mulf %108, %109 : vector<64x256xf32>
    %111 = arith.truncf %110 : vector<64x256xf32> to vector<64x256xbf16>
    %c3 = arith.constant 3 : index
    %c0_41 = arith.constant 0 : index
    %c0_42 = arith.constant 0 : index
    %112 = vector.load %arg9[%c3, %c0_41, %c0_42] : memref<9x256x128xbf16, #tpu.memory_space<vmem>>, vector<1x256x128xbf16>
    %113 = vector.shape_cast %112 : vector<1x256x128xbf16> to vector<256x128xbf16>
    %cst_43 = arith.constant dense<0.000000e+00> : vector<64x128xf32>
    %114 = tpu.matmul %111, %113, %cst_43 {dimension_numbers = #tpu.dot_dimension_numbers<[1], [0], [0], [1], [0, 0, 1, 1], [], []>} : vector<64x256xbf16>, vector<256x128xbf16>, vector<64x128xf32> -> vector<64x128xf32>
    %115 = arith.addf %89, %114 : vector<64x128xf32>
    %116 = vector.extract_strided_slice %4 {offsets = [0, 8], sizes = [64, 1], strides = [1, 1]} : vector<64x18xf32> to vector<64x1xf32>
    %117 = vector.extract_strided_slice %4 {offsets = [0, 9], sizes = [64, 1], strides = [1, 1]} : vector<64x18xf32> to vector<64x1xf32>
    %118 = vector.broadcast %116 : vector<64x1xf32> to vector<64x16xf32>
    %119 = arith.subf %8, %118 : vector<64x16xf32>
    %120 = math.absf %119 : vector<64x16xf32>
    %cst_44 = arith.constant 1.000000e+00 : f32
    %121 = vector.broadcast %cst_44 : f32 to vector<64x16xf32>
    %122 = arith.subf %121, %120 : vector<64x16xf32>
    %cst_45 = arith.constant 0.000000e+00 : f32
    %123 = vector.broadcast %cst_45 : f32 to vector<64x16xf32>
    %124 = arith.maximumf %122, %123 : vector<64x16xf32>
    %125 = arith.truncf %124 : vector<64x16xf32> to vector<64x16xbf16>
    %126 = vector.broadcast %117 : vector<64x1xf32> to vector<64x16xf32>
    %127 = arith.subf %10, %126 : vector<64x16xf32>
    %128 = math.absf %127 : vector<64x16xf32>
    %cst_46 = arith.constant 1.000000e+00 : f32
    %129 = vector.broadcast %cst_46 : f32 to vector<64x16xf32>
    %130 = arith.subf %129, %128 : vector<64x16xf32>
    %cst_47 = arith.constant 0.000000e+00 : f32
    %131 = vector.broadcast %cst_47 : f32 to vector<64x16xf32>
    %132 = arith.maximumf %130, %131 : vector<64x16xf32>
    %133 = arith.truncf %132 : vector<64x16xf32> to vector<64x16xbf16>
    %cst_48 = arith.constant dense<0.000000e+00> : vector<64x256xf32>
    %134 = tpu.matmul %125, %5, %cst_48 {dimension_numbers = #tpu.dot_dimension_numbers<[1], [0], [0], [1], [0, 0, 1, 1], [], []>} : vector<64x16xbf16>, vector<16x256xbf16>, vector<64x256xf32> -> vector<64x256xf32>
    %cst_49 = arith.constant dense<0.000000e+00> : vector<64x256xf32>
    %135 = tpu.matmul %133, %6, %cst_49 {dimension_numbers = #tpu.dot_dimension_numbers<[1], [0], [0], [1], [0, 0, 1, 1], [], []>} : vector<64x16xbf16>, vector<16x256xbf16>, vector<64x256xf32> -> vector<64x256xf32>
    %136 = arith.mulf %134, %135 : vector<64x256xf32>
    %137 = arith.truncf %136 : vector<64x256xf32> to vector<64x256xbf16>
    %c4 = arith.constant 4 : index
    %c0_50 = arith.constant 0 : index
    %c0_51 = arith.constant 0 : index
    %138 = vector.load %arg9[%c4, %c0_50, %c0_51] : memref<9x256x128xbf16, #tpu.memory_space<vmem>>, vector<1x256x128xbf16>
    %139 = vector.shape_cast %138 : vector<1x256x128xbf16> to vector<256x128xbf16>
    %cst_52 = arith.constant dense<0.000000e+00> : vector<64x128xf32>
    %140 = tpu.matmul %137, %139, %cst_52 {dimension_numbers = #tpu.dot_dimension_numbers<[1], [0], [0], [1], [0, 0, 1, 1], [], []>} : vector<64x256xbf16>, vector<256x128xbf16>, vector<64x128xf32> -> vector<64x128xf32>
    %141 = arith.addf %115, %140 : vector<64x128xf32>
    %142 = vector.extract_strided_slice %4 {offsets = [0, 10], sizes = [64, 1], strides = [1, 1]} : vector<64x18xf32> to vector<64x1xf32>
    %143 = vector.extract_strided_slice %4 {offsets = [0, 11], sizes = [64, 1], strides = [1, 1]} : vector<64x18xf32> to vector<64x1xf32>
    %144 = vector.broadcast %142 : vector<64x1xf32> to vector<64x16xf32>
    %145 = arith.subf %8, %144 : vector<64x16xf32>
    %146 = math.absf %145 : vector<64x16xf32>
    %cst_53 = arith.constant 1.000000e+00 : f32
    %147 = vector.broadcast %cst_53 : f32 to vector<64x16xf32>
    %148 = arith.subf %147, %146 : vector<64x16xf32>
    %cst_54 = arith.constant 0.000000e+00 : f32
    %149 = vector.broadcast %cst_54 : f32 to vector<64x16xf32>
    %150 = arith.maximumf %148, %149 : vector<64x16xf32>
    %151 = arith.truncf %150 : vector<64x16xf32> to vector<64x16xbf16>
    %152 = vector.broadcast %143 : vector<64x1xf32> to vector<64x16xf32>
    %153 = arith.subf %10, %152 : vector<64x16xf32>
    %154 = math.absf %153 : vector<64x16xf32>
    %cst_55 = arith.constant 1.000000e+00 : f32
    %155 = vector.broadcast %cst_55 : f32 to vector<64x16xf32>
    %156 = arith.subf %155, %154 : vector<64x16xf32>
    %cst_56 = arith.constant 0.000000e+00 : f32
    %157 = vector.broadcast %cst_56 : f32 to vector<64x16xf32>
    %158 = arith.maximumf %156, %157 : vector<64x16xf32>
    %159 = arith.truncf %158 : vector<64x16xf32> to vector<64x16xbf16>
    %cst_57 = arith.constant dense<0.000000e+00> : vector<64x256xf32>
    %160 = tpu.matmul %151, %5, %cst_57 {dimension_numbers = #tpu.dot_dimension_numbers<[1], [0], [0], [1], [0, 0, 1, 1], [], []>} : vector<64x16xbf16>, vector<16x256xbf16>, vector<64x256xf32> -> vector<64x256xf32>
    %cst_58 = arith.constant dense<0.000000e+00> : vector<64x256xf32>
    %161 = tpu.matmul %159, %6, %cst_58 {dimension_numbers = #tpu.dot_dimension_numbers<[1], [0], [0], [1], [0, 0, 1, 1], [], []>} : vector<64x16xbf16>, vector<16x256xbf16>, vector<64x256xf32> -> vector<64x256xf32>
    %162 = arith.mulf %160, %161 : vector<64x256xf32>
    %163 = arith.truncf %162 : vector<64x256xf32> to vector<64x256xbf16>
    %c5 = arith.constant 5 : index
    %c0_59 = arith.constant 0 : index
    %c0_60 = arith.constant 0 : index
    %164 = vector.load %arg9[%c5, %c0_59, %c0_60] : memref<9x256x128xbf16, #tpu.memory_space<vmem>>, vector<1x256x128xbf16>
    %165 = vector.shape_cast %164 : vector<1x256x128xbf16> to vector<256x128xbf16>
    %cst_61 = arith.constant dense<0.000000e+00> : vector<64x128xf32>
    %166 = tpu.matmul %163, %165, %cst_61 {dimension_numbers = #tpu.dot_dimension_numbers<[1], [0], [0], [1], [0, 0, 1, 1], [], []>} : vector<64x256xbf16>, vector<256x128xbf16>, vector<64x128xf32> -> vector<64x128xf32>
    %167 = arith.addf %141, %166 : vector<64x128xf32>
    %168 = vector.extract_strided_slice %4 {offsets = [0, 12], sizes = [64, 1], strides = [1, 1]} : vector<64x18xf32> to vector<64x1xf32>
    %169 = vector.extract_strided_slice %4 {offsets = [0, 13], sizes = [64, 1], strides = [1, 1]} : vector<64x18xf32> to vector<64x1xf32>
    %170 = vector.broadcast %168 : vector<64x1xf32> to vector<64x16xf32>
    %171 = arith.subf %8, %170 : vector<64x16xf32>
    %172 = math.absf %171 : vector<64x16xf32>
    %cst_62 = arith.constant 1.000000e+00 : f32
    %173 = vector.broadcast %cst_62 : f32 to vector<64x16xf32>
    %174 = arith.subf %173, %172 : vector<64x16xf32>
    %cst_63 = arith.constant 0.000000e+00 : f32
    %175 = vector.broadcast %cst_63 : f32 to vector<64x16xf32>
    %176 = arith.maximumf %174, %175 : vector<64x16xf32>
    %177 = arith.truncf %176 : vector<64x16xf32> to vector<64x16xbf16>
    %178 = vector.broadcast %169 : vector<64x1xf32> to vector<64x16xf32>
    %179 = arith.subf %10, %178 : vector<64x16xf32>
    %180 = math.absf %179 : vector<64x16xf32>
    %cst_64 = arith.constant 1.000000e+00 : f32
    %181 = vector.broadcast %cst_64 : f32 to vector<64x16xf32>
    %182 = arith.subf %181, %180 : vector<64x16xf32>
    %cst_65 = arith.constant 0.000000e+00 : f32
    %183 = vector.broadcast %cst_65 : f32 to vector<64x16xf32>
    %184 = arith.maximumf %182, %183 : vector<64x16xf32>
    %185 = arith.truncf %184 : vector<64x16xf32> to vector<64x16xbf16>
    %cst_66 = arith.constant dense<0.000000e+00> : vector<64x256xf32>
    %186 = tpu.matmul %177, %5, %cst_66 {dimension_numbers = #tpu.dot_dimension_numbers<[1], [0], [0], [1], [0, 0, 1, 1], [], []>} : vector<64x16xbf16>, vector<16x256xbf16>, vector<64x256xf32> -> vector<64x256xf32>
    %cst_67 = arith.constant dense<0.000000e+00> : vector<64x256xf32>
    %187 = tpu.matmul %185, %6, %cst_67 {dimension_numbers = #tpu.dot_dimension_numbers<[1], [0], [0], [1], [0, 0, 1, 1], [], []>} : vector<64x16xbf16>, vector<16x256xbf16>, vector<64x256xf32> -> vector<64x256xf32>
    %188 = arith.mulf %186, %187 : vector<64x256xf32>
    %189 = arith.truncf %188 : vector<64x256xf32> to vector<64x256xbf16>
    %c6 = arith.constant 6 : index
    %c0_68 = arith.constant 0 : index
    %c0_69 = arith.constant 0 : index
    %190 = vector.load %arg9[%c6, %c0_68, %c0_69] : memref<9x256x128xbf16, #tpu.memory_space<vmem>>, vector<1x256x128xbf16>
    %191 = vector.shape_cast %190 : vector<1x256x128xbf16> to vector<256x128xbf16>
    %cst_70 = arith.constant dense<0.000000e+00> : vector<64x128xf32>
    %192 = tpu.matmul %189, %191, %cst_70 {dimension_numbers = #tpu.dot_dimension_numbers<[1], [0], [0], [1], [0, 0, 1, 1], [], []>} : vector<64x256xbf16>, vector<256x128xbf16>, vector<64x128xf32> -> vector<64x128xf32>
    %193 = arith.addf %167, %192 : vector<64x128xf32>
    %194 = vector.extract_strided_slice %4 {offsets = [0, 14], sizes = [64, 1], strides = [1, 1]} : vector<64x18xf32> to vector<64x1xf32>
    %195 = vector.extract_strided_slice %4 {offsets = [0, 15], sizes = [64, 1], strides = [1, 1]} : vector<64x18xf32> to vector<64x1xf32>
    %196 = vector.broadcast %194 : vector<64x1xf32> to vector<64x16xf32>
    %197 = arith.subf %8, %196 : vector<64x16xf32>
    %198 = math.absf %197 : vector<64x16xf32>
    %cst_71 = arith.constant 1.000000e+00 : f32
    %199 = vector.broadcast %cst_71 : f32 to vector<64x16xf32>
    %200 = arith.subf %199, %198 : vector<64x16xf32>
    %cst_72 = arith.constant 0.000000e+00 : f32
    %201 = vector.broadcast %cst_72 : f32 to vector<64x16xf32>
    %202 = arith.maximumf %200, %201 : vector<64x16xf32>
    %203 = arith.truncf %202 : vector<64x16xf32> to vector<64x16xbf16>
    %204 = vector.broadcast %195 : vector<64x1xf32> to vector<64x16xf32>
    %205 = arith.subf %10, %204 : vector<64x16xf32>
    %206 = math.absf %205 : vector<64x16xf32>
    %cst_73 = arith.constant 1.000000e+00 : f32
    %207 = vector.broadcast %cst_73 : f32 to vector<64x16xf32>
    %208 = arith.subf %207, %206 : vector<64x16xf32>
    %cst_74 = arith.constant 0.000000e+00 : f32
    %209 = vector.broadcast %cst_74 : f32 to vector<64x16xf32>
    %210 = arith.maximumf %208, %209 : vector<64x16xf32>
    %211 = arith.truncf %210 : vector<64x16xf32> to vector<64x16xbf16>
    %cst_75 = arith.constant dense<0.000000e+00> : vector<64x256xf32>
    %212 = tpu.matmul %203, %5, %cst_75 {dimension_numbers = #tpu.dot_dimension_numbers<[1], [0], [0], [1], [0, 0, 1, 1], [], []>} : vector<64x16xbf16>, vector<16x256xbf16>, vector<64x256xf32> -> vector<64x256xf32>
    %cst_76 = arith.constant dense<0.000000e+00> : vector<64x256xf32>
    %213 = tpu.matmul %211, %6, %cst_76 {dimension_numbers = #tpu.dot_dimension_numbers<[1], [0], [0], [1], [0, 0, 1, 1], [], []>} : vector<64x16xbf16>, vector<16x256xbf16>, vector<64x256xf32> -> vector<64x256xf32>
    %214 = arith.mulf %212, %213 : vector<64x256xf32>
    %215 = arith.truncf %214 : vector<64x256xf32> to vector<64x256xbf16>
    %c7 = arith.constant 7 : index
    %c0_77 = arith.constant 0 : index
    %c0_78 = arith.constant 0 : index
    %216 = vector.load %arg9[%c7, %c0_77, %c0_78] : memref<9x256x128xbf16, #tpu.memory_space<vmem>>, vector<1x256x128xbf16>
    %217 = vector.shape_cast %216 : vector<1x256x128xbf16> to vector<256x128xbf16>
    %cst_79 = arith.constant dense<0.000000e+00> : vector<64x128xf32>
    %218 = tpu.matmul %215, %217, %cst_79 {dimension_numbers = #tpu.dot_dimension_numbers<[1], [0], [0], [1], [0, 0, 1, 1], [], []>} : vector<64x256xbf16>, vector<256x128xbf16>, vector<64x128xf32> -> vector<64x128xf32>
    %219 = arith.addf %193, %218 : vector<64x128xf32>
    %220 = vector.extract_strided_slice %4 {offsets = [0, 16], sizes = [64, 1], strides = [1, 1]} : vector<64x18xf32> to vector<64x1xf32>
    %221 = vector.extract_strided_slice %4 {offsets = [0, 17], sizes = [64, 1], strides = [1, 1]} : vector<64x18xf32> to vector<64x1xf32>
    %222 = vector.broadcast %220 : vector<64x1xf32> to vector<64x16xf32>
    %223 = arith.subf %8, %222 : vector<64x16xf32>
    %224 = math.absf %223 : vector<64x16xf32>
    %cst_80 = arith.constant 1.000000e+00 : f32
    %225 = vector.broadcast %cst_80 : f32 to vector<64x16xf32>
    %226 = arith.subf %225, %224 : vector<64x16xf32>
    %cst_81 = arith.constant 0.000000e+00 : f32
    %227 = vector.broadcast %cst_81 : f32 to vector<64x16xf32>
    %228 = arith.maximumf %226, %227 : vector<64x16xf32>
    %229 = arith.truncf %228 : vector<64x16xf32> to vector<64x16xbf16>
    %230 = vector.broadcast %221 : vector<64x1xf32> to vector<64x16xf32>
    %231 = arith.subf %10, %230 : vector<64x16xf32>
    %232 = math.absf %231 : vector<64x16xf32>
    %cst_82 = arith.constant 1.000000e+00 : f32
    %233 = vector.broadcast %cst_82 : f32 to vector<64x16xf32>
    %234 = arith.subf %233, %232 : vector<64x16xf32>
    %cst_83 = arith.constant 0.000000e+00 : f32
    %235 = vector.broadcast %cst_83 : f32 to vector<64x16xf32>
    %236 = arith.maximumf %234, %235 : vector<64x16xf32>
    %237 = arith.truncf %236 : vector<64x16xf32> to vector<64x16xbf16>
    %cst_84 = arith.constant dense<0.000000e+00> : vector<64x256xf32>
    %238 = tpu.matmul %229, %5, %cst_84 {dimension_numbers = #tpu.dot_dimension_numbers<[1], [0], [0], [1], [0, 0, 1, 1], [], []>} : vector<64x16xbf16>, vector<16x256xbf16>, vector<64x256xf32> -> vector<64x256xf32>
    %cst_85 = arith.constant dense<0.000000e+00> : vector<64x256xf32>
    %239 = tpu.matmul %237, %6, %cst_85 {dimension_numbers = #tpu.dot_dimension_numbers<[1], [0], [0], [1], [0, 0, 1, 1], [], []>} : vector<64x16xbf16>, vector<16x256xbf16>, vector<64x256xf32> -> vector<64x256xf32>
    %240 = arith.mulf %238, %239 : vector<64x256xf32>
    %241 = arith.truncf %240 : vector<64x256xf32> to vector<64x256xbf16>
    %c8 = arith.constant 8 : index
    %c0_86 = arith.constant 0 : index
    %c0_87 = arith.constant 0 : index
    %242 = vector.load %arg9[%c8, %c0_86, %c0_87] : memref<9x256x128xbf16, #tpu.memory_space<vmem>>, vector<1x256x128xbf16>
    %243 = vector.shape_cast %242 : vector<1x256x128xbf16> to vector<256x128xbf16>
    %cst_88 = arith.constant dense<0.000000e+00> : vector<64x128xf32>
    %244 = tpu.matmul %241, %243, %cst_88 {dimension_numbers = #tpu.dot_dimension_numbers<[1], [0], [0], [1], [0, 0, 1, 1], [], []>} : vector<64x256xbf16>, vector<256x128xbf16>, vector<64x128xf32> -> vector<64x128xf32>
    %245 = arith.addf %219, %244 : vector<64x128xf32>
    %246 = arith.truncf %245 : vector<64x128xf32> to vector<64x128xbf16>
    %c0_89 = arith.constant 0 : index
    %c0_90 = arith.constant 0 : index
    %c0_91 = arith.constant 0 : index
    %247 = vector.load %arg7[%c0_89, %c0_90, %c0_91] : memref<1x64x128xbf16, #tpu.memory_space<vmem>>, vector<1x64x128xbf16>
    %248 = vector.shape_cast %247 : vector<1x64x128xbf16> to vector<64x128xbf16>
    %249 = vector.shape_cast %246 : vector<64x128xbf16> to vector<1x64x128xbf16>
    tpu.vector_store %arg7[%c0_89, %c0_90, %c0_91], %249 {strides = array<i32>} : memref<1x64x128xbf16, #tpu.memory_space<vmem>>, vector<1x64x128xbf16>,
    %cst_92 = arith.constant dense<0.000000e+00> : vector<128xf32>
    %250 = vector.multi_reduction <add>, %245, %cst_92 [0] : vector<64x128xf32> to vector<128xf32>
    %251 = vector.shape_cast %250 : vector<128xf32> to vector<1x128xf32>
    %252 = arith.mulf %245, %245 : vector<64x128xf32>
    %cst_93 = arith.constant dense<0.000000e+00> : vector<128xf32>
    %253 = vector.multi_reduction <add>, %252, %cst_93 [0] : vector<64x128xf32> to vector<128xf32>
    %254 = vector.shape_cast %253 : vector<128xf32> to vector<1x128xf32>
    %255 = tpu.concatenate %251, %254 in 0 : vector<1x128xf32>, vector<1x128xf32> -> vector<2x128xf32>
    %256 = vector.shape_cast %255 : vector<2x128xf32> to vector<1x2x128xf32>
    %257 = arith.extui %0 : i1 to i32
    %c0_i32_94 = arith.constant 0 : i32
    %258 = arith.cmpi ne, %257, %c0_i32_94 : i32
    scf.if %258 {
      %c0_96 = arith.constant 0 : index
      %c0_97 = arith.constant 0 : index
      %c0_98 = arith.constant 0 : index
      %262 = vector.load %arg8[%c0_96, %c0_97, %c0_98] : memref<1x2x128xf32, #tpu.memory_space<vmem>>, vector<1x2x128xf32>
      tpu.vector_store %arg8[%c0_96, %c0_97, %c0_98], %256 {strides = array<i32>} : memref<1x2x128xf32, #tpu.memory_space<vmem>>, vector<1x2x128xf32>,
    } else {
    }
    %true = arith.constant true
    %259 = arith.xori %0, %true : i1
    %260 = arith.extui %259 : i1 to i32
    %c0_i32_95 = arith.constant 0 : i32
    %261 = arith.cmpi ne, %260, %c0_i32_95 : i32
    scf.if %261 {
      %c0_96 = arith.constant 0 : index
      %c0_97 = arith.constant 0 : index
      %c0_98 = arith.constant 0 : index
      %262 = vector.load %arg8[%c0_96, %c0_97, %c0_98] : memref<1x2x128xf32, #tpu.memory_space<vmem>>, vector<1x2x128xf32>
      %263 = arith.addf %262, %256 : vector<1x2x128xf32>
      %c0_99 = arith.constant 0 : index
      %c0_100 = arith.constant 0 : index
      %c0_101 = arith.constant 0 : index
      %264 = vector.load %arg8[%c0_99, %c0_100, %c0_101] : memref<1x2x128xf32, #tpu.memory_space<vmem>>, vector<1x2x128xf32>
      tpu.vector_store %arg8[%c0_99, %c0_100, %c0_101], %263 {strides = array<i32>} : memref<1x2x128xf32, #tpu.memory_space<vmem>>, vector<1x2x128xf32>,
    } else {
    }
    return
  }
  func.func @transform_0(%arg0: i32, %arg1: i32) -> (i32, i32, i32) {
    %c0_i32 = arith.constant 0 : i32
    %c0_i32_0 = arith.constant 0 : i32
    %c0_i32_1 = arith.constant 0 : i32
    return %arg0, %c0_i32, %c0_i32_0 : i32, i32, i32
  }
  func.func @transform_1(%arg0: i32, %arg1: i32) -> (i32, i32, i32) {
    %c0_i32 = arith.constant 0 : i32
    %c0_i32_0 = arith.constant 0 : i32
    return %arg0, %arg1, %c0_i32 : i32, i32, i32
  }
  func.func @transform_2(%arg0: i32, %arg1: i32) -> (i32, i32, i32) {
    %c0_i32 = arith.constant 0 : i32
    %c0_i32_0 = arith.constant 0 : i32
    %c0_i32_1 = arith.constant 0 : i32
    %c0_i32_2 = arith.constant 0 : i32
    return %c0_i32, %c0_i32_0, %c0_i32_1 : i32, i32, i32
  }
  func.func @transform_3(%arg0: i32, %arg1: i32) -> (i32, i32) {
    %c0_i32 = arith.constant 0 : i32
    %c0_i32_0 = arith.constant 0 : i32
    %c0_i32_1 = arith.constant 0 : i32
    return %c0_i32, %c0_i32_0 : i32, i32
  }
  func.func @transform_4(%arg0: i32, %arg1: i32) -> (i32, i32) {
    %c0_i32 = arith.constant 0 : i32
    %c0_i32_0 = arith.constant 0 : i32
    %c0_i32_1 = arith.constant 0 : i32
    return %c0_i32, %c0_i32_0 : i32, i32
  }
  func.func @transform_5(%arg0: i32, %arg1: i32) -> (i32, i32, i32) {
    %c0_i32 = arith.constant 0 : i32
    %c0_i32_0 = arith.constant 0 : i32
    return %arg0, %arg1, %c0_i32 : i32, i32, i32
  }
  func.func @transform_6(%arg0: i32, %arg1: i32) -> (i32, i32, i32) {
    %c0_i32 = arith.constant 0 : i32
    %c0_i32_0 = arith.constant 0 : i32
    %c0_i32_1 = arith.constant 0 : i32
    return %arg0, %c0_i32, %c0_i32_0 : i32, i32, i32
  }
}

module attributes {stable_mosaic.version = 11 : i64} {
  func.func @_bn_gelu_kernel(%arg0: i32, %arg1: memref<128x128xbf16, #tpu.memory_space<vmem>>, %arg2: memref<1x128xf32, #tpu.memory_space<vmem>>, %arg3: memref<1x128xf32, #tpu.memory_space<vmem>>, %arg4: memref<128x128xf32, #tpu.memory_space<vmem>>) attributes {dimension_semantics = [#tpu.dimension_semantics<parallel>], iteration_bounds = array<i64: 1>, scalar_prefetch = 0 : i64, scratch_operands = 0 : i64, tpu.core_type = #tpu.core_type<tc>, window_params = [{transform_indices = @transform_0, window_bounds = array<i64: 128, 128>}, {pipeline_mode = #tpu.pipeline_mode<synchronous>, transform_indices = @transform_1, window_bounds = array<i64: 1, 128>}, {pipeline_mode = #tpu.pipeline_mode<synchronous>, transform_indices = @transform_2, window_bounds = array<i64: 1, 128>}, {transform_indices = @transform_3, window_bounds = array<i64: 128, 128>}]} {
    %c0 = arith.constant 0 : index
    %c0_0 = arith.constant 0 : index
    %0 = vector.load %arg1[%c0, %c0_0] : memref<128x128xbf16, #tpu.memory_space<vmem>>, vector<128x128xbf16>
    %1 = arith.extf %0 : vector<128x128xbf16> to vector<128x128xf32>
    %c0_1 = arith.constant 0 : index
    %c0_2 = arith.constant 0 : index
    %2 = vector.load %arg2[%c0_1, %c0_2] : memref<1x128xf32, #tpu.memory_space<vmem>>, vector<1x128xf32>
    %3 = vector.broadcast %2 : vector<1x128xf32> to vector<128x128xf32>
    %4 = arith.mulf %1, %3 : vector<128x128xf32>
    %c0_3 = arith.constant 0 : index
    %c0_4 = arith.constant 0 : index
    %5 = vector.load %arg3[%c0_3, %c0_4] : memref<1x128xf32, #tpu.memory_space<vmem>>, vector<1x128xf32>
    %6 = vector.broadcast %5 : vector<1x128xf32> to vector<128x128xf32>
    %7 = arith.addf %4, %6 : vector<128x128xf32>
    %cst = arith.constant 5.000000e-01 : f32
    %8 = vector.broadcast %cst : f32 to vector<128x128xf32>
    %9 = arith.mulf %8, %7 : vector<128x128xf32>
    %cst_5 = arith.constant 0.707106769 : f32
    %10 = vector.broadcast %cst_5 : f32 to vector<128x128xf32>
    %11 = arith.mulf %7, %10 : vector<128x128xf32>
    %cst_6 = arith.constant -4.000000e+00 : f32
    %cst_7 = arith.constant 4.000000e+00 : f32
    %12 = vector.broadcast %cst_6 : f32 to vector<128x128xf32>
    %13 = arith.maximumf %12, %11 : vector<128x128xf32>
    %14 = vector.broadcast %cst_7 : f32 to vector<128x128xf32>
    %15 = arith.minimumf %14, %13 : vector<128x128xf32>
    %16 = arith.mulf %15, %15 : vector<128x128xf32>
    %cst_8 = arith.constant -2.72614237E-10 : f32
    %17 = vector.broadcast %cst_8 : f32 to vector<128x128xf32>
    %18 = arith.mulf %17, %16 : vector<128x128xf32>
    %cst_9 = arith.constant 2.77068146E-8 : f32
    %19 = vector.broadcast %cst_9 : f32 to vector<128x128xf32>
    %20 = arith.addf %18, %19 : vector<128x128xf32>
    %21 = arith.mulf %20, %16 : vector<128x128xf32>
    %cst_10 = arith.constant -2.10102394E-6 : f32
    %22 = vector.broadcast %cst_10 : f32 to vector<128x128xf32>
    %23 = arith.addf %21, %22 : vector<128x128xf32>
    %24 = arith.mulf %23, %16 : vector<128x128xf32>
    %cst_11 = arith.constant -5.69250624E-5 : f32
    %25 = vector.broadcast %cst_11 : f32 to vector<128x128xf32>
    %26 = arith.addf %24, %25 : vector<128x128xf32>
    %27 = arith.mulf %26, %16 : vector<128x128xf32>
    %cst_12 = arith.constant -7.34990637E-4 : f32
    %28 = vector.broadcast %cst_12 : f32 to vector<128x128xf32>
    %29 = arith.addf %27, %28 : vector<128x128xf32>
    %30 = arith.mulf %29, %16 : vector<128x128xf32>
    %cst_13 = arith.constant -2.954600e-03 : f32
    %31 = vector.broadcast %cst_13 : f32 to vector<128x128xf32>
    %32 = arith.addf %30, %31 : vector<128x128xf32>
    %33 = arith.mulf %32, %16 : vector<128x128xf32>
    %cst_14 = arith.constant -0.0160960332 : f32
    %34 = vector.broadcast %cst_14 : f32 to vector<128x128xf32>
    %35 = arith.addf %33, %34 : vector<128x128xf32>
    %cst_15 = arith.constant -1.45660715E-5 : f32
    %36 = vector.broadcast %cst_15 : f32 to vector<128x128xf32>
    %37 = arith.mulf %36, %16 : vector<128x128xf32>
    %cst_16 = arith.constant -2.13374049E-4 : f32
    %38 = vector.broadcast %cst_16 : f32 to vector<128x128xf32>
    %39 = arith.addf %37, %38 : vector<128x128xf32>
    %40 = arith.mulf %39, %16 : vector<128x128xf32>
    %cst_17 = arith.constant -0.00168282702 : f32
    %41 = vector.broadcast %cst_17 : f32 to vector<128x128xf32>
    %42 = arith.addf %40, %41 : vector<128x128xf32>
    %43 = arith.mulf %42, %16 : vector<128x128xf32>
    %cst_18 = arith.constant -0.00737332925 : f32
    %44 = vector.broadcast %cst_18 : f32 to vector<128x128xf32>
    %45 = arith.addf %43, %44 : vector<128x128xf32>
    %46 = arith.mulf %45, %16 : vector<128x128xf32>
    %cst_19 = arith.constant -0.0142647391 : f32
    %47 = vector.broadcast %cst_19 : f32 to vector<128x128xf32>
    %48 = arith.addf %46, %47 : vector<128x128xf32>
    %49 = arith.mulf %15, %35 : vector<128x128xf32>
    %50 = tpu.reciprocal %48 {approx = true} : vector<128x128xf32> -> vector<128x128xf32>
    %51 = arith.mulf %49, %50 : vector<128x128xf32>
    %cst_20 = arith.constant -1.000000e+00 : f32
    %cst_21 = arith.constant 1.000000e+00 : f32
    %52 = vector.broadcast %cst_20 : f32 to vector<128x128xf32>
    %53 = arith.maximumf %52, %51 : vector<128x128xf32>
    %54 = vector.broadcast %cst_21 : f32 to vector<128x128xf32>
    %55 = arith.minimumf %54, %53 : vector<128x128xf32>
    %cst_22 = arith.constant 1.000000e+00 : f32
    %56 = vector.broadcast %cst_22 : f32 to vector<128x128xf32>
    %57 = arith.addf %56, %55 : vector<128x128xf32>
    %58 = arith.mulf %9, %57 : vector<128x128xf32>
    %c0_23 = arith.constant 0 : index
    %c0_24 = arith.constant 0 : index
    %59 = vector.load %arg4[%c0_23, %c0_24] : memref<128x128xf32, #tpu.memory_space<vmem>>, vector<128x128xf32>
    tpu.vector_store %arg4[%c0_23, %c0_24], %58 {strides = array<i32>} : memref<128x128xf32, #tpu.memory_space<vmem>>, vector<128x128xf32>,
    return
  }
  func.func @transform_0(%arg0: i32) -> (i32, i32) {
    %c0_i32 = arith.constant 0 : i32
    %c0_i32_0 = arith.constant 0 : i32
    return %arg0, %c0_i32 : i32, i32
  }
  func.func @transform_1(%arg0: i32) -> (i32, i32) {
    %c0_i32 = arith.constant 0 : i32
    %c0_i32_0 = arith.constant 0 : i32
    %c0_i32_1 = arith.constant 0 : i32
    return %c0_i32, %c0_i32_0 : i32, i32
  }
  func.func @transform_2(%arg0: i32) -> (i32, i32) {
    %c0_i32 = arith.constant 0 : i32
    %c0_i32_0 = arith.constant 0 : i32
    %c0_i32_1 = arith.constant 0 : i32
    return %c0_i32, %c0_i32_0 : i32, i32
  }
  func.func @transform_3(%arg0: i32) -> (i32, i32) {
    %c0_i32 = arith.constant 0 : i32
    %c0_i32_0 = arith.constant 0 : i32
    return %arg0, %c0_i32 : i32, i32
  }
}

</mosaic_0001>

<llo_original>
// kernel: dtm_forward.3
$region0: #{dtm_forward.3}
  #allocation0 [shape = 'u32[]', space=smem, size = 0x4, offset = 0x4, fixed_abs, tag = 'smem constant byte address 0x4 - core index']
  #allocation1 [shape = 'u32[72,128]{1,0:T(1,128)}', space=vmem, size = 0x9000, scoped, tag = 'internal scratch']
  %s0 = inlined_call_operand.vmem [shape: bf16[128,128], index: 0, kind: input, shape index: {}]
  %s1 = inlined_call_operand.vmem [shape: f32[1,128], index: 1, kind: input, shape index: {}]
  %s2 = inlined_call_operand.vmem [shape: f32[1,128], index: 2, kind: input, shape index: {}]
  %s3 = inlined_call_operand.vmem [shape: f32[128,128], index: 3, kind: output, shape index: {}]
  %s4 = sld [smem:[#allocation0]]
  $region22: #{dtm_forward.3} parent=0
    _
  %s6 = ssub.s32 1, %s4
  %s7 = scalar_select 0, %s6, %s4
  // Predicated region
  $region2: #{dtm_forward.3} parent=0 // pred_check
    _
  $region3: #{dtm_forward.3} parent=0 // pred_check_branch
    %9 = sbr.rel (0) target = $region5
  $region4: #{dtm_forward.3} parent=0 // pred_region
    _
  $region5: #{dtm_forward.3} parent=0 // pred_fallthru
    _
  // Predicated region
  $region6: #{dtm_forward.3} parent=0 // pred_check
    _
  $region7: #{dtm_forward.3} parent=0 // pred_check_branch
    %11 = sbr.rel (0) target = $region9
  $region8: #{dtm_forward.3} parent=0 // pred_region
    _
  $region9: #{dtm_forward.3} parent=0 // pred_fallthru
    _
  // Predicated region
  $region10: #{dtm_forward.3} parent=0 // pred_check
    _
  $region11: #{dtm_forward.3} parent=0 // pred_check_branch
    %13 = sbr.rel (0) target = $region13
  $region12: #{dtm_forward.3} parent=0 // pred_region
    _
  $region13: #{dtm_forward.3} parent=0 // pred_fallthru
    _
  %v14 = vld [vmem:[%s0] sm:$0xf]
  %v15 = vld [vmem:[%s0 + $0x4] sm:$0xf]
  %v16 = vld [vmem:[%s0 + $0x8] sm:$0xf]
  %v17 = vld [vmem:[%s0 + $0xc] sm:$0xf]
  %v18 = vld [vmem:[%s0 + $0x10] sm:$0xf]
  %v19 = vld [vmem:[%s0 + $0x14] sm:$0xf]
  %v20 = vld [vmem:[%s0 + $0x18] sm:$0xf]
  %v21 = vld [vmem:[%s0 + $0x1c] sm:$0xf]
  %v22 = vld [vmem:[%s0 + $0x20] sm:$0xf]
  %v23 = vld [vmem:[%s0 + $0x24] sm:$0xf]
  %v24 = vld [vmem:[%s0 + $0x28] sm:$0xf]
  %v25 = vld [vmem:[%s0 + $0x2c] sm:$0xf]
  %v26 = vld [vmem:[%s0 + $0x30] sm:$0xf]
  %v27 = vld [vmem:[%s0 + $0x34] sm:$0xf]
  %v28 = vld [vmem:[%s0 + $0x38] sm:$0xf]
  %v29 = vld [vmem:[%s0 + $0x3c] sm:$0xf]
  %v30 = vunpack.c.l.bf16 %v14
  %v31 = vunpack.c.l.bf16 %v15
  %v32 = vunpack.c.l.bf16 %v16
  %v33 = vunpack.c.l.bf16 %v17
  %v34 = vunpack.c.l.bf16 %v18
  %v35 = vunpack.c.l.bf16 %v19
  %v36 = vunpack.c.l.bf16 %v20
  %v37 = vunpack.c.l.bf16 %v21
  %v38 = vunpack.c.l.bf16 %v22
  %v39 = vunpack.c.l.bf16 %v23
  %v40 = vunpack.c.l.bf16 %v24
  %v41 = vunpack.c.l.bf16 %v25
  %v42 = vunpack.c.l.bf16 %v26
  %v43 = vunpack.c.l.bf16 %v27
  %v44 = vunpack.c.l.bf16 %v28
  %v45 = vunpack.c.l.bf16 %v29
  %v46 = vld [vmem:[%s1] sm:$0x1]
  %v48 = vperm.slane %v46, 0
  %v50 = vmul.f32 %v30, %v48
  %v51 = vmul.f32 %v31, %v48
  %v52 = vmul.f32 %v32, %v48
  %v53 = vmul.f32 %v33, %v48
  %v54 = vmul.f32 %v34, %v48
  %v55 = vmul.f32 %v35, %v48
  %v56 = vmul.f32 %v36, %v48
  %v57 = vmul.f32 %v37, %v48
  %v58 = vmul.f32 %v38, %v48
  %v59 = vmul.f32 %v39, %v48
  %v60 = vmul.f32 %v40, %v48
  %v61 = vmul.f32 %v41, %v48
  %v62 = vmul.f32 %v42, %v48
  %v63 = vmul.f32 %v43, %v48
  %v64 = vmul.f32 %v44, %v48
  %v65 = vmul.f32 %v45, %v48
  %v66 = vld [vmem:[%s2] sm:$0x1]
  %v68 = vperm.slane %v66, 0
  %v70 = vadd.f32 %v50, %v68
  %v71 = vadd.f32 %v51, %v68
  %v72 = vadd.f32 %v52, %v68
  %v73 = vadd.f32 %v53, %v68
  %v74 = vadd.f32 %v54, %v68
  %v75 = vadd.f32 %v55, %v68
  %v76 = vadd.f32 %v56, %v68
  %v77 = vadd.f32 %v57, %v68
  %v78 = vadd.f32 %v58, %v68
  %v79 = vadd.f32 %v59, %v68
  %v80 = vadd.f32 %v60, %v68
  %v81 = vadd.f32 %v61, %v68
  %v82 = vadd.f32 %v62, %v68
  %v83 = vadd.f32 %v63, %v68
  %v84 = vadd.f32 %v64, %v68
  %v85 = vadd.f32 %v65, %v68
  %v86 = vmul.f32 %v70, 0.5
  %v87 = vmul.f32 %v71, 0.5
  %v88 = vmul.f32 %v72, 0.5
  %v89 = vmul.f32 %v73, 0.5
  %v90 = vmul.f32 %v74, 0.5
  %v91 = vmul.f32 %v75, 0.5
  %v92 = vmul.f32 %v76, 0.5
  %v93 = vmul.f32 %v77, 0.5
  %v94 = vmul.f32 %v78, 0.5
  %v95 = vmul.f32 %v79, 0.5
  %v96 = vmul.f32 %v80, 0.5
  %v97 = vmul.f32 %v81, 0.5
  %v98 = vmul.f32 %v82, 0.5
  %v99 = vmul.f32 %v83, 0.5
  %v100 = vmul.f32 %v84, 0.5
  %v101 = vmul.f32 %v85, 0.5
  %v102 = vmul.f32 %v70, 0.70710677
  %v103 = vmul.f32 %v71, 0.70710677
  %v104 = vmul.f32 %v72, 0.70710677
  %v105 = vmul.f32 %v73, 0.70710677
  %v106 = vmul.f32 %v74, 0.70710677
  %v107 = vmul.f32 %v75, 0.70710677
  %v108 = vmul.f32 %v76, 0.70710677
  %v109 = vmul.f32 %v77, 0.70710677
  %v110 = vmul.f32 %v78, 0.70710677
  %v111 = vmul.f32 %v79, 0.70710677
  %v112 = vmul.f32 %v80, 0.70710677
  %v113 = vmul.f32 %v81, 0.70710677
  %v114 = vmul.f32 %v82, 0.70710677
  %v115 = vmul.f32 %v83, 0.70710677
  %v116 = vmul.f32 %v84, 0.70710677
  %v117 = vmul.f32 %v85, 0.70710677
  %v118 = vmax.f32 %v102, -4.0
  %v119 = vmax.f32 %v103, -4.0
  %v120 = vmax.f32 %v104, -4.0
  %v121 = vmax.f32 %v105, -4.0
  %v122 = vmax.f32 %v106, -4.0
  %v123 = vmax.f32 %v107, -4.0
  %v124 = vmax.f32 %v108, -4.0
  %v125 = vmax.f32 %v109, -4.0
  %v126 = vmax.f32 %v110, -4.0
  %v127 = vmax.f32 %v111, -4.0
  %v128 = vmax.f32 %v112, -4.0
  %v129 = vmax.f32 %v113, -4.0
  %v130 = vmax.f32 %v114, -4.0
  %v131 = vmax.f32 %v115, -4.0
  %v132 = vmax.f32 %v116, -4.0
  %v133 = vmax.f32 %v117, -4.0
  %v134 = vmin.f32 %v118, 4.0
  %v135 = vmin.f32 %v119, 4.0
  %v136 = vmin.f32 %v120, 4.0
  %v137 = vmin.f32 %v121, 4.0
  %v138 = vmin.f32 %v122, 4.0
  %v139 = vmin.f32 %v123, 4.0
  %v140 = vmin.f32 %v124, 4.0
  %v141 = vmin.f32 %v125, 4.0
  %v142 = vmin.f32 %v126, 4.0
  %v143 = vmin.f32 %v127, 4.0
  %v144 = vmin.f32 %v128, 4.0
  %v145 = vmin.f32 %v129, 4.0
  %v146 = vmin.f32 %v130, 4.0
  %v147 = vmin.f32 %v131, 4.0
  %v148 = vmin.f32 %v132, 4.0
  %v149 = vmin.f32 %v133, 4.0
  %v150 = vmul.f32 %v134, %v134
  %v151 = vmul.f32 %v135, %v135
  %v152 = vmul.f32 %v136, %v136
  %v153 = vmul.f32 %v137, %v137
  %v154 = vmul.f32 %v138, %v138
  %v155 = vmul.f32 %v139, %v139
  %v156 = vmul.f32 %v140, %v140
  %v157 = vmul.f32 %v141, %v141
  %v158 = vmul.f32 %v142, %v142
  %v159 = vmul.f32 %v143, %v143
  %v160 = vmul.f32 %v144, %v144
  %v161 = vmul.f32 %v145, %v145
  %v162 = vmul.f32 %v146, %v146
  %v163 = vmul.f32 %v147, %v147
  %v164 = vmul.f32 %v148, %v148
  %v165 = vmul.f32 %v149, %v149
  %v166 = vmul.f32 %v150, -2.7261424e-10
  %v167 = vmul.f32 %v151, -2.7261424e-10
  %v168 = vmul.f32 %v152, -2.7261424e-10
  %v169 = vmul.f32 %v153, -2.7261424e-10
  %v170 = vmul.f32 %v154, -2.7261424e-10
  %v171 = vmul.f32 %v155, -2.7261424e-10
  %v172 = vmul.f32 %v156, -2.7261424e-10
  %v173 = vmul.f32 %v157, -2.7261424e-10
  %v174 = vmul.f32 %v158, -2.7261424e-10
  %v175 = vmul.f32 %v159, -2.7261424e-10
  %v176 = vmul.f32 %v160, -2.7261424e-10
  %v177 = vmul.f32 %v161, -2.7261424e-10
  %v178 = vmul.f32 %v162, -2.7261424e-10
  %v179 = vmul.f32 %v163, -2.7261424e-10
  %v180 = vmul.f32 %v164, -2.7261424e-10
  %v181 = vmul.f32 %v165, -2.7261424e-10
  %v182 = vadd.f32 %v166, 2.7706815e-08
  %v183 = vadd.f32 %v167, 2.7706815e-08
  %v184 = vadd.f32 %v168, 2.7706815e-08
  %v185 = vadd.f32 %v169, 2.7706815e-08
  %v186 = vadd.f32 %v170, 2.7706815e-08
  %v187 = vadd.f32 %v171, 2.7706815e-08
  %v188 = vadd.f32 %v172, 2.7706815e-08
  %v189 = vadd.f32 %v173, 2.7706815e-08
  %v190 = vadd.f32 %v174, 2.7706815e-08
  %v191 = vadd.f32 %v175, 2.7706815e-08
  %v192 = vadd.f32 %v176, 2.7706815e-08
  %v193 = vadd.f32 %v177, 2.7706815e-08
  %v194 = vadd.f32 %v178, 2.7706815e-08
  %v195 = vadd.f32 %v179, 2.7706815e-08
  %v196 = vadd.f32 %v180, 2.7706815e-08
  %v197 = vadd.f32 %v181, 2.7706815e-08
  %v198 = vmul.f32 %v182, %v150
  %v199 = vmul.f32 %v183, %v151
  %v200 = vmul.f32 %v184, %v152
  %v201 = vmul.f32 %v185, %v153
  %v202 = vmul.f32 %v186, %v154
  %v203 = vmul.f32 %v187, %v155
  %v204 = vmul.f32 %v188, %v156
  %v205 = vmul.f32 %v189, %v157
  %v206 = vmul.f32 %v190, %v158
  %v207 = vmul.f32 %v191, %v159
  %v208 = vmul.f32 %v192, %v160
  %v209 = vmul.f32 %v193, %v161
  %v210 = vmul.f32 %v194, %v162
  %v211 = vmul.f32 %v195, %v163
  %v212 = vmul.f32 %v196, %v164
  %v213 = vmul.f32 %v197, %v165
  %v214 = vadd.f32 %v198, -2.101024e-06
  %v215 = vadd.f32 %v199, -2.101024e-06
  %v216 = vadd.f32 %v200, -2.101024e-06
  %v217 = vadd.f32 %v201, -2.101024e-06
  %v218 = vadd.f32 %v202, -2.101024e-06
  %v219 = vadd.f32 %v203, -2.101024e-06
  %v220 = vadd.f32 %v204, -2.101024e-06
  %v221 = vadd.f32 %v205, -2.101024e-06
  %v222 = vadd.f32 %v206, -2.101024e-06
  %v223 = vadd.f32 %v207, -2.101024e-06
  %v224 = vadd.f32 %v208, -2.101024e-06
  %v225 = vadd.f32 %v209, -2.101024e-06
  %v226 = vadd.f32 %v210, -2.101024e-06
  %v227 = vadd.f32 %v211, -2.101024e-06
  %v228 = vadd.f32 %v212, -2.101024e-06
  %v229 = vadd.f32 %v213, -2.101024e-06
  %v230 = vmul.f32 %v214, %v150
  %v231 = vmul.f32 %v215, %v151
  %v232 = vmul.f32 %v216, %v152
  %v233 = vmul.f32 %v217, %v153
  %v234 = vmul.f32 %v218, %v154
  %v235 = vmul.f32 %v219, %v155
  %v236 = vmul.f32 %v220, %v156
  %v237 = vmul.f32 %v221, %v157
  %v238 = vmul.f32 %v222, %v158
  %v239 = vmul.f32 %v223, %v159
  %v240 = vmul.f32 %v224, %v160
  %v241 = vmul.f32 %v225, %v161
  %v242 = vmul.f32 %v226, %v162
  %v243 = vmul.f32 %v227, %v163
  %v244 = vmul.f32 %v228, %v164
  %v245 = vmul.f32 %v229, %v165
  %v246 = vadd.f32 %v230, -5.6925062e-05
  %v247 = vadd.f32 %v231, -5.6925062e-05
  %v248 = vadd.f32 %v232, -5.6925062e-05
  %v249 = vadd.f32 %v233, -5.6925062e-05
  %v250 = vadd.f32 %v234, -5.6925062e-05
  %v251 = vadd.f32 %v235, -5.6925062e-05
  %v252 = vadd.f32 %v236, -5.6925062e-05
  %v253 = vadd.f32 %v237, -5.6925062e-05
  %v254 = vadd.f32 %v238, -5.6925062e-05
  %v255 = vadd.f32 %v239, -5.6925062e-05
  %v256 = vadd.f32 %v240, -5.6925062e-05
  %v257 = vadd.f32 %v241, -5.6925062e-05
  %v258 = vadd.f32 %v242, -5.6925062e-05
  %v259 = vadd.f32 %v243, -5.6925062e-05
  %v260 = vadd.f32 %v244, -5.6925062e-05
  %v261 = vadd.f32 %v245, -5.6925062e-05
  %v262 = vmul.f32 %v246, %v150
  %v263 = vmul.f32 %v247, %v151
  %v264 = vmul.f32 %v248, %v152
  %v265 = vmul.f32 %v249, %v153
  %v266 = vmul.f32 %v250, %v154
  %v267 = vmul.f32 %v251, %v155
  %v268 = vmul.f32 %v252, %v156
  %v269 = vmul.f32 %v253, %v157
  %v270 = vmul.f32 %v254, %v158
  %v271 = vmul.f32 %v255, %v159
  %v272 = vmul.f32 %v256, %v160
  %v273 = vmul.f32 %v257, %v161
  %v274 = vmul.f32 %v258, %v162
  %v275 = vmul.f32 %v259, %v163
  %v276 = vmul.f32 %v260, %v164
  %v277 = vmul.f32 %v261, %v165
  %v278 = vadd.f32 %v262, -0.00073499064
  %v279 = vadd.f32 %v263, -0.00073499064
  %v280 = vadd.f32 %v264, -0.00073499064
  %v281 = vadd.f32 %v265, -0.00073499064
  %v282 = vadd.f32 %v266, -0.00073499064
  %v283 = vadd.f32 %v267, -0.00073499064
  %v284 = vadd.f32 %v268, -0.00073499064
  %v285 = vadd.f32 %v269, -0.00073499064
  %v286 = vadd.f32 %v270, -0.00073499064
  %v287 = vadd.f32 %v271, -0.00073499064
  %v288 = vadd.f32 %v272, -0.00073499064
  %v289 = vadd.f32 %v273, -0.00073499064
  %v290 = vadd.f32 %v274, -0.00073499064
  %v291 = vadd.f32 %v275, -0.00073499064
  %v292 = vadd.f32 %v276, -0.00073499064
  %v293 = vadd.f32 %v277, -0.00073499064
  %v294 = vmul.f32 %v278, %v150
  %v295 = vmul.f32 %v279, %v151
  %v296 = vmul.f32 %v280, %v152
  %v297 = vmul.f32 %v281, %v153
  %v298 = vmul.f32 %v282, %v154
  %v299 = vmul.f32 %v283, %v155
  %v300 = vmul.f32 %v284, %v156
  %v301 = vmul.f32 %v285, %v157
  %v302 = vmul.f32 %v286, %v158
  %v303 = vmul.f32 %v287, %v159
  %v304 = vmul.f32 %v288, %v160
  %v305 = vmul.f32 %v289, %v161
  %v306 = vmul.f32 %v290, %v162
  %v307 = vmul.f32 %v291, %v163
  %v308 = vmul.f32 %v292, %v164
  %v309 = vmul.f32 %v293, %v165
  %v310 = vadd.f32 %v294, -0.0029546
  %v311 = vadd.f32 %v295, -0.0029546
  %v312 = vadd.f32 %v296, -0.0029546
  %v313 = vadd.f32 %v297, -0.0029546
  %v314 = vadd.f32 %v298, -0.0029546
  %v315 = vadd.f32 %v299, -0.0029546
  %v316 = vadd.f32 %v300, -0.0029546
  %v317 = vadd.f32 %v301, -0.0029546
  %v318 = vadd.f32 %v302, -0.0029546
  %v319 = vadd.f32 %v303, -0.0029546
  %v320 = vadd.f32 %v304, -0.0029546
  %v321 = vadd.f32 %v305, -0.0029546
  %v322 = vadd.f32 %v306, -0.0029546
  %v323 = vadd.f32 %v307, -0.0029546
  %v324 = vadd.f32 %v308, -0.0029546
  %v325 = vadd.f32 %v309, -0.0029546
  %v326 = vmul.f32 %v310, %v150
  %v327 = vmul.f32 %v311, %v151
  %v328 = vmul.f32 %v312, %v152
  %v329 = vmul.f32 %v313, %v153
  %v330 = vmul.f32 %v314, %v154
  %v331 = vmul.f32 %v315, %v155
  %v332 = vmul.f32 %v316, %v156
  %v333 = vmul.f32 %v317, %v157
  %v334 = vmul.f32 %v318, %v158
  %v335 = vmul.f32 %v319, %v159
  %v336 = vmul.f32 %v320, %v160
  %v337 = vmul.f32 %v321, %v161
  %v338 = vmul.f32 %v322, %v162
  %v339 = vmul.f32 %v323, %v163
  %v340 = vmul.f32 %v324, %v164
  %v341 = vmul.f32 %v325, %v165
  %v342 = vadd.f32 %v326, -0.016096033
  %v343 = vadd.f32 %v327, -0.016096033
  %v344 = vadd.f32 %v328, -0.016096033
  %v345 = vadd.f32 %v329, -0.016096033
  %v346 = vadd.f32 %v330, -0.016096033
  %v347 = vadd.f32 %v331, -0.016096033
  %v348 = vadd.f32 %v332, -0.016096033
  %v349 = vadd.f32 %v333, -0.016096033
  %v350 = vadd.f32 %v334, -0.016096033
  %v351 = vadd.f32 %v335, -0.016096033
  %v352 = vadd.f32 %v336, -0.016096033
  %v353 = vadd.f32 %v337, -0.016096033
  %v354 = vadd.f32 %v338, -0.016096033
  %v355 = vadd.f32 %v339, -0.016096033
  %v356 = vadd.f32 %v340, -0.016096033
  %v357 = vadd.f32 %v341, -0.016096033
  %v358 = vmul.f32 %v150, -1.45660715e-05
  %v359 = vmul.f32 %v151, -1.45660715e-05
  %v360 = vmul.f32 %v152, -1.45660715e-05
  %v361 = vmul.f32 %v153, -1.45660715e-05
  %v362 = vmul.f32 %v154, -1.45660715e-05
  %v363 = vmul.f32 %v155, -1.45660715e-05
  %v364 = vmul.f32 %v156, -1.45660715e-05
  %v365 = vmul.f32 %v157, -1.45660715e-05
  %v366 = vmul.f32 %v158, -1.45660715e-05
  %v367 = vmul.f32 %v159, -1.45660715e-05
  %v368 = vmul.f32 %v160, -1.45660715e-05
  %v369 = vmul.f32 %v161, -1.45660715e-05
  %v370 = vmul.f32 %v162, -1.45660715e-05
  %v371 = vmul.f32 %v163, -1.45660715e-05
  %v372 = vmul.f32 %v164, -1.45660715e-05
  %v373 = vmul.f32 %v165, -1.45660715e-05
  %v374 = vadd.f32 %v358, -0.00021337405
  %v375 = vadd.f32 %v359, -0.00021337405
  %v376 = vadd.f32 %v360, -0.00021337405
  %v377 = vadd.f32 %v361, -0.00021337405
  %v378 = vadd.f32 %v362, -0.00021337405
  %v379 = vadd.f32 %v363, -0.00021337405
  %v380 = vadd.f32 %v364, -0.00021337405
  %v381 = vadd.f32 %v365, -0.00021337405
  %v382 = vadd.f32 %v366, -0.00021337405
  %v383 = vadd.f32 %v367, -0.00021337405
  %v384 = vadd.f32 %v368, -0.00021337405
  %v385 = vadd.f32 %v369, -0.00021337405
  %v386 = vadd.f32 %v370, -0.00021337405
  %v387 = vadd.f32 %v371, -0.00021337405
  %v388 = vadd.f32 %v372, -0.00021337405
  %v389 = vadd.f32 %v373, -0.00021337405
  %v390 = vmul.f32 %v374, %v150
  %v391 = vmul.f32 %v375, %v151
  %v392 = vmul.f32 %v376, %v152
  %v393 = vmul.f32 %v377, %v153
  %v394 = vmul.f32 %v378, %v154
  %v395 = vmul.f32 %v379, %v155
  %v396 = vmul.f32 %v380, %v156
  %v397 = vmul.f32 %v381, %v157
  %v398 = vmul.f32 %v382, %v158
  %v399 = vmul.f32 %v383, %v159
  %v400 = vmul.f32 %v384, %v160
  %v401 = vmul.f32 %v385, %v161
  %v402 = vmul.f32 %v386, %v162
  %v403 = vmul.f32 %v387, %v163
  %v404 = vmul.f32 %v388, %v164
  %v405 = vmul.f32 %v389, %v165
  %v406 = vadd.f32 %v390, -0.001682827
  %v407 = vadd.f32 %v391, -0.001682827
  %v408 = vadd.f32 %v392, -0.001682827
  %v409 = vadd.f32 %v393, -0.001682827
  %v410 = vadd.f32 %v394, -0.001682827
  %v411 = vadd.f32 %v395, -0.001682827
  %v412 = vadd.f32 %v396, -0.001682827
  %v413 = vadd.f32 %v397, -0.001682827
  %v414 = vadd.f32 %v398, -0.001682827
  %v415 = vadd.f32 %v399, -0.001682827
  %v416 = vadd.f32 %v400, -0.001682827
  %v417 = vadd.f32 %v401, -0.001682827
  %v418 = vadd.f32 %v402, -0.001682827
  %v419 = vadd.f32 %v403, -0.001682827
  %v420 = vadd.f32 %v404, -0.001682827
  %v421 = vadd.f32 %v405, -0.001682827
  %v422 = vmul.f32 %v406, %v150
  %v423 = vmul.f32 %v407, %v151
  %v424 = vmul.f32 %v408, %v152
  %v425 = vmul.f32 %v409, %v153
  %v426 = vmul.f32 %v410, %v154
  %v427 = vmul.f32 %v411, %v155
  %v428 = vmul.f32 %v412, %v156
  %v429 = vmul.f32 %v413, %v157
  %v430 = vmul.f32 %v414, %v158
  %v431 = vmul.f32 %v415, %v159
  %v432 = vmul.f32 %v416, %v160
  %v433 = vmul.f32 %v417, %v161
  %v434 = vmul.f32 %v418, %v162
  %v435 = vmul.f32 %v419, %v163
  %v436 = vmul.f32 %v420, %v164
  %v437 = vmul.f32 %v421, %v165
  %v438 = vadd.f32 %v422, -0.0073733293
  %v439 = vadd.f32 %v423, -0.0073733293
  %v440 = vadd.f32 %v424, -0.0073733293
  %v441 = vadd.f32 %v425, -0.0073733293
  %v442 = vadd.f32 %v426, -0.0073733293
  %v443 = vadd.f32 %v427, -0.0073733293
  %v444 = vadd.f32 %v428, -0.0073733293
  %v445 = vadd.f32 %v429, -0.0073733293
  %v446 = vadd.f32 %v430, -0.0073733293
  %v447 = vadd.f32 %v431, -0.0073733293
  %v448 = vadd.f32 %v432, -0.0073733293
  %v449 = vadd.f32 %v433, -0.0073733293
  %v450 = vadd.f32 %v434, -0.0073733293
  %v451 = vadd.f32 %v435, -0.0073733293
  %v452 = vadd.f32 %v436, -0.0073733293
  %v453 = vadd.f32 %v437, -0.0073733293
  %v454 = vmul.f32 %v438, %v150
  %v455 = vmul.f32 %v439, %v151
  %v456 = vmul.f32 %v440, %v152
  %v457 = vmul.f32 %v441, %v153
  %v458 = vmul.f32 %v442, %v154
  %v459 = vmul.f32 %v443, %v155
  %v460 = vmul.f32 %v444, %v156
  %v461 = vmul.f32 %v445, %v157
  %v462 = vmul.f32 %v446, %v158
  %v463 = vmul.f32 %v447, %v159
  %v464 = vmul.f32 %v448, %v160
  %v465 = vmul.f32 %v449, %v161
  %v466 = vmul.f32 %v450, %v162
  %v467 = vmul.f32 %v451, %v163
  %v468 = vmul.f32 %v452, %v164
  %v469 = vmul.f32 %v453, %v165
  %v470 = vadd.f32 %v454, -0.014264739
  %v471 = vadd.f32 %v455, -0.014264739
  %v472 = vadd.f32 %v456, -0.014264739
  %v473 = vadd.f32 %v457, -0.014264739
  %v474 = vadd.f32 %v458, -0.014264739
  %v475 = vadd.f32 %v459, -0.014264739
  %v476 = vadd.f32 %v460, -0.014264739
  %v477 = vadd.f32 %v461, -0.014264739
  %v478 = vadd.f32 %v462, -0.014264739
  %v479 = vadd.f32 %v463, -0.014264739
  %v480 = vadd.f32 %v464, -0.014264739
  %v481 = vadd.f32 %v465, -0.014264739
  %v482 = vadd.f32 %v466, -0.014264739
  %v483 = vadd.f32 %v467, -0.014264739
  %v484 = vadd.f32 %v468, -0.014264739
  %v485 = vadd.f32 %v469, -0.014264739
  %v486 = vmul.f32 %v134, %v342
  %v487 = vmul.f32 %v135, %v343
  %v488 = vmul.f32 %v136, %v344
  %v489 = vmul.f32 %v137, %v345
  %v490 = vmul.f32 %v138, %v346
  %v491 = vmul.f32 %v139, %v347
  %v492 = vmul.f32 %v140, %v348
  %v493 = vmul.f32 %v141, %v349
  %v494 = vmul.f32 %v142, %v350
  %v495 = vmul.f32 %v143, %v351
  %v496 = vmul.f32 %v144, %v352
  %v497 = vmul.f32 %v145, %v353
  %v498 = vmul.f32 %v146, %v354
  %v499 = vmul.f32 %v147, %v355
  %v500 = vmul.f32 %v148, %v356
  %v501 = vmul.f32 %v149, %v357
  %v502 = vrcp.pop %v470
  %v503 = vrcp.pop %v471
  %v504 = vrcp.pop %v472
  %v505 = vrcp.pop %v473
  %v506 = vrcp.pop %v474
  %v507 = vrcp.pop %v475
  %v508 = vrcp.pop %v476
  %v509 = vrcp.pop %v477
  %v510 = vrcp.pop %v478
  %v511 = vrcp.pop %v479
  %v512 = vrcp.pop %v480
  %v513 = vrcp.pop %v481
  %v514 = vrcp.pop %v482
  %v515 = vrcp.pop %v483
  %v516 = vrcp.pop %v484
  %v517 = vrcp.pop %v485
  %v518 = vmul.f32 %v486, %v502
  %v519 = vmul.f32 %v487, %v503
  %v520 = vmul.f32 %v488, %v504
  %v521 = vmul.f32 %v489, %v505
  %v522 = vmul.f32 %v490, %v506
  %v523 = vmul.f32 %v491, %v507
  %v524 = vmul.f32 %v492, %v508
  %v525 = vmul.f32 %v493, %v509
  %v526 = vmul.f32 %v494, %v510
  %v527 = vmul.f32 %v495, %v511
  %v528 = vmul.f32 %v496, %v512
  %v529 = vmul.f32 %v497, %v513
  %v530 = vmul.f32 %v498, %v514
  %v531 = vmul.f32 %v499, %v515
  %v532 = vmul.f32 %v500, %v516
  %v533 = vmul.f32 %v501, %v517
  %v534 = vmax.f32 %v518, -1.0
  %v535 = vmax.f32 %v519, -1.0
  %v536 = vmax.f32 %v520, -1.0
  %v537 = vmax.f32 %v521, -1.0
  %v538 = vmax.f32 %v522, -1.0
  %v539 = vmax.f32 %v523, -1.0
  %v540 = vmax.f32 %v524, -1.0
  %v541 = vmax.f32 %v525, -1.0
  %v542 = vmax.f32 %v526, -1.0
  %v543 = vmax.f32 %v527, -1.0
  %v544 = vmax.f32 %v528, -1.0
  %v545 = vmax.f32 %v529, -1.0
  %v546 = vmax.f32 %v530, -1.0
  %v547 = vmax.f32 %v531, -1.0
  %v548 = vmax.f32 %v532, -1.0
  %v549 = vmax.f32 %v533, -1.0
  %v550 = vmin.f32 %v534, 1.0
  %v551 = vmin.f32 %v535, 1.0
  %v552 = vmin.f32 %v536, 1.0
  %v553 = vmin.f32 %v537, 1.0
  %v554 = vmin.f32 %v538, 1.0
  %v555 = vmin.f32 %v539, 1.0
  %v556 = vmin.f32 %v540, 1.0
  %v557 = vmin.f32 %v541, 1.0
  %v558 = vmin.f32 %v542, 1.0
  %v559 = vmin.f32 %v543, 1.0
  %v560 = vmin.f32 %v544, 1.0
  %v561 = vmin.f32 %v545, 1.0
  %v562 = vmin.f32 %v546, 1.0
  %v563 = vmin.f32 %v547, 1.0
  %v564 = vmin.f32 %v548, 1.0
  %v565 = vmin.f32 %v549, 1.0
  %v566 = vadd.f32 %v550, 1.0
  %v567 = vadd.f32 %v551, 1.0
  %v568 = vadd.f32 %v552, 1.0
  %v569 = vadd.f32 %v553, 1.0
  %v570 = vadd.f32 %v554, 1.0
  %v571 = vadd.f32 %v555, 1.0
  %v572 = vadd.f32 %v556, 1.0
  %v573 = vadd.f32 %v557, 1.0
  %v574 = vadd.f32 %v558, 1.0
  %v575 = vadd.f32 %v559, 1.0
  %v576 = vadd.f32 %v560, 1.0
  %v577 = vadd.f32 %v561, 1.0
  %v578 = vadd.f32 %v562, 1.0
  %v579 = vadd.f32 %v563, 1.0
  %v580 = vadd.f32 %v564, 1.0
  %v581 = vadd.f32 %v565, 1.0
  %v582 = vmul.f32 %v86, %v566
  %v583 = vmul.f32 %v87, %v567
  %v584 = vmul.f32 %v88, %v568
  %v585 = vmul.f32 %v89, %v569
  %v586 = vmul.f32 %v90, %v570
  %v587 = vmul.f32 %v91, %v571
  %v588 = vmul.f32 %v92, %v572
  %v589 = vmul.f32 %v93, %v573
  %v590 = vmul.f32 %v94, %v574
  %v591 = vmul.f32 %v95, %v575
  %v592 = vmul.f32 %v96, %v576
  %v593 = vmul.f32 %v97, %v577
  %v594 = vmul.f32 %v98, %v578
  %v595 = vmul.f32 %v99, %v579
  %v596 = vmul.f32 %v100, %v580
  %v597 = vmul.f32 %v101, %v581
  %598 = vst [vmem:[%s3] sm:$0xff] %v582
  %599 = vst [vmem:[%s3 + $0x8] sm:$0xff] %v583
  %600 = vst [vmem:[%s3 + $0x10] sm:$0xff] %v584
  %601 = vst [vmem:[%s3 + $0x18] sm:$0xff] %v585
  %602 = vst [vmem:[%s3 + $0x20] sm:$0xff] %v586
  %603 = vst [vmem:[%s3 + $0x28] sm:$0xff] %v587
  %604 = vst [vmem:[%s3 + $0x30] sm:$0xff] %v588
  %605 = vst [vmem:[%s3 + $0x38] sm:$0xff] %v589
  %606 = vst [vmem:[%s3 + $0x40] sm:$0xff] %v590
  %607 = vst [vmem:[%s3 + $0x48] sm:$0xff] %v591
  %608 = vst [vmem:[%s3 + $0x50] sm:$0xff] %v592
  %609 = vst [vmem:[%s3 + $0x58] sm:$0xff] %v593
  %610 = vst [vmem:[%s3 + $0x60] sm:$0xff] %v594
  %611 = vst [vmem:[%s3 + $0x68] sm:$0xff] %v595
  %612 = vst [vmem:[%s3 + $0x70] sm:$0xff] %v596
  %613 = vst [vmem:[%s3 + $0x78] sm:$0xff] %v597
  // Predicated region
  $region14: #{dtm_forward.3} parent=0 // pred_check
    _
  $region15: #{dtm_forward.3} parent=0 // pred_check_branch
    %615 = sbr.rel (0) target = $region17
  $region16: #{dtm_forward.3} parent=0 // pred_region
    _
  $region17: #{dtm_forward.3} parent=0 // pred_fallthru
    _
  // Predicated region
  $region18: #{dtm_forward.3} parent=0 // pred_check
    _
  $region19: #{dtm_forward.3} parent=0 // pred_check_branch
    %617 = sbr.rel (0) target = $region21
  $region20: #{dtm_forward.3} parent=0 // pred_region
    _
  $region21: #{dtm_forward.3} parent=0 // pred_fallthru
    _

// kernel: dtm_forward.2
$region0: #{dtm_forward.2}
  #allocation0 [shape = 'u32[]', space=smem, size = 0x4, offset = 0x4, fixed_abs, tag = 'smem constant byte address 0x4 - core index']
  #allocation1 [shape = 'u32[72,128]{1,0:T(1,128)}', space=vmem, size = 0x9000, scoped, tag = 'internal scratch']
  #allocation2 [shape = 'bf16[9,256,128]{2,1,0:T(8,128)(2,1)}', space=vmem, size = 0x90000, scoped, tag = 'scratch operand']
  %s0 = inlined_call_operand.vmem [shape: bf16[2,256,8], index: 0, kind: input, shape index: {}]
  %s1 = inlined_call_operand.vmem [shape: f32[2,64,18], index: 1, kind: input, shape index: {}]
  %s2 = inlined_call_operand.vmem [shape: bf16[9,8,128], index: 2, kind: input, shape index: {}]
  %s3 = inlined_call_operand.vmem [shape: bf16[16,256], index: 3, kind: input, shape index: {}]
  %s4 = inlined_call_operand.vmem [shape: bf16[16,256], index: 4, kind: input, shape index: {}]
  %s5 = inlined_call_operand.vmem [shape: bf16[2,64,128], index: 5, kind: output, shape index: {0}]
  %s6 = inlined_call_operand.vmem [shape: f32[2,2,128], index: 6, kind: output, shape index: {1}]
  %7 = xla_tuple %s5, %s6
  %s8 = sld [smem:[#allocation0]]
  $region73: #{dtm_forward.2} parent=0
    _
  %s10 = ssub.s32 1, %s8
  %s11 = scalar_select 0, %s10, %s8
  loop: start=0, step=1, limit=4
  $region2: #{dtm_forward.2} parent=0 // loop_pre_header
    _
  $region3: #{dtm_forward.2} parent=0 // loop_header
    %s13 = sphi 0, %s17
    %p14 = scmp.ge.s32.totalorder %s13, 4
    %s20 = sphi 0, %s32
    %s21 = sphi 0, %s28
    %s22 = sphi 0, %s20
    %s23 = sphi 0, %s21
    %s24 = sphi 0, %s22
    %s25 = sphi 0, %s23
    %s35 = sphi 0, %s37
    %s38 = sphi 0, %s35
    %s39 = sphi 0, %s38
    %s55 = sphi 0, %s39
    %s63 = sphi 0, %s65
    %s66 = sphi 0, %s63
    %s67 = sphi 0, %s66
    %s83 = sphi 0, %s67
    %s87 = sphi 0, %s87
    %s89 = sphi 0, %s87
    %s90 = sphi 0, %s89
    %s104 = sphi 0, %s90
    %s108 = sphi 0, %s108
    %s110 = sphi 0, %s108
    %s111 = sphi 0, %s110
    %s125 = sphi 0, %s111
    %s129 = sphi 0, %s129
    %s131 = sphi 0, %s129
    %s132 = sphi 0, %s131
    %s146 = sphi 0, %s132
    %s154 = sphi 0, %s156
    %s157 = sphi 0, %s154
    %s158 = sphi 0, %s157
    %s174 = sphi 0, %s158
    %s180 = sphi 0, %s182
    %s183 = sphi 0, %s180
    %s184 = sphi 0, %s183
    %s200 = sphi 0, %s184
  $region4: #{dtm_forward.2} parent=0 // loop_header_branch
    %16 = sbr.rel (%p14) target = $region8
  $region5: #{dtm_forward.2} parent=0 // loop_body
    %s18 = ssub.s32 %s13, 1
    %s19 = ssub.s32 %s13, 2
    %s26 = sadd.s32 1, %s21
    %p27 = scmp.ge.s32.totalorder %s26, 1
    %s28 = scalar_select %p27, 0, %s26
    %s29 = sadd.s32 1, %s20
    %s30 = scalar_select %p27, %s29, %s20
    %p31 = scmp.ge.s32.totalorder %s30, 2
    %s32 = scalar_select %p31, 0, %s30
    %s33 = ssub.s32 %s20, %s32
    %p34 = scmp.eq.s32.totalorder %s33, 0
    %s36 = sadd.s32 %s35, 1
    %s37 = scalar_select %p34, %s35, %s36
    %p40 = pneg %p34
    %p41 = scmp.eq.s32.totalorder %s13, 1
    %p42 = por %p40, %p41
    %p43 = scmp.ne.s32.totalorder %s35, %s38
    %p44 = scmp.eq.s32.totalorder %s13, 0
    %p45 = por %p43, %p44
    %p46 = scmp.ne.s32.totalorder %s35, %s38
    %p47 = scmp.eq.s32.totalorder %s18, 1
    %p48 = por %p46, %p47
    %p49 = scmp.ne.s32.totalorder %s38, %s39
    %p50 = scmp.eq.s32.totalorder %s18, 0
    %p51 = por %p49, %p50
    %p52 = scmp.ne.s32.totalorder %s38, %s39
    %p53 = scmp.eq.s32.totalorder %s19, 1
    %p54 = por %p52, %p53
    %p56 = scmp.ne.s32.totalorder %s39, %s55
    %p57 = scmp.eq.s32.totalorder %s19, 0
    %p58 = por %p56, %p57
    %s59 = ssub.s32 %s20, %s32
    %s60 = ssub.s32 %s21, %s28
    %s61 = sor.u32 %s59, %s60
    %p62 = scmp.eq.s32.totalorder %s61, 0
    %s64 = sadd.s32 %s63, 1
    %s65 = scalar_select %p62, %s63, %s64
    %p68 = pneg %p62
    %p69 = scmp.eq.s32.totalorder %s13, 1
    %p70 = por %p68, %p69
    %p71 = scmp.ne.s32.totalorder %s63, %s66
    %p72 = scmp.eq.s32.totalorder %s13, 0
    %p73 = por %p71, %p72
    %p74 = scmp.ne.s32.totalorder %s63, %s66
    %p75 = scmp.eq.s32.totalorder %s18, 1
    %p76 = por %p74, %p75
    %p77 = scmp.ne.s32.totalorder %s66, %s67
    %p78 = scmp.eq.s32.totalorder %s18, 0
    %p79 = por %p77, %p78
    %p80 = scmp.ne.s32.totalorder %s66, %s67
    %p81 = scmp.eq.s32.totalorder %s19, 1
    %p82 = por %p80, %p81
    %p84 = scmp.ne.s32.totalorder %s67, %s83
    %p85 = scmp.eq.s32.totalorder %s19, 0
    %p86 = por %p84, %p85
    %s88 = sadd.s32 %s87, 1
    %p91 = scmp.eq.s32.totalorder %s13, 1
    %p92 = scmp.ne.s32.totalorder %s87, %s89
    %p93 = scmp.eq.s32.totalorder %s13, 0
    %p94 = por %p92, %p93
    %p95 = scmp.ne.s32.totalorder %s87, %s89
    %p96 = scmp.eq.s32.totalorder %s18, 1
    %p97 = por %p95, %p96
    %p98 = scmp.ne.s32.totalorder %s89, %s90
    %p99 = scmp.eq.s32.totalorder %s18, 0
    %p100 = por %p98, %p99
    %p101 = scmp.ne.s32.totalorder %s89, %s90
    %p102 = scmp.eq.s32.totalorder %s19, 1
    %p103 = por %p101, %p102
    %p105 = scmp.ne.s32.totalorder %s90, %s104
    %p106 = scmp.eq.s32.totalorder %s19, 0
    %p107 = por %p105, %p106
    %s109 = sadd.s32 %s108, 1
    %p112 = scmp.eq.s32.totalorder %s13, 1
    %p113 = scmp.ne.s32.totalorder %s108, %s110
    %p114 = scmp.eq.s32.totalorder %s13, 0
    %p115 = por %p113, %p114
    %p116 = scmp.ne.s32.totalorder %s108, %s110
    %p117 = scmp.eq.s32.totalorder %s18, 1
    %p118 = por %p116, %p117
    %p119 = scmp.ne.s32.totalorder %s110, %s111
    %p120 = scmp.eq.s32.totalorder %s18, 0
    %p121 = por %p119, %p120
    %p122 = scmp.ne.s32.totalorder %s110, %s111
    %p123 = scmp.eq.s32.totalorder %s19, 1
    %p124 = por %p122, %p123
    %p126 = scmp.ne.s32.totalorder %s111, %s125
    %p127 = scmp.eq.s32.totalorder %s19, 0
    %p128 = por %p126, %p127
    %s130 = sadd.s32 %s129, 1
    %p133 = scmp.eq.s32.totalorder %s13, 1
    %p134 = scmp.ne.s32.totalorder %s129, %s131
    %p135 = scmp.eq.s32.totalorder %s13, 0
    %p136 = por %p134, %p135
    %p137 = scmp.ne.s32.totalorder %s129, %s131
    %p138 = scmp.eq.s32.totalorder %s18, 1
    %p139 = por %p137, %p138
    %p140 = scmp.ne.s32.totalorder %s131, %s132
    %p141 = scmp.eq.s32.totalorder %s18, 0
    %p142 = por %p140, %p141
    %p143 = scmp.ne.s32.totalorder %s131, %s132
    %p144 = scmp.eq.s32.totalorder %s19, 1
    %p145 = por %p143, %p144
    %p147 = scmp.ne.s32.totalorder %s132, %s146
    %p148 = scmp.eq.s32.totalorder %s19, 0
    %p149 = por %p147, %p148
    %s150 = ssub.s32 %s20, %s32
    %s151 = ssub.s32 %s21, %s28
    %s152 = sor.u32 %s150, %s151
    %p153 = scmp.eq.s32.totalorder %s152, 0
    %s155 = sadd.s32 %s154, 1
    %s156 = scalar_select %p153, %s154, %s155
    %p159 = pneg %p153
    %p160 = scmp.eq.s32.totalorder %s13, 1
    %p161 = por %p159, %p160
    %p162 = scmp.ne.s32.totalorder %s154, %s157
    %p163 = scmp.eq.s32.totalorder %s13, 0
    %p164 = por %p162, %p163
    %p165 = scmp.ne.s32.totalorder %s154, %s157
    %p166 = scmp.eq.s32.totalorder %s18, 1
    %p167 = por %p165, %p166
    %p168 = scmp.ne.s32.totalorder %s157, %s158
    %p169 = scmp.eq.s32.totalorder %s18, 0
    %p170 = por %p168, %p169
    %p171 = scmp.ne.s32.totalorder %s157, %s158
    %p172 = scmp.eq.s32.totalorder %s19, 1
    %p173 = por %p171, %p172
    %p175 = scmp.ne.s32.totalorder %s158, %s174
    %p176 = scmp.eq.s32.totalorder %s19, 0
    %p177 = por %p175, %p176
    %s178 = ssub.s32 %s20, %s32
    %p179 = scmp.eq.s32.totalorder %s178, 0
    %s181 = sadd.s32 %s180, 1
    %s182 = scalar_select %p179, %s180, %s181
    %p185 = pneg %p179
    %p186 = scmp.eq.s32.totalorder %s13, 1
    %p187 = por %p185, %p186
    %p188 = scmp.ne.s32.totalorder %s180, %s183
    %p189 = scmp.eq.s32.totalorder %s13, 0
    %p190 = por %p188, %p189
    %p191 = scmp.ne.s32.totalorder %s180, %s183
    %p192 = scmp.eq.s32.totalorder %s18, 1
    %p193 = por %p191, %p192
    %p194 = scmp.ne.s32.totalorder %s183, %s184
    %p195 = scmp.eq.s32.totalorder %s18, 0
    %p196 = por %p194, %p195
    %p197 = scmp.ne.s32.totalorder %s183, %s184
    %p198 = scmp.eq.s32.totalorder %s19, 1
    %p199 = por %p197, %p198
    %p201 = scmp.ne.s32.totalorder %s184, %s200
    %p202 = scmp.eq.s32.totalorder %s19, 0
    %p203 = por %p201, %p202
    %p204 = scmp.le.s32.totalorder 1, %s13
    %p205 = scmp.lt.s32.totalorder %s13, 3
    %p206 = pnand %p204, %p205
    %p207 = pneg %p206
    // Predicated region
    $region9: #{dtm_forward.2} parent=5 // pred_check
      _
    $region10: #{dtm_forward.2} parent=5 // pred_check_branch
      %209 = sbr.rel (%p206) target = $region12
    $region11: #{dtm_forward.2} parent=5 // pred_region
      %s210 = ssub.s32 %s13, 1
      // Predicated region
      $region13: #{dtm_forward.2} parent=11 // pred_check
        %p211 = pneg %p100
      $region14: #{dtm_forward.2} parent=11 // pred_check_branch
        %213 = sbr.rel (%p211) target = $region16
      $region15: #{dtm_forward.2} parent=11 // pred_region
        _
      $region16: #{dtm_forward.2} parent=11 // pred_fallthru
        _
      // Predicated region
      $region17: #{dtm_forward.2} parent=11 // pred_check
        %p214 = pneg %p121
      $region18: #{dtm_forward.2} parent=11 // pred_check_branch
        %216 = sbr.rel (%p214) target = $region20
      $region19: #{dtm_forward.2} parent=11 // pred_region
        _
      $region20: #{dtm_forward.2} parent=11 // pred_fallthru
        _
      // Predicated region
      $region21: #{dtm_forward.2} parent=11 // pred_check
        %p217 = pneg %p142
      $region22: #{dtm_forward.2} parent=11 // pred_check_branch
        %219 = sbr.rel (%p217) target = $region24
      $region23: #{dtm_forward.2} parent=11 // pred_region
        _
      $region24: #{dtm_forward.2} parent=11 // pred_fallthru
        _
    $region12: #{dtm_forward.2} parent=5 // pred_fallthru
      _
    %p220 = scmp.lt.s32.totalorder %s13, 2
    // Predicated region
    $region25: #{dtm_forward.2} parent=5 // pred_check
      %p221 = pneg %p220
    $region26: #{dtm_forward.2} parent=5 // pred_check_branch
      %223 = sbr.rel (%p221) target = $region28
    $region27: #{dtm_forward.2} parent=5 // pred_region
      // Predicated region
      $region29: #{dtm_forward.2} parent=27 // pred_check
        %p224 = pneg %p45
      $region30: #{dtm_forward.2} parent=27 // pred_check_branch
        %226 = sbr.rel (%p224) target = $region32
      $region31: #{dtm_forward.2} parent=27 // pred_region
        %p227 = scmp.lt.s32.totalorder %s20, 1
        %s228 = scalar_select %p227, %s20, 1
        %s229 = smul.addr %s228, 32
        %s230 = smul.addr %s229, 4
        %s231 = scalar_lea.vmem %s0, %s230
      $region32: #{dtm_forward.2} parent=27 // pred_fallthru
        _
      // Predicated region
      $region33: #{dtm_forward.2} parent=27 // pred_check
        %p232 = pneg %p73
      $region34: #{dtm_forward.2} parent=27 // pred_check_branch
        %234 = sbr.rel (%p232) target = $region36
      $region35: #{dtm_forward.2} parent=27 // pred_region
        %s235 = smul.u32 8, %s21
        %p236 = scmp.lt.s32.totalorder %s20, 1
        %s237 = scalar_select %p236, %s20, 1
        %p238 = scmp.lt.s32.totalorder %s235, 7
        %s239 = scalar_select %p238, %s235, 7
        %s240 = smul.addr %s237, 8
        %s241 = sadd.s32 %s239, %s240
        %s242 = smul.addr %s241, 8
        %s243 = scalar_lea.vmem %s1, %s242
        %s244 = smul.u32 8, %s21
      $region36: #{dtm_forward.2} parent=27 // pred_fallthru
        _
    $region28: #{dtm_forward.2} parent=5 // pred_fallthru
      _
    %p245 = scmp.le.s32.totalorder 1, %s13
    %p246 = scmp.lt.s32.totalorder %s13, 3
    %p247 = pnand %p245, %p246
    %p248 = pneg %p247
    // Predicated region
    $region37: #{dtm_forward.2} parent=5 // pred_check
      _
    $region38: #{dtm_forward.2} parent=5 // pred_check_branch
      %250 = sbr.rel (%p247) target = $region40
    $region39: #{dtm_forward.2} parent=5 // pred_region
      %s251 = ssub.s32 %s13, 1
      %p252 = scmp.lt.s32.totalorder %s22, 1
      %s253 = scalar_select %p252, %s22, 1
      %s254 = smul.addr %s253, 32
      %s255 = smul.addr %s254, 4
      %s256 = scalar_lea.vmem %s0, %s255
      %p257 = pneg %p51
      %p258 = pneg %p48
      %s259 = smul.u32 8, %s23
      %p260 = scmp.lt.s32.totalorder %s22, 1
      %s261 = scalar_select %p260, %s22, 1
      %p262 = scmp.lt.s32.totalorder %s259, 7
      %s263 = scalar_select %p262, %s259, 7
      %s264 = smul.addr %s261, 8
      %s265 = sadd.s32 %s263, %s264
      %s266 = smul.addr %s265, 8
      %s267 = scalar_lea.vmem %s1, %s266
      %p268 = pneg %p79
      %p269 = pneg %p76
      %p270 = pneg %p100
      %p271 = pneg %p97
      %p272 = pneg %p121
      %p273 = pneg %p118
      %p274 = pneg %p142
      %p275 = pneg %p139
      %p276 = pneg %p170
      %p277 = pneg %p167
      %s278 = smul.u32 8, %s23
      %p279 = scmp.lt.s32.totalorder %s22, 1
      %s280 = scalar_select %p279, %s22, 1
      %p281 = scmp.lt.s32.totalorder %s278, 7
      %s282 = scalar_select %p281, %s278, 7
      %s283 = smul.addr %s280, 8
      %s284 = sadd.s32 %s282, %s283
      %s285 = smul.addr %s284, 4
      %s286 = scalar_lea.vmem %s5, %s285
      %p287 = pneg %p196
      %p288 = pneg %p193
      %p289 = scmp.lt.s32.totalorder %s22, 1
      %s290 = scalar_select %p289, %s22, 1
      %s291 = smul.addr %s290, 2
      %s292 = scalar_lea.vmem %s6, %s291
      %p293 = scmp.lt.s32.totalorder %s22, 1
      %s294 = scalar_select %p293, %s22, 1
      %s295 = smul.addr %s294, 32
      %s296 = smul.addr %s295, 4
      %s297 = scalar_lea.vmem %s0, %s296
      %s298 = smul.u32 8, %s23
      %p299 = scmp.lt.s32.totalorder %s22, 1
      %s300 = scalar_select %p299, %s22, 1
      %p301 = scmp.lt.s32.totalorder %s298, 7
      %s302 = scalar_select %p301, %s298, 7
      %s303 = smul.addr %s300, 8
      %s304 = sadd.s32 %s302, %s303
      %s305 = smul.addr %s304, 8
      %s306 = scalar_lea.vmem %s1, %s305
      %s307 = smul.u32 8, %s23
      %s308 = smul.u32 8, %s23
      %p309 = scmp.lt.s32.totalorder %s22, 1
      %s310 = scalar_select %p309, %s22, 1
      %p311 = scmp.lt.s32.totalorder %s308, 7
      %s312 = scalar_select %p311, %s308, 7
      %s313 = smul.addr %s310, 8
      %s314 = sadd.s32 %s312, %s313
      %s315 = smul.addr %s314, 4
      %s316 = scalar_lea.vmem %s5, %s315
      %s317 = smul.u32 8, %s23
      %p318 = scmp.lt.s32.totalorder %s22, 1
      %s319 = scalar_select %p318, %s22, 1
      %s320 = smul.addr %s319, 2
      %s321 = scalar_lea.vmem %s6, %s320
      %p323 = scmp.eq.s32.totalorder %s23, 0
      // Predicated region
      $region41: #{dtm_forward.2} parent=39 // pred_check
        %p324 = pneg %p323
      $region42: #{dtm_forward.2} parent=39 // pred_check_branch
        %326 = sbr.rel (%p324) target = $region44
      $region43: #{dtm_forward.2} parent=39 // pred_region
        %v327 = vld [vmem:[%s297] sm:$0xf]
        %v328 = vld [vmem:[%s297 + $0x4] sm:$0xf]
        %v329 = vld [vmem:[%s297 + $0x8] sm:$0xf]
        %v330 = vld [vmem:[%s297 + $0xc] sm:$0xf]
        %v331 = vld [vmem:[%s297 + $0x10] sm:$0xf]
        %v332 = vld [vmem:[%s297 + $0x14] sm:$0xf]
        %v333 = vld [vmem:[%s297 + $0x18] sm:$0xf]
        %v334 = vld [vmem:[%s297 + $0x1c] sm:$0xf]
        %v335 = vld [vmem:[%s297 + $0x20] sm:$0xf]
        %v336 = vld [vmem:[%s297 + $0x24] sm:$0xf]
        %v337 = vld [vmem:[%s297 + $0x28] sm:$0xf]
        %v338 = vld [vmem:[%s297 + $0x2c] sm:$0xf]
        %v339 = vld [vmem:[%s297 + $0x30] sm:$0xf]
        %v340 = vld [vmem:[%s297 + $0x34] sm:$0xf]
        %v341 = vld [vmem:[%s297 + $0x38] sm:$0xf]
        %v342 = vld [vmem:[%s297 + $0x3c] sm:$0xf]
        %v343 = vld [vmem:[%s297 + $0x40] sm:$0xf]
        %v344 = vld [vmem:[%s297 + $0x44] sm:$0xf]
        %v345 = vld [vmem:[%s297 + $0x48] sm:$0xf]
        %v346 = vld [vmem:[%s297 + $0x4c] sm:$0xf]
        %v347 = vld [vmem:[%s297 + $0x50] sm:$0xf]
        %v348 = vld [vmem:[%s297 + $0x54] sm:$0xf]
        %v349 = vld [vmem:[%s297 + $0x58] sm:$0xf]
        %v350 = vld [vmem:[%s297 + $0x5c] sm:$0xf]
        %v351 = vld [vmem:[%s297 + $0x60] sm:$0xf]
        %v352 = vld [vmem:[%s297 + $0x64] sm:$0xf]
        %v353 = vld [vmem:[%s297 + $0x68] sm:$0xf]
        %v354 = vld [vmem:[%s297 + $0x6c] sm:$0xf]
        %v355 = vld [vmem:[%s297 + $0x70] sm:$0xf]
        %v356 = vld [vmem:[%s297 + $0x74] sm:$0xf]
        %v357 = vld [vmem:[%s297 + $0x78] sm:$0xf]
        %v358 = vld [vmem:[%s297 + $0x7c] sm:$0xf]
        %v359 = vld [vmem:[%s2] sm:$0xf]
        %v392 = vunpack.c.l.b16 %v327
        %v393 = vunpack.c.l.b16 %v328
        %v394 = vunpack.c.l.b16 %v329
        %v395 = vunpack.c.l.b16 %v330
        %v396 = vunpack.c.l.b16 %v331
        %v397 = vunpack.c.l.b16 %v332
        %v398 = vunpack.c.l.b16 %v333
        %v399 = vunpack.c.l.b16 %v334
        %v400 = vunpack.c.l.b16 %v335
        %v401 = vunpack.c.l.b16 %v336
        %v402 = vunpack.c.l.b16 %v337
        %v403 = vunpack.c.l.b16 %v338
        %v404 = vunpack.c.l.b16 %v339
        %v405 = vunpack.c.l.b16 %v340
        %v406 = vunpack.c.l.b16 %v341
        %v407 = vunpack.c.l.b16 %v342
        %v408 = vunpack.c.l.b16 %v343
        %v409 = vunpack.c.l.b16 %v344
        %v410 = vunpack.c.l.b16 %v345
        %v411 = vunpack.c.l.b16 %v346
        %v412 = vunpack.c.l.b16 %v347
        %v413 = vunpack.c.l.b16 %v348
        %v414 = vunpack.c.l.b16 %v349
        %v415 = vunpack.c.l.b16 %v350
        %v416 = vunpack.c.l.b16 %v351
        %v417 = vunpack.c.l.b16 %v352
        %v418 = vunpack.c.l.b16 %v353
        %v419 = vunpack.c.l.b16 %v354
        %v420 = vunpack.c.l.b16 %v355
        %v421 = vunpack.c.l.b16 %v356
        %v422 = vunpack.c.l.b16 %v357
        %v423 = vunpack.c.l.b16 %v358
        %v424 = vpack.c.b16 %v393, %v392
        %v425 = vpack.c.b16 %v395, %v394
        %v426 = vpack.c.b16 %v397, %v396
        %v427 = vpack.c.b16 %v399, %v398
        %v428 = vpack.c.b16 %v401, %v400
        %v429 = vpack.c.b16 %v403, %v402
        %v430 = vpack.c.b16 %v405, %v404
        %v431 = vpack.c.b16 %v407, %v406
        %v432 = vpack.c.b16 %v409, %v408
        %v433 = vpack.c.b16 %v411, %v410
        %v434 = vpack.c.b16 %v413, %v412
        %v435 = vpack.c.b16 %v415, %v414
        %v436 = vpack.c.b16 %v417, %v416
        %v437 = vpack.c.b16 %v419, %v418
        %v438 = vpack.c.b16 %v421, %v420
        %v439 = vpack.c.b16 %v423, %v422
        %vm440 = vcmask 64512
        %v442 = vsel %vm440, %v424, 0
        %v445 = vsel %vm440, %v425, 0
        %v448 = vsel %vm440, %v426, 0
        %v451 = vsel %vm440, %v427, 0
        %v454 = vsel %vm440, %v428, 0
        %v457 = vsel %vm440, %v429, 0
        %v460 = vsel %vm440, %v430, 0
        %v463 = vsel %vm440, %v431, 0
        %v466 = vsel %vm440, %v432, 0
        %v469 = vsel %vm440, %v433, 0
        %v472 = vsel %vm440, %v434, 0
        %v475 = vsel %vm440, %v435, 0
        %v478 = vsel %vm440, %v436, 0
        %v481 = vsel %vm440, %v437, 0
        %v484 = vsel %vm440, %v438, 0
        %v487 = vsel %vm440, %v439, 0
        %vm489 = vcmask 1043456
        %v491 = vsel %vm489, %v359, 0
        %493 = vmatpush.bf16.msra.mxu0 0
        %494 = vmatpush.bf16.msra.mxu0 0
        %495 = vmatpush.bf16.msra.mxu0 0
        %496 = vmatpush.bf16.msra.mxu0 0
        %497 = vmatpush.bf16.msra.mxu0 0
        %498 = vmatpush.bf16.msra.mxu0 0
        %499 = vmatpush.bf16.msra.mxu0 0
        %500 = vmatpush.bf16.msra.mxu0 %v491
        %501 = vmatmul.bf16.gmra.mxu0 %v442
        %v502 = vpop.f32.mrf.mxu0
        %v503 = vadd.f32 0.0, %v502
        %v504 = vpop.f32.mrf.mxu0
        %v505 = vadd.f32 0.0, %v504
        %506 = vmatmul.bf16.gmra.mxu0 %v445
        %v507 = vpop.f32.mrf.mxu0
        %v508 = vadd.f32 0.0, %v507
        %v509 = vpop.f32.mrf.mxu0
        %v510 = vadd.f32 0.0, %v509
        %511 = vmatmul.bf16.gmra.mxu0 %v448
        %v512 = vpop.f32.mrf.mxu0
        %v513 = vadd.f32 0.0, %v512
        %v514 = vpop.f32.mrf.mxu0
        %v515 = vadd.f32 0.0, %v514
        %516 = vmatmul.bf16.gmra.mxu0 %v451
        %v517 = vpop.f32.mrf.mxu0
        %v518 = vadd.f32 0.0, %v517
        %v519 = vpop.f32.mrf.mxu0
        %v520 = vadd.f32 0.0, %v519
        %521 = vmatmul.bf16.gmra.mxu0 %v454
        %v522 = vpop.f32.mrf.mxu0
        %v523 = vadd.f32 0.0, %v522
        %v524 = vpop.f32.mrf.mxu0
        %v525 = vadd.f32 0.0, %v524
        %526 = vmatmul.bf16.gmra.mxu0 %v457
        %v527 = vpop.f32.mrf.mxu0
        %v528 = vadd.f32 0.0, %v527
        %v529 = vpop.f32.mrf.mxu0
        %v530 = vadd.f32 0.0, %v529
        %531 = vmatmul.bf16.gmra.mxu0 %v460
        %v532 = vpop.f32.mrf.mxu0
        %v533 = vadd.f32 0.0, %v532
        %v534 = vpop.f32.mrf.mxu0
        %v535 = vadd.f32 0.0, %v534
        %536 = vmatmul.bf16.gmra.mxu0 %v463
        %v537 = vpop.f32.mrf.mxu0
        %v538 = vadd.f32 0.0, %v537
        %v539 = vpop.f32.mrf.mxu0
        %v540 = vadd.f32 0.0, %v539
        %541 = vmatmul.bf16.gmra.mxu0 %v466
        %v542 = vpop.f32.mrf.mxu0
        %v543 = vadd.f32 0.0, %v542
        %v544 = vpop.f32.mrf.mxu0
        %v545 = vadd.f32 0.0, %v544
        %546 = vmatmul.bf16.gmra.mxu0 %v469
        %v547 = vpop.f32.mrf.mxu0
        %v548 = vadd.f32 0.0, %v547
        %v549 = vpop.f32.mrf.mxu0
        %v550 = vadd.f32 0.0, %v549
        %551 = vmatmul.bf16.gmra.mxu0 %v472
        %v552 = vpop.f32.mrf.mxu0
        %v553 = vadd.f32 0.0, %v552
        %v554 = vpop.f32.mrf.mxu0
        %v555 = vadd.f32 0.0, %v554
        %556 = vmatmul.bf16.gmra.mxu0 %v475
        %v557 = vpop.f32.mrf.mxu0
        %v558 = vadd.f32 0.0, %v557
        %v559 = vpop.f32.mrf.mxu0
        %v560 = vadd.f32 0.0, %v559
        %561 = vmatmul.bf16.gmra.mxu0 %v478
        %v562 = vpop.f32.mrf.mxu0
        %v563 = vadd.f32 0.0, %v562
        %v564 = vpop.f32.mrf.mxu0
        %v565 = vadd.f32 0.0, %v564
        %566 = vmatmul.bf16.gmra.mxu0 %v481
        %v567 = vpop.f32.mrf.mxu0
        %v568 = vadd.f32 0.0, %v567
        %v569 = vpop.f32.mrf.mxu0
        %v570 = vadd.f32 0.0, %v569
        %571 = vmatmul.bf16.gmra.mxu0 %v484
        %v572 = vpop.f32.mrf.mxu0
        %v573 = vadd.f32 0.0, %v572
        %v574 = vpop.f32.mrf.mxu0
        %v575 = vadd.f32 0.0, %v574
        %576 = vmatmul.bf16.gmra.mxu0 %v487
        %v577 = vpop.f32.mrf.mxu0
        %v578 = vadd.f32 0.0, %v577
        %v579 = vpop.f32.mrf.mxu0
        %v580 = vadd.f32 0.0, %v579
        %581 = vdwg.mxu0
        %v582 = vpack.c.bf16 %v503, %v503
        %v583 = vpack.c.bf16 %v505, %v505
        %v584 = vpack.c.bf16 %v508, %v508
        %v585 = vpack.c.bf16 %v510, %v510
        %v586 = vpack.c.bf16 %v513, %v513
        %v587 = vpack.c.bf16 %v515, %v515
        %v588 = vpack.c.bf16 %v518, %v518
        %v589 = vpack.c.bf16 %v520, %v520
        %v590 = vpack.c.bf16 %v523, %v523
        %v591 = vpack.c.bf16 %v525, %v525
        %v592 = vpack.c.bf16 %v528, %v528
        %v593 = vpack.c.bf16 %v530, %v530
        %v594 = vpack.c.bf16 %v533, %v533
        %v595 = vpack.c.bf16 %v535, %v535
        %v596 = vpack.c.bf16 %v538, %v538
        %v597 = vpack.c.bf16 %v540, %v540
        %v598 = vpack.c.bf16 %v543, %v543
        %v599 = vpack.c.bf16 %v545, %v545
        %v600 = vpack.c.bf16 %v548, %v548
        %v601 = vpack.c.bf16 %v550, %v550
        %v602 = vpack.c.bf16 %v553, %v553
        %v603 = vpack.c.bf16 %v555, %v555
        %v604 = vpack.c.bf16 %v558, %v558
        %v605 = vpack.c.bf16 %v560, %v560
        %v606 = vpack.c.bf16 %v563, %v563
        %v607 = vpack.c.bf16 %v565, %v565
        %v608 = vpack.c.bf16 %v568, %v568
        %v609 = vpack.c.bf16 %v570, %v570
        %v610 = vpack.c.bf16 %v573, %v573
        %v611 = vpack.c.bf16 %v575, %v575
        %v612 = vpack.c.bf16 %v578, %v578
        %v613 = vpack.c.bf16 %v580, %v580
        %614 = vst [vmem:[#allocation2] sm:$0xf] %v582
        %615 = vst [vmem:[#allocation2 + $0x4] sm:$0xf] %v583
        %616 = vst [vmem:[#allocation2 + $0x8] sm:$0xf] %v584
        %617 = vst [vmem:[#allocation2 + $0xc] sm:$0xf] %v585
        %618 = vst [vmem:[#allocation2 + $0x10] sm:$0xf] %v586
        %619 = vst [vmem:[#allocation2 + $0x14] sm:$0xf] %v587
        %620 = vst [vmem:[#allocation2 + $0x18] sm:$0xf] %v588
        %621 = vst [vmem:[#allocation2 + $0x1c] sm:$0xf] %v589
        %622 = vst [vmem:[#allocation2 + $0x20] sm:$0xf] %v590
        %623 = vst [vmem:[#allocation2 + $0x24] sm:$0xf] %v591
        %624 = vst [vmem:[#allocation2 + $0x28] sm:$0xf] %v592
        %625 = vst [vmem:[#allocation2 + $0x2c] sm:$0xf] %v593
        %626 = vst [vmem:[#allocation2 + $0x30] sm:$0xf] %v594
        %627 = vst [vmem:[#allocation2 + $0x34] sm:$0xf] %v595
        %628 = vst [vmem:[#allocation2 + $0x38] sm:$0xf] %v596
        %629 = vst [vmem:[#allocation2 + $0x3c] sm:$0xf] %v597
        %630 = vst [vmem:[#allocation2 + $0x40] sm:$0xf] %v598
        %631 = vst [vmem:[#allocation2 + $0x44] sm:$0xf] %v599
        %632 = vst [vmem:[#allocation2 + $0x48] sm:$0xf] %v600
        %633 = vst [vmem:[#allocation2 + $0x4c] sm:$0xf] %v601
        %634 = vst [vmem:[#allocation2 + $0x50] sm:$0xf] %v602
        %635 = vst [vmem:[#allocation2 + $0x54] sm:$0xf] %v603
        %636 = vst [vmem:[#allocation2 + $0x58] sm:$0xf] %v604
        %637 = vst [vmem:[#allocation2 + $0x5c] sm:$0xf] %v605
        %638 = vst [vmem:[#allocation2 + $0x60] sm:$0xf] %v606
        %639 = vst [vmem:[#allocation2 + $0x64] sm:$0xf] %v607
        %640 = vst [vmem:[#allocation2 + $0x68] sm:$0xf] %v608
        %641 = vst [vmem:[#allocation2 + $0x6c] sm:$0xf] %v609
        %642 = vst [vmem:[#allocation2 + $0x70] sm:$0xf] %v610
        %643 = vst [vmem:[#allocation2 + $0x74] sm:$0xf] %v611
        %644 = vst [vmem:[#allocation2 + $0x78] sm:$0xf] %v612
        %645 = vst [vmem:[#allocation2 + $0x7c] sm:$0xf] %v613
        %s646 = scalar_lea.vmem %s2, 4
        %v647 = vld [vmem:[%s646] sm:$0xf]
        %v649 = vsel %vm489, %v647, 0
        %651 = vmatpush.bf16.msra.mxu0 0
        %652 = vmatpush.bf16.msra.mxu0 0
        %653 = vmatpush.bf16.msra.mxu0 0
        %654 = vmatpush.bf16.msra.mxu0 0
        %655 = vmatpush.bf16.msra.mxu0 0
        %656 = vmatpush.bf16.msra.mxu0 0
        %657 = vmatpush.bf16.msra.mxu0 0
        %658 = vmatpush.bf16.msra.mxu0 %v649
        %659 = vmatmul.bf16.gmra.mxu0 %v442
        %v660 = vpop.f32.mrf.mxu0
        %v661 = vadd.f32 0.0, %v660
        %v662 = vpop.f32.mrf.mxu0
        %v663 = vadd.f32 0.0, %v662
        %664 = vmatmul.bf16.gmra.mxu0 %v445
        %v665 = vpop.f32.mrf.mxu0
        %v666 = vadd.f32 0.0, %v665
        %v667 = vpop.f32.mrf.mxu0
        %v668 = vadd.f32 0.0, %v667
        %669 = vmatmul.bf16.gmra.mxu0 %v448
        %v670 = vpop.f32.mrf.mxu0
        %v671 = vadd.f32 0.0, %v670
        %v672 = vpop.f32.mrf.mxu0
        %v673 = vadd.f32 0.0, %v672
        %674 = vmatmul.bf16.gmra.mxu0 %v451
        %v675 = vpop.f32.mrf.mxu0
        %v676 = vadd.f32 0.0, %v675
        %v677 = vpop.f32.mrf.mxu0
        %v678 = vadd.f32 0.0, %v677
        %679 = vmatmul.bf16.gmra.mxu0 %v454
        %v680 = vpop.f32.mrf.mxu0
        %v681 = vadd.f32 0.0, %v680
        %v682 = vpop.f32.mrf.mxu0
        %v683 = vadd.f32 0.0, %v682
        %684 = vmatmul.bf16.gmra.mxu0 %v457
        %v685 = vpop.f32.mrf.mxu0
        %v686 = vadd.f32 0.0, %v685
        %v687 = vpop.f32.mrf.mxu0
        %v688 = vadd.f32 0.0, %v687
        %689 = vmatmul.bf16.gmra.mxu0 %v460
        %v690 = vpop.f32.mrf.mxu0
        %v691 = vadd.f32 0.0, %v690
        %v692 = vpop.f32.mrf.mxu0
        %v693 = vadd.f32 0.0, %v692
        %694 = vmatmul.bf16.gmra.mxu0 %v463
        %v695 = vpop.f32.mrf.mxu0
        %v696 = vadd.f32 0.0, %v695
        %v697 = vpop.f32.mrf.mxu0
        %v698 = vadd.f32 0.0, %v697
        %699 = vmatmul.bf16.gmra.mxu0 %v466
        %v700 = vpop.f32.mrf.mxu0
        %v701 = vadd.f32 0.0, %v700
        %v702 = vpop.f32.mrf.mxu0
        %v703 = vadd.f32 0.0, %v702
        %704 = vmatmul.bf16.gmra.mxu0 %v469
        %v705 = vpop.f32.mrf.mxu0
        %v706 = vadd.f32 0.0, %v705
        %v707 = vpop.f32.mrf.mxu0
        %v708 = vadd.f32 0.0, %v707
        %709 = vmatmul.bf16.gmra.mxu0 %v472
        %v710 = vpop.f32.mrf.mxu0
        %v711 = vadd.f32 0.0, %v710
        %v712 = vpop.f32.mrf.mxu0
        %v713 = vadd.f32 0.0, %v712
        %714 = vmatmul.bf16.gmra.mxu0 %v475
        %v715 = vpop.f32.mrf.mxu0
        %v716 = vadd.f32 0.0, %v715
        %v717 = vpop.f32.mrf.mxu0
        %v718 = vadd.f32 0.0, %v717
        %719 = vmatmul.bf16.gmra.mxu0 %v478
        %v720 = vpop.f32.mrf.mxu0
        %v721 = vadd.f32 0.0, %v720
        %v722 = vpop.f32.mrf.mxu0
        %v723 = vadd.f32 0.0, %v722
        %724 = vmatmul.bf16.gmra.mxu0 %v481
        %v725 = vpop.f32.mrf.mxu0
        %v726 = vadd.f32 0.0, %v725
        %v727 = vpop.f32.mrf.mxu0
        %v728 = vadd.f32 0.0, %v727
        %729 = vmatmul.bf16.gmra.mxu0 %v484
        %v730 = vpop.f32.mrf.mxu0
        %v731 = vadd.f32 0.0, %v730
        %v732 = vpop.f32.mrf.mxu0
        %v733 = vadd.f32 0.0, %v732
        %734 = vmatmul.bf16.gmra.mxu0 %v487
        %v735 = vpop.f32.mrf.mxu0
        %v736 = vadd.f32 0.0, %v735
        %v737 = vpop.f32.mrf.mxu0
        %v738 = vadd.f32 0.0, %v737
        %739 = vdwg.mxu0
        %v740 = vpack.c.bf16 %v661, %v661
        %v741 = vpack.c.bf16 %v663, %v663
        %v742 = vpack.c.bf16 %v666, %v666
        %v743 = vpack.c.bf16 %v668, %v668
        %v744 = vpack.c.bf16 %v671, %v671
        %v745 = vpack.c.bf16 %v673, %v673
        %v746 = vpack.c.bf16 %v676, %v676
        %v747 = vpack.c.bf16 %v678, %v678
        %v748 = vpack.c.bf16 %v681, %v681
        %v749 = vpack.c.bf16 %v683, %v683
        %v750 = vpack.c.bf16 %v686, %v686
        %v751 = vpack.c.bf16 %v688, %v688
        %v752 = vpack.c.bf16 %v691, %v691
        %v753 = vpack.c.bf16 %v693, %v693
        %v754 = vpack.c.bf16 %v696, %v696
        %v755 = vpack.c.bf16 %v698, %v698
        %v756 = vpack.c.bf16 %v701, %v701
        %v757 = vpack.c.bf16 %v703, %v703
        %v758 = vpack.c.bf16 %v706, %v706
        %v759 = vpack.c.bf16 %v708, %v708
        %v760 = vpack.c.bf16 %v711, %v711
        %v761 = vpack.c.bf16 %v713, %v713
        %v762 = vpack.c.bf16 %v716, %v716
        %v763 = vpack.c.bf16 %v718, %v718
        %v764 = vpack.c.bf16 %v721, %v721
        %v765 = vpack.c.bf16 %v723, %v723
        %v766 = vpack.c.bf16 %v726, %v726
        %v767 = vpack.c.bf16 %v728, %v728
        %v768 = vpack.c.bf16 %v731, %v731
        %v769 = vpack.c.bf16 %v733, %v733
        %v770 = vpack.c.bf16 %v736, %v736
        %v771 = vpack.c.bf16 %v738, %v738
        %s772 = scalar_lea.vmem [#allocation2], 128
        %773 = vst [vmem:[%s772] sm:$0xf] %v740
        %774 = vst [vmem:[%s772 + $0x4] sm:$0xf] %v741
        %775 = vst [vmem:[%s772 + $0x8] sm:$0xf] %v742
        %776 = vst [vmem:[%s772 + $0xc] sm:$0xf] %v743
        %777 = vst [vmem:[%s772 + $0x10] sm:$0xf] %v744
        %778 = vst [vmem:[%s772 + $0x14] sm:$0xf] %v745
        %779 = vst [vmem:[%s772 + $0x18] sm:$0xf] %v746
        %780 = vst [vmem:[%s772 + $0x1c] sm:$0xf] %v747
        %781 = vst [vmem:[%s772 + $0x20] sm:$0xf] %v748
        %782 = vst [vmem:[%s772 + $0x24] sm:$0xf] %v749
        %783 = vst [vmem:[%s772 + $0x28] sm:$0xf] %v750
        %784 = vst [vmem:[%s772 + $0x2c] sm:$0xf] %v751
        %785 = vst [vmem:[%s772 + $0x30] sm:$0xf] %v752
        %786 = vst [vmem:[%s772 + $0x34] sm:$0xf] %v753
        %787 = vst [vmem:[%s772 + $0x38] sm:$0xf] %v754
        %788 = vst [vmem:[%s772 + $0x3c] sm:$0xf] %v755
        %789 = vst [vmem:[%s772 + $0x40] sm:$0xf] %v756
        %790 = vst [vmem:[%s772 + $0x44] sm:$0xf] %v757
        %791 = vst [vmem:[%s772 + $0x48] sm:$0xf] %v758
        %792 = vst [vmem:[%s772 + $0x4c] sm:$0xf] %v759
        %793 = vst [vmem:[%s772 + $0x50] sm:$0xf] %v760
        %794 = vst [vmem:[%s772 + $0x54] sm:$0xf] %v761
        %795 = vst [vmem:[%s772 + $0x58] sm:$0xf] %v762
        %796 = vst [vmem:[%s772 + $0x5c] sm:$0xf] %v763
        %797 = vst [vmem:[%s772 + $0x60] sm:$0xf] %v764
        %798 = vst [vmem:[%s772 + $0x64] sm:$0xf] %v765
        %799 = vst [vmem:[%s772 + $0x68] sm:$0xf] %v766
        %800 = vst [vmem:[%s772 + $0x6c] sm:$0xf] %v767
        %801 = vst [vmem:[%s772 + $0x70] sm:$0xf] %v768
        %802 = vst [vmem:[%s772 + $0x74] sm:$0xf] %v769
        %803 = vst [vmem:[%s772 + $0x78] sm:$0xf] %v770
        %804 = vst [vmem:[%s772 + $0x7c] sm:$0xf] %v771
        %s805 = scalar_lea.vmem %s2, 8
        %v806 = vld [vmem:[%s805] sm:$0xf]
        %v808 = vsel %vm489, %v806, 0
        %810 = vmatpush.bf16.msra.mxu0 0
        %811 = vmatpush.bf16.msra.mxu0 0
        %812 = vmatpush.bf16.msra.mxu0 0
        %813 = vmatpush.bf16.msra.mxu0 0
        %814 = vmatpush.bf16.msra.mxu0 0
        %815 = vmatpush.bf16.msra.mxu0 0
        %816 = vmatpush.bf16.msra.mxu0 0
        %817 = vmatpush.bf16.msra.mxu0 %v808
        %818 = vmatmul.bf16.gmra.mxu0 %v442
        %v819 = vpop.f32.mrf.mxu0
        %v820 = vadd.f32 0.0, %v819
        %v821 = vpop.f32.mrf.mxu0
        %v822 = vadd.f32 0.0, %v821
        %823 = vmatmul.bf16.gmra.mxu0 %v445
        %v824 = vpop.f32.mrf.mxu0
        %v825 = vadd.f32 0.0, %v824
        %v826 = vpop.f32.mrf.mxu0
        %v827 = vadd.f32 0.0, %v826
        %828 = vmatmul.bf16.gmra.mxu0 %v448
        %v829 = vpop.f32.mrf.mxu0
        %v830 = vadd.f32 0.0, %v829
        %v831 = vpop.f32.mrf.mxu0
        %v832 = vadd.f32 0.0, %v831
        %833 = vmatmul.bf16.gmra.mxu0 %v451
        %v834 = vpop.f32.mrf.mxu0
        %v835 = vadd.f32 0.0, %v834
        %v836 = vpop.f32.mrf.mxu0
        %v837 = vadd.f32 0.0, %v836
        %838 = vmatmul.bf16.gmra.mxu0 %v454
        %v839 = vpop.f32.mrf.mxu0
        %v840 = vadd.f32 0.0, %v839
        %v841 = vpop.f32.mrf.mxu0
        %v842 = vadd.f32 0.0, %v841
        %843 = vmatmul.bf16.gmra.mxu0 %v457
        %v844 = vpop.f32.mrf.mxu0
        %v845 = vadd.f32 0.0, %v844
        %v846 = vpop.f32.mrf.mxu0
        %v847 = vadd.f32 0.0, %v846
        %848 = vmatmul.bf16.gmra.mxu0 %v460
        %v849 = vpop.f32.mrf.mxu0
        %v850 = vadd.f32 0.0, %v849
        %v851 = vpop.f32.mrf.mxu0
        %v852 = vadd.f32 0.0, %v851
        %853 = vmatmul.bf16.gmra.mxu0 %v463
        %v854 = vpop.f32.mrf.mxu0
        %v855 = vadd.f32 0.0, %v854
        %v856 = vpop.f32.mrf.mxu0
        %v857 = vadd.f32 0.0, %v856
        %858 = vmatmul.bf16.gmra.mxu0 %v466
        %v859 = vpop.f32.mrf.mxu0
        %v860 = vadd.f32 0.0, %v859
        %v861 = vpop.f32.mrf.mxu0
        %v862 = vadd.f32 0.0, %v861
        %863 = vmatmul.bf16.gmra.mxu0 %v469
        %v864 = vpop.f32.mrf.mxu0
        %v865 = vadd.f32 0.0, %v864
        %v866 = vpop.f32.mrf.mxu0
        %v867 = vadd.f32 0.0, %v866
        %868 = vmatmul.bf16.gmra.mxu0 %v472
        %v869 = vpop.f32.mrf.mxu0
        %v870 = vadd.f32 0.0, %v869
        %v871 = vpop.f32.mrf.mxu0
        %v872 = vadd.f32 0.0, %v871
        %873 = vmatmul.bf16.gmra.mxu0 %v475
        %v874 = vpop.f32.mrf.mxu0
        %v875 = vadd.f32 0.0, %v874
        %v876 = vpop.f32.mrf.mxu0
        %v877 = vadd.f32 0.0, %v876
        %878 = vmatmul.bf16.gmra.mxu0 %v478
        %v879 = vpop.f32.mrf.mxu0
        %v880 = vadd.f32 0.0, %v879
        %v881 = vpop.f32.mrf.mxu0
        %v882 = vadd.f32 0.0, %v881
        %883 = vmatmul.bf16.gmra.mxu0 %v481
        %v884 = vpop.f32.mrf.mxu0
        %v885 = vadd.f32 0.0, %v884
        %v886 = vpop.f32.mrf.mxu0
        %v887 = vadd.f32 0.0, %v886
        %888 = vmatmul.bf16.gmra.mxu0 %v484
        %v889 = vpop.f32.mrf.mxu0
        %v890 = vadd.f32 0.0, %v889
        %v891 = vpop.f32.mrf.mxu0
        %v892 = vadd.f32 0.0, %v891
        %893 = vmatmul.bf16.gmra.mxu0 %v487
        %v894 = vpop.f32.mrf.mxu0
        %v895 = vadd.f32 0.0, %v894
        %v896 = vpop.f32.mrf.mxu0
        %v897 = vadd.f32 0.0, %v896
        %898 = vdwg.mxu0
        %v899 = vpack.c.bf16 %v820, %v820
        %v900 = vpack.c.bf16 %v822, %v822
        %v901 = vpack.c.bf16 %v825, %v825
        %v902 = vpack.c.bf16 %v827, %v827
        %v903 = vpack.c.bf16 %v830, %v830
        %v904 = vpack.c.bf16 %v832, %v832
        %v905 = vpack.c.bf16 %v835, %v835
        %v906 = vpack.c.bf16 %v837, %v837
        %v907 = vpack.c.bf16 %v840, %v840
        %v908 = vpack.c.bf16 %v842, %v842
        %v909 = vpack.c.bf16 %v845, %v845
        %v910 = vpack.c.bf16 %v847, %v847
        %v911 = vpack.c.bf16 %v850, %v850
        %v912 = vpack.c.bf16 %v852, %v852
        %v913 = vpack.c.bf16 %v855, %v855
        %v914 = vpack.c.bf16 %v857, %v857
        %v915 = vpack.c.bf16 %v860, %v860
        %v916 = vpack.c.bf16 %v862, %v862
        %v917 = vpack.c.bf16 %v865, %v865
        %v918 = vpack.c.bf16 %v867, %v867
        %v919 = vpack.c.bf16 %v870, %v870
        %v920 = vpack.c.bf16 %v872, %v872
        %v921 = vpack.c.bf16 %v875, %v875
        %v922 = vpack.c.bf16 %v877, %v877
        %v923 = vpack.c.bf16 %v880, %v880
        %v924 = vpack.c.bf16 %v882, %v882
        %v925 = vpack.c.bf16 %v885, %v885
        %v926 = vpack.c.bf16 %v887, %v887
        %v927 = vpack.c.bf16 %v890, %v890
        %v928 = vpack.c.bf16 %v892, %v892
        %v929 = vpack.c.bf16 %v895, %v895
        %v930 = vpack.c.bf16 %v897, %v897
        %s931 = scalar_lea.vmem [#allocation2], 256
        %932 = vst [vmem:[%s931] sm:$0xf] %v899
        %933 = vst [vmem:[%s931 + $0x4] sm:$0xf] %v900
        %934 = vst [vmem:[%s931 + $0x8] sm:$0xf] %v901
        %935 = vst [vmem:[%s931 + $0xc] sm:$0xf] %v902
        %936 = vst [vmem:[%s931 + $0x10] sm:$0xf] %v903
        %937 = vst [vmem:[%s931 + $0x14] sm:$0xf] %v904
        %938 = vst [vmem:[%s931 + $0x18] sm:$0xf] %v905
        %939 = vst [vmem:[%s931 + $0x1c] sm:$0xf] %v906
        %940 = vst [vmem:[%s931 + $0x20] sm:$0xf] %v907
        %941 = vst [vmem:[%s931 + $0x24] sm:$0xf] %v908
        %942 = vst [vmem:[%s931 + $0x28] sm:$0xf] %v909
        %943 = vst [vmem:[%s931 + $0x2c] sm:$0xf] %v910
        %944 = vst [vmem:[%s931 + $0x30] sm:$0xf] %v911
        %945 = vst [vmem:[%s931 + $0x34] sm:$0xf] %v912
        %946 = vst [vmem:[%s931 + $0x38] sm:$0xf] %v913
        %947 = vst [vmem:[%s931 + $0x3c] sm:$0xf] %v914
        %948 = vst [vmem:[%s931 + $0x40] sm:$0xf] %v915
        %949 = vst [vmem:[%s931 + $0x44] sm:$0xf] %v916
        %950 = vst [vmem:[%s931 + $0x48] sm:$0xf] %v917
        %951 = vst [vmem:[%s931 + $0x4c] sm:$0xf] %v918
        %952 = vst [vmem:[%s931 + $0x50] sm:$0xf] %v919
        %953 = vst [vmem:[%s931 + $0x54] sm:$0xf] %v920
        %954 = vst [vmem:[%s931 + $0x58] sm:$0xf] %v921
        %955 = vst [vmem:[%s931 + $0x5c] sm:$0xf] %v922
        %956 = vst [vmem:[%s931 + $0x60] sm:$0xf] %v923
        %957 = vst [vmem:[%s931 + $0x64] sm:$0xf] %v924
        %958 = vst [vmem:[%s931 + $0x68] sm:$0xf] %v925
        %959 = vst [vmem:[%s931 + $0x6c] sm:$0xf] %v926
        %960 = vst [vmem:[%s931 + $0x70] sm:$0xf] %v927
        %961 = vst [vmem:[%s931 + $0x74] sm:$0xf] %v928
        %962 = vst [vmem:[%s931 + $0x78] sm:$0xf] %v929
        %963 = vst [vmem:[%s931 + $0x7c] sm:$0xf] %v930
        %s964 = scalar_lea.vmem %s2, 12
        %v965 = vld [vmem:[%s964] sm:$0xf]
        %v967 = vsel %vm489, %v965, 0
        %969 = vmatpush.bf16.msra.mxu0 0
        %970 = vmatpush.bf16.msra.mxu0 0
        %971 = vmatpush.bf16.msra.mxu0 0
        %972 = vmatpush.bf16.msra.mxu0 0
        %973 = vmatpush.bf16.msra.mxu0 0
        %974 = vmatpush.bf16.msra.mxu0 0
        %975 = vmatpush.bf16.msra.mxu0 0
        %976 = vmatpush.bf16.msra.mxu0 %v967
        %977 = vmatmul.bf16.gmra.mxu0 %v442
        %v978 = vpop.f32.mrf.mxu0
        %v979 = vadd.f32 0.0, %v978
        %v980 = vpop.f32.mrf.mxu0
        %v981 = vadd.f32 0.0, %v980
        %982 = vmatmul.bf16.gmra.mxu0 %v445
        %v983 = vpop.f32.mrf.mxu0
        %v984 = vadd.f32 0.0, %v983
        %v985 = vpop.f32.mrf.mxu0
        %v986 = vadd.f32 0.0, %v985
        %987 = vmatmul.bf16.gmra.mxu0 %v448
        %v988 = vpop.f32.mrf.mxu0
        %v989 = vadd.f32 0.0, %v988
        %v990 = vpop.f32.mrf.mxu0
        %v991 = vadd.f32 0.0, %v990
        %992 = vmatmul.bf16.gmra.mxu0 %v451
        %v993 = vpop.f32.mrf.mxu0
        %v994 = vadd.f32 0.0, %v993
        %v995 = vpop.f32.mrf.mxu0
        %v996 = vadd.f32 0.0, %v995
        %997 = vmatmul.bf16.gmra.mxu0 %v454
        %v998 = vpop.f32.mrf.mxu0
        %v999 = vadd.f32 0.0, %v998
        %v1000 = vpop.f32.mrf.mxu0
        %v1001 = vadd.f32 0.0, %v1000
        %1002 = vmatmul.bf16.gmra.mxu0 %v457
        %v1003 = vpop.f32.mrf.mxu0
        %v1004 = vadd.f32 0.0, %v1003
        %v1005 = vpop.f32.mrf.mxu0
        %v1006 = vadd.f32 0.0, %v1005
        %1007 = vmatmul.bf16.gmra.mxu0 %v460
        %v1008 = vpop.f32.mrf.mxu0
        %v1009 = vadd.f32 0.0, %v1008
        %v1010 = vpop.f32.mrf.mxu0
        %v1011 = vadd.f32 0.0, %v1010
        %1012 = vmatmul.bf16.gmra.mxu0 %v463
        %v1013 = vpop.f32.mrf.mxu0
        %v1014 = vadd.f32 0.0, %v1013
        %v1015 = vpop.f32.mrf.mxu0
        %v1016 = vadd.f32 0.0, %v1015
        %1017 = vmatmul.bf16.gmra.mxu0 %v466
        %v1018 = vpop.f32.mrf.mxu0
        %v1019 = vadd.f32 0.0, %v1018
        %v1020 = vpop.f32.mrf.mxu0
        %v1021 = vadd.f32 0.0, %v1020
        %1022 = vmatmul.bf16.gmra.mxu0 %v469
        %v1023 = vpop.f32.mrf.mxu0
        %v1024 = vadd.f32 0.0, %v1023
        %v1025 = vpop.f32.mrf.mxu0
        %v1026 = vadd.f32 0.0, %v1025
        %1027 = vmatmul.bf16.gmra.mxu0 %v472
        %v1028 = vpop.f32.mrf.mxu0
        %v1029 = vadd.f32 0.0, %v1028
        %v1030 = vpop.f32.mrf.mxu0
        %v1031 = vadd.f32 0.0, %v1030
        %1032 = vmatmul.bf16.gmra.mxu0 %v475
        %v1033 = vpop.f32.mrf.mxu0
        %v1034 = vadd.f32 0.0, %v1033
        %v1035 = vpop.f32.mrf.mxu0
        %v1036 = vadd.f32 0.0, %v1035
        %1037 = vmatmul.bf16.gmra.mxu0 %v478
        %v1038 = vpop.f32.mrf.mxu0
        %v1039 = vadd.f32 0.0, %v1038
        %v1040 = vpop.f32.mrf.mxu0
        %v1041 = vadd.f32 0.0, %v1040
        %1042 = vmatmul.bf16.gmra.mxu0 %v481
        %v1043 = vpop.f32.mrf.mxu0
        %v1044 = vadd.f32 0.0, %v1043
        %v1045 = vpop.f32.mrf.mxu0
        %v1046 = vadd.f32 0.0, %v1045
        %1047 = vmatmul.bf16.gmra.mxu0 %v484
        %v1048 = vpop.f32.mrf.mxu0
        %v1049 = vadd.f32 0.0, %v1048
        %v1050 = vpop.f32.mrf.mxu0
        %v1051 = vadd.f32 0.0, %v1050
        %1052 = vmatmul.bf16.gmra.mxu0 %v487
        %v1053 = vpop.f32.mrf.mxu0
        %v1054 = vadd.f32 0.0, %v1053
        %v1055 = vpop.f32.mrf.mxu0
        %v1056 = vadd.f32 0.0, %v1055
        %1057 = vdwg.mxu0
        %v1058 = vpack.c.bf16 %v979, %v979
        %v1059 = vpack.c.bf16 %v981, %v981
        %v1060 = vpack.c.bf16 %v984, %v984
        %v1061 = vpack.c.bf16 %v986, %v986
        %v1062 = vpack.c.bf16 %v989, %v989
        %v1063 = vpack.c.bf16 %v991, %v991
        %v1064 = vpack.c.bf16 %v994, %v994
        %v1065 = vpack.c.bf16 %v996, %v996
        %v1066 = vpack.c.bf16 %v999, %v999
        %v1067 = vpack.c.bf16 %v1001, %v1001
        %v1068 = vpack.c.bf16 %v1004, %v1004
        %v1069 = vpack.c.bf16 %v1006, %v1006
        %v1070 = vpack.c.bf16 %v1009, %v1009
        %v1071 = vpack.c.bf16 %v1011, %v1011
        %v1072 = vpack.c.bf16 %v1014, %v1014
        %v1073 = vpack.c.bf16 %v1016, %v1016
        %v1074 = vpack.c.bf16 %v1019, %v1019
        %v1075 = vpack.c.bf16 %v1021, %v1021
        %v1076 = vpack.c.bf16 %v1024, %v1024
        %v1077 = vpack.c.bf16 %v1026, %v1026
        %v1078 = vpack.c.bf16 %v1029, %v1029
        %v1079 = vpack.c.bf16 %v1031, %v1031
        %v1080 = vpack.c.bf16 %v1034, %v1034
        %v1081 = vpack.c.bf16 %v1036, %v1036
        %v1082 = vpack.c.bf16 %v1039, %v1039
        %v1083 = vpack.c.bf16 %v1041, %v1041
        %v1084 = vpack.c.bf16 %v1044, %v1044
        %v1085 = vpack.c.bf16 %v1046, %v1046
        %v1086 = vpack.c.bf16 %v1049, %v1049
        %v1087 = vpack.c.bf16 %v1051, %v1051
        %v1088 = vpack.c.bf16 %v1054, %v1054
        %v1089 = vpack.c.bf16 %v1056, %v1056
        %s1090 = scalar_lea.vmem [#allocation2], 384
        %1091 = vst [vmem:[%s1090] sm:$0xf] %v1058
        %1092 = vst [vmem:[%s1090 + $0x4] sm:$0xf] %v1059
        %1093 = vst [vmem:[%s1090 + $0x8] sm:$0xf] %v1060
        %1094 = vst [vmem:[%s1090 + $0xc] sm:$0xf] %v1061
        %1095 = vst [vmem:[%s1090 + $0x10] sm:$0xf] %v1062
        %1096 = vst [vmem:[%s1090 + $0x14] sm:$0xf] %v1063
        %1097 = vst [vmem:[%s1090 + $0x18] sm:$0xf] %v1064
        %1098 = vst [vmem:[%s1090 + $0x1c] sm:$0xf] %v1065
        %1099 = vst [vmem:[%s1090 + $0x20] sm:$0xf] %v1066
        %1100 = vst [vmem:[%s1090 + $0x24] sm:$0xf] %v1067
        %1101 = vst [vmem:[%s1090 + $0x28] sm:$0xf] %v1068
        %1102 = vst [vmem:[%s1090 + $0x2c] sm:$0xf] %v1069
        %1103 = vst [vmem:[%s1090 + $0x30] sm:$0xf] %v1070
        %1104 = vst [vmem:[%s1090 + $0x34] sm:$0xf] %v1071
        %1105 = vst [vmem:[%s1090 + $0x38] sm:$0xf] %v1072
        %1106 = vst [vmem:[%s1090 + $0x3c] sm:$0xf] %v1073
        %1107 = vst [vmem:[%s1090 + $0x40] sm:$0xf] %v1074
        %1108 = vst [vmem:[%s1090 + $0x44] sm:$0xf] %v1075
        %1109 = vst [vmem:[%s1090 + $0x48] sm:$0xf] %v1076
        %1110 = vst [vmem:[%s1090 + $0x4c] sm:$0xf] %v1077
        %1111 = vst [vmem:[%s1090 + $0x50] sm:$0xf] %v1078
        %1112 = vst [vmem:[%s1090 + $0x54] sm:$0xf] %v1079
        %1113 = vst [vmem:[%s1090 + $0x58] sm:$0xf] %v1080
        %1114 = vst [vmem:[%s1090 + $0x5c] sm:$0xf] %v1081
        %1115 = vst [vmem:[%s1090 + $0x60] sm:$0xf] %v1082
        %1116 = vst [vmem:[%s1090 + $0x64] sm:$0xf] %v1083
        %1117 = vst [vmem:[%s1090 + $0x68] sm:$0xf] %v1084
        %1118 = vst [vmem:[%s1090 + $0x6c] sm:$0xf] %v1085
        %1119 = vst [vmem:[%s1090 + $0x70] sm:$0xf] %v1086
        %1120 = vst [vmem:[%s1090 + $0x74] sm:$0xf] %v1087
        %1121 = vst [vmem:[%s1090 + $0x78] sm:$0xf] %v1088
        %1122 = vst [vmem:[%s1090 + $0x7c] sm:$0xf] %v1089
        %s1123 = scalar_lea.vmem %s2, 16
        %v1124 = vld [vmem:[%s1123] sm:$0xf]
        %v1126 = vsel %vm489, %v1124, 0
        %1128 = vmatpush.bf16.msra.mxu0 0
        %1129 = vmatpush.bf16.msra.mxu0 0
        %1130 = vmatpush.bf16.msra.mxu0 0
        %1131 = vmatpush.bf16.msra.mxu0 0
        %1132 = vmatpush.bf16.msra.mxu0 0
        %1133 = vmatpush.bf16.msra.mxu0 0
        %1134 = vmatpush.bf16.msra.mxu0 0
        %1135 = vmatpush.bf16.msra.mxu0 %v1126
        %1136 = vmatmul.bf16.gmra.mxu0 %v442
        %v1137 = vpop.f32.mrf.mxu0
        %v1138 = vadd.f32 0.0, %v1137
        %v1139 = vpop.f32.mrf.mxu0
        %v1140 = vadd.f32 0.0, %v1139
        %1141 = vmatmul.bf16.gmra.mxu0 %v445
        %v1142 = vpop.f32.mrf.mxu0
        %v1143 = vadd.f32 0.0, %v1142
        %v1144 = vpop.f32.mrf.mxu0
        %v1145 = vadd.f32 0.0, %v1144
        %1146 = vmatmul.bf16.gmra.mxu0 %v448
        %v1147 = vpop.f32.mrf.mxu0
        %v1148 = vadd.f32 0.0, %v1147
        %v1149 = vpop.f32.mrf.mxu0
        %v1150 = vadd.f32 0.0, %v1149
        %1151 = vmatmul.bf16.gmra.mxu0 %v451
        %v1152 = vpop.f32.mrf.mxu0
        %v1153 = vadd.f32 0.0, %v1152
        %v1154 = vpop.f32.mrf.mxu0
        %v1155 = vadd.f32 0.0, %v1154
        %1156 = vmatmul.bf16.gmra.mxu0 %v454
        %v1157 = vpop.f32.mrf.mxu0
        %v1158 = vadd.f32 0.0, %v1157
        %v1159 = vpop.f32.mrf.mxu0
        %v1160 = vadd.f32 0.0, %v1159
        %1161 = vmatmul.bf16.gmra.mxu0 %v457
        %v1162 = vpop.f32.mrf.mxu0
        %v1163 = vadd.f32 0.0, %v1162
        %v1164 = vpop.f32.mrf.mxu0
        %v1165 = vadd.f32 0.0, %v1164
        %1166 = vmatmul.bf16.gmra.mxu0 %v460
        %v1167 = vpop.f32.mrf.mxu0
        %v1168 = vadd.f32 0.0, %v1167
        %v1169 = vpop.f32.mrf.mxu0
        %v1170 = vadd.f32 0.0, %v1169
        %1171 = vmatmul.bf16.gmra.mxu0 %v463
        %v1172 = vpop.f32.mrf.mxu0
        %v1173 = vadd.f32 0.0, %v1172
        %v1174 = vpop.f32.mrf.mxu0
        %v1175 = vadd.f32 0.0, %v1174
        %1176 = vmatmul.bf16.gmra.mxu0 %v466
        %v1177 = vpop.f32.mrf.mxu0
        %v1178 = vadd.f32 0.0, %v1177
        %v1179 = vpop.f32.mrf.mxu0
        %v1180 = vadd.f32 0.0, %v1179
        %1181 = vmatmul.bf16.gmra.mxu0 %v469
        %v1182 = vpop.f32.mrf.mxu0
        %v1183 = vadd.f32 0.0, %v1182
        %v1184 = vpop.f32.mrf.mxu0
        %v1185 = vadd.f32 0.0, %v1184
        %1186 = vmatmul.bf16.gmra.mxu0 %v472
        %v1187 = vpop.f32.mrf.mxu0
        %v1188 = vadd.f32 0.0, %v1187
        %v1189 = vpop.f32.mrf.mxu0
        %v1190 = vadd.f32 0.0, %v1189
        %1191 = vmatmul.bf16.gmra.mxu0 %v475
        %v1192 = vpop.f32.mrf.mxu0
        %v1193 = vadd.f32 0.0, %v1192
        %v1194 = vpop.f32.mrf.mxu0
        %v1195 = vadd.f32 0.0, %v1194
        %1196 = vmatmul.bf16.gmra.mxu0 %v478
        %v1197 = vpop.f32.mrf.mxu0
        %v1198 = vadd.f32 0.0, %v1197
        %v1199 = vpop.f32.mrf.mxu0
        %v1200 = vadd.f32 0.0, %v1199
        %1201 = vmatmul.bf16.gmra.mxu0 %v481
        %v1202 = vpop.f32.mrf.mxu0
        %v1203 = vadd.f32 0.0, %v1202
        %v1204 = vpop.f32.mrf.mxu0
        %v1205 = vadd.f32 0.0, %v1204
        %1206 = vmatmul.bf16.gmra.mxu0 %v484
        %v1207 = vpop.f32.mrf.mxu0
        %v1208 = vadd.f32 0.0, %v1207
        %v1209 = vpop.f32.mrf.mxu0
        %v1210 = vadd.f32 0.0, %v1209
        %1211 = vmatmul.bf16.gmra.mxu0 %v487
        %v1212 = vpop.f32.mrf.mxu0
        %v1213 = vadd.f32 0.0, %v1212
        %v1214 = vpop.f32.mrf.mxu0
        %v1215 = vadd.f32 0.0, %v1214
        %1216 = vdwg.mxu0
        %v1217 = vpack.c.bf16 %v1138, %v1138
        %v1218 = vpack.c.bf16 %v1140, %v1140
        %v1219 = vpack.c.bf16 %v1143, %v1143
        %v1220 = vpack.c.bf16 %v1145, %v1145
        %v1221 = vpack.c.bf16 %v1148, %v1148
        %v1222 = vpack.c.bf16 %v1150, %v1150
        %v1223 = vpack.c.bf16 %v1153, %v1153
        %v1224 = vpack.c.bf16 %v1155, %v1155
        %v1225 = vpack.c.bf16 %v1158, %v1158
        %v1226 = vpack.c.bf16 %v1160, %v1160
        %v1227 = vpack.c.bf16 %v1163, %v1163
        %v1228 = vpack.c.bf16 %v1165, %v1165
        %v1229 = vpack.c.bf16 %v1168, %v1168
        %v1230 = vpack.c.bf16 %v1170, %v1170
        %v1231 = vpack.c.bf16 %v1173, %v1173
        %v1232 = vpack.c.bf16 %v1175, %v1175
        %v1233 = vpack.c.bf16 %v1178, %v1178
        %v1234 = vpack.c.bf16 %v1180, %v1180
        %v1235 = vpack.c.bf16 %v1183, %v1183
        %v1236 = vpack.c.bf16 %v1185, %v1185
        %v1237 = vpack.c.bf16 %v1188, %v1188
        %v1238 = vpack.c.bf16 %v1190, %v1190
        %v1239 = vpack.c.bf16 %v1193, %v1193
        %v1240 = vpack.c.bf16 %v1195, %v1195
        %v1241 = vpack.c.bf16 %v1198, %v1198
        %v1242 = vpack.c.bf16 %v1200, %v1200
        %v1243 = vpack.c.bf16 %v1203, %v1203
        %v1244 = vpack.c.bf16 %v1205, %v1205
        %v1245 = vpack.c.bf16 %v1208, %v1208
        %v1246 = vpack.c.bf16 %v1210, %v1210
        %v1247 = vpack.c.bf16 %v1213, %v1213
        %v1248 = vpack.c.bf16 %v1215, %v1215
        %s1249 = scalar_lea.vmem [#allocation2], 512
        %1250 = vst [vmem:[%s1249] sm:$0xf] %v1217
        %1251 = vst [vmem:[%s1249 + $0x4] sm:$0xf] %v1218
        %1252 = vst [vmem:[%s1249 + $0x8] sm:$0xf] %v1219
        %1253 = vst [vmem:[%s1249 + $0xc] sm:$0xf] %v1220
        %1254 = vst [vmem:[%s1249 + $0x10] sm:$0xf] %v1221
        %1255 = vst [vmem:[%s1249 + $0x14] sm:$0xf] %v1222
        %1256 = vst [vmem:[%s1249 + $0x18] sm:$0xf] %v1223
        %1257 = vst [vmem:[%s1249 + $0x1c] sm:$0xf] %v1224
        %1258 = vst [vmem:[%s1249 + $0x20] sm:$0xf] %v1225
        %1259 = vst [vmem:[%s1249 + $0x24] sm:$0xf] %v1226
        %1260 = vst [vmem:[%s1249 + $0x28] sm:$0xf] %v1227
        %1261 = vst [vmem:[%s1249 + $0x2c] sm:$0xf] %v1228
        %1262 = vst [vmem:[%s1249 + $0x30] sm:$0xf] %v1229
        %1263 = vst [vmem:[%s1249 + $0x34] sm:$0xf] %v1230
        %1264 = vst [vmem:[%s1249 + $0x38] sm:$0xf] %v1231
        %1265 = vst [vmem:[%s1249 + $0x3c] sm:$0xf] %v1232
        %1266 = vst [vmem:[%s1249 + $0x40] sm:$0xf] %v1233
        %1267 = vst [vmem:[%s1249 + $0x44] sm:$0xf] %v1234
        %1268 = vst [vmem:[%s1249 + $0x48] sm:$0xf] %v1235
        %1269 = vst [vmem:[%s1249 + $0x4c] sm:$0xf] %v1236
        %1270 = vst [vmem:[%s1249 + $0x50] sm:$0xf] %v1237
        %1271 = vst [vmem:[%s1249 + $0x54] sm:$0xf] %v1238
        %1272 = vst [vmem:[%s1249 + $0x58] sm:$0xf] %v1239
        %1273 = vst [vmem:[%s1249 + $0x5c] sm:$0xf] %v1240
        %1274 = vst [vmem:[%s1249 + $0x60] sm:$0xf] %v1241
        %1275 = vst [vmem:[%s1249 + $0x64] sm:$0xf] %v1242
        %1276 = vst [vmem:[%s1249 + $0x68] sm:$0xf] %v1243
        %1277 = vst [vmem:[%s1249 + $0x6c] sm:$0xf] %v1244
        %1278 = vst [vmem:[%s1249 + $0x70] sm:$0xf] %v1245
        %1279 = vst [vmem:[%s1249 + $0x74] sm:$0xf] %v1246
        %1280 = vst [vmem:[%s1249 + $0x78] sm:$0xf] %v1247
        %1281 = vst [vmem:[%s1249 + $0x7c] sm:$0xf] %v1248
        %s1282 = scalar_lea.vmem %s2, 20
        %v1283 = vld [vmem:[%s1282] sm:$0xf]
        %v1285 = vsel %vm489, %v1283, 0
        %1287 = vmatpush.bf16.msra.mxu0 0
        %1288 = vmatpush.bf16.msra.mxu0 0
        %1289 = vmatpush.bf16.msra.mxu0 0
        %1290 = vmatpush.bf16.msra.mxu0 0
        %1291 = vmatpush.bf16.msra.mxu0 0
        %1292 = vmatpush.bf16.msra.mxu0 0
        %1293 = vmatpush.bf16.msra.mxu0 0
        %1294 = vmatpush.bf16.msra.mxu0 %v1285
        %1295 = vmatmul.bf16.gmra.mxu0 %v442
        %v1296 = vpop.f32.mrf.mxu0
        %v1297 = vadd.f32 0.0, %v1296
        %v1298 = vpop.f32.mrf.mxu0
        %v1299 = vadd.f32 0.0, %v1298
        %1300 = vmatmul.bf16.gmra.mxu0 %v445
        %v1301 = vpop.f32.mrf.mxu0
        %v1302 = vadd.f32 0.0, %v1301
        %v1303 = vpop.f32.mrf.mxu0
        %v1304 = vadd.f32 0.0, %v1303
        %1305 = vmatmul.bf16.gmra.mxu0 %v448
        %v1306 = vpop.f32.mrf.mxu0
        %v1307 = vadd.f32 0.0, %v1306
        %v1308 = vpop.f32.mrf.mxu0
        %v1309 = vadd.f32 0.0, %v1308
        %1310 = vmatmul.bf16.gmra.mxu0 %v451
        %v1311 = vpop.f32.mrf.mxu0
        %v1312 = vadd.f32 0.0, %v1311
        %v1313 = vpop.f32.mrf.mxu0
        %v1314 = vadd.f32 0.0, %v1313
        %1315 = vmatmul.bf16.gmra.mxu0 %v454
        %v1316 = vpop.f32.mrf.mxu0
        %v1317 = vadd.f32 0.0, %v1316
        %v1318 = vpop.f32.mrf.mxu0
        %v1319 = vadd.f32 0.0, %v1318
        %1320 = vmatmul.bf16.gmra.mxu0 %v457
        %v1321 = vpop.f32.mrf.mxu0
        %v1322 = vadd.f32 0.0, %v1321
        %v1323 = vpop.f32.mrf.mxu0
        %v1324 = vadd.f32 0.0, %v1323
        %1325 = vmatmul.bf16.gmra.mxu0 %v460
        %v1326 = vpop.f32.mrf.mxu0
        %v1327 = vadd.f32 0.0, %v1326
        %v1328 = vpop.f32.mrf.mxu0
        %v1329 = vadd.f32 0.0, %v1328
        %1330 = vmatmul.bf16.gmra.mxu0 %v463
        %v1331 = vpop.f32.mrf.mxu0
        %v1332 = vadd.f32 0.0, %v1331
        %v1333 = vpop.f32.mrf.mxu0
        %v1334 = vadd.f32 0.0, %v1333
        %1335 = vmatmul.bf16.gmra.mxu0 %v466
        %v1336 = vpop.f32.mrf.mxu0
        %v1337 = vadd.f32 0.0, %v1336
        %v1338 = vpop.f32.mrf.mxu0
        %v1339 = vadd.f32 0.0, %v1338
        %1340 = vmatmul.bf16.gmra.mxu0 %v469
        %v1341 = vpop.f32.mrf.mxu0
        %v1342 = vadd.f32 0.0, %v1341
        %v1343 = vpop.f32.mrf.mxu0
        %v1344 = vadd.f32 0.0, %v1343
        %1345 = vmatmul.bf16.gmra.mxu0 %v472
        %v1346 = vpop.f32.mrf.mxu0
        %v1347 = vadd.f32 0.0, %v1346
        %v1348 = vpop.f32.mrf.mxu0
        %v1349 = vadd.f32 0.0, %v1348
        %1350 = vmatmul.bf16.gmra.mxu0 %v475
        %v1351 = vpop.f32.mrf.mxu0
        %v1352 = vadd.f32 0.0, %v1351
        %v1353 = vpop.f32.mrf.mxu0
        %v1354 = vadd.f32 0.0, %v1353
        %1355 = vmatmul.bf16.gmra.mxu0 %v478
        %v1356 = vpop.f32.mrf.mxu0
        %v1357 = vadd.f32 0.0, %v1356
        %v1358 = vpop.f32.mrf.mxu0
        %v1359 = vadd.f32 0.0, %v1358
        %1360 = vmatmul.bf16.gmra.mxu0 %v481
        %v1361 = vpop.f32.mrf.mxu0
        %v1362 = vadd.f32 0.0, %v1361
        %v1363 = vpop.f32.mrf.mxu0
        %v1364 = vadd.f32 0.0, %v1363
        %1365 = vmatmul.bf16.gmra.mxu0 %v484
        %v1366 = vpop.f32.mrf.mxu0
        %v1367 = vadd.f32 0.0, %v1366
        %v1368 = vpop.f32.mrf.mxu0
        %v1369 = vadd.f32 0.0, %v1368
        %1370 = vmatmul.bf16.gmra.mxu0 %v487
        %v1371 = vpop.f32.mrf.mxu0
        %v1372 = vadd.f32 0.0, %v1371
        %v1373 = vpop.f32.mrf.mxu0
        %v1374 = vadd.f32 0.0, %v1373
        %1375 = vdwg.mxu0
        %v1376 = vpack.c.bf16 %v1297, %v1297
        %v1377 = vpack.c.bf16 %v1299, %v1299
        %v1378 = vpack.c.bf16 %v1302, %v1302
        %v1379 = vpack.c.bf16 %v1304, %v1304
        %v1380 = vpack.c.bf16 %v1307, %v1307
        %v1381 = vpack.c.bf16 %v1309, %v1309
        %v1382 = vpack.c.bf16 %v1312, %v1312
        %v1383 = vpack.c.bf16 %v1314, %v1314
        %v1384 = vpack.c.bf16 %v1317, %v1317
        %v1385 = vpack.c.bf16 %v1319, %v1319
        %v1386 = vpack.c.bf16 %v1322, %v1322
        %v1387 = vpack.c.bf16 %v1324, %v1324
        %v1388 = vpack.c.bf16 %v1327, %v1327
        %v1389 = vpack.c.bf16 %v1329, %v1329
        %v1390 = vpack.c.bf16 %v1332, %v1332
        %v1391 = vpack.c.bf16 %v1334, %v1334
        %v1392 = vpack.c.bf16 %v1337, %v1337
        %v1393 = vpack.c.bf16 %v1339, %v1339
        %v1394 = vpack.c.bf16 %v1342, %v1342
        %v1395 = vpack.c.bf16 %v1344, %v1344
        %v1396 = vpack.c.bf16 %v1347, %v1347
        %v1397 = vpack.c.bf16 %v1349, %v1349
        %v1398 = vpack.c.bf16 %v1352, %v1352
        %v1399 = vpack.c.bf16 %v1354, %v1354
        %v1400 = vpack.c.bf16 %v1357, %v1357
        %v1401 = vpack.c.bf16 %v1359, %v1359
        %v1402 = vpack.c.bf16 %v1362, %v1362
        %v1403 = vpack.c.bf16 %v1364, %v1364
        %v1404 = vpack.c.bf16 %v1367, %v1367
        %v1405 = vpack.c.bf16 %v1369, %v1369
        %v1406 = vpack.c.bf16 %v1372, %v1372
        %v1407 = vpack.c.bf16 %v1374, %v1374
        %s1408 = scalar_lea.vmem [#allocation2], 640
        %1409 = vst [vmem:[%s1408] sm:$0xf] %v1376
        %1410 = vst [vmem:[%s1408 + $0x4] sm:$0xf] %v1377
        %1411 = vst [vmem:[%s1408 + $0x8] sm:$0xf] %v1378
        %1412 = vst [vmem:[%s1408 + $0xc] sm:$0xf] %v1379
        %1413 = vst [vmem:[%s1408 + $0x10] sm:$0xf] %v1380
        %1414 = vst [vmem:[%s1408 + $0x14] sm:$0xf] %v1381
        %1415 = vst [vmem:[%s1408 + $0x18] sm:$0xf] %v1382
        %1416 = vst [vmem:[%s1408 + $0x1c] sm:$0xf] %v1383
        %1417 = vst [vmem:[%s1408 + $0x20] sm:$0xf] %v1384
        %1418 = vst [vmem:[%s1408 + $0x24] sm:$0xf] %v1385
        %1419 = vst [vmem:[%s1408 + $0x28] sm:$0xf] %v1386
        %1420 = vst [vmem:[%s1408 + $0x2c] sm:$0xf] %v1387
        %1421 = vst [vmem:[%s1408 + $0x30] sm:$0xf] %v1388
        %1422 = vst [vmem:[%s1408 + $0x34] sm:$0xf] %v1389
        %1423 = vst [vmem:[%s1408 + $0x38] sm:$0xf] %v1390
        %1424 = vst [vmem:[%s1408 + $0x3c] sm:$0xf] %v1391
        %1425 = vst [vmem:[%s1408 + $0x40] sm:$0xf] %v1392
        %1426 = vst [vmem:[%s1408 + $0x44] sm:$0xf] %v1393
        %1427 = vst [vmem:[%s1408 + $0x48] sm:$0xf] %v1394
        %1428 = vst [vmem:[%s1408 + $0x4c] sm:$0xf] %v1395
        %1429 = vst [vmem:[%s1408 + $0x50] sm:$0xf] %v1396
        %1430 = vst [vmem:[%s1408 + $0x54] sm:$0xf] %v1397
        %1431 = vst [vmem:[%s1408 + $0x58] sm:$0xf] %v1398
        %1432 = vst [vmem:[%s1408 + $0x5c] sm:$0xf] %v1399
        %1433 = vst [vmem:[%s1408 + $0x60] sm:$0xf] %v1400
        %1434 = vst [vmem:[%s1408 + $0x64] sm:$0xf] %v1401
        %1435 = vst [vmem:[%s1408 + $0x68] sm:$0xf] %v1402
        %1436 = vst [vmem:[%s1408 + $0x6c] sm:$0xf] %v1403
        %1437 = vst [vmem:[%s1408 + $0x70] sm:$0xf] %v1404
        %1438 = vst [vmem:[%s1408 + $0x74] sm:$0xf] %v1405
        %1439 = vst [vmem:[%s1408 + $0x78] sm:$0xf] %v1406
        %1440 = vst [vmem:[%s1408 + $0x7c] sm:$0xf] %v1407
        %s1441 = scalar_lea.vmem %s2, 24
        %v1442 = vld [vmem:[%s1441] sm:$0xf]
        %v1444 = vsel %vm489, %v1442, 0
        %1446 = vmatpush.bf16.msra.mxu0 0
        %1447 = vmatpush.bf16.msra.mxu0 0
        %1448 = vmatpush.bf16.msra.mxu0 0
        %1449 = vmatpush.bf16.msra.mxu0 0
        %1450 = vmatpush.bf16.msra.mxu0 0
        %1451 = vmatpush.bf16.msra.mxu0 0
        %1452 = vmatpush.bf16.msra.mxu0 0
        %1453 = vmatpush.bf16.msra.mxu0 %v1444
        %1454 = vmatmul.bf16.gmra.mxu0 %v442
        %v1455 = vpop.f32.mrf.mxu0
        %v1456 = vadd.f32 0.0, %v1455
        %v1457 = vpop.f32.mrf.mxu0
        %v1458 = vadd.f32 0.0, %v1457
        %1459 = vmatmul.bf16.gmra.mxu0 %v445
        %v1460 = vpop.f32.mrf.mxu0
        %v1461 = vadd.f32 0.0, %v1460
        %v1462 = vpop.f32.mrf.mxu0
        %v1463 = vadd.f32 0.0, %v1462
        %1464 = vmatmul.bf16.gmra.mxu0 %v448
        %v1465 = vpop.f32.mrf.mxu0
        %v1466 = vadd.f32 0.0, %v1465
        %v1467 = vpop.f32.mrf.mxu0
        %v1468 = vadd.f32 0.0, %v1467
        %1469 = vmatmul.bf16.gmra.mxu0 %v451
        %v1470 = vpop.f32.mrf.mxu0
        %v1471 = vadd.f32 0.0, %v1470
        %v1472 = vpop.f32.mrf.mxu0
        %v1473 = vadd.f32 0.0, %v1472
        %1474 = vmatmul.bf16.gmra.mxu0 %v454
        %v1475 = vpop.f32.mrf.mxu0
        %v1476 = vadd.f32 0.0, %v1475
        %v1477 = vpop.f32.mrf.mxu0
        %v1478 = vadd.f32 0.0, %v1477
        %1479 = vmatmul.bf16.gmra.mxu0 %v457
        %v1480 = vpop.f32.mrf.mxu0
        %v1481 = vadd.f32 0.0, %v1480
        %v1482 = vpop.f32.mrf.mxu0
        %v1483 = vadd.f32 0.0, %v1482
        %1484 = vmatmul.bf16.gmra.mxu0 %v460
        %v1485 = vpop.f32.mrf.mxu0
        %v1486 = vadd.f32 0.0, %v1485
        %v1487 = vpop.f32.mrf.mxu0
        %v1488 = vadd.f32 0.0, %v1487
        %1489 = vmatmul.bf16.gmra.mxu0 %v463
        %v1490 = vpop.f32.mrf.mxu0
        %v1491 = vadd.f32 0.0, %v1490
        %v1492 = vpop.f32.mrf.mxu0
        %v1493 = vadd.f32 0.0, %v1492
        %1494 = vmatmul.bf16.gmra.mxu0 %v466
        %v1495 = vpop.f32.mrf.mxu0
        %v1496 = vadd.f32 0.0, %v1495
        %v1497 = vpop.f32.mrf.mxu0
        %v1498 = vadd.f32 0.0, %v1497
        %1499 = vmatmul.bf16.gmra.mxu0 %v469
        %v1500 = vpop.f32.mrf.mxu0
        %v1501 = vadd.f32 0.0, %v1500
        %v1502 = vpop.f32.mrf.mxu0
        %v1503 = vadd.f32 0.0, %v1502
        %1504 = vmatmul.bf16.gmra.mxu0 %v472
        %v1505 = vpop.f32.mrf.mxu0
        %v1506 = vadd.f32 0.0, %v1505
        %v1507 = vpop.f32.mrf.mxu0
        %v1508 = vadd.f32 0.0, %v1507
        %1509 = vmatmul.bf16.gmra.mxu0 %v475
        %v1510 = vpop.f32.mrf.mxu0
        %v1511 = vadd.f32 0.0, %v1510
        %v1512 = vpop.f32.mrf.mxu0
        %v1513 = vadd.f32 0.0, %v1512
        %1514 = vmatmul.bf16.gmra.mxu0 %v478
        %v1515 = vpop.f32.mrf.mxu0
        %v1516 = vadd.f32 0.0, %v1515
        %v1517 = vpop.f32.mrf.mxu0
        %v1518 = vadd.f32 0.0, %v1517
        %1519 = vmatmul.bf16.gmra.mxu0 %v481
        %v1520 = vpop.f32.mrf.mxu0
        %v1521 = vadd.f32 0.0, %v1520
        %v1522 = vpop.f32.mrf.mxu0
        %v1523 = vadd.f32 0.0, %v1522
        %1524 = vmatmul.bf16.gmra.mxu0 %v484
        %v1525 = vpop.f32.mrf.mxu0
        %v1526 = vadd.f32 0.0, %v1525
        %v1527 = vpop.f32.mrf.mxu0
        %v1528 = vadd.f32 0.0, %v1527
        %1529 = vmatmul.bf16.gmra.mxu0 %v487
        %v1530 = vpop.f32.mrf.mxu0
        %v1531 = vadd.f32 0.0, %v1530
        %v1532 = vpop.f32.mrf.mxu0
        %v1533 = vadd.f32 0.0, %v1532
        %1534 = vdwg.mxu0
        %v1535 = vpack.c.bf16 %v1456, %v1456
        %v1536 = vpack.c.bf16 %v1458, %v1458
        %v1537 = vpack.c.bf16 %v1461, %v1461
        %v1538 = vpack.c.bf16 %v1463, %v1463
        %v1539 = vpack.c.bf16 %v1466, %v1466
        %v1540 = vpack.c.bf16 %v1468, %v1468
        %v1541 = vpack.c.bf16 %v1471, %v1471
        %v1542 = vpack.c.bf16 %v1473, %v1473
        %v1543 = vpack.c.bf16 %v1476, %v1476
        %v1544 = vpack.c.bf16 %v1478, %v1478
        %v1545 = vpack.c.bf16 %v1481, %v1481
        %v1546 = vpack.c.bf16 %v1483, %v1483
        %v1547 = vpack.c.bf16 %v1486, %v1486
        %v1548 = vpack.c.bf16 %v1488, %v1488
        %v1549 = vpack.c.bf16 %v1491, %v1491
        %v1550 = vpack.c.bf16 %v1493, %v1493
        %v1551 = vpack.c.bf16 %v1496, %v1496
        %v1552 = vpack.c.bf16 %v1498, %v1498
        %v1553 = vpack.c.bf16 %v1501, %v1501
        %v1554 = vpack.c.bf16 %v1503, %v1503
        %v1555 = vpack.c.bf16 %v1506, %v1506
        %v1556 = vpack.c.bf16 %v1508, %v1508
        %v1557 = vpack.c.bf16 %v1511, %v1511
        %v1558 = vpack.c.bf16 %v1513, %v1513
        %v1559 = vpack.c.bf16 %v1516, %v1516
        %v1560 = vpack.c.bf16 %v1518, %v1518
        %v1561 = vpack.c.bf16 %v1521, %v1521
        %v1562 = vpack.c.bf16 %v1523, %v1523
        %v1563 = vpack.c.bf16 %v1526, %v1526
        %v1564 = vpack.c.bf16 %v1528, %v1528
        %v1565 = vpack.c.bf16 %v1531, %v1531
        %v1566 = vpack.c.bf16 %v1533, %v1533
        %s1567 = scalar_lea.vmem [#allocation2], 768
        %1568 = vst [vmem:[%s1567] sm:$0xf] %v1535
        %1569 = vst [vmem:[%s1567 + $0x4] sm:$0xf] %v1536
        %1570 = vst [vmem:[%s1567 + $0x8] sm:$0xf] %v1537
        %1571 = vst [vmem:[%s1567 + $0xc] sm:$0xf] %v1538
        %1572 = vst [vmem:[%s1567 + $0x10] sm:$0xf] %v1539
        %1573 = vst [vmem:[%s1567 + $0x14] sm:$0xf] %v1540
        %1574 = vst [vmem:[%s1567 + $0x18] sm:$0xf] %v1541
        %1575 = vst [vmem:[%s1567 + $0x1c] sm:$0xf] %v1542
        %1576 = vst [vmem:[%s1567 + $0x20] sm:$0xf] %v1543
        %1577 = vst [vmem:[%s1567 + $0x24] sm:$0xf] %v1544
        %1578 = vst [vmem:[%s1567 + $0x28] sm:$0xf] %v1545
        %1579 = vst [vmem:[%s1567 + $0x2c] sm:$0xf] %v1546
        %1580 = vst [vmem:[%s1567 + $0x30] sm:$0xf] %v1547
        %1581 = vst [vmem:[%s1567 + $0x34] sm:$0xf] %v1548
        %1582 = vst [vmem:[%s1567 + $0x38] sm:$0xf] %v1549
        %1583 = vst [vmem:[%s1567 + $0x3c] sm:$0xf] %v1550
        %1584 = vst [vmem:[%s1567 + $0x40] sm:$0xf] %v1551
        %1585 = vst [vmem:[%s1567 + $0x44] sm:$0xf] %v1552
        %1586 = vst [vmem:[%s1567 + $0x48] sm:$0xf] %v1553
        %1587 = vst [vmem:[%s1567 + $0x4c] sm:$0xf] %v1554
        %1588 = vst [vmem:[%s1567 + $0x50] sm:$0xf] %v1555
        %1589 = vst [vmem:[%s1567 + $0x54] sm:$0xf] %v1556
        %1590 = vst [vmem:[%s1567 + $0x58] sm:$0xf] %v1557
        %1591 = vst [vmem:[%s1567 + $0x5c] sm:$0xf] %v1558
        %1592 = vst [vmem:[%s1567 + $0x60] sm:$0xf] %v1559
        %1593 = vst [vmem:[%s1567 + $0x64] sm:$0xf] %v1560
        %1594 = vst [vmem:[%s1567 + $0x68] sm:$0xf] %v1561
        %1595 = vst [vmem:[%s1567 + $0x6c] sm:$0xf] %v1562
        %1596 = vst [vmem:[%s1567 + $0x70] sm:$0xf] %v1563
        %1597 = vst [vmem:[%s1567 + $0x74] sm:$0xf] %v1564
        %1598 = vst [vmem:[%s1567 + $0x78] sm:$0xf] %v1565
        %1599 = vst [vmem:[%s1567 + $0x7c] sm:$0xf] %v1566
        %s1600 = scalar_lea.vmem %s2, 28
        %v1601 = vld [vmem:[%s1600] sm:$0xf]
        %v1603 = vsel %vm489, %v1601, 0
        %1605 = vmatpush.bf16.msra.mxu0 0
        %1606 = vmatpush.bf16.msra.mxu0 0
        %1607 = vmatpush.bf16.msra.mxu0 0
        %1608 = vmatpush.bf16.msra.mxu0 0
        %1609 = vmatpush.bf16.msra.mxu0 0
        %1610 = vmatpush.bf16.msra.mxu0 0
        %1611 = vmatpush.bf16.msra.mxu0 0
        %1612 = vmatpush.bf16.msra.mxu0 %v1603
        %1613 = vmatmul.bf16.gmra.mxu0 %v442
        %v1614 = vpop.f32.mrf.mxu0
        %v1615 = vadd.f32 0.0, %v1614
        %v1616 = vpop.f32.mrf.mxu0
        %v1617 = vadd.f32 0.0, %v1616
        %1618 = vmatmul.bf16.gmra.mxu0 %v445
        %v1619 = vpop.f32.mrf.mxu0
        %v1620 = vadd.f32 0.0, %v1619
        %v1621 = vpop.f32.mrf.mxu0
        %v1622 = vadd.f32 0.0, %v1621
        %1623 = vmatmul.bf16.gmra.mxu0 %v448
        %v1624 = vpop.f32.mrf.mxu0
        %v1625 = vadd.f32 0.0, %v1624
        %v1626 = vpop.f32.mrf.mxu0
        %v1627 = vadd.f32 0.0, %v1626
        %1628 = vmatmul.bf16.gmra.mxu0 %v451
        %v1629 = vpop.f32.mrf.mxu0
        %v1630 = vadd.f32 0.0, %v1629
        %v1631 = vpop.f32.mrf.mxu0
        %v1632 = vadd.f32 0.0, %v1631
        %1633 = vmatmul.bf16.gmra.mxu0 %v454
        %v1634 = vpop.f32.mrf.mxu0
        %v1635 = vadd.f32 0.0, %v1634
        %v1636 = vpop.f32.mrf.mxu0
        %v1637 = vadd.f32 0.0, %v1636
        %1638 = vmatmul.bf16.gmra.mxu0 %v457
        %v1639 = vpop.f32.mrf.mxu0
        %v1640 = vadd.f32 0.0, %v1639
        %v1641 = vpop.f32.mrf.mxu0
        %v1642 = vadd.f32 0.0, %v1641
        %1643 = vmatmul.bf16.gmra.mxu0 %v460
        %v1644 = vpop.f32.mrf.mxu0
        %v1645 = vadd.f32 0.0, %v1644
        %v1646 = vpop.f32.mrf.mxu0
        %v1647 = vadd.f32 0.0, %v1646
        %1648 = vmatmul.bf16.gmra.mxu0 %v463
        %v1649 = vpop.f32.mrf.mxu0
        %v1650 = vadd.f32 0.0, %v1649
        %v1651 = vpop.f32.mrf.mxu0
        %v1652 = vadd.f32 0.0, %v1651
        %1653 = vmatmul.bf16.gmra.mxu0 %v466
        %v1654 = vpop.f32.mrf.mxu0
        %v1655 = vadd.f32 0.0, %v1654
        %v1656 = vpop.f32.mrf.mxu0
        %v1657 = vadd.f32 0.0, %v1656
        %1658 = vmatmul.bf16.gmra.mxu0 %v469
        %v1659 = vpop.f32.mrf.mxu0
        %v1660 = vadd.f32 0.0, %v1659
        %v1661 = vpop.f32.mrf.mxu0
        %v1662 = vadd.f32 0.0, %v1661
        %1663 = vmatmul.bf16.gmra.mxu0 %v472
        %v1664 = vpop.f32.mrf.mxu0
        %v1665 = vadd.f32 0.0, %v1664
        %v1666 = vpop.f32.mrf.mxu0
        %v1667 = vadd.f32 0.0, %v1666
        %1668 = vmatmul.bf16.gmra.mxu0 %v475
        %v1669 = vpop.f32.mrf.mxu0
        %v1670 = vadd.f32 0.0, %v1669
        %v1671 = vpop.f32.mrf.mxu0
        %v1672 = vadd.f32 0.0, %v1671
        %1673 = vmatmul.bf16.gmra.mxu0 %v478
        %v1674 = vpop.f32.mrf.mxu0
        %v1675 = vadd.f32 0.0, %v1674
        %v1676 = vpop.f32.mrf.mxu0
        %v1677 = vadd.f32 0.0, %v1676
        %1678 = vmatmul.bf16.gmra.mxu0 %v481
        %v1679 = vpop.f32.mrf.mxu0
        %v1680 = vadd.f32 0.0, %v1679
        %v1681 = vpop.f32.mrf.mxu0
        %v1682 = vadd.f32 0.0, %v1681
        %1683 = vmatmul.bf16.gmra.mxu0 %v484
        %v1684 = vpop.f32.mrf.mxu0
        %v1685 = vadd.f32 0.0, %v1684
        %v1686 = vpop.f32.mrf.mxu0
        %v1687 = vadd.f32 0.0, %v1686
        %1688 = vmatmul.bf16.gmra.mxu0 %v487
        %v1689 = vpop.f32.mrf.mxu0
        %v1690 = vadd.f32 0.0, %v1689
        %v1691 = vpop.f32.mrf.mxu0
        %v1692 = vadd.f32 0.0, %v1691
        %1693 = vdwg.mxu0
        %v1694 = vpack.c.bf16 %v1615, %v1615
        %v1695 = vpack.c.bf16 %v1617, %v1617
        %v1696 = vpack.c.bf16 %v1620, %v1620
        %v1697 = vpack.c.bf16 %v1622, %v1622
        %v1698 = vpack.c.bf16 %v1625, %v1625
        %v1699 = vpack.c.bf16 %v1627, %v1627
        %v1700 = vpack.c.bf16 %v1630, %v1630
        %v1701 = vpack.c.bf16 %v1632, %v1632
        %v1702 = vpack.c.bf16 %v1635, %v1635
        %v1703 = vpack.c.bf16 %v1637, %v1637
        %v1704 = vpack.c.bf16 %v1640, %v1640
        %v1705 = vpack.c.bf16 %v1642, %v1642
        %v1706 = vpack.c.bf16 %v1645, %v1645
        %v1707 = vpack.c.bf16 %v1647, %v1647
        %v1708 = vpack.c.bf16 %v1650, %v1650
        %v1709 = vpack.c.bf16 %v1652, %v1652
        %v1710 = vpack.c.bf16 %v1655, %v1655
        %v1711 = vpack.c.bf16 %v1657, %v1657
        %v1712 = vpack.c.bf16 %v1660, %v1660
        %v1713 = vpack.c.bf16 %v1662, %v1662
        %v1714 = vpack.c.bf16 %v1665, %v1665
        %v1715 = vpack.c.bf16 %v1667, %v1667
        %v1716 = vpack.c.bf16 %v1670, %v1670
        %v1717 = vpack.c.bf16 %v1672, %v1672
        %v1718 = vpack.c.bf16 %v1675, %v1675
        %v1719 = vpack.c.bf16 %v1677, %v1677
        %v1720 = vpack.c.bf16 %v1680, %v1680
        %v1721 = vpack.c.bf16 %v1682, %v1682
        %v1722 = vpack.c.bf16 %v1685, %v1685
        %v1723 = vpack.c.bf16 %v1687, %v1687
        %v1724 = vpack.c.bf16 %v1690, %v1690
        %v1725 = vpack.c.bf16 %v1692, %v1692
        %s1726 = scalar_lea.vmem [#allocation2], 896
        %1727 = vst [vmem:[%s1726] sm:$0xf] %v1694
        %1728 = vst [vmem:[%s1726 + $0x4] sm:$0xf] %v1695
        %1729 = vst [vmem:[%s1726 + $0x8] sm:$0xf] %v1696
        %1730 = vst [vmem:[%s1726 + $0xc] sm:$0xf] %v1697
        %1731 = vst [vmem:[%s1726 + $0x10] sm:$0xf] %v1698
        %1732 = vst [vmem:[%s1726 + $0x14] sm:$0xf] %v1699
        %1733 = vst [vmem:[%s1726 + $0x18] sm:$0xf] %v1700
        %1734 = vst [vmem:[%s1726 + $0x1c] sm:$0xf] %v1701
        %1735 = vst [vmem:[%s1726 + $0x20] sm:$0xf] %v1702
        %1736 = vst [vmem:[%s1726 + $0x24] sm:$0xf] %v1703
        %1737 = vst [vmem:[%s1726 + $0x28] sm:$0xf] %v1704
        %1738 = vst [vmem:[%s1726 + $0x2c] sm:$0xf] %v1705
        %1739 = vst [vmem:[%s1726 + $0x30] sm:$0xf] %v1706
        %1740 = vst [vmem:[%s1726 + $0x34] sm:$0xf] %v1707
        %1741 = vst [vmem:[%s1726 + $0x38] sm:$0xf] %v1708
        %1742 = vst [vmem:[%s1726 + $0x3c] sm:$0xf] %v1709
        %1743 = vst [vmem:[%s1726 + $0x40] sm:$0xf] %v1710
        %1744 = vst [vmem:[%s1726 + $0x44] sm:$0xf] %v1711
        %1745 = vst [vmem:[%s1726 + $0x48] sm:$0xf] %v1712
        %1746 = vst [vmem:[%s1726 + $0x4c] sm:$0xf] %v1713
        %1747 = vst [vmem:[%s1726 + $0x50] sm:$0xf] %v1714
        %1748 = vst [vmem:[%s1726 + $0x54] sm:$0xf] %v1715
        %1749 = vst [vmem:[%s1726 + $0x58] sm:$0xf] %v1716
        %1750 = vst [vmem:[%s1726 + $0x5c] sm:$0xf] %v1717
        %1751 = vst [vmem:[%s1726 + $0x60] sm:$0xf] %v1718
        %1752 = vst [vmem:[%s1726 + $0x64] sm:$0xf] %v1719
        %1753 = vst [vmem:[%s1726 + $0x68] sm:$0xf] %v1720
        %1754 = vst [vmem:[%s1726 + $0x6c] sm:$0xf] %v1721
        %1755 = vst [vmem:[%s1726 + $0x70] sm:$0xf] %v1722
        %1756 = vst [vmem:[%s1726 + $0x74] sm:$0xf] %v1723
        %1757 = vst [vmem:[%s1726 + $0x78] sm:$0xf] %v1724
        %1758 = vst [vmem:[%s1726 + $0x7c] sm:$0xf] %v1725
        %s1759 = scalar_lea.vmem %s2, 32
        %v1760 = vld [vmem:[%s1759] sm:$0xf]
        %v1762 = vsel %vm489, %v1760, 0
        %1764 = vmatpush.bf16.msra.mxu0 0
        %1765 = vmatpush.bf16.msra.mxu0 0
        %1766 = vmatpush.bf16.msra.mxu0 0
        %1767 = vmatpush.bf16.msra.mxu0 0
        %1768 = vmatpush.bf16.msra.mxu0 0
        %1769 = vmatpush.bf16.msra.mxu0 0
        %1770 = vmatpush.bf16.msra.mxu0 0
        %1771 = vmatpush.bf16.msra.mxu0 %v1762
        %1772 = vmatmul.bf16.gmra.mxu0 %v442
        %v1773 = vpop.f32.mrf.mxu0
        %v1774 = vadd.f32 0.0, %v1773
        %v1775 = vpop.f32.mrf.mxu0
        %v1776 = vadd.f32 0.0, %v1775
        %1777 = vmatmul.bf16.gmra.mxu0 %v445
        %v1778 = vpop.f32.mrf.mxu0
        %v1779 = vadd.f32 0.0, %v1778
        %v1780 = vpop.f32.mrf.mxu0
        %v1781 = vadd.f32 0.0, %v1780
        %1782 = vmatmul.bf16.gmra.mxu0 %v448
        %v1783 = vpop.f32.mrf.mxu0
        %v1784 = vadd.f32 0.0, %v1783
        %v1785 = vpop.f32.mrf.mxu0
        %v1786 = vadd.f32 0.0, %v1785
        %1787 = vmatmul.bf16.gmra.mxu0 %v451
        %v1788 = vpop.f32.mrf.mxu0
        %v1789 = vadd.f32 0.0, %v1788
        %v1790 = vpop.f32.mrf.mxu0
        %v1791 = vadd.f32 0.0, %v1790
        %1792 = vmatmul.bf16.gmra.mxu0 %v454
        %v1793 = vpop.f32.mrf.mxu0
        %v1794 = vadd.f32 0.0, %v1793
        %v1795 = vpop.f32.mrf.mxu0
        %v1796 = vadd.f32 0.0, %v1795
        %1797 = vmatmul.bf16.gmra.mxu0 %v457
        %v1798 = vpop.f32.mrf.mxu0
        %v1799 = vadd.f32 0.0, %v1798
        %v1800 = vpop.f32.mrf.mxu0
        %v1801 = vadd.f32 0.0, %v1800
        %1802 = vmatmul.bf16.gmra.mxu0 %v460
        %v1803 = vpop.f32.mrf.mxu0
        %v1804 = vadd.f32 0.0, %v1803
        %v1805 = vpop.f32.mrf.mxu0
        %v1806 = vadd.f32 0.0, %v1805
        %1807 = vmatmul.bf16.gmra.mxu0 %v463
        %v1808 = vpop.f32.mrf.mxu0
        %v1809 = vadd.f32 0.0, %v1808
        %v1810 = vpop.f32.mrf.mxu0
        %v1811 = vadd.f32 0.0, %v1810
        %1812 = vmatmul.bf16.gmra.mxu0 %v466
        %v1813 = vpop.f32.mrf.mxu0
        %v1814 = vadd.f32 0.0, %v1813
        %v1815 = vpop.f32.mrf.mxu0
        %v1816 = vadd.f32 0.0, %v1815
        %1817 = vmatmul.bf16.gmra.mxu0 %v469
        %v1818 = vpop.f32.mrf.mxu0
        %v1819 = vadd.f32 0.0, %v1818
        %v1820 = vpop.f32.mrf.mxu0
        %v1821 = vadd.f32 0.0, %v1820
        %1822 = vmatmul.bf16.gmra.mxu0 %v472
        %v1823 = vpop.f32.mrf.mxu0
        %v1824 = vadd.f32 0.0, %v1823
        %v1825 = vpop.f32.mrf.mxu0
        %v1826 = vadd.f32 0.0, %v1825
        %1827 = vmatmul.bf16.gmra.mxu0 %v475
        %v1828 = vpop.f32.mrf.mxu0
        %v1829 = vadd.f32 0.0, %v1828
        %v1830 = vpop.f32.mrf.mxu0
        %v1831 = vadd.f32 0.0, %v1830
        %1832 = vmatmul.bf16.gmra.mxu0 %v478
        %v1833 = vpop.f32.mrf.mxu0
        %v1834 = vadd.f32 0.0, %v1833
        %v1835 = vpop.f32.mrf.mxu0
        %v1836 = vadd.f32 0.0, %v1835
        %1837 = vmatmul.bf16.gmra.mxu0 %v481
        %v1838 = vpop.f32.mrf.mxu0
        %v1839 = vadd.f32 0.0, %v1838
        %v1840 = vpop.f32.mrf.mxu0
        %v1841 = vadd.f32 0.0, %v1840
        %1842 = vmatmul.bf16.gmra.mxu0 %v484
        %v1843 = vpop.f32.mrf.mxu0
        %v1844 = vadd.f32 0.0, %v1843
        %v1845 = vpop.f32.mrf.mxu0
        %v1846 = vadd.f32 0.0, %v1845
        %1847 = vmatmul.bf16.gmra.mxu0 %v487
        %v1848 = vpop.f32.mrf.mxu0
        %v1849 = vadd.f32 0.0, %v1848
        %v1850 = vpop.f32.mrf.mxu0
        %v1851 = vadd.f32 0.0, %v1850
        %1852 = vdwg.mxu0
        %v1853 = vpack.c.bf16 %v1774, %v1774
        %v1854 = vpack.c.bf16 %v1776, %v1776
        %v1855 = vpack.c.bf16 %v1779, %v1779
        %v1856 = vpack.c.bf16 %v1781, %v1781
        %v1857 = vpack.c.bf16 %v1784, %v1784
        %v1858 = vpack.c.bf16 %v1786, %v1786
        %v1859 = vpack.c.bf16 %v1789, %v1789
        %v1860 = vpack.c.bf16 %v1791, %v1791
        %v1861 = vpack.c.bf16 %v1794, %v1794
        %v1862 = vpack.c.bf16 %v1796, %v1796
        %v1863 = vpack.c.bf16 %v1799, %v1799
        %v1864 = vpack.c.bf16 %v1801, %v1801
        %v1865 = vpack.c.bf16 %v1804, %v1804
        %v1866 = vpack.c.bf16 %v1806, %v1806
        %v1867 = vpack.c.bf16 %v1809, %v1809
        %v1868 = vpack.c.bf16 %v1811, %v1811
        %v1869 = vpack.c.bf16 %v1814, %v1814
        %v1870 = vpack.c.bf16 %v1816, %v1816
        %v1871 = vpack.c.bf16 %v1819, %v1819
        %v1872 = vpack.c.bf16 %v1821, %v1821
        %v1873 = vpack.c.bf16 %v1824, %v1824
        %v1874 = vpack.c.bf16 %v1826, %v1826
        %v1875 = vpack.c.bf16 %v1829, %v1829
        %v1876 = vpack.c.bf16 %v1831, %v1831
        %v1877 = vpack.c.bf16 %v1834, %v1834
        %v1878 = vpack.c.bf16 %v1836, %v1836
        %v1879 = vpack.c.bf16 %v1839, %v1839
        %v1880 = vpack.c.bf16 %v1841, %v1841
        %v1881 = vpack.c.bf16 %v1844, %v1844
        %v1882 = vpack.c.bf16 %v1846, %v1846
        %v1883 = vpack.c.bf16 %v1849, %v1849
        %v1884 = vpack.c.bf16 %v1851, %v1851
        %s1885 = scalar_lea.vmem [#allocation2], 1024
        %1886 = vst [vmem:[%s1885] sm:$0xf] %v1853
        %1887 = vst [vmem:[%s1885 + $0x4] sm:$0xf] %v1854
        %1888 = vst [vmem:[%s1885 + $0x8] sm:$0xf] %v1855
        %1889 = vst [vmem:[%s1885 + $0xc] sm:$0xf] %v1856
        %1890 = vst [vmem:[%s1885 + $0x10] sm:$0xf] %v1857
        %1891 = vst [vmem:[%s1885 + $0x14] sm:$0xf] %v1858
        %1892 = vst [vmem:[%s1885 + $0x18] sm:$0xf] %v1859
        %1893 = vst [vmem:[%s1885 + $0x1c] sm:$0xf] %v1860
        %1894 = vst [vmem:[%s1885 + $0x20] sm:$0xf] %v1861
        %1895 = vst [vmem:[%s1885 + $0x24] sm:$0xf] %v1862
        %1896 = vst [vmem:[%s1885 + $0x28] sm:$0xf] %v1863
        %1897 = vst [vmem:[%s1885 + $0x2c] sm:$0xf] %v1864
        %1898 = vst [vmem:[%s1885 + $0x30] sm:$0xf] %v1865
        %1899 = vst [vmem:[%s1885 + $0x34] sm:$0xf] %v1866
        %1900 = vst [vmem:[%s1885 + $0x38] sm:$0xf] %v1867
        %1901 = vst [vmem:[%s1885 + $0x3c] sm:$0xf] %v1868
        %1902 = vst [vmem:[%s1885 + $0x40] sm:$0xf] %v1869
        %1903 = vst [vmem:[%s1885 + $0x44] sm:$0xf] %v1870
        %1904 = vst [vmem:[%s1885 + $0x48] sm:$0xf] %v1871
        %1905 = vst [vmem:[%s1885 + $0x4c] sm:$0xf] %v1872
        %1906 = vst [vmem:[%s1885 + $0x50] sm:$0xf] %v1873
        %1907 = vst [vmem:[%s1885 + $0x54] sm:$0xf] %v1874
        %1908 = vst [vmem:[%s1885 + $0x58] sm:$0xf] %v1875
        %1909 = vst [vmem:[%s1885 + $0x5c] sm:$0xf] %v1876
        %1910 = vst [vmem:[%s1885 + $0x60] sm:$0xf] %v1877
        %1911 = vst [vmem:[%s1885 + $0x64] sm:$0xf] %v1878
        %1912 = vst [vmem:[%s1885 + $0x68] sm:$0xf] %v1879
        %1913 = vst [vmem:[%s1885 + $0x6c] sm:$0xf] %v1880
        %1914 = vst [vmem:[%s1885 + $0x70] sm:$0xf] %v1881
        %1915 = vst [vmem:[%s1885 + $0x74] sm:$0xf] %v1882
        %1916 = vst [vmem:[%s1885 + $0x78] sm:$0xf] %v1883
        %1917 = vst [vmem:[%s1885 + $0x7c] sm:$0xf] %v1884
      $region44: #{dtm_forward.2} parent=39 // pred_fallthru
        _
      %v1918 = vld [vmem:[%s306] sm:$0xff]
      %v1919 = vld [vmem:[%s306 + $0x8] sm:$0xff]
      %v1920 = vld [vmem:[%s306 + $0x10] sm:$0xff]
      %v1921 = vld [vmem:[%s306 + $0x18] sm:$0xff]
      %v1922 = vld [vmem:[%s306 + $0x20] sm:$0xff]
      %v1923 = vld [vmem:[%s306 + $0x28] sm:$0xff]
      %v1924 = vld [vmem:[%s306 + $0x30] sm:$0xff]
      %v1925 = vld [vmem:[%s306 + $0x38] sm:$0xff]
      %v1926 = vld [vmem:[%s3] sm:$0xff]
      %v1927 = vld [vmem:[%s3 + $0x8] sm:$0xff]
      %v1928 = vld [vmem:[%s4] sm:$0xff]
      %v1929 = vld [vmem:[%s4 + $0x8] sm:$0xff]
      %v1930 = vlaneseq
      %v1931 = vand.u32 %v1930, 127
      %v1932 = vcvt.s32.f32 %v1931
      %1934 = vset.pattern.permute.xlu0 0
      %1935 = vperm.xlu0 %1934, %v1918
      %v1936 = vpop.permute.xlu0 %1935
      %1939 = vset.pattern.permute.xlu0 0
      %1940 = vperm.xlu0 %1939, %v1919
      %v1941 = vpop.permute.xlu0 %1940
      %1944 = vset.pattern.permute.xlu0 0
      %1945 = vperm.xlu0 %1944, %v1920
      %v1946 = vpop.permute.xlu0 %1945
      %1949 = vset.pattern.permute.xlu0 0
      %1950 = vperm.xlu0 %1949, %v1921
      %v1951 = vpop.permute.xlu0 %1950
      %1954 = vset.pattern.permute.xlu0 0
      %1955 = vperm.xlu0 %1954, %v1922
      %v1956 = vpop.permute.xlu0 %1955
      %1959 = vset.pattern.permute.xlu0 0
      %1960 = vperm.xlu0 %1959, %v1923
      %v1961 = vpop.permute.xlu0 %1960
      %1964 = vset.pattern.permute.xlu0 0
      %1965 = vperm.xlu0 %1964, %v1924
      %v1966 = vpop.permute.xlu0 %1965
      %1969 = vset.pattern.permute.xlu0 0
      %1970 = vperm.xlu0 %1969, %v1925
      %v1971 = vpop.permute.xlu0 %1970
      %v1973 = vsub.f32 %v1932, %v1936
      %v1974 = vsub.f32 %v1932, %v1941
      %v1975 = vsub.f32 %v1932, %v1946
      %v1976 = vsub.f32 %v1932, %v1951
      %v1977 = vsub.f32 %v1932, %v1956
      %v1978 = vsub.f32 %v1932, %v1961
      %v1979 = vsub.f32 %v1932, %v1966
      %v1980 = vsub.f32 %v1932, %v1971
      %v1981 = vand.u32 2147483647, %v1973
      %v1982 = vand.u32 2147483647, %v1974
      %v1983 = vand.u32 2147483647, %v1975
      %v1984 = vand.u32 2147483647, %v1976
      %v1985 = vand.u32 2147483647, %v1977
      %v1986 = vand.u32 2147483647, %v1978
      %v1987 = vand.u32 2147483647, %v1979
      %v1988 = vand.u32 2147483647, %v1980
      %v1989 = vsub.f32 1.0, %v1981
      %v1990 = vsub.f32 1.0, %v1982
      %v1991 = vsub.f32 1.0, %v1983
      %v1992 = vsub.f32 1.0, %v1984
      %v1993 = vsub.f32 1.0, %v1985
      %v1994 = vsub.f32 1.0, %v1986
      %v1995 = vsub.f32 1.0, %v1987
      %v1996 = vsub.f32 1.0, %v1988
      %v1997 = vmax.f32 %v1989, 0.0
      %v1998 = vmax.f32 %v1990, 0.0
      %v1999 = vmax.f32 %v1991, 0.0
      %v2000 = vmax.f32 %v1992, 0.0
      %v2001 = vmax.f32 %v1993, 0.0
      %v2002 = vmax.f32 %v1994, 0.0
      %v2003 = vmax.f32 %v1995, 0.0
      %v2004 = vmax.f32 %v1996, 0.0
      %v2005 = vpack.c.bf16 %v1998, %v1997
      %v2006 = vpack.c.bf16 %v2000, %v1999
      %v2007 = vpack.c.bf16 %v2002, %v2001
      %v2008 = vpack.c.bf16 %v2004, %v2003
      %2009 = vset.pattern.permute.xlu0 1
      %2010 = vperm.xlu0 %2009, %v1918
      %v2011 = vpop.permute.xlu0 %2010
      %2013 = vset.pattern.permute.xlu0 1
      %2014 = vperm.xlu0 %2013, %v1919
      %v2015 = vpop.permute.xlu0 %2014
      %2017 = vset.pattern.permute.xlu0 1
      %2018 = vperm.xlu0 %2017, %v1920
      %v2019 = vpop.permute.xlu0 %2018
      %2021 = vset.pattern.permute.xlu0 1
      %2022 = vperm.xlu0 %2021, %v1921
      %v2023 = vpop.permute.xlu0 %2022
      %2025 = vset.pattern.permute.xlu0 1
      %2026 = vperm.xlu0 %2025, %v1922
      %v2027 = vpop.permute.xlu0 %2026
      %2029 = vset.pattern.permute.xlu0 1
      %2030 = vperm.xlu0 %2029, %v1923
      %v2031 = vpop.permute.xlu0 %2030
      %2033 = vset.pattern.permute.xlu0 1
      %2034 = vperm.xlu0 %2033, %v1924
      %v2035 = vpop.permute.xlu0 %2034
      %2037 = vset.pattern.permute.xlu0 1
      %2038 = vperm.xlu0 %2037, %v1925
      %v2039 = vpop.permute.xlu0 %2038
      %v2041 = vsub.f32 %v1932, %v2011
      %v2042 = vsub.f32 %v1932, %v2015
      %v2043 = vsub.f32 %v1932, %v2019
      %v2044 = vsub.f32 %v1932, %v2023
      %v2045 = vsub.f32 %v1932, %v2027
      %v2046 = vsub.f32 %v1932, %v2031
      %v2047 = vsub.f32 %v1932, %v2035
      %v2048 = vsub.f32 %v1932, %v2039
      %v2049 = vand.u32 2147483647, %v2041
      %v2050 = vand.u32 2147483647, %v2042
      %v2051 = vand.u32 2147483647, %v2043
      %v2052 = vand.u32 2147483647, %v2044
      %v2053 = vand.u32 2147483647, %v2045
      %v2054 = vand.u32 2147483647, %v2046
      %v2055 = vand.u32 2147483647, %v2047
      %v2056 = vand.u32 2147483647, %v2048
      %v2057 = vsub.f32 1.0, %v2049
      %v2058 = vsub.f32 1.0, %v2050
      %v2059 = vsub.f32 1.0, %v2051
      %v2060 = vsub.f32 1.0, %v2052
      %v2061 = vsub.f32 1.0, %v2053
      %v2062 = vsub.f32 1.0, %v2054
      %v2063 = vsub.f32 1.0, %v2055
      %v2064 = vsub.f32 1.0, %v2056
      %v2065 = vmax.f32 %v2057, 0.0
      %v2066 = vmax.f32 %v2058, 0.0
      %v2067 = vmax.f32 %v2059, 0.0
      %v2068 = vmax.f32 %v2060, 0.0
      %v2069 = vmax.f32 %v2061, 0.0
      %v2070 = vmax.f32 %v2062, 0.0
      %v2071 = vmax.f32 %v2063, 0.0
      %v2072 = vmax.f32 %v2064, 0.0
      %v2073 = vpack.c.bf16 %v2066, %v2065
      %v2074 = vpack.c.bf16 %v2068, %v2067
      %v2075 = vpack.c.bf16 %v2070, %v2069
      %v2076 = vpack.c.bf16 %v2072, %v2071
      %v2079 = vunpack.c.l.b16 %v1926
      %v2080 = vunpack.c.h.b16 %v1926
      %v2081 = vunpack.c.l.b16 %v1927
      %v2082 = vunpack.c.h.b16 %v1927
      %v2083 = vpack.c.b16 %v2081, %v2079
      %v2084 = vpack.c.b16 %v2082, %v2080
      %vm2087 = vcmask 130048
      %v2089 = vsel %vm2087, %v2005, 0
      %v2092 = vsel %vm2087, %v2006, 0
      %v2095 = vsel %vm2087, %v2007, 0
      %v2098 = vsel %vm2087, %v2008, 0
      %2100 = vmatpush.bf16.msra.mxu0 0
      %2101 = vmatpush.bf16.msra.mxu0 0
      %2102 = vmatpush.bf16.msra.mxu0 0
      %2103 = vmatpush.bf16.msra.mxu0 0
      %2104 = vmatpush.bf16.msra.mxu0 0
      %2105 = vmatpush.bf16.msra.mxu0 0
      %2106 = vmatpush.bf16.msra.mxu0 0
      %2107 = vmatpush.bf16.msra.mxu0 %v2083
      %2108 = vmatmul.bf16.gmra.mxu0 %v2089
      %v2109 = vpop.f32.mrf.mxu0
      %v2110 = vadd.f32 0.0, %v2109
      %v2111 = vpop.f32.mrf.mxu0
      %v2112 = vadd.f32 0.0, %v2111
      %2113 = vmatmul.bf16.gmra.mxu0 %v2092
      %v2114 = vpop.f32.mrf.mxu0
      %v2115 = vadd.f32 0.0, %v2114
      %v2116 = vpop.f32.mrf.mxu0
      %v2117 = vadd.f32 0.0, %v2116
      %2118 = vmatmul.bf16.gmra.mxu0 %v2095
      %v2119 = vpop.f32.mrf.mxu0
      %v2120 = vadd.f32 0.0, %v2119
      %v2121 = vpop.f32.mrf.mxu0
      %v2122 = vadd.f32 0.0, %v2121
      %2123 = vmatmul.bf16.gmra.mxu0 %v2098
      %v2124 = vpop.f32.mrf.mxu0
      %v2125 = vadd.f32 0.0, %v2124
      %v2126 = vpop.f32.mrf.mxu0
      %v2127 = vadd.f32 0.0, %v2126
      %2128 = vdwg.mxu0
      %2129 = vmatpush.bf16.msra.mxu0 0
      %2130 = vmatpush.bf16.msra.mxu0 0
      %2131 = vmatpush.bf16.msra.mxu0 0
      %2132 = vmatpush.bf16.msra.mxu0 0
      %2133 = vmatpush.bf16.msra.mxu0 0
      %2134 = vmatpush.bf16.msra.mxu0 0
      %2135 = vmatpush.bf16.msra.mxu0 0
      %2136 = vmatpush.bf16.msra.mxu0 %v2084
      %2137 = vmatmul.bf16.gmra.mxu0 %v2089
      %v2138 = vpop.f32.mrf.mxu0
      %v2139 = vadd.f32 0.0, %v2138
      %v2140 = vpop.f32.mrf.mxu0
      %v2141 = vadd.f32 0.0, %v2140
      %2142 = vmatmul.bf16.gmra.mxu0 %v2092
      %v2143 = vpop.f32.mrf.mxu0
      %v2144 = vadd.f32 0.0, %v2143
      %v2145 = vpop.f32.mrf.mxu0
      %v2146 = vadd.f32 0.0, %v2145
      %2147 = vmatmul.bf16.gmra.mxu0 %v2095
      %v2148 = vpop.f32.mrf.mxu0
      %v2149 = vadd.f32 0.0, %v2148
      %v2150 = vpop.f32.mrf.mxu0
      %v2151 = vadd.f32 0.0, %v2150
      %2152 = vmatmul.bf16.gmra.mxu0 %v2098
      %v2153 = vpop.f32.mrf.mxu0
      %v2154 = vadd.f32 0.0, %v2153
      %v2155 = vpop.f32.mrf.mxu0
      %v2156 = vadd.f32 0.0, %v2155
      %2157 = vdwg.mxu0
      %v2160 = vunpack.c.l.b16 %v1928
      %v2161 = vunpack.c.h.b16 %v1928
      %v2162 = vunpack.c.l.b16 %v1929
      %v2163 = vunpack.c.h.b16 %v1929
      %v2164 = vpack.c.b16 %v2162, %v2160
      %v2165 = vpack.c.b16 %v2163, %v2161
      %v2169 = vsel %vm2087, %v2073, 0
      %v2172 = vsel %vm2087, %v2074, 0
      %v2175 = vsel %vm2087, %v2075, 0
      %v2178 = vsel %vm2087, %v2076, 0
      %2180 = vmatpush.bf16.msra.mxu0 0
      %2181 = vmatpush.bf16.msra.mxu0 0
      %2182 = vmatpush.bf16.msra.mxu0 0
      %2183 = vmatpush.bf16.msra.mxu0 0
      %2184 = vmatpush.bf16.msra.mxu0 0
      %2185 = vmatpush.bf16.msra.mxu0 0
      %2186 = vmatpush.bf16.msra.mxu0 0
      %2187 = vmatpush.bf16.msra.mxu0 %v2164
      %2188 = vmatmul.bf16.gmra.mxu0 %v2169
      %v2189 = vpop.f32.mrf.mxu0
      %v2190 = vadd.f32 0.0, %v2189
      %v2191 = vpop.f32.mrf.mxu0
      %v2192 = vadd.f32 0.0, %v2191
      %2193 = vmatmul.bf16.gmra.mxu0 %v2172
      %v2194 = vpop.f32.mrf.mxu0
      %v2195 = vadd.f32 0.0, %v2194
      %v2196 = vpop.f32.mrf.mxu0
      %v2197 = vadd.f32 0.0, %v2196
      %2198 = vmatmul.bf16.gmra.mxu0 %v2175
      %v2199 = vpop.f32.mrf.mxu0
      %v2200 = vadd.f32 0.0, %v2199
      %v2201 = vpop.f32.mrf.mxu0
      %v2202 = vadd.f32 0.0, %v2201
      %2203 = vmatmul.bf16.gmra.mxu0 %v2178
      %v2204 = vpop.f32.mrf.mxu0
      %v2205 = vadd.f32 0.0, %v2204
      %v2206 = vpop.f32.mrf.mxu0
      %v2207 = vadd.f32 0.0, %v2206
      %2208 = vdwg.mxu0
      %2209 = vmatpush.bf16.msra.mxu0 0
      %2210 = vmatpush.bf16.msra.mxu0 0
      %2211 = vmatpush.bf16.msra.mxu0 0
      %2212 = vmatpush.bf16.msra.mxu0 0
      %2213 = vmatpush.bf16.msra.mxu0 0
      %2214 = vmatpush.bf16.msra.mxu0 0
      %2215 = vmatpush.bf16.msra.mxu0 0
      %2216 = vmatpush.bf16.msra.mxu0 %v2165
      %2217 = vmatmul.bf16.gmra.mxu0 %v2169
      %v2218 = vpop.f32.mrf.mxu0
      %v2219 = vadd.f32 0.0, %v2218
      %v2220 = vpop.f32.mrf.mxu0
      %v2221 = vadd.f32 0.0, %v2220
      %2222 = vmatmul.bf16.gmra.mxu0 %v2172
      %v2223 = vpop.f32.mrf.mxu0
      %v2224 = vadd.f32 0.0, %v2223
      %v2225 = vpop.f32.mrf.mxu0
      %v2226 = vadd.f32 0.0, %v2225
      %2227 = vmatmul.bf16.gmra.mxu0 %v2175
      %v2228 = vpop.f32.mrf.mxu0
      %v2229 = vadd.f32 0.0, %v2228
      %v2230 = vpop.f32.mrf.mxu0
      %v2231 = vadd.f32 0.0, %v2230
      %2232 = vmatmul.bf16.gmra.mxu0 %v2178
      %v2233 = vpop.f32.mrf.mxu0
      %v2234 = vadd.f32 0.0, %v2233
      %v2235 = vpop.f32.mrf.mxu0
      %v2236 = vadd.f32 0.0, %v2235
      %2237 = vdwg.mxu0
      %v2238 = vmul.f32 %v2110, %v2190
      %v2239 = vmul.f32 %v2139, %v2219
      %v2240 = vmul.f32 %v2112, %v2192
      %v2241 = vmul.f32 %v2141, %v2221
      %v2242 = vmul.f32 %v2115, %v2195
      %v2243 = vmul.f32 %v2144, %v2224
      %v2244 = vmul.f32 %v2117, %v2197
      %v2245 = vmul.f32 %v2146, %v2226
      %v2246 = vmul.f32 %v2120, %v2200
      %v2247 = vmul.f32 %v2149, %v2229
      %v2248 = vmul.f32 %v2122, %v2202
      %v2249 = vmul.f32 %v2151, %v2231
      %v2250 = vmul.f32 %v2125, %v2205
      %v2251 = vmul.f32 %v2154, %v2234
      %v2252 = vmul.f32 %v2127, %v2207
      %v2253 = vmul.f32 %v2156, %v2236
      %v2254 = vpack.c.bf16 %v2240, %v2238
      %v2255 = vpack.c.bf16 %v2241, %v2239
      %v2256 = vpack.c.bf16 %v2244, %v2242
      %v2257 = vpack.c.bf16 %v2245, %v2243
      %v2258 = vpack.c.bf16 %v2248, %v2246
      %v2259 = vpack.c.bf16 %v2249, %v2247
      %v2260 = vpack.c.bf16 %v2252, %v2250
      %v2261 = vpack.c.bf16 %v2253, %v2251
      %v2262 = vld [vmem:[#allocation2] sm:$0xf]
      %v2263 = vld [vmem:[#allocation2 + $0x4] sm:$0xf]
      %v2264 = vld [vmem:[#allocation2 + $0x8] sm:$0xf]
      %v2265 = vld [vmem:[#allocation2 + $0xc] sm:$0xf]
      %v2266 = vld [vmem:[#allocation2 + $0x10] sm:$0xf]
      %v2267 = vld [vmem:[#allocation2 + $0x14] sm:$0xf]
      %v2268 = vld [vmem:[#allocation2 + $0x18] sm:$0xf]
      %v2269 = vld [vmem:[#allocation2 + $0x1c] sm:$0xf]
      %v2270 = vld [vmem:[#allocation2 + $0x20] sm:$0xf]
      %v2271 = vld [vmem:[#allocation2 + $0x24] sm:$0xf]
      %v2272 = vld [vmem:[#allocation2 + $0x28] sm:$0xf]
      %v2273 = vld [vmem:[#allocation2 + $0x2c] sm:$0xf]
      %v2274 = vld [vmem:[#allocation2 + $0x30] sm:$0xf]
      %v2275 = vld [vmem:[#allocation2 + $0x34] sm:$0xf]
      %v2276 = vld [vmem:[#allocation2 + $0x38] sm:$0xf]
      %v2277 = vld [vmem:[#allocation2 + $0x3c] sm:$0xf]
      %v2278 = vld [vmem:[#allocation2 + $0x40] sm:$0xf]
      %v2279 = vld [vmem:[#allocation2 + $0x44] sm:$0xf]
      %v2280 = vld [vmem:[#allocation2 + $0x48] sm:$0xf]
      %v2281 = vld [vmem:[#allocation2 + $0x4c] sm:$0xf]
      %v2282 = vld [vmem:[#allocation2 + $0x50] sm:$0xf]
      %v2283 = vld [vmem:[#allocation2 + $0x54] sm:$0xf]
      %v2284 = vld [vmem:[#allocation2 + $0x58] sm:$0xf]
      %v2285 = vld [vmem:[#allocation2 + $0x5c] sm:$0xf]
      %v2286 = vld [vmem:[#allocation2 + $0x60] sm:$0xf]
      %v2287 = vld [vmem:[#allocation2 + $0x64] sm:$0xf]
      %v2288 = vld [vmem:[#allocation2 + $0x68] sm:$0xf]
      %v2289 = vld [vmem:[#allocation2 + $0x6c] sm:$0xf]
      %v2290 = vld [vmem:[#allocation2 + $0x70] sm:$0xf]
      %v2291 = vld [vmem:[#allocation2 + $0x74] sm:$0xf]
      %v2292 = vld [vmem:[#allocation2 + $0x78] sm:$0xf]
      %v2293 = vld [vmem:[#allocation2 + $0x7c] sm:$0xf]
      %2294 = vset.pattern.permute.xlu0 2
      %2295 = vperm.xlu0 %2294, %v1918
      %v2296 = vpop.permute.xlu0 %2295
      %2298 = vset.pattern.permute.xlu0 2
      %2299 = vperm.xlu0 %2298, %v1919
      %v2300 = vpop.permute.xlu0 %2299
      %2302 = vset.pattern.permute.xlu0 2
      %2303 = vperm.xlu0 %2302, %v1920
      %v2304 = vpop.permute.xlu0 %2303
      %2306 = vset.pattern.permute.xlu0 2
      %2307 = vperm.xlu0 %2306, %v1921
      %v2308 = vpop.permute.xlu0 %2307
      %2310 = vset.pattern.permute.xlu0 2
      %2311 = vperm.xlu0 %2310, %v1922
      %v2312 = vpop.permute.xlu0 %2311
      %2314 = vset.pattern.permute.xlu0 2
      %2315 = vperm.xlu0 %2314, %v1923
      %v2316 = vpop.permute.xlu0 %2315
      %2318 = vset.pattern.permute.xlu0 2
      %2319 = vperm.xlu0 %2318, %v1924
      %v2320 = vpop.permute.xlu0 %2319
      %2322 = vset.pattern.permute.xlu0 2
      %2323 = vperm.xlu0 %2322, %v1925
      %v2324 = vpop.permute.xlu0 %2323
      %v2326 = vsub.f32 %v1932, %v2296
      %v2327 = vsub.f32 %v1932, %v2300
      %v2328 = vsub.f32 %v1932, %v2304
      %v2329 = vsub.f32 %v1932, %v2308
      %v2330 = vsub.f32 %v1932, %v2312
      %v2331 = vsub.f32 %v1932, %v2316
      %v2332 = vsub.f32 %v1932, %v2320
      %v2333 = vsub.f32 %v1932, %v2324
      %v2334 = vand.u32 2147483647, %v2326
      %v2335 = vand.u32 2147483647, %v2327
      %v2336 = vand.u32 2147483647, %v2328
      %v2337 = vand.u32 2147483647, %v2329
      %v2338 = vand.u32 2147483647, %v2330
      %v2339 = vand.u32 2147483647, %v2331
      %v2340 = vand.u32 2147483647, %v2332
      %v2341 = vand.u32 2147483647, %v2333
      %v2342 = vsub.f32 1.0, %v2334
      %v2343 = vsub.f32 1.0, %v2335
      %v2344 = vsub.f32 1.0, %v2336
      %v2345 = vsub.f32 1.0, %v2337
      %v2346 = vsub.f32 1.0, %v2338
      %v2347 = vsub.f32 1.0, %v2339
      %v2348 = vsub.f32 1.0, %v2340
      %v2349 = vsub.f32 1.0, %v2341
      %v2350 = vmax.f32 %v2342, 0.0
      %v2351 = vmax.f32 %v2343, 0.0
      %v2352 = vmax.f32 %v2344, 0.0
      %v2353 = vmax.f32 %v2345, 0.0
      %v2354 = vmax.f32 %v2346, 0.0
      %v2355 = vmax.f32 %v2347, 0.0
      %v2356 = vmax.f32 %v2348, 0.0
      %v2357 = vmax.f32 %v2349, 0.0
      %v2358 = vpack.c.bf16 %v2351, %v2350
      %v2359 = vpack.c.bf16 %v2353, %v2352
      %v2360 = vpack.c.bf16 %v2355, %v2354
      %v2361 = vpack.c.bf16 %v2357, %v2356
      %2362 = vset.pattern.permute.xlu0 3
      %2363 = vperm.xlu0 %2362, %v1918
      %v2364 = vpop.permute.xlu0 %2363
      %2366 = vset.pattern.permute.xlu0 3
      %2367 = vperm.xlu0 %2366, %v1919
      %v2368 = vpop.permute.xlu0 %2367
      %2370 = vset.pattern.permute.xlu0 3
      %2371 = vperm.xlu0 %2370, %v1920
      %v2372 = vpop.permute.xlu0 %2371
      %2374 = vset.pattern.permute.xlu0 3
      %2375 = vperm.xlu0 %2374, %v1921
      %v2376 = vpop.permute.xlu0 %2375
      %2378 = vset.pattern.permute.xlu0 3
      %2379 = vperm.xlu0 %2378, %v1922
      %v2380 = vpop.permute.xlu0 %2379
      %2382 = vset.pattern.permute.xlu0 3
      %2383 = vperm.xlu0 %2382, %v1923
      %v2384 = vpop.permute.xlu0 %2383
      %2386 = vset.pattern.permute.xlu0 3
      %2387 = vperm.xlu0 %2386, %v1924
      %v2388 = vpop.permute.xlu0 %2387
      %2390 = vset.pattern.permute.xlu0 3
      %2391 = vperm.xlu0 %2390, %v1925
      %v2392 = vpop.permute.xlu0 %2391
      %v2394 = vsub.f32 %v1932, %v2364
      %v2395 = vsub.f32 %v1932, %v2368
      %v2396 = vsub.f32 %v1932, %v2372
      %v2397 = vsub.f32 %v1932, %v2376
      %v2398 = vsub.f32 %v1932, %v2380
      %v2399 = vsub.f32 %v1932, %v2384
      %v2400 = vsub.f32 %v1932, %v2388
      %v2401 = vsub.f32 %v1932, %v2392
      %v2402 = vand.u32 2147483647, %v2394
      %v2403 = vand.u32 2147483647, %v2395
      %v2404 = vand.u32 2147483647, %v2396
      %v2405 = vand.u32 2147483647, %v2397
      %v2406 = vand.u32 2147483647, %v2398
      %v2407 = vand.u32 2147483647, %v2399
      %v2408 = vand.u32 2147483647, %v2400
      %v2409 = vand.u32 2147483647, %v2401
      %v2410 = vsub.f32 1.0, %v2402
      %v2411 = vsub.f32 1.0, %v2403
      %v2412 = vsub.f32 1.0, %v2404
      %v2413 = vsub.f32 1.0, %v2405
      %v2414 = vsub.f32 1.0, %v2406
      %v2415 = vsub.f32 1.0, %v2407
      %v2416 = vsub.f32 1.0, %v2408
      %v2417 = vsub.f32 1.0, %v2409
      %v2418 = vmax.f32 %v2410, 0.0
      %v2419 = vmax.f32 %v2411, 0.0
      %v2420 = vmax.f32 %v2412, 0.0
      %v2421 = vmax.f32 %v2413, 0.0
      %v2422 = vmax.f32 %v2414, 0.0
      %v2423 = vmax.f32 %v2415, 0.0
      %v2424 = vmax.f32 %v2416, 0.0
      %v2425 = vmax.f32 %v2417, 0.0
      %v2426 = vpack.c.bf16 %v2419, %v2418
      %v2427 = vpack.c.bf16 %v2421, %v2420
      %v2428 = vpack.c.bf16 %v2423, %v2422
      %v2429 = vpack.c.bf16 %v2425, %v2424
      %v2431 = vsel %vm2087, %v2358, 0
      %v2434 = vsel %vm2087, %v2359, 0
      %v2437 = vsel %vm2087, %v2360, 0
      %v2440 = vsel %vm2087, %v2361, 0
      %2442 = vmatpush.bf16.msra.mxu0 0
      %2443 = vmatpush.bf16.msra.mxu0 0
      %2444 = vmatpush.bf16.msra.mxu0 0
      %2445 = vmatpush.bf16.msra.mxu0 0
      %2446 = vmatpush.bf16.msra.mxu0 0
      %2447 = vmatpush.bf16.msra.mxu0 0
      %2448 = vmatpush.bf16.msra.mxu0 0
      %2449 = vmatpush.bf16.msra.mxu0 %v2083
      %2450 = vmatmul.bf16.gmra.mxu0 %v2431
      %v2451 = vpop.f32.mrf.mxu0
      %v2452 = vadd.f32 0.0, %v2451
      %v2453 = vpop.f32.mrf.mxu0
      %v2454 = vadd.f32 0.0, %v2453
      %2455 = vmatmul.bf16.gmra.mxu0 %v2434
      %v2456 = vpop.f32.mrf.mxu0
      %v2457 = vadd.f32 0.0, %v2456
      %v2458 = vpop.f32.mrf.mxu0
      %v2459 = vadd.f32 0.0, %v2458
      %2460 = vmatmul.bf16.gmra.mxu0 %v2437
      %v2461 = vpop.f32.mrf.mxu0
      %v2462 = vadd.f32 0.0, %v2461
      %v2463 = vpop.f32.mrf.mxu0
      %v2464 = vadd.f32 0.0, %v2463
      %2465 = vmatmul.bf16.gmra.mxu0 %v2440
      %v2466 = vpop.f32.mrf.mxu0
      %v2467 = vadd.f32 0.0, %v2466
      %v2468 = vpop.f32.mrf.mxu0
      %v2469 = vadd.f32 0.0, %v2468
      %2470 = vdwg.mxu0
      %2471 = vmatpush.bf16.msra.mxu0 0
      %2472 = vmatpush.bf16.msra.mxu0 0
      %2473 = vmatpush.bf16.msra.mxu0 0
      %2474 = vmatpush.bf16.msra.mxu0 0
      %2475 = vmatpush.bf16.msra.mxu0 0
      %2476 = vmatpush.bf16.msra.mxu0 0
      %2477 = vmatpush.bf16.msra.mxu0 0
      %2478 = vmatpush.bf16.msra.mxu0 %v2084
      %2479 = vmatmul.bf16.gmra.mxu0 %v2431
      %v2480 = vpop.f32.mrf.mxu0
      %v2481 = vadd.f32 0.0, %v2480
      %v2482 = vpop.f32.mrf.mxu0
      %v2483 = vadd.f32 0.0, %v2482
      %2484 = vmatmul.bf16.gmra.mxu0 %v2434
      %v2485 = vpop.f32.mrf.mxu0
      %v2486 = vadd.f32 0.0, %v2485
      %v2487 = vpop.f32.mrf.mxu0
      %v2488 = vadd.f32 0.0, %v2487
      %2489 = vmatmul.bf16.gmra.mxu0 %v2437
      %v2490 = vpop.f32.mrf.mxu0
      %v2491 = vadd.f32 0.0, %v2490
      %v2492 = vpop.f32.mrf.mxu0
      %v2493 = vadd.f32 0.0, %v2492
      %2494 = vmatmul.bf16.gmra.mxu0 %v2440
      %v2495 = vpop.f32.mrf.mxu0
      %v2496 = vadd.f32 0.0, %v2495
      %v2497 = vpop.f32.mrf.mxu0
      %v2498 = vadd.f32 0.0, %v2497
      %2499 = vdwg.mxu0
      %v2501 = vsel %vm2087, %v2426, 0
      %v2504 = vsel %vm2087, %v2427, 0
      %v2507 = vsel %vm2087, %v2428, 0
      %v2510 = vsel %vm2087, %v2429, 0
      %2512 = vmatpush.bf16.msra.mxu0 0
      %2513 = vmatpush.bf16.msra.mxu0 0
      %2514 = vmatpush.bf16.msra.mxu0 0
      %2515 = vmatpush.bf16.msra.mxu0 0
      %2516 = vmatpush.bf16.msra.mxu0 0
      %2517 = vmatpush.bf16.msra.mxu0 0
      %2518 = vmatpush.bf16.msra.mxu0 0
      %2519 = vmatpush.bf16.msra.mxu0 %v2164
      %2520 = vmatmul.bf16.gmra.mxu0 %v2501
      %v2521 = vpop.f32.mrf.mxu0
      %v2522 = vadd.f32 0.0, %v2521
      %v2523 = vpop.f32.mrf.mxu0
      %v2524 = vadd.f32 0.0, %v2523
      %2525 = vmatmul.bf16.gmra.mxu0 %v2504
      %v2526 = vpop.f32.mrf.mxu0
      %v2527 = vadd.f32 0.0, %v2526
      %v2528 = vpop.f32.mrf.mxu0
      %v2529 = vadd.f32 0.0, %v2528
      %2530 = vmatmul.bf16.gmra.mxu0 %v2507
      %v2531 = vpop.f32.mrf.mxu0
      %v2532 = vadd.f32 0.0, %v2531
      %v2533 = vpop.f32.mrf.mxu0
      %v2534 = vadd.f32 0.0, %v2533
      %2535 = vmatmul.bf16.gmra.mxu0 %v2510
      %v2536 = vpop.f32.mrf.mxu0
      %v2537 = vadd.f32 0.0, %v2536
      %v2538 = vpop.f32.mrf.mxu0
      %v2539 = vadd.f32 0.0, %v2538
      %2540 = vdwg.mxu0
      %2541 = vmatpush.bf16.msra.mxu0 0
      %2542 = vmatpush.bf16.msra.mxu0 0
      %2543 = vmatpush.bf16.msra.mxu0 0
      %2544 = vmatpush.bf16.msra.mxu0 0
      %2545 = vmatpush.bf16.msra.mxu0 0
      %2546 = vmatpush.bf16.msra.mxu0 0
      %2547 = vmatpush.bf16.msra.mxu0 0
      %2548 = vmatpush.bf16.msra.mxu0 %v2165
      %2549 = vmatmul.bf16.gmra.mxu0 %v2501
      %v2550 = vpop.f32.mrf.mxu0
      %v2551 = vadd.f32 0.0, %v2550
      %v2552 = vpop.f32.mrf.mxu0
      %v2553 = vadd.f32 0.0, %v2552
      %2554 = vmatmul.bf16.gmra.mxu0 %v2504
      %v2555 = vpop.f32.mrf.mxu0
      %v2556 = vadd.f32 0.0, %v2555
      %v2557 = vpop.f32.mrf.mxu0
      %v2558 = vadd.f32 0.0, %v2557
      %2559 = vmatmul.bf16.gmra.mxu0 %v2507
      %v2560 = vpop.f32.mrf.mxu0
      %v2561 = vadd.f32 0.0, %v2560
      %v2562 = vpop.f32.mrf.mxu0
      %v2563 = vadd.f32 0.0, %v2562
      %2564 = vmatmul.bf16.gmra.mxu0 %v2510
      %v2565 = vpop.f32.mrf.mxu0
      %v2566 = vadd.f32 0.0, %v2565
      %v2567 = vpop.f32.mrf.mxu0
      %v2568 = vadd.f32 0.0, %v2567
      %2569 = vdwg.mxu0
      %v2570 = vmul.f32 %v2452, %v2522
      %v2571 = vmul.f32 %v2481, %v2551
      %v2572 = vmul.f32 %v2454, %v2524
      %v2573 = vmul.f32 %v2483, %v2553
      %v2574 = vmul.f32 %v2457, %v2527
      %v2575 = vmul.f32 %v2486, %v2556
      %v2576 = vmul.f32 %v2459, %v2529
      %v2577 = vmul.f32 %v2488, %v2558
      %v2578 = vmul.f32 %v2462, %v2532
      %v2579 = vmul.f32 %v2491, %v2561
      %v2580 = vmul.f32 %v2464, %v2534
      %v2581 = vmul.f32 %v2493, %v2563
      %v2582 = vmul.f32 %v2467, %v2537
      %v2583 = vmul.f32 %v2496, %v2566
      %v2584 = vmul.f32 %v2469, %v2539
      %v2585 = vmul.f32 %v2498, %v2568
      %v2586 = vpack.c.bf16 %v2572, %v2570
      %v2587 = vpack.c.bf16 %v2573, %v2571
      %v2588 = vpack.c.bf16 %v2576, %v2574
      %v2589 = vpack.c.bf16 %v2577, %v2575
      %v2590 = vpack.c.bf16 %v2580, %v2578
      %v2591 = vpack.c.bf16 %v2581, %v2579
      %v2592 = vpack.c.bf16 %v2584, %v2582
      %v2593 = vpack.c.bf16 %v2585, %v2583
      %s2594 = scalar_lea.vmem [#allocation2], 128
      %v2595 = vld [vmem:[%s2594] sm:$0xf]
      %v2596 = vld [vmem:[%s2594 + $0x4] sm:$0xf]
      %v2597 = vld [vmem:[%s2594 + $0x8] sm:$0xf]
      %v2598 = vld [vmem:[%s2594 + $0xc] sm:$0xf]
      %v2599 = vld [vmem:[%s2594 + $0x10] sm:$0xf]
      %v2600 = vld [vmem:[%s2594 + $0x14] sm:$0xf]
      %v2601 = vld [vmem:[%s2594 + $0x18] sm:$0xf]
      %v2602 = vld [vmem:[%s2594 + $0x1c] sm:$0xf]
      %v2603 = vld [vmem:[%s2594 + $0x20] sm:$0xf]
      %v2604 = vld [vmem:[%s2594 + $0x24] sm:$0xf]
      %v2605 = vld [vmem:[%s2594 + $0x28] sm:$0xf]
      %v2606 = vld [vmem:[%s2594 + $0x2c] sm:$0xf]
      %v2607 = vld [vmem:[%s2594 + $0x30] sm:$0xf]
      %v2608 = vld [vmem:[%s2594 + $0x34] sm:$0xf]
      %v2609 = vld [vmem:[%s2594 + $0x38] sm:$0xf]
      %v2610 = vld [vmem:[%s2594 + $0x3c] sm:$0xf]
      %v2611 = vld [vmem:[%s2594 + $0x40] sm:$0xf]
      %v2612 = vld [vmem:[%s2594 + $0x44] sm:$0xf]
      %v2613 = vld [vmem:[%s2594 + $0x48] sm:$0xf]
      %v2614 = vld [vmem:[%s2594 + $0x4c] sm:$0xf]
      %v2615 = vld [vmem:[%s2594 + $0x50] sm:$0xf]
      %v2616 = vld [vmem:[%s2594 + $0x54] sm:$0xf]
      %v2617 = vld [vmem:[%s2594 + $0x58] sm:$0xf]
      %v2618 = vld [vmem:[%s2594 + $0x5c] sm:$0xf]
      %v2619 = vld [vmem:[%s2594 + $0x60] sm:$0xf]
      %v2620 = vld [vmem:[%s2594 + $0x64] sm:$0xf]
      %v2621 = vld [vmem:[%s2594 + $0x68] sm:$0xf]
      %v2622 = vld [vmem:[%s2594 + $0x6c] sm:$0xf]
      %v2623 = vld [vmem:[%s2594 + $0x70] sm:$0xf]
      %v2624 = vld [vmem:[%s2594 + $0x74] sm:$0xf]
      %v2625 = vld [vmem:[%s2594 + $0x78] sm:$0xf]
      %v2626 = vld [vmem:[%s2594 + $0x7c] sm:$0xf]
      %v2659 = vunpack.c.l.b16 %v2595
      %v2660 = vunpack.c.l.b16 %v2596
      %v2661 = vunpack.c.l.b16 %v2597
      %v2662 = vunpack.c.l.b16 %v2598
      %v2663 = vunpack.c.l.b16 %v2599
      %v2664 = vunpack.c.l.b16 %v2600
      %v2665 = vunpack.c.l.b16 %v2601
      %v2666 = vunpack.c.l.b16 %v2602
      %v2667 = vunpack.c.l.b16 %v2603
      %v2668 = vunpack.c.l.b16 %v2604
      %v2669 = vunpack.c.l.b16 %v2605
      %v2670 = vunpack.c.l.b16 %v2606
      %v2671 = vunpack.c.l.b16 %v2607
      %v2672 = vunpack.c.l.b16 %v2608
      %v2673 = vunpack.c.l.b16 %v2609
      %v2674 = vunpack.c.l.b16 %v2610
      %v2675 = vunpack.c.l.b16 %v2611
      %v2676 = vunpack.c.l.b16 %v2612
      %v2677 = vunpack.c.l.b16 %v2613
      %v2678 = vunpack.c.l.b16 %v2614
      %v2679 = vunpack.c.l.b16 %v2615
      %v2680 = vunpack.c.l.b16 %v2616
      %v2681 = vunpack.c.l.b16 %v2617
      %v2682 = vunpack.c.l.b16 %v2618
      %v2683 = vunpack.c.l.b16 %v2619
      %v2684 = vunpack.c.l.b16 %v2620
      %v2685 = vunpack.c.l.b16 %v2621
      %v2686 = vunpack.c.l.b16 %v2622
      %v2687 = vunpack.c.l.b16 %v2623
      %v2688 = vunpack.c.l.b16 %v2624
      %v2689 = vunpack.c.l.b16 %v2625
      %v2690 = vunpack.c.l.b16 %v2626
      %v2691 = vpack.c.b16 %v2660, %v2659
      %v2692 = vpack.c.b16 %v2662, %v2661
      %v2693 = vpack.c.b16 %v2664, %v2663
      %v2694 = vpack.c.b16 %v2666, %v2665
      %v2695 = vpack.c.b16 %v2668, %v2667
      %v2696 = vpack.c.b16 %v2670, %v2669
      %v2697 = vpack.c.b16 %v2672, %v2671
      %v2698 = vpack.c.b16 %v2674, %v2673
      %v2699 = vpack.c.b16 %v2676, %v2675
      %v2700 = vpack.c.b16 %v2678, %v2677
      %v2701 = vpack.c.b16 %v2680, %v2679
      %v2702 = vpack.c.b16 %v2682, %v2681
      %v2703 = vpack.c.b16 %v2684, %v2683
      %v2704 = vpack.c.b16 %v2686, %v2685
      %v2705 = vpack.c.b16 %v2688, %v2687
      %v2706 = vpack.c.b16 %v2690, %v2689
      %2723 = vmatpush.bf16.msra.mxu0 %v2698
      %2724 = vmatpush.bf16.msra.mxu0 %v2697
      %2725 = vmatpush.bf16.msra.mxu0 %v2696
      %2726 = vmatpush.bf16.msra.mxu0 %v2695
      %2727 = vmatpush.bf16.msra.mxu0 %v2694
      %2728 = vmatpush.bf16.msra.mxu0 %v2693
      %2729 = vmatpush.bf16.msra.mxu0 %v2692
      %2730 = vmatpush.bf16.msra.mxu0 %v2691
      %2731 = vmatmul.bf16.gmra.mxu0 %v2586
      %v2732 = vpop.f32.mrf.mxu0
      %v2733 = vadd.f32 0.0, %v2732
      %v2734 = vpop.f32.mrf.mxu0
      %v2735 = vadd.f32 0.0, %v2734
      %2736 = vmatmul.bf16.gmra.mxu0 %v2588
      %v2737 = vpop.f32.mrf.mxu0
      %v2738 = vadd.f32 0.0, %v2737
      %v2739 = vpop.f32.mrf.mxu0
      %v2740 = vadd.f32 0.0, %v2739
      %2741 = vmatmul.bf16.gmra.mxu0 %v2590
      %v2742 = vpop.f32.mrf.mxu0
      %v2743 = vadd.f32 0.0, %v2742
      %v2744 = vpop.f32.mrf.mxu0
      %v2745 = vadd.f32 0.0, %v2744
      %2746 = vmatmul.bf16.gmra.mxu0 %v2592
      %v2747 = vpop.f32.mrf.mxu0
      %v2748 = vadd.f32 0.0, %v2747
      %v2749 = vpop.f32.mrf.mxu0
      %v2750 = vadd.f32 0.0, %v2749
      %2751 = vdwg.mxu0
      %2752 = vmatpush.bf16.msra.mxu0 %v2706
      %2753 = vmatpush.bf16.msra.mxu0 %v2705
      %2754 = vmatpush.bf16.msra.mxu0 %v2704
      %2755 = vmatpush.bf16.msra.mxu0 %v2703
      %2756 = vmatpush.bf16.msra.mxu0 %v2702
      %2757 = vmatpush.bf16.msra.mxu0 %v2701
      %2758 = vmatpush.bf16.msra.mxu0 %v2700
      %2759 = vmatpush.bf16.msra.mxu0 %v2699
      %2760 = vmatmul.bf16.gmra.mxu0 %v2587
      %v2761 = vpop.f32.mrf.mxu0
      %v2762 = vadd.f32 %v2733, %v2761
      %v2763 = vpop.f32.mrf.mxu0
      %v2764 = vadd.f32 %v2735, %v2763
      %2765 = vmatmul.bf16.gmra.mxu0 %v2589
      %v2766 = vpop.f32.mrf.mxu0
      %v2767 = vadd.f32 %v2738, %v2766
      %v2768 = vpop.f32.mrf.mxu0
      %v2769 = vadd.f32 %v2740, %v2768
      %2770 = vmatmul.bf16.gmra.mxu0 %v2591
      %v2771 = vpop.f32.mrf.mxu0
      %v2772 = vadd.f32 %v2743, %v2771
      %v2773 = vpop.f32.mrf.mxu0
      %v2774 = vadd.f32 %v2745, %v2773
      %2775 = vmatmul.bf16.gmra.mxu0 %v2593
      %v2776 = vpop.f32.mrf.mxu0
      %v2777 = vadd.f32 %v2748, %v2776
      %v2778 = vpop.f32.mrf.mxu0
      %v2779 = vadd.f32 %v2750, %v2778
      %2780 = vdwg.mxu0
      %v2813 = vunpack.c.l.b16 %v2262
      %v2814 = vunpack.c.l.b16 %v2263
      %v2815 = vunpack.c.l.b16 %v2264
      %v2816 = vunpack.c.l.b16 %v2265
      %v2817 = vunpack.c.l.b16 %v2266
      %v2818 = vunpack.c.l.b16 %v2267
      %v2819 = vunpack.c.l.b16 %v2268
      %v2820 = vunpack.c.l.b16 %v2269
      %v2821 = vunpack.c.l.b16 %v2270
      %v2822 = vunpack.c.l.b16 %v2271
      %v2823 = vunpack.c.l.b16 %v2272
      %v2824 = vunpack.c.l.b16 %v2273
      %v2825 = vunpack.c.l.b16 %v2274
      %v2826 = vunpack.c.l.b16 %v2275
      %v2827 = vunpack.c.l.b16 %v2276
      %v2828 = vunpack.c.l.b16 %v2277
      %v2829 = vunpack.c.l.b16 %v2278
      %v2830 = vunpack.c.l.b16 %v2279
      %v2831 = vunpack.c.l.b16 %v2280
      %v2832 = vunpack.c.l.b16 %v2281
      %v2833 = vunpack.c.l.b16 %v2282
      %v2834 = vunpack.c.l.b16 %v2283
      %v2835 = vunpack.c.l.b16 %v2284
      %v2836 = vunpack.c.l.b16 %v2285
      %v2837 = vunpack.c.l.b16 %v2286
      %v2838 = vunpack.c.l.b16 %v2287
      %v2839 = vunpack.c.l.b16 %v2288
      %v2840 = vunpack.c.l.b16 %v2289
      %v2841 = vunpack.c.l.b16 %v2290
      %v2842 = vunpack.c.l.b16 %v2291
      %v2843 = vunpack.c.l.b16 %v2292
      %v2844 = vunpack.c.l.b16 %v2293
      %v2845 = vpack.c.b16 %v2814, %v2813
      %v2846 = vpack.c.b16 %v2816, %v2815
      %v2847 = vpack.c.b16 %v2818, %v2817
      %v2848 = vpack.c.b16 %v2820, %v2819
      %v2849 = vpack.c.b16 %v2822, %v2821
      %v2850 = vpack.c.b16 %v2824, %v2823
      %v2851 = vpack.c.b16 %v2826, %v2825
      %v2852 = vpack.c.b16 %v2828, %v2827
      %v2853 = vpack.c.b16 %v2830, %v2829
      %v2854 = vpack.c.b16 %v2832, %v2831
      %v2855 = vpack.c.b16 %v2834, %v2833
      %v2856 = vpack.c.b16 %v2836, %v2835
      %v2857 = vpack.c.b16 %v2838, %v2837
      %v2858 = vpack.c.b16 %v2840, %v2839
      %v2859 = vpack.c.b16 %v2842, %v2841
      %v2860 = vpack.c.b16 %v2844, %v2843
      %2877 = vmatpush.bf16.msra.mxu0 %v2852
      %2878 = vmatpush.bf16.msra.mxu0 %v2851
      %2879 = vmatpush.bf16.msra.mxu0 %v2850
      %2880 = vmatpush.bf16.msra.mxu0 %v2849
      %2881 = vmatpush.bf16.msra.mxu0 %v2848
      %2882 = vmatpush.bf16.msra.mxu0 %v2847
      %2883 = vmatpush.bf16.msra.mxu0 %v2846
      %2884 = vmatpush.bf16.msra.mxu0 %v2845
      %2885 = vmatmul.bf16.gmra.mxu0 %v2254
      %v2886 = vpop.f32.mrf.mxu0
      %v2887 = vadd.f32 %v2762, %v2886
      %v2888 = vpop.f32.mrf.mxu0
      %v2889 = vadd.f32 %v2764, %v2888
      %2890 = vmatmul.bf16.gmra.mxu0 %v2256
      %v2891 = vpop.f32.mrf.mxu0
      %v2892 = vadd.f32 %v2767, %v2891
      %v2893 = vpop.f32.mrf.mxu0
      %v2894 = vadd.f32 %v2769, %v2893
      %2895 = vmatmul.bf16.gmra.mxu0 %v2258
      %v2896 = vpop.f32.mrf.mxu0
      %v2897 = vadd.f32 %v2772, %v2896
      %v2898 = vpop.f32.mrf.mxu0
      %v2899 = vadd.f32 %v2774, %v2898
      %2900 = vmatmul.bf16.gmra.mxu0 %v2260
      %v2901 = vpop.f32.mrf.mxu0
      %v2902 = vadd.f32 %v2777, %v2901
      %v2903 = vpop.f32.mrf.mxu0
      %v2904 = vadd.f32 %v2779, %v2903
      %2905 = vdwg.mxu0
      %2906 = vmatpush.bf16.msra.mxu0 %v2860
      %2907 = vmatpush.bf16.msra.mxu0 %v2859
      %2908 = vmatpush.bf16.msra.mxu0 %v2858
      %2909 = vmatpush.bf16.msra.mxu0 %v2857
      %2910 = vmatpush.bf16.msra.mxu0 %v2856
      %2911 = vmatpush.bf16.msra.mxu0 %v2855
      %2912 = vmatpush.bf16.msra.mxu0 %v2854
      %2913 = vmatpush.bf16.msra.mxu0 %v2853
      %2914 = vmatmul.bf16.gmra.mxu0 %v2255
      %v2915 = vpop.f32.mrf.mxu0
      %v2916 = vadd.f32 %v2887, %v2915
      %v2917 = vpop.f32.mrf.mxu0
      %v2918 = vadd.f32 %v2889, %v2917
      %2919 = vmatmul.bf16.gmra.mxu0 %v2257
      %v2920 = vpop.f32.mrf.mxu0
      %v2921 = vadd.f32 %v2892, %v2920
      %v2922 = vpop.f32.mrf.mxu0
      %v2923 = vadd.f32 %v2894, %v2922
      %2924 = vmatmul.bf16.gmra.mxu0 %v2259
      %v2925 = vpop.f32.mrf.mxu0
      %v2926 = vadd.f32 %v2897, %v2925
      %v2927 = vpop.f32.mrf.mxu0
      %v2928 = vadd.f32 %v2899, %v2927
      %2929 = vmatmul.bf16.gmra.mxu0 %v2261
      %v2930 = vpop.f32.mrf.mxu0
      %v2931 = vadd.f32 %v2902, %v2930
      %v2932 = vpop.f32.mrf.mxu0
      %v2933 = vadd.f32 %v2904, %v2932
      %2934 = vdwg.mxu0
      %2935 = vset.pattern.permute.xlu0 4
      %2936 = vperm.xlu0 %2935, %v1918
      %v2937 = vpop.permute.xlu0 %2936
      %2939 = vset.pattern.permute.xlu0 4
      %2940 = vperm.xlu0 %2939, %v1919
      %v2941 = vpop.permute.xlu0 %2940
      %2943 = vset.pattern.permute.xlu0 4
      %2944 = vperm.xlu0 %2943, %v1920
      %v2945 = vpop.permute.xlu0 %2944
      %2947 = vset.pattern.permute.xlu0 4
      %2948 = vperm.xlu0 %2947, %v1921
      %v2949 = vpop.permute.xlu0 %2948
      %2951 = vset.pattern.permute.xlu0 4
      %2952 = vperm.xlu0 %2951, %v1922
      %v2953 = vpop.permute.xlu0 %2952
      %2955 = vset.pattern.permute.xlu0 4
      %2956 = vperm.xlu0 %2955, %v1923
      %v2957 = vpop.permute.xlu0 %2956
      %2959 = vset.pattern.permute.xlu0 4
      %2960 = vperm.xlu0 %2959, %v1924
      %v2961 = vpop.permute.xlu0 %2960
      %2963 = vset.pattern.permute.xlu0 4
      %2964 = vperm.xlu0 %2963, %v1925
      %v2965 = vpop.permute.xlu0 %2964
      %v2967 = vsub.f32 %v1932, %v2937
      %v2968 = vsub.f32 %v1932, %v2941
      %v2969 = vsub.f32 %v1932, %v2945
      %v2970 = vsub.f32 %v1932, %v2949
      %v2971 = vsub.f32 %v1932, %v2953
      %v2972 = vsub.f32 %v1932, %v2957
      %v2973 = vsub.f32 %v1932, %v2961
      %v2974 = vsub.f32 %v1932, %v2965
      %v2975 = vand.u32 2147483647, %v2967
      %v2976 = vand.u32 2147483647, %v2968
      %v2977 = vand.u32 2147483647, %v2969
      %v2978 = vand.u32 2147483647, %v2970
      %v2979 = vand.u32 2147483647, %v2971
      %v2980 = vand.u32 2147483647, %v2972
      %v2981 = vand.u32 2147483647, %v2973
      %v2982 = vand.u32 2147483647, %v2974
      %v2983 = vsub.f32 1.0, %v2975
      %v2984 = vsub.f32 1.0, %v2976
      %v2985 = vsub.f32 1.0, %v2977
      %v2986 = vsub.f32 1.0, %v2978
      %v2987 = vsub.f32 1.0, %v2979
      %v2988 = vsub.f32 1.0, %v2980
      %v2989 = vsub.f32 1.0, %v2981
      %v2990 = vsub.f32 1.0, %v2982
      %v2991 = vmax.f32 %v2983, 0.0
      %v2992 = vmax.f32 %v2984, 0.0
      %v2993 = vmax.f32 %v2985, 0.0
      %v2994 = vmax.f32 %v2986, 0.0
      %v2995 = vmax.f32 %v2987, 0.0
      %v2996 = vmax.f32 %v2988, 0.0
      %v2997 = vmax.f32 %v2989, 0.0
      %v2998 = vmax.f32 %v2990, 0.0
      %v2999 = vpack.c.bf16 %v2992, %v2991
      %v3000 = vpack.c.bf16 %v2994, %v2993
      %v3001 = vpack.c.bf16 %v2996, %v2995
      %v3002 = vpack.c.bf16 %v2998, %v2997
      %3003 = vset.pattern.permute.xlu0 5
      %3004 = vperm.xlu0 %3003, %v1918
      %v3005 = vpop.permute.xlu0 %3004
      %3007 = vset.pattern.permute.xlu0 5
      %3008 = vperm.xlu0 %3007, %v1919
      %v3009 = vpop.permute.xlu0 %3008
      %3011 = vset.pattern.permute.xlu0 5
      %3012 = vperm.xlu0 %3011, %v1920
      %v3013 = vpop.permute.xlu0 %3012
      %3015 = vset.pattern.permute.xlu0 5
      %3016 = vperm.xlu0 %3015, %v1921
      %v3017 = vpop.permute.xlu0 %3016
      %3019 = vset.pattern.permute.xlu0 5
      %3020 = vperm.xlu0 %3019, %v1922
      %v3021 = vpop.permute.xlu0 %3020
      %3023 = vset.pattern.permute.xlu0 5
      %3024 = vperm.xlu0 %3023, %v1923
      %v3025 = vpop.permute.xlu0 %3024
      %3027 = vset.pattern.permute.xlu0 5
      %3028 = vperm.xlu0 %3027, %v1924
      %v3029 = vpop.permute.xlu0 %3028
      %3031 = vset.pattern.permute.xlu0 5
      %3032 = vperm.xlu0 %3031, %v1925
      %v3033 = vpop.permute.xlu0 %3032
      %v3035 = vsub.f32 %v1932, %v3005
      %v3036 = vsub.f32 %v1932, %v3009
      %v3037 = vsub.f32 %v1932, %v3013
      %v3038 = vsub.f32 %v1932, %v3017
      %v3039 = vsub.f32 %v1932, %v3021
      %v3040 = vsub.f32 %v1932, %v3025
      %v3041 = vsub.f32 %v1932, %v3029
      %v3042 = vsub.f32 %v1932, %v3033
      %v3043 = vand.u32 2147483647, %v3035
      %v3044 = vand.u32 2147483647, %v3036
      %v3045 = vand.u32 2147483647, %v3037
      %v3046 = vand.u32 2147483647, %v3038
      %v3047 = vand.u32 2147483647, %v3039
      %v3048 = vand.u32 2147483647, %v3040
      %v3049 = vand.u32 2147483647, %v3041
      %v3050 = vand.u32 2147483647, %v3042
      %v3051 = vsub.f32 1.0, %v3043
      %v3052 = vsub.f32 1.0, %v3044
      %v3053 = vsub.f32 1.0, %v3045
      %v3054 = vsub.f32 1.0, %v3046
      %v3055 = vsub.f32 1.0, %v3047
      %v3056 = vsub.f32 1.0, %v3048
      %v3057 = vsub.f32 1.0, %v3049
      %v3058 = vsub.f32 1.0, %v3050
      %v3059 = vmax.f32 %v3051, 0.0
      %v3060 = vmax.f32 %v3052, 0.0
      %v3061 = vmax.f32 %v3053, 0.0
      %v3062 = vmax.f32 %v3054, 0.0
      %v3063 = vmax.f32 %v3055, 0.0
      %v3064 = vmax.f32 %v3056, 0.0
      %v3065 = vmax.f32 %v3057, 0.0
      %v3066 = vmax.f32 %v3058, 0.0
      %v3067 = vpack.c.bf16 %v3060, %v3059
      %v3068 = vpack.c.bf16 %v3062, %v3061
      %v3069 = vpack.c.bf16 %v3064, %v3063
      %v3070 = vpack.c.bf16 %v3066, %v3065
      %v3072 = vsel %vm2087, %v2999, 0
      %v3075 = vsel %vm2087, %v3000, 0
      %v3078 = vsel %vm2087, %v3001, 0
      %v3081 = vsel %vm2087, %v3002, 0
      %3083 = vmatpush.bf16.msra.mxu0 0
      %3084 = vmatpush.bf16.msra.mxu0 0
      %3085 = vmatpush.bf16.msra.mxu0 0
      %3086 = vmatpush.bf16.msra.mxu0 0
      %3087 = vmatpush.bf16.msra.mxu0 0
      %3088 = vmatpush.bf16.msra.mxu0 0
      %3089 = vmatpush.bf16.msra.mxu0 0
      %3090 = vmatpush.bf16.msra.mxu0 %v2083
      %3091 = vmatmul.bf16.gmra.mxu0 %v3072
      %v3092 = vpop.f32.mrf.mxu0
      %v3093 = vadd.f32 0.0, %v3092
      %v3094 = vpop.f32.mrf.mxu0
      %v3095 = vadd.f32 0.0, %v3094
      %3096 = vmatmul.bf16.gmra.mxu0 %v3075
      %v3097 = vpop.f32.mrf.mxu0
      %v3098 = vadd.f32 0.0, %v3097
      %v3099 = vpop.f32.mrf.mxu0
      %v3100 = vadd.f32 0.0, %v3099
      %3101 = vmatmul.bf16.gmra.mxu0 %v3078
      %v3102 = vpop.f32.mrf.mxu0
      %v3103 = vadd.f32 0.0, %v3102
      %v3104 = vpop.f32.mrf.mxu0
      %v3105 = vadd.f32 0.0, %v3104
      %3106 = vmatmul.bf16.gmra.mxu0 %v3081
      %v3107 = vpop.f32.mrf.mxu0
      %v3108 = vadd.f32 0.0, %v3107
      %v3109 = vpop.f32.mrf.mxu0
      %v3110 = vadd.f32 0.0, %v3109
      %3111 = vdwg.mxu0
      %3112 = vmatpush.bf16.msra.mxu0 0
      %3113 = vmatpush.bf16.msra.mxu0 0
      %3114 = vmatpush.bf16.msra.mxu0 0
      %3115 = vmatpush.bf16.msra.mxu0 0
      %3116 = vmatpush.bf16.msra.mxu0 0
      %3117 = vmatpush.bf16.msra.mxu0 0
      %3118 = vmatpush.bf16.msra.mxu0 0
      %3119 = vmatpush.bf16.msra.mxu0 %v2084
      %3120 = vmatmul.bf16.gmra.mxu0 %v3072
      %v3121 = vpop.f32.mrf.mxu0
      %v3122 = vadd.f32 0.0, %v3121
      %v3123 = vpop.f32.mrf.mxu0
      %v3124 = vadd.f32 0.0, %v3123
      %3125 = vmatmul.bf16.gmra.mxu0 %v3075
      %v3126 = vpop.f32.mrf.mxu0
      %v3127 = vadd.f32 0.0, %v3126
      %v3128 = vpop.f32.mrf.mxu0
      %v3129 = vadd.f32 0.0, %v3128
      %3130 = vmatmul.bf16.gmra.mxu0 %v3078
      %v3131 = vpop.f32.mrf.mxu0
      %v3132 = vadd.f32 0.0, %v3131
      %v3133 = vpop.f32.mrf.mxu0
      %v3134 = vadd.f32 0.0, %v3133
      %3135 = vmatmul.bf16.gmra.mxu0 %v3081
      %v3136 = vpop.f32.mrf.mxu0
      %v3137 = vadd.f32 0.0, %v3136
      %v3138 = vpop.f32.mrf.mxu0
      %v3139 = vadd.f32 0.0, %v3138
      %3140 = vdwg.mxu0
      %v3142 = vsel %vm2087, %v3067, 0
      %v3145 = vsel %vm2087, %v3068, 0
      %v3148 = vsel %vm2087, %v3069, 0
      %v3151 = vsel %vm2087, %v3070, 0
      %3153 = vmatpush.bf16.msra.mxu0 0
      %3154 = vmatpush.bf16.msra.mxu0 0
      %3155 = vmatpush.bf16.msra.mxu0 0
      %3156 = vmatpush.bf16.msra.mxu0 0
      %3157 = vmatpush.bf16.msra.mxu0 0
      %3158 = vmatpush.bf16.msra.mxu0 0
      %3159 = vmatpush.bf16.msra.mxu0 0
      %3160 = vmatpush.bf16.msra.mxu0 %v2164
      %3161 = vmatmul.bf16.gmra.mxu0 %v3142
      %v3162 = vpop.f32.mrf.mxu0
      %v3163 = vadd.f32 0.0, %v3162
      %v3164 = vpop.f32.mrf.mxu0
      %v3165 = vadd.f32 0.0, %v3164
      %3166 = vmatmul.bf16.gmra.mxu0 %v3145
      %v3167 = vpop.f32.mrf.mxu0
      %v3168 = vadd.f32 0.0, %v3167
      %v3169 = vpop.f32.mrf.mxu0
      %v3170 = vadd.f32 0.0, %v3169
      %3171 = vmatmul.bf16.gmra.mxu0 %v3148
      %v3172 = vpop.f32.mrf.mxu0
      %v3173 = vadd.f32 0.0, %v3172
      %v3174 = vpop.f32.mrf.mxu0
      %v3175 = vadd.f32 0.0, %v3174
      %3176 = vmatmul.bf16.gmra.mxu0 %v3151
      %v3177 = vpop.f32.mrf.mxu0
      %v3178 = vadd.f32 0.0, %v3177
      %v3179 = vpop.f32.mrf.mxu0
      %v3180 = vadd.f32 0.0, %v3179
      %3181 = vdwg.mxu0
      %3182 = vmatpush.bf16.msra.mxu0 0
      %3183 = vmatpush.bf16.msra.mxu0 0
      %3184 = vmatpush.bf16.msra.mxu0 0
      %3185 = vmatpush.bf16.msra.mxu0 0
      %3186 = vmatpush.bf16.msra.mxu0 0
      %3187 = vmatpush.bf16.msra.mxu0 0
      %3188 = vmatpush.bf16.msra.mxu0 0
      %3189 = vmatpush.bf16.msra.mxu0 %v2165
      %3190 = vmatmul.bf16.gmra.mxu0 %v3142
      %v3191 = vpop.f32.mrf.mxu0
      %v3192 = vadd.f32 0.0, %v3191
      %v3193 = vpop.f32.mrf.mxu0
      %v3194 = vadd.f32 0.0, %v3193
      %3195 = vmatmul.bf16.gmra.mxu0 %v3145
      %v3196 = vpop.f32.mrf.mxu0
      %v3197 = vadd.f32 0.0, %v3196
      %v3198 = vpop.f32.mrf.mxu0
      %v3199 = vadd.f32 0.0, %v3198
      %3200 = vmatmul.bf16.gmra.mxu0 %v3148
      %v3201 = vpop.f32.mrf.mxu0
      %v3202 = vadd.f32 0.0, %v3201
      %v3203 = vpop.f32.mrf.mxu0
      %v3204 = vadd.f32 0.0, %v3203
      %3205 = vmatmul.bf16.gmra.mxu0 %v3151
      %v3206 = vpop.f32.mrf.mxu0
      %v3207 = vadd.f32 0.0, %v3206
      %v3208 = vpop.f32.mrf.mxu0
      %v3209 = vadd.f32 0.0, %v3208
      %3210 = vdwg.mxu0
      %v3211 = vmul.f32 %v3093, %v3163
      %v3212 = vmul.f32 %v3122, %v3192
      %v3213 = vmul.f32 %v3095, %v3165
      %v3214 = vmul.f32 %v3124, %v3194
      %v3215 = vmul.f32 %v3098, %v3168
      %v3216 = vmul.f32 %v3127, %v3197
      %v3217 = vmul.f32 %v3100, %v3170
      %v3218 = vmul.f32 %v3129, %v3199
      %v3219 = vmul.f32 %v3103, %v3173
      %v3220 = vmul.f32 %v3132, %v3202
      %v3221 = vmul.f32 %v3105, %v3175
      %v3222 = vmul.f32 %v3134, %v3204
      %v3223 = vmul.f32 %v3108, %v3178
      %v3224 = vmul.f32 %v3137, %v3207
      %v3225 = vmul.f32 %v3110, %v3180
      %v3226 = vmul.f32 %v3139, %v3209
      %v3227 = vpack.c.bf16 %v3213, %v3211
      %v3228 = vpack.c.bf16 %v3214, %v3212
      %v3229 = vpack.c.bf16 %v3217, %v3215
      %v3230 = vpack.c.bf16 %v3218, %v3216
      %v3231 = vpack.c.bf16 %v3221, %v3219
      %v3232 = vpack.c.bf16 %v3222, %v3220
      %v3233 = vpack.c.bf16 %v3225, %v3223
      %v3234 = vpack.c.bf16 %v3226, %v3224
      %s3235 = scalar_lea.vmem [#allocation2], 256
      %v3236 = vld [vmem:[%s3235] sm:$0xf]
      %v3237 = vld [vmem:[%s3235 + $0x4] sm:$0xf]
      %v3238 = vld [vmem:[%s3235 + $0x8] sm:$0xf]
      %v3239 = vld [vmem:[%s3235 + $0xc] sm:$0xf]
      %v3240 = vld [vmem:[%s3235 + $0x10] sm:$0xf]
      %v3241 = vld [vmem:[%s3235 + $0x14] sm:$0xf]
      %v3242 = vld [vmem:[%s3235 + $0x18] sm:$0xf]
      %v3243 = vld [vmem:[%s3235 + $0x1c] sm:$0xf]
      %v3244 = vld [vmem:[%s3235 + $0x20] sm:$0xf]
      %v3245 = vld [vmem:[%s3235 + $0x24] sm:$0xf]
      %v3246 = vld [vmem:[%s3235 + $0x28] sm:$0xf]
      %v3247 = vld [vmem:[%s3235 + $0x2c] sm:$0xf]
      %v3248 = vld [vmem:[%s3235 + $0x30] sm:$0xf]
      %v3249 = vld [vmem:[%s3235 + $0x34] sm:$0xf]
      %v3250 = vld [vmem:[%s3235 + $0x38] sm:$0xf]
      %v3251 = vld [vmem:[%s3235 + $0x3c] sm:$0xf]
      %v3252 = vld [vmem:[%s3235 + $0x40] sm:$0xf]
      %v3253 = vld [vmem:[%s3235 + $0x44] sm:$0xf]
      %v3254 = vld [vmem:[%s3235 + $0x48] sm:$0xf]
      %v3255 = vld [vmem:[%s3235 + $0x4c] sm:$0xf]
      %v3256 = vld [vmem:[%s3235 + $0x50] sm:$0xf]
      %v3257 = vld [vmem:[%s3235 + $0x54] sm:$0xf]
      %v3258 = vld [vmem:[%s3235 + $0x58] sm:$0xf]
      %v3259 = vld [vmem:[%s3235 + $0x5c] sm:$0xf]
      %v3260 = vld [vmem:[%s3235 + $0x60] sm:$0xf]
      %v3261 = vld [vmem:[%s3235 + $0x64] sm:$0xf]
      %v3262 = vld [vmem:[%s3235 + $0x68] sm:$0xf]
      %v3263 = vld [vmem:[%s3235 + $0x6c] sm:$0xf]
      %v3264 = vld [vmem:[%s3235 + $0x70] sm:$0xf]
      %v3265 = vld [vmem:[%s3235 + $0x74] sm:$0xf]
      %v3266 = vld [vmem:[%s3235 + $0x78] sm:$0xf]
      %v3267 = vld [vmem:[%s3235 + $0x7c] sm:$0xf]
      %v3300 = vunpack.c.l.b16 %v3236
      %v3301 = vunpack.c.l.b16 %v3237
      %v3302 = vunpack.c.l.b16 %v3238
      %v3303 = vunpack.c.l.b16 %v3239
      %v3304 = vunpack.c.l.b16 %v3240
      %v3305 = vunpack.c.l.b16 %v3241
      %v3306 = vunpack.c.l.b16 %v3242
      %v3307 = vunpack.c.l.b16 %v3243
      %v3308 = vunpack.c.l.b16 %v3244
      %v3309 = vunpack.c.l.b16 %v3245
      %v3310 = vunpack.c.l.b16 %v3246
      %v3311 = vunpack.c.l.b16 %v3247
      %v3312 = vunpack.c.l.b16 %v3248
      %v3313 = vunpack.c.l.b16 %v3249
      %v3314 = vunpack.c.l.b16 %v3250
      %v3315 = vunpack.c.l.b16 %v3251
      %v3316 = vunpack.c.l.b16 %v3252
      %v3317 = vunpack.c.l.b16 %v3253
      %v3318 = vunpack.c.l.b16 %v3254
      %v3319 = vunpack.c.l.b16 %v3255
      %v3320 = vunpack.c.l.b16 %v3256
      %v3321 = vunpack.c.l.b16 %v3257
      %v3322 = vunpack.c.l.b16 %v3258
      %v3323 = vunpack.c.l.b16 %v3259
      %v3324 = vunpack.c.l.b16 %v3260
      %v3325 = vunpack.c.l.b16 %v3261
      %v3326 = vunpack.c.l.b16 %v3262
      %v3327 = vunpack.c.l.b16 %v3263
      %v3328 = vunpack.c.l.b16 %v3264
      %v3329 = vunpack.c.l.b16 %v3265
      %v3330 = vunpack.c.l.b16 %v3266
      %v3331 = vunpack.c.l.b16 %v3267
      %v3332 = vpack.c.b16 %v3301, %v3300
      %v3333 = vpack.c.b16 %v3303, %v3302
      %v3334 = vpack.c.b16 %v3305, %v3304
      %v3335 = vpack.c.b16 %v3307, %v3306
      %v3336 = vpack.c.b16 %v3309, %v3308
      %v3337 = vpack.c.b16 %v3311, %v3310
      %v3338 = vpack.c.b16 %v3313, %v3312
      %v3339 = vpack.c.b16 %v3315, %v3314
      %v3340 = vpack.c.b16 %v3317, %v3316
      %v3341 = vpack.c.b16 %v3319, %v3318
      %v3342 = vpack.c.b16 %v3321, %v3320
      %v3343 = vpack.c.b16 %v3323, %v3322
      %v3344 = vpack.c.b16 %v3325, %v3324
      %v3345 = vpack.c.b16 %v3327, %v3326
      %v3346 = vpack.c.b16 %v3329, %v3328
      %v3347 = vpack.c.b16 %v3331, %v3330
      %3364 = vmatpush.bf16.msra.mxu0 %v3339
      %3365 = vmatpush.bf16.msra.mxu0 %v3338
      %3366 = vmatpush.bf16.msra.mxu0 %v3337
      %3367 = vmatpush.bf16.msra.mxu0 %v3336
      %3368 = vmatpush.bf16.msra.mxu0 %v3335
      %3369 = vmatpush.bf16.msra.mxu0 %v3334
      %3370 = vmatpush.bf16.msra.mxu0 %v3333
      %3371 = vmatpush.bf16.msra.mxu0 %v3332
      %3372 = vmatmul.bf16.gmra.mxu0 %v3227
      %v3373 = vpop.f32.mrf.mxu0
      %v3374 = vadd.f32 0.0, %v3373
      %v3375 = vpop.f32.mrf.mxu0
      %v3376 = vadd.f32 0.0, %v3375
      %3377 = vmatmul.bf16.gmra.mxu0 %v3229
      %v3378 = vpop.f32.mrf.mxu0
      %v3379 = vadd.f32 0.0, %v3378
      %v3380 = vpop.f32.mrf.mxu0
      %v3381 = vadd.f32 0.0, %v3380
      %3382 = vmatmul.bf16.gmra.mxu0 %v3231
      %v3383 = vpop.f32.mrf.mxu0
      %v3384 = vadd.f32 0.0, %v3383
      %v3385 = vpop.f32.mrf.mxu0
      %v3386 = vadd.f32 0.0, %v3385
      %3387 = vmatmul.bf16.gmra.mxu0 %v3233
      %v3388 = vpop.f32.mrf.mxu0
      %v3389 = vadd.f32 0.0, %v3388
      %v3390 = vpop.f32.mrf.mxu0
      %v3391 = vadd.f32 0.0, %v3390
      %3392 = vdwg.mxu0
      %3393 = vmatpush.bf16.msra.mxu0 %v3347
      %3394 = vmatpush.bf16.msra.mxu0 %v3346
      %3395 = vmatpush.bf16.msra.mxu0 %v3345
      %3396 = vmatpush.bf16.msra.mxu0 %v3344
      %3397 = vmatpush.bf16.msra.mxu0 %v3343
      %3398 = vmatpush.bf16.msra.mxu0 %v3342
      %3399 = vmatpush.bf16.msra.mxu0 %v3341
      %3400 = vmatpush.bf16.msra.mxu0 %v3340
      %3401 = vmatmul.bf16.gmra.mxu0 %v3228
      %v3402 = vpop.f32.mrf.mxu0
      %v3403 = vadd.f32 %v3374, %v3402
      %v3404 = vpop.f32.mrf.mxu0
      %v3405 = vadd.f32 %v3376, %v3404
      %3406 = vmatmul.bf16.gmra.mxu0 %v3230
      %v3407 = vpop.f32.mrf.mxu0
      %v3408 = vadd.f32 %v3379, %v3407
      %v3409 = vpop.f32.mrf.mxu0
      %v3410 = vadd.f32 %v3381, %v3409
      %3411 = vmatmul.bf16.gmra.mxu0 %v3232
      %v3412 = vpop.f32.mrf.mxu0
      %v3413 = vadd.f32 %v3384, %v3412
      %v3414 = vpop.f32.mrf.mxu0
      %v3415 = vadd.f32 %v3386, %v3414
      %3416 = vmatmul.bf16.gmra.mxu0 %v3234
      %v3417 = vpop.f32.mrf.mxu0
      %v3418 = vadd.f32 %v3389, %v3417
      %v3419 = vpop.f32.mrf.mxu0
      %v3420 = vadd.f32 %v3391, %v3419
      %3421 = vdwg.mxu0
      %v3422 = vadd.f32 %v2916, %v3403
      %v3423 = vadd.f32 %v2918, %v3405
      %v3424 = vadd.f32 %v2921, %v3408
      %v3425 = vadd.f32 %v2923, %v3410
      %v3426 = vadd.f32 %v2926, %v3413
      %v3427 = vadd.f32 %v2928, %v3415
      %v3428 = vadd.f32 %v2931, %v3418
      %v3429 = vadd.f32 %v2933, %v3420
      %3430 = vset.pattern.permute.xlu0 6
      %3431 = vperm.xlu0 %3430, %v1918
      %v3432 = vpop.permute.xlu0 %3431
      %3434 = vset.pattern.permute.xlu0 6
      %3435 = vperm.xlu0 %3434, %v1919
      %v3436 = vpop.permute.xlu0 %3435
      %3438 = vset.pattern.permute.xlu0 6
      %3439 = vperm.xlu0 %3438, %v1920
      %v3440 = vpop.permute.xlu0 %3439
      %3442 = vset.pattern.permute.xlu0 6
      %3443 = vperm.xlu0 %3442, %v1921
      %v3444 = vpop.permute.xlu0 %3443
      %3446 = vset.pattern.permute.xlu0 6
      %3447 = vperm.xlu0 %3446, %v1922
      %v3448 = vpop.permute.xlu0 %3447
      %3450 = vset.pattern.permute.xlu0 6
      %3451 = vperm.xlu0 %3450, %v1923
      %v3452 = vpop.permute.xlu0 %3451
      %3454 = vset.pattern.permute.xlu0 6
      %3455 = vperm.xlu0 %3454, %v1924
      %v3456 = vpop.permute.xlu0 %3455
      %3458 = vset.pattern.permute.xlu0 6
      %3459 = vperm.xlu0 %3458, %v1925
      %v3460 = vpop.permute.xlu0 %3459
      %v3462 = vsub.f32 %v1932, %v3432
      %v3463 = vsub.f32 %v1932, %v3436
      %v3464 = vsub.f32 %v1932, %v3440
      %v3465 = vsub.f32 %v1932, %v3444
      %v3466 = vsub.f32 %v1932, %v3448
      %v3467 = vsub.f32 %v1932, %v3452
      %v3468 = vsub.f32 %v1932, %v3456
      %v3469 = vsub.f32 %v1932, %v3460
      %v3470 = vand.u32 2147483647, %v3462
      %v3471 = vand.u32 2147483647, %v3463
      %v3472 = vand.u32 2147483647, %v3464
      %v3473 = vand.u32 2147483647, %v3465
      %v3474 = vand.u32 2147483647, %v3466
      %v3475 = vand.u32 2147483647, %v3467
      %v3476 = vand.u32 2147483647, %v3468
      %v3477 = vand.u32 2147483647, %v3469
      %v3478 = vsub.f32 1.0, %v3470
      %v3479 = vsub.f32 1.0, %v3471
      %v3480 = vsub.f32 1.0, %v3472
      %v3481 = vsub.f32 1.0, %v3473
      %v3482 = vsub.f32 1.0, %v3474
      %v3483 = vsub.f32 1.0, %v3475
      %v3484 = vsub.f32 1.0, %v3476
      %v3485 = vsub.f32 1.0, %v3477
      %v3486 = vmax.f32 %v3478, 0.0
      %v3487 = vmax.f32 %v3479, 0.0
      %v3488 = vmax.f32 %v3480, 0.0
      %v3489 = vmax.f32 %v3481, 0.0
      %v3490 = vmax.f32 %v3482, 0.0
      %v3491 = vmax.f32 %v3483, 0.0
      %v3492 = vmax.f32 %v3484, 0.0
      %v3493 = vmax.f32 %v3485, 0.0
      %v3494 = vpack.c.bf16 %v3487, %v3486
      %v3495 = vpack.c.bf16 %v3489, %v3488
      %v3496 = vpack.c.bf16 %v3491, %v3490
      %v3497 = vpack.c.bf16 %v3493, %v3492
      %3498 = vset.pattern.permute.xlu0 7
      %3499 = vperm.xlu0 %3498, %v1918
      %v3500 = vpop.permute.xlu0 %3499
      %3502 = vset.pattern.permute.xlu0 7
      %3503 = vperm.xlu0 %3502, %v1919
      %v3504 = vpop.permute.xlu0 %3503
      %3506 = vset.pattern.permute.xlu0 7
      %3507 = vperm.xlu0 %3506, %v1920
      %v3508 = vpop.permute.xlu0 %3507
      %3510 = vset.pattern.permute.xlu0 7
      %3511 = vperm.xlu0 %3510, %v1921
      %v3512 = vpop.permute.xlu0 %3511
      %3514 = vset.pattern.permute.xlu0 7
      %3515 = vperm.xlu0 %3514, %v1922
      %v3516 = vpop.permute.xlu0 %3515
      %3518 = vset.pattern.permute.xlu0 7
      %3519 = vperm.xlu0 %3518, %v1923
      %v3520 = vpop.permute.xlu0 %3519
      %3522 = vset.pattern.permute.xlu0 7
      %3523 = vperm.xlu0 %3522, %v1924
      %v3524 = vpop.permute.xlu0 %3523
      %3526 = vset.pattern.permute.xlu0 7
      %3527 = vperm.xlu0 %3526, %v1925
      %v3528 = vpop.permute.xlu0 %3527
      %v3530 = vsub.f32 %v1932, %v3500
      %v3531 = vsub.f32 %v1932, %v3504
      %v3532 = vsub.f32 %v1932, %v3508
      %v3533 = vsub.f32 %v1932, %v3512
      %v3534 = vsub.f32 %v1932, %v3516
      %v3535 = vsub.f32 %v1932, %v3520
      %v3536 = vsub.f32 %v1932, %v3524
      %v3537 = vsub.f32 %v1932, %v3528
      %v3538 = vand.u32 2147483647, %v3530
      %v3539 = vand.u32 2147483647, %v3531
      %v3540 = vand.u32 2147483647, %v3532
      %v3541 = vand.u32 2147483647, %v3533
      %v3542 = vand.u32 2147483647, %v3534
      %v3543 = vand.u32 2147483647, %v3535
      %v3544 = vand.u32 2147483647, %v3536
      %v3545 = vand.u32 2147483647, %v3537
      %v3546 = vsub.f32 1.0, %v3538
      %v3547 = vsub.f32 1.0, %v3539
      %v3548 = vsub.f32 1.0, %v3540
      %v3549 = vsub.f32 1.0, %v3541
      %v3550 = vsub.f32 1.0, %v3542
      %v3551 = vsub.f32 1.0, %v3543
      %v3552 = vsub.f32 1.0, %v3544
      %v3553 = vsub.f32 1.0, %v3545
      %v3554 = vmax.f32 %v3546, 0.0
      %v3555 = vmax.f32 %v3547, 0.0
      %v3556 = vmax.f32 %v3548, 0.0
      %v3557 = vmax.f32 %v3549, 0.0
      %v3558 = vmax.f32 %v3550, 0.0
      %v3559 = vmax.f32 %v3551, 0.0
      %v3560 = vmax.f32 %v3552, 0.0
      %v3561 = vmax.f32 %v3553, 0.0
      %v3562 = vpack.c.bf16 %v3555, %v3554
      %v3563 = vpack.c.bf16 %v3557, %v3556
      %v3564 = vpack.c.bf16 %v3559, %v3558
      %v3565 = vpack.c.bf16 %v3561, %v3560
      %v3567 = vsel %vm2087, %v3494, 0
      %v3570 = vsel %vm2087, %v3495, 0
      %v3573 = vsel %vm2087, %v3496, 0
      %v3576 = vsel %vm2087, %v3497, 0
      %3578 = vmatpush.bf16.msra.mxu0 0
      %3579 = vmatpush.bf16.msra.mxu0 0
      %3580 = vmatpush.bf16.msra.mxu0 0
      %3581 = vmatpush.bf16.msra.mxu0 0
      %3582 = vmatpush.bf16.msra.mxu0 0
      %3583 = vmatpush.bf16.msra.mxu0 0
      %3584 = vmatpush.bf16.msra.mxu0 0
      %3585 = vmatpush.bf16.msra.mxu0 %v2083
      %3586 = vmatmul.bf16.gmra.mxu0 %v3567
      %v3587 = vpop.f32.mrf.mxu0
      %v3588 = vadd.f32 0.0, %v3587
      %v3589 = vpop.f32.mrf.mxu0
      %v3590 = vadd.f32 0.0, %v3589
      %3591 = vmatmul.bf16.gmra.mxu0 %v3570
      %v3592 = vpop.f32.mrf.mxu0
      %v3593 = vadd.f32 0.0, %v3592
      %v3594 = vpop.f32.mrf.mxu0
      %v3595 = vadd.f32 0.0, %v3594
      %3596 = vmatmul.bf16.gmra.mxu0 %v3573
      %v3597 = vpop.f32.mrf.mxu0
      %v3598 = vadd.f32 0.0, %v3597
      %v3599 = vpop.f32.mrf.mxu0
      %v3600 = vadd.f32 0.0, %v3599
      %3601 = vmatmul.bf16.gmra.mxu0 %v3576
      %v3602 = vpop.f32.mrf.mxu0
      %v3603 = vadd.f32 0.0, %v3602
      %v3604 = vpop.f32.mrf.mxu0
      %v3605 = vadd.f32 0.0, %v3604
      %3606 = vdwg.mxu0
      %3607 = vmatpush.bf16.msra.mxu0 0
      %3608 = vmatpush.bf16.msra.mxu0 0
      %3609 = vmatpush.bf16.msra.mxu0 0
      %3610 = vmatpush.bf16.msra.mxu0 0
      %3611 = vmatpush.bf16.msra.mxu0 0
      %3612 = vmatpush.bf16.msra.mxu0 0
      %3613 = vmatpush.bf16.msra.mxu0 0
      %3614 = vmatpush.bf16.msra.mxu0 %v2084
      %3615 = vmatmul.bf16.gmra.mxu0 %v3567
      %v3616 = vpop.f32.mrf.mxu0
      %v3617 = vadd.f32 0.0, %v3616
      %v3618 = vpop.f32.mrf.mxu0
      %v3619 = vadd.f32 0.0, %v3618
      %3620 = vmatmul.bf16.gmra.mxu0 %v3570
      %v3621 = vpop.f32.mrf.mxu0
      %v3622 = vadd.f32 0.0, %v3621
      %v3623 = vpop.f32.mrf.mxu0
      %v3624 = vadd.f32 0.0, %v3623
      %3625 = vmatmul.bf16.gmra.mxu0 %v3573
      %v3626 = vpop.f32.mrf.mxu0
      %v3627 = vadd.f32 0.0, %v3626
      %v3628 = vpop.f32.mrf.mxu0
      %v3629 = vadd.f32 0.0, %v3628
      %3630 = vmatmul.bf16.gmra.mxu0 %v3576
      %v3631 = vpop.f32.mrf.mxu0
      %v3632 = vadd.f32 0.0, %v3631
      %v3633 = vpop.f32.mrf.mxu0
      %v3634 = vadd.f32 0.0, %v3633
      %3635 = vdwg.mxu0
      %v3637 = vsel %vm2087, %v3562, 0
      %v3640 = vsel %vm2087, %v3563, 0
      %v3643 = vsel %vm2087, %v3564, 0
      %v3646 = vsel %vm2087, %v3565, 0
      %3648 = vmatpush.bf16.msra.mxu0 0
      %3649 = vmatpush.bf16.msra.mxu0 0
      %3650 = vmatpush.bf16.msra.mxu0 0
      %3651 = vmatpush.bf16.msra.mxu0 0
      %3652 = vmatpush.bf16.msra.mxu0 0
      %3653 = vmatpush.bf16.msra.mxu0 0
      %3654 = vmatpush.bf16.msra.mxu0 0
      %3655 = vmatpush.bf16.msra.mxu0 %v2164
      %3656 = vmatmul.bf16.gmra.mxu0 %v3637
      %v3657 = vpop.f32.mrf.mxu0
      %v3658 = vadd.f32 0.0, %v3657
      %v3659 = vpop.f32.mrf.mxu0
      %v3660 = vadd.f32 0.0, %v3659
      %3661 = vmatmul.bf16.gmra.mxu0 %v3640
      %v3662 = vpop.f32.mrf.mxu0
      %v3663 = vadd.f32 0.0, %v3662
      %v3664 = vpop.f32.mrf.mxu0
      %v3665 = vadd.f32 0.0, %v3664
      %3666 = vmatmul.bf16.gmra.mxu0 %v3643
      %v3667 = vpop.f32.mrf.mxu0
      %v3668 = vadd.f32 0.0, %v3667
      %v3669 = vpop.f32.mrf.mxu0
      %v3670 = vadd.f32 0.0, %v3669
      %3671 = vmatmul.bf16.gmra.mxu0 %v3646
      %v3672 = vpop.f32.mrf.mxu0
      %v3673 = vadd.f32 0.0, %v3672
      %v3674 = vpop.f32.mrf.mxu0
      %v3675 = vadd.f32 0.0, %v3674
      %3676 = vdwg.mxu0
      %3677 = vmatpush.bf16.msra.mxu0 0
      %3678 = vmatpush.bf16.msra.mxu0 0
      %3679 = vmatpush.bf16.msra.mxu0 0
      %3680 = vmatpush.bf16.msra.mxu0 0
      %3681 = vmatpush.bf16.msra.mxu0 0
      %3682 = vmatpush.bf16.msra.mxu0 0
      %3683 = vmatpush.bf16.msra.mxu0 0
      %3684 = vmatpush.bf16.msra.mxu0 %v2165
      %3685 = vmatmul.bf16.gmra.mxu0 %v3637
      %v3686 = vpop.f32.mrf.mxu0
      %v3687 = vadd.f32 0.0, %v3686
      %v3688 = vpop.f32.mrf.mxu0
      %v3689 = vadd.f32 0.0, %v3688
      %3690 = vmatmul.bf16.gmra.mxu0 %v3640
      %v3691 = vpop.f32.mrf.mxu0
      %v3692 = vadd.f32 0.0, %v3691
      %v3693 = vpop.f32.mrf.mxu0
      %v3694 = vadd.f32 0.0, %v3693
      %3695 = vmatmul.bf16.gmra.mxu0 %v3643
      %v3696 = vpop.f32.mrf.mxu0
      %v3697 = vadd.f32 0.0, %v3696
      %v3698 = vpop.f32.mrf.mxu0
      %v3699 = vadd.f32 0.0, %v3698
      %3700 = vmatmul.bf16.gmra.mxu0 %v3646
      %v3701 = vpop.f32.mrf.mxu0
      %v3702 = vadd.f32 0.0, %v3701
      %v3703 = vpop.f32.mrf.mxu0
      %v3704 = vadd.f32 0.0, %v3703
      %3705 = vdwg.mxu0
      %v3706 = vmul.f32 %v3588, %v3658
      %v3707 = vmul.f32 %v3617, %v3687
      %v3708 = vmul.f32 %v3590, %v3660
      %v3709 = vmul.f32 %v3619, %v3689
      %v3710 = vmul.f32 %v3593, %v3663
      %v3711 = vmul.f32 %v3622, %v3692
      %v3712 = vmul.f32 %v3595, %v3665
      %v3713 = vmul.f32 %v3624, %v3694
      %v3714 = vmul.f32 %v3598, %v3668
      %v3715 = vmul.f32 %v3627, %v3697
      %v3716 = vmul.f32 %v3600, %v3670
      %v3717 = vmul.f32 %v3629, %v3699
      %v3718 = vmul.f32 %v3603, %v3673
      %v3719 = vmul.f32 %v3632, %v3702
      %v3720 = vmul.f32 %v3605, %v3675
      %v3721 = vmul.f32 %v3634, %v3704
      %v3722 = vpack.c.bf16 %v3708, %v3706
      %v3723 = vpack.c.bf16 %v3709, %v3707
      %v3724 = vpack.c.bf16 %v3712, %v3710
      %v3725 = vpack.c.bf16 %v3713, %v3711
      %v3726 = vpack.c.bf16 %v3716, %v3714
      %v3727 = vpack.c.bf16 %v3717, %v3715
      %v3728 = vpack.c.bf16 %v3720, %v3718
      %v3729 = vpack.c.bf16 %v3721, %v3719
      %s3730 = scalar_lea.vmem [#allocation2], 384
      %v3731 = vld [vmem:[%s3730] sm:$0xf]
      %v3732 = vld [vmem:[%s3730 + $0x4] sm:$0xf]
      %v3733 = vld [vmem:[%s3730 + $0x8] sm:$0xf]
      %v3734 = vld [vmem:[%s3730 + $0xc] sm:$0xf]
      %v3735 = vld [vmem:[%s3730 + $0x10] sm:$0xf]
      %v3736 = vld [vmem:[%s3730 + $0x14] sm:$0xf]
      %v3737 = vld [vmem:[%s3730 + $0x18] sm:$0xf]
      %v3738 = vld [vmem:[%s3730 + $0x1c] sm:$0xf]
      %v3739 = vld [vmem:[%s3730 + $0x20] sm:$0xf]
      %v3740 = vld [vmem:[%s3730 + $0x24] sm:$0xf]
      %v3741 = vld [vmem:[%s3730 + $0x28] sm:$0xf]
      %v3742 = vld [vmem:[%s3730 + $0x2c] sm:$0xf]
      %v3743 = vld [vmem:[%s3730 + $0x30] sm:$0xf]
      %v3744 = vld [vmem:[%s3730 + $0x34] sm:$0xf]
      %v3745 = vld [vmem:[%s3730 + $0x38] sm:$0xf]
      %v3746 = vld [vmem:[%s3730 + $0x3c] sm:$0xf]
      %v3747 = vld [vmem:[%s3730 + $0x40] sm:$0xf]
      %v3748 = vld [vmem:[%s3730 + $0x44] sm:$0xf]
      %v3749 = vld [vmem:[%s3730 + $0x48] sm:$0xf]
      %v3750 = vld [vmem:[%s3730 + $0x4c] sm:$0xf]
      %v3751 = vld [vmem:[%s3730 + $0x50] sm:$0xf]
      %v3752 = vld [vmem:[%s3730 + $0x54] sm:$0xf]
      %v3753 = vld [vmem:[%s3730 + $0x58] sm:$0xf]
      %v3754 = vld [vmem:[%s3730 + $0x5c] sm:$0xf]
      %v3755 = vld [vmem:[%s3730 + $0x60] sm:$0xf]
      %v3756 = vld [vmem:[%s3730 + $0x64] sm:$0xf]
      %v3757 = vld [vmem:[%s3730 + $0x68] sm:$0xf]
      %v3758 = vld [vmem:[%s3730 + $0x6c] sm:$0xf]
      %v3759 = vld [vmem:[%s3730 + $0x70] sm:$0xf]
      %v3760 = vld [vmem:[%s3730 + $0x74] sm:$0xf]
      %v3761 = vld [vmem:[%s3730 + $0x78] sm:$0xf]
      %v3762 = vld [vmem:[%s3730 + $0x7c] sm:$0xf]
      %v3795 = vunpack.c.l.b16 %v3731
      %v3796 = vunpack.c.l.b16 %v3732
      %v3797 = vunpack.c.l.b16 %v3733
      %v3798 = vunpack.c.l.b16 %v3734
      %v3799 = vunpack.c.l.b16 %v3735
      %v3800 = vunpack.c.l.b16 %v3736
      %v3801 = vunpack.c.l.b16 %v3737
      %v3802 = vunpack.c.l.b16 %v3738
      %v3803 = vunpack.c.l.b16 %v3739
      %v3804 = vunpack.c.l.b16 %v3740
      %v3805 = vunpack.c.l.b16 %v3741
      %v3806 = vunpack.c.l.b16 %v3742
      %v3807 = vunpack.c.l.b16 %v3743
      %v3808 = vunpack.c.l.b16 %v3744
      %v3809 = vunpack.c.l.b16 %v3745
      %v3810 = vunpack.c.l.b16 %v3746
      %v3811 = vunpack.c.l.b16 %v3747
      %v3812 = vunpack.c.l.b16 %v3748
      %v3813 = vunpack.c.l.b16 %v3749
      %v3814 = vunpack.c.l.b16 %v3750
      %v3815 = vunpack.c.l.b16 %v3751
      %v3816 = vunpack.c.l.b16 %v3752
      %v3817 = vunpack.c.l.b16 %v3753
      %v3818 = vunpack.c.l.b16 %v3754
      %v3819 = vunpack.c.l.b16 %v3755
      %v3820 = vunpack.c.l.b16 %v3756
      %v3821 = vunpack.c.l.b16 %v3757
      %v3822 = vunpack.c.l.b16 %v3758
      %v3823 = vunpack.c.l.b16 %v3759
      %v3824 = vunpack.c.l.b16 %v3760
      %v3825 = vunpack.c.l.b16 %v3761
      %v3826 = vunpack.c.l.b16 %v3762
      %v3827 = vpack.c.b16 %v3796, %v3795
      %v3828 = vpack.c.b16 %v3798, %v3797
      %v3829 = vpack.c.b16 %v3800, %v3799
      %v3830 = vpack.c.b16 %v3802, %v3801
      %v3831 = vpack.c.b16 %v3804, %v3803
      %v3832 = vpack.c.b16 %v3806, %v3805
      %v3833 = vpack.c.b16 %v3808, %v3807
      %v3834 = vpack.c.b16 %v3810, %v3809
      %v3835 = vpack.c.b16 %v3812, %v3811
      %v3836 = vpack.c.b16 %v3814, %v3813
      %v3837 = vpack.c.b16 %v3816, %v3815
      %v3838 = vpack.c.b16 %v3818, %v3817
      %v3839 = vpack.c.b16 %v3820, %v3819
      %v3840 = vpack.c.b16 %v3822, %v3821
      %v3841 = vpack.c.b16 %v3824, %v3823
      %v3842 = vpack.c.b16 %v3826, %v3825
      %3859 = vmatpush.bf16.msra.mxu0 %v3834
      %3860 = vmatpush.bf16.msra.mxu0 %v3833
      %3861 = vmatpush.bf16.msra.mxu0 %v3832
      %3862 = vmatpush.bf16.msra.mxu0 %v3831
      %3863 = vmatpush.bf16.msra.mxu0 %v3830
      %3864 = vmatpush.bf16.msra.mxu0 %v3829
      %3865 = vmatpush.bf16.msra.mxu0 %v3828
      %3866 = vmatpush.bf16.msra.mxu0 %v3827
      %3867 = vmatmul.bf16.gmra.mxu0 %v3722
      %v3868 = vpop.f32.mrf.mxu0
      %v3869 = vadd.f32 0.0, %v3868
      %v3870 = vpop.f32.mrf.mxu0
      %v3871 = vadd.f32 0.0, %v3870
      %3872 = vmatmul.bf16.gmra.mxu0 %v3724
      %v3873 = vpop.f32.mrf.mxu0
      %v3874 = vadd.f32 0.0, %v3873
      %v3875 = vpop.f32.mrf.mxu0
      %v3876 = vadd.f32 0.0, %v3875
      %3877 = vmatmul.bf16.gmra.mxu0 %v3726
      %v3878 = vpop.f32.mrf.mxu0
      %v3879 = vadd.f32 0.0, %v3878
      %v3880 = vpop.f32.mrf.mxu0
      %v3881 = vadd.f32 0.0, %v3880
      %3882 = vmatmul.bf16.gmra.mxu0 %v3728
      %v3883 = vpop.f32.mrf.mxu0
      %v3884 = vadd.f32 0.0, %v3883
      %v3885 = vpop.f32.mrf.mxu0
      %v3886 = vadd.f32 0.0, %v3885
      %3887 = vdwg.mxu0
      %3888 = vmatpush.bf16.msra.mxu0 %v3842
      %3889 = vmatpush.bf16.msra.mxu0 %v3841
      %3890 = vmatpush.bf16.msra.mxu0 %v3840
      %3891 = vmatpush.bf16.msra.mxu0 %v3839
      %3892 = vmatpush.bf16.msra.mxu0 %v3838
      %3893 = vmatpush.bf16.msra.mxu0 %v3837
      %3894 = vmatpush.bf16.msra.mxu0 %v3836
      %3895 = vmatpush.bf16.msra.mxu0 %v3835
      %3896 = vmatmul.bf16.gmra.mxu0 %v3723
      %v3897 = vpop.f32.mrf.mxu0
      %v3898 = vadd.f32 %v3869, %v3897
      %v3899 = vpop.f32.mrf.mxu0
      %v3900 = vadd.f32 %v3871, %v3899
      %3901 = vmatmul.bf16.gmra.mxu0 %v3725
      %v3902 = vpop.f32.mrf.mxu0
      %v3903 = vadd.f32 %v3874, %v3902
      %v3904 = vpop.f32.mrf.mxu0
      %v3905 = vadd.f32 %v3876, %v3904
      %3906 = vmatmul.bf16.gmra.mxu0 %v3727
      %v3907 = vpop.f32.mrf.mxu0
      %v3908 = vadd.f32 %v3879, %v3907
      %v3909 = vpop.f32.mrf.mxu0
      %v3910 = vadd.f32 %v3881, %v3909
      %3911 = vmatmul.bf16.gmra.mxu0 %v3729
      %v3912 = vpop.f32.mrf.mxu0
      %v3913 = vadd.f32 %v3884, %v3912
      %v3914 = vpop.f32.mrf.mxu0
      %v3915 = vadd.f32 %v3886, %v3914
      %3916 = vdwg.mxu0
      %v3917 = vadd.f32 %v3422, %v3898
      %v3918 = vadd.f32 %v3423, %v3900
      %v3919 = vadd.f32 %v3424, %v3903
      %v3920 = vadd.f32 %v3425, %v3905
      %v3921 = vadd.f32 %v3426, %v3908
      %v3922 = vadd.f32 %v3427, %v3910
      %v3923 = vadd.f32 %v3428, %v3913
      %v3924 = vadd.f32 %v3429, %v3915
      %3925 = vset.pattern.permute.xlu0 8
      %3926 = vperm.xlu0 %3925, %v1918
      %v3927 = vpop.permute.xlu0 %3926
      %3929 = vset.pattern.permute.xlu0 8
      %3930 = vperm.xlu0 %3929, %v1919
      %v3931 = vpop.permute.xlu0 %3930
      %3933 = vset.pattern.permute.xlu0 8
      %3934 = vperm.xlu0 %3933, %v1920
      %v3935 = vpop.permute.xlu0 %3934
      %3937 = vset.pattern.permute.xlu0 8
      %3938 = vperm.xlu0 %3937, %v1921
      %v3939 = vpop.permute.xlu0 %3938
      %3941 = vset.pattern.permute.xlu0 8
      %3942 = vperm.xlu0 %3941, %v1922
      %v3943 = vpop.permute.xlu0 %3942
      %3945 = vset.pattern.permute.xlu0 8
      %3946 = vperm.xlu0 %3945, %v1923
      %v3947 = vpop.permute.xlu0 %3946
      %3949 = vset.pattern.permute.xlu0 8
      %3950 = vperm.xlu0 %3949, %v1924
      %v3951 = vpop.permute.xlu0 %3950
      %3953 = vset.pattern.permute.xlu0 8
      %3954 = vperm.xlu0 %3953, %v1925
      %v3955 = vpop.permute.xlu0 %3954
      %v3957 = vsub.f32 %v1932, %v3927
      %v3958 = vsub.f32 %v1932, %v3931
      %v3959 = vsub.f32 %v1932, %v3935
      %v3960 = vsub.f32 %v1932, %v3939
      %v3961 = vsub.f32 %v1932, %v3943
      %v3962 = vsub.f32 %v1932, %v3947
      %v3963 = vsub.f32 %v1932, %v3951
      %v3964 = vsub.f32 %v1932, %v3955
      %v3965 = vand.u32 2147483647, %v3957
      %v3966 = vand.u32 2147483647, %v3958
      %v3967 = vand.u32 2147483647, %v3959
      %v3968 = vand.u32 2147483647, %v3960
      %v3969 = vand.u32 2147483647, %v3961
      %v3970 = vand.u32 2147483647, %v3962
      %v3971 = vand.u32 2147483647, %v3963
      %v3972 = vand.u32 2147483647, %v3964
      %v3973 = vsub.f32 1.0, %v3965
      %v3974 = vsub.f32 1.0, %v3966
      %v3975 = vsub.f32 1.0, %v3967
      %v3976 = vsub.f32 1.0, %v3968
      %v3977 = vsub.f32 1.0, %v3969
      %v3978 = vsub.f32 1.0, %v3970
      %v3979 = vsub.f32 1.0, %v3971
      %v3980 = vsub.f32 1.0, %v3972
      %v3981 = vmax.f32 %v3973, 0.0
      %v3982 = vmax.f32 %v3974, 0.0
      %v3983 = vmax.f32 %v3975, 0.0
      %v3984 = vmax.f32 %v3976, 0.0
      %v3985 = vmax.f32 %v3977, 0.0
      %v3986 = vmax.f32 %v3978, 0.0
      %v3987 = vmax.f32 %v3979, 0.0
      %v3988 = vmax.f32 %v3980, 0.0
      %v3989 = vpack.c.bf16 %v3982, %v3981
      %v3990 = vpack.c.bf16 %v3984, %v3983
      %v3991 = vpack.c.bf16 %v3986, %v3985
      %v3992 = vpack.c.bf16 %v3988, %v3987
      %3993 = vset.pattern.permute.xlu0 9
      %3994 = vperm.xlu0 %3993, %v1918
      %v3995 = vpop.permute.xlu0 %3994
      %3997 = vset.pattern.permute.xlu0 9
      %3998 = vperm.xlu0 %3997, %v1919
      %v3999 = vpop.permute.xlu0 %3998
      %4001 = vset.pattern.permute.xlu0 9
      %4002 = vperm.xlu0 %4001, %v1920
      %v4003 = vpop.permute.xlu0 %4002
      %4005 = vset.pattern.permute.xlu0 9
      %4006 = vperm.xlu0 %4005, %v1921
      %v4007 = vpop.permute.xlu0 %4006
      %4009 = vset.pattern.permute.xlu0 9
      %4010 = vperm.xlu0 %4009, %v1922
      %v4011 = vpop.permute.xlu0 %4010
      %4013 = vset.pattern.permute.xlu0 9
      %4014 = vperm.xlu0 %4013, %v1923
      %v4015 = vpop.permute.xlu0 %4014
      %4017 = vset.pattern.permute.xlu0 9
      %4018 = vperm.xlu0 %4017, %v1924
      %v4019 = vpop.permute.xlu0 %4018
      %4021 = vset.pattern.permute.xlu0 9
      %4022 = vperm.xlu0 %4021, %v1925
      %v4023 = vpop.permute.xlu0 %4022
      %v4025 = vsub.f32 %v1932, %v3995
      %v4026 = vsub.f32 %v1932, %v3999
      %v4027 = vsub.f32 %v1932, %v4003
      %v4028 = vsub.f32 %v1932, %v4007
      %v4029 = vsub.f32 %v1932, %v4011
      %v4030 = vsub.f32 %v1932, %v4015
      %v4031 = vsub.f32 %v1932, %v4019
      %v4032 = vsub.f32 %v1932, %v4023
      %v4033 = vand.u32 2147483647, %v4025
      %v4034 = vand.u32 2147483647, %v4026
      %v4035 = vand.u32 2147483647, %v4027
      %v4036 = vand.u32 2147483647, %v4028
      %v4037 = vand.u32 2147483647, %v4029
      %v4038 = vand.u32 2147483647, %v4030
      %v4039 = vand.u32 2147483647, %v4031
      %v4040 = vand.u32 2147483647, %v4032
      %v4041 = vsub.f32 1.0, %v4033
      %v4042 = vsub.f32 1.0, %v4034
      %v4043 = vsub.f32 1.0, %v4035
      %v4044 = vsub.f32 1.0, %v4036
      %v4045 = vsub.f32 1.0, %v4037
      %v4046 = vsub.f32 1.0, %v4038
      %v4047 = vsub.f32 1.0, %v4039
      %v4048 = vsub.f32 1.0, %v4040
      %v4049 = vmax.f32 %v4041, 0.0
      %v4050 = vmax.f32 %v4042, 0.0
      %v4051 = vmax.f32 %v4043, 0.0
      %v4052 = vmax.f32 %v4044, 0.0
      %v4053 = vmax.f32 %v4045, 0.0
      %v4054 = vmax.f32 %v4046, 0.0
      %v4055 = vmax.f32 %v4047, 0.0
      %v4056 = vmax.f32 %v4048, 0.0
      %v4057 = vpack.c.bf16 %v4050, %v4049
      %v4058 = vpack.c.bf16 %v4052, %v4051
      %v4059 = vpack.c.bf16 %v4054, %v4053
      %v4060 = vpack.c.bf16 %v4056, %v4055
      %v4062 = vsel %vm2087, %v3989, 0
      %v4065 = vsel %vm2087, %v3990, 0
      %v4068 = vsel %vm2087, %v3991, 0
      %v4071 = vsel %vm2087, %v3992, 0
      %4073 = vmatpush.bf16.msra.mxu0 0
      %4074 = vmatpush.bf16.msra.mxu0 0
      %4075 = vmatpush.bf16.msra.mxu0 0
      %4076 = vmatpush.bf16.msra.mxu0 0
      %4077 = vmatpush.bf16.msra.mxu0 0
      %4078 = vmatpush.bf16.msra.mxu0 0
      %4079 = vmatpush.bf16.msra.mxu0 0
      %4080 = vmatpush.bf16.msra.mxu0 %v2083
      %4081 = vmatmul.bf16.gmra.mxu0 %v4062
      %v4082 = vpop.f32.mrf.mxu0
      %v4083 = vadd.f32 0.0, %v4082
      %v4084 = vpop.f32.mrf.mxu0
      %v4085 = vadd.f32 0.0, %v4084
      %4086 = vmatmul.bf16.gmra.mxu0 %v4065
      %v4087 = vpop.f32.mrf.mxu0
      %v4088 = vadd.f32 0.0, %v4087
      %v4089 = vpop.f32.mrf.mxu0
      %v4090 = vadd.f32 0.0, %v4089
      %4091 = vmatmul.bf16.gmra.mxu0 %v4068
      %v4092 = vpop.f32.mrf.mxu0
      %v4093 = vadd.f32 0.0, %v4092
      %v4094 = vpop.f32.mrf.mxu0
      %v4095 = vadd.f32 0.0, %v4094
      %4096 = vmatmul.bf16.gmra.mxu0 %v4071
      %v4097 = vpop.f32.mrf.mxu0
      %v4098 = vadd.f32 0.0, %v4097
      %v4099 = vpop.f32.mrf.mxu0
      %v4100 = vadd.f32 0.0, %v4099
      %4101 = vdwg.mxu0
      %4102 = vmatpush.bf16.msra.mxu0 0
      %4103 = vmatpush.bf16.msra.mxu0 0
      %4104 = vmatpush.bf16.msra.mxu0 0
      %4105 = vmatpush.bf16.msra.mxu0 0
      %4106 = vmatpush.bf16.msra.mxu0 0
      %4107 = vmatpush.bf16.msra.mxu0 0
      %4108 = vmatpush.bf16.msra.mxu0 0
      %4109 = vmatpush.bf16.msra.mxu0 %v2084
      %4110 = vmatmul.bf16.gmra.mxu0 %v4062
      %v4111 = vpop.f32.mrf.mxu0
      %v4112 = vadd.f32 0.0, %v4111
      %v4113 = vpop.f32.mrf.mxu0
      %v4114 = vadd.f32 0.0, %v4113
      %4115 = vmatmul.bf16.gmra.mxu0 %v4065
      %v4116 = vpop.f32.mrf.mxu0
      %v4117 = vadd.f32 0.0, %v4116
      %v4118 = vpop.f32.mrf.mxu0
      %v4119 = vadd.f32 0.0, %v4118
      %4120 = vmatmul.bf16.gmra.mxu0 %v4068
      %v4121 = vpop.f32.mrf.mxu0
      %v4122 = vadd.f32 0.0, %v4121
      %v4123 = vpop.f32.mrf.mxu0
      %v4124 = vadd.f32 0.0, %v4123
      %4125 = vmatmul.bf16.gmra.mxu0 %v4071
      %v4126 = vpop.f32.mrf.mxu0
      %v4127 = vadd.f32 0.0, %v4126
      %v4128 = vpop.f32.mrf.mxu0
      %v4129 = vadd.f32 0.0, %v4128
      %4130 = vdwg.mxu0
      %v4132 = vsel %vm2087, %v4057, 0
      %v4135 = vsel %vm2087, %v4058, 0
      %v4138 = vsel %vm2087, %v4059, 0
      %v4141 = vsel %vm2087, %v4060, 0
      %4143 = vmatpush.bf16.msra.mxu0 0
      %4144 = vmatpush.bf16.msra.mxu0 0
      %4145 = vmatpush.bf16.msra.mxu0 0
      %4146 = vmatpush.bf16.msra.mxu0 0
      %4147 = vmatpush.bf16.msra.mxu0 0
      %4148 = vmatpush.bf16.msra.mxu0 0
      %4149 = vmatpush.bf16.msra.mxu0 0
      %4150 = vmatpush.bf16.msra.mxu0 %v2164
      %4151 = vmatmul.bf16.gmra.mxu0 %v4132
      %v4152 = vpop.f32.mrf.mxu0
      %v4153 = vadd.f32 0.0, %v4152
      %v4154 = vpop.f32.mrf.mxu0
      %v4155 = vadd.f32 0.0, %v4154
      %4156 = vmatmul.bf16.gmra.mxu0 %v4135
      %v4157 = vpop.f32.mrf.mxu0
      %v4158 = vadd.f32 0.0, %v4157
      %v4159 = vpop.f32.mrf.mxu0
      %v4160 = vadd.f32 0.0, %v4159
      %4161 = vmatmul.bf16.gmra.mxu0 %v4138
      %v4162 = vpop.f32.mrf.mxu0
      %v4163 = vadd.f32 0.0, %v4162
      %v4164 = vpop.f32.mrf.mxu0
      %v4165 = vadd.f32 0.0, %v4164
      %4166 = vmatmul.bf16.gmra.mxu0 %v4141
      %v4167 = vpop.f32.mrf.mxu0
      %v4168 = vadd.f32 0.0, %v4167
      %v4169 = vpop.f32.mrf.mxu0
      %v4170 = vadd.f32 0.0, %v4169
      %4171 = vdwg.mxu0
      %4172 = vmatpush.bf16.msra.mxu0 0
      %4173 = vmatpush.bf16.msra.mxu0 0
      %4174 = vmatpush.bf16.msra.mxu0 0
      %4175 = vmatpush.bf16.msra.mxu0 0
      %4176 = vmatpush.bf16.msra.mxu0 0
      %4177 = vmatpush.bf16.msra.mxu0 0
      %4178 = vmatpush.bf16.msra.mxu0 0
      %4179 = vmatpush.bf16.msra.mxu0 %v2165
      %4180 = vmatmul.bf16.gmra.mxu0 %v4132
      %v4181 = vpop.f32.mrf.mxu0
      %v4182 = vadd.f32 0.0, %v4181
      %v4183 = vpop.f32.mrf.mxu0
      %v4184 = vadd.f32 0.0, %v4183
      %4185 = vmatmul.bf16.gmra.mxu0 %v4135
      %v4186 = vpop.f32.mrf.mxu0
      %v4187 = vadd.f32 0.0, %v4186
      %v4188 = vpop.f32.mrf.mxu0
      %v4189 = vadd.f32 0.0, %v4188
      %4190 = vmatmul.bf16.gmra.mxu0 %v4138
      %v4191 = vpop.f32.mrf.mxu0
      %v4192 = vadd.f32 0.0, %v4191
      %v4193 = vpop.f32.mrf.mxu0
      %v4194 = vadd.f32 0.0, %v4193
      %4195 = vmatmul.bf16.gmra.mxu0 %v4141
      %v4196 = vpop.f32.mrf.mxu0
      %v4197 = vadd.f32 0.0, %v4196
      %v4198 = vpop.f32.mrf.mxu0
      %v4199 = vadd.f32 0.0, %v4198
      %4200 = vdwg.mxu0
      %v4201 = vmul.f32 %v4083, %v4153
      %v4202 = vmul.f32 %v4112, %v4182
      %v4203 = vmul.f32 %v4085, %v4155
      %v4204 = vmul.f32 %v4114, %v4184
      %v4205 = vmul.f32 %v4088, %v4158
      %v4206 = vmul.f32 %v4117, %v4187
      %v4207 = vmul.f32 %v4090, %v4160
      %v4208 = vmul.f32 %v4119, %v4189
      %v4209 = vmul.f32 %v4093, %v4163
      %v4210 = vmul.f32 %v4122, %v4192
      %v4211 = vmul.f32 %v4095, %v4165
      %v4212 = vmul.f32 %v4124, %v4194
      %v4213 = vmul.f32 %v4098, %v4168
      %v4214 = vmul.f32 %v4127, %v4197
      %v4215 = vmul.f32 %v4100, %v4170
      %v4216 = vmul.f32 %v4129, %v4199
      %v4217 = vpack.c.bf16 %v4203, %v4201
      %v4218 = vpack.c.bf16 %v4204, %v4202
      %v4219 = vpack.c.bf16 %v4207, %v4205
      %v4220 = vpack.c.bf16 %v4208, %v4206
      %v4221 = vpack.c.bf16 %v4211, %v4209
      %v4222 = vpack.c.bf16 %v4212, %v4210
      %v4223 = vpack.c.bf16 %v4215, %v4213
      %v4224 = vpack.c.bf16 %v4216, %v4214
      %s4225 = scalar_lea.vmem [#allocation2], 512
      %v4226 = vld [vmem:[%s4225] sm:$0xf]
      %v4227 = vld [vmem:[%s4225 + $0x4] sm:$0xf]
      %v4228 = vld [vmem:[%s4225 + $0x8] sm:$0xf]
      %v4229 = vld [vmem:[%s4225 + $0xc] sm:$0xf]
      %v4230 = vld [vmem:[%s4225 + $0x10] sm:$0xf]
      %v4231 = vld [vmem:[%s4225 + $0x14] sm:$0xf]
      %v4232 = vld [vmem:[%s4225 + $0x18] sm:$0xf]
      %v4233 = vld [vmem:[%s4225 + $0x1c] sm:$0xf]
      %v4234 = vld [vmem:[%s4225 + $0x20] sm:$0xf]
      %v4235 = vld [vmem:[%s4225 + $0x24] sm:$0xf]
      %v4236 = vld [vmem:[%s4225 + $0x28] sm:$0xf]
      %v4237 = vld [vmem:[%s4225 + $0x2c] sm:$0xf]
      %v4238 = vld [vmem:[%s4225 + $0x30] sm:$0xf]
      %v4239 = vld [vmem:[%s4225 + $0x34] sm:$0xf]
      %v4240 = vld [vmem:[%s4225 + $0x38] sm:$0xf]
      %v4241 = vld [vmem:[%s4225 + $0x3c] sm:$0xf]
      %v4242 = vld [vmem:[%s4225 + $0x40] sm:$0xf]
      %v4243 = vld [vmem:[%s4225 + $0x44] sm:$0xf]
      %v4244 = vld [vmem:[%s4225 + $0x48] sm:$0xf]
      %v4245 = vld [vmem:[%s4225 + $0x4c] sm:$0xf]
      %v4246 = vld [vmem:[%s4225 + $0x50] sm:$0xf]
      %v4247 = vld [vmem:[%s4225 + $0x54] sm:$0xf]
      %v4248 = vld [vmem:[%s4225 + $0x58] sm:$0xf]
      %v4249 = vld [vmem:[%s4225 + $0x5c] sm:$0xf]
      %v4250 = vld [vmem:[%s4225 + $0x60] sm:$0xf]
      %v4251 = vld [vmem:[%s4225 + $0x64] sm:$0xf]
      %v4252 = vld [vmem:[%s4225 + $0x68] sm:$0xf]
      %v4253 = vld [vmem:[%s4225 + $0x6c] sm:$0xf]
      %v4254 = vld [vmem:[%s4225 + $0x70] sm:$0xf]
      %v4255 = vld [vmem:[%s4225 + $0x74] sm:$0xf]
      %v4256 = vld [vmem:[%s4225 + $0x78] sm:$0xf]
      %v4257 = vld [vmem:[%s4225 + $0x7c] sm:$0xf]
      %v4290 = vunpack.c.l.b16 %v4226
      %v4291 = vunpack.c.l.b16 %v4227
      %v4292 = vunpack.c.l.b16 %v4228
      %v4293 = vunpack.c.l.b16 %v4229
      %v4294 = vunpack.c.l.b16 %v4230
      %v4295 = vunpack.c.l.b16 %v4231
      %v4296 = vunpack.c.l.b16 %v4232
      %v4297 = vunpack.c.l.b16 %v4233
      %v4298 = vunpack.c.l.b16 %v4234
      %v4299 = vunpack.c.l.b16 %v4235
      %v4300 = vunpack.c.l.b16 %v4236
      %v4301 = vunpack.c.l.b16 %v4237
      %v4302 = vunpack.c.l.b16 %v4238
      %v4303 = vunpack.c.l.b16 %v4239
      %v4304 = vunpack.c.l.b16 %v4240
      %v4305 = vunpack.c.l.b16 %v4241
      %v4306 = vunpack.c.l.b16 %v4242
      %v4307 = vunpack.c.l.b16 %v4243
      %v4308 = vunpack.c.l.b16 %v4244
      %v4309 = vunpack.c.l.b16 %v4245
      %v4310 = vunpack.c.l.b16 %v4246
      %v4311 = vunpack.c.l.b16 %v4247
      %v4312 = vunpack.c.l.b16 %v4248
      %v4313 = vunpack.c.l.b16 %v4249
      %v4314 = vunpack.c.l.b16 %v4250
      %v4315 = vunpack.c.l.b16 %v4251
      %v4316 = vunpack.c.l.b16 %v4252
      %v4317 = vunpack.c.l.b16 %v4253
      %v4318 = vunpack.c.l.b16 %v4254
      %v4319 = vunpack.c.l.b16 %v4255
      %v4320 = vunpack.c.l.b16 %v4256
      %v4321 = vunpack.c.l.b16 %v4257
      %v4322 = vpack.c.b16 %v4291, %v4290
      %v4323 = vpack.c.b16 %v4293, %v4292
      %v4324 = vpack.c.b16 %v4295, %v4294
      %v4325 = vpack.c.b16 %v4297, %v4296
      %v4326 = vpack.c.b16 %v4299, %v4298
      %v4327 = vpack.c.b16 %v4301, %v4300
      %v4328 = vpack.c.b16 %v4303, %v4302
      %v4329 = vpack.c.b16 %v4305, %v4304
      %v4330 = vpack.c.b16 %v4307, %v4306
      %v4331 = vpack.c.b16 %v4309, %v4308
      %v4332 = vpack.c.b16 %v4311, %v4310
      %v4333 = vpack.c.b16 %v4313, %v4312
      %v4334 = vpack.c.b16 %v4315, %v4314
      %v4335 = vpack.c.b16 %v4317, %v4316
      %v4336 = vpack.c.b16 %v4319, %v4318
      %v4337 = vpack.c.b16 %v4321, %v4320
      %4354 = vmatpush.bf16.msra.mxu0 %v4329
      %4355 = vmatpush.bf16.msra.mxu0 %v4328
      %4356 = vmatpush.bf16.msra.mxu0 %v4327
      %4357 = vmatpush.bf16.msra.mxu0 %v4326
      %4358 = vmatpush.bf16.msra.mxu0 %v4325
      %4359 = vmatpush.bf16.msra.mxu0 %v4324
      %4360 = vmatpush.bf16.msra.mxu0 %v4323
      %4361 = vmatpush.bf16.msra.mxu0 %v4322
      %4362 = vmatmul.bf16.gmra.mxu0 %v4217
      %v4363 = vpop.f32.mrf.mxu0
      %v4364 = vadd.f32 0.0, %v4363
      %v4365 = vpop.f32.mrf.mxu0
      %v4366 = vadd.f32 0.0, %v4365
      %4367 = vmatmul.bf16.gmra.mxu0 %v4219
      %v4368 = vpop.f32.mrf.mxu0
      %v4369 = vadd.f32 0.0, %v4368
      %v4370 = vpop.f32.mrf.mxu0
      %v4371 = vadd.f32 0.0, %v4370
      %4372 = vmatmul.bf16.gmra.mxu0 %v4221
      %v4373 = vpop.f32.mrf.mxu0
      %v4374 = vadd.f32 0.0, %v4373
      %v4375 = vpop.f32.mrf.mxu0
      %v4376 = vadd.f32 0.0, %v4375
      %4377 = vmatmul.bf16.gmra.mxu0 %v4223
      %v4378 = vpop.f32.mrf.mxu0
      %v4379 = vadd.f32 0.0, %v4378
      %v4380 = vpop.f32.mrf.mxu0
      %v4381 = vadd.f32 0.0, %v4380
      %4382 = vdwg.mxu0
      %4383 = vmatpush.bf16.msra.mxu0 %v4337
      %4384 = vmatpush.bf16.msra.mxu0 %v4336
      %4385 = vmatpush.bf16.msra.mxu0 %v4335
      %4386 = vmatpush.bf16.msra.mxu0 %v4334
      %4387 = vmatpush.bf16.msra.mxu0 %v4333
      %4388 = vmatpush.bf16.msra.mxu0 %v4332
      %4389 = vmatpush.bf16.msra.mxu0 %v4331
      %4390 = vmatpush.bf16.msra.mxu0 %v4330
      %4391 = vmatmul.bf16.gmra.mxu0 %v4218
      %v4392 = vpop.f32.mrf.mxu0
      %v4393 = vadd.f32 %v4364, %v4392
      %v4394 = vpop.f32.mrf.mxu0
      %v4395 = vadd.f32 %v4366, %v4394
      %4396 = vmatmul.bf16.gmra.mxu0 %v4220
      %v4397 = vpop.f32.mrf.mxu0
      %v4398 = vadd.f32 %v4369, %v4397
      %v4399 = vpop.f32.mrf.mxu0
      %v4400 = vadd.f32 %v4371, %v4399
      %4401 = vmatmul.bf16.gmra.mxu0 %v4222
      %v4402 = vpop.f32.mrf.mxu0
      %v4403 = vadd.f32 %v4374, %v4402
      %v4404 = vpop.f32.mrf.mxu0
      %v4405 = vadd.f32 %v4376, %v4404
      %4406 = vmatmul.bf16.gmra.mxu0 %v4224
      %v4407 = vpop.f32.mrf.mxu0
      %v4408 = vadd.f32 %v4379, %v4407
      %v4409 = vpop.f32.mrf.mxu0
      %v4410 = vadd.f32 %v4381, %v4409
      %4411 = vdwg.mxu0
      %v4412 = vadd.f32 %v3917, %v4393
      %v4413 = vadd.f32 %v3918, %v4395
      %v4414 = vadd.f32 %v3919, %v4398
      %v4415 = vadd.f32 %v3920, %v4400
      %v4416 = vadd.f32 %v3921, %v4403
      %v4417 = vadd.f32 %v3922, %v4405
      %v4418 = vadd.f32 %v3923, %v4408
      %v4419 = vadd.f32 %v3924, %v4410
      %4420 = vset.pattern.permute.xlu0 10
      %4421 = vperm.xlu0 %4420, %v1918
      %v4422 = vpop.permute.xlu0 %4421
      %4424 = vset.pattern.permute.xlu0 10
      %4425 = vperm.xlu0 %4424, %v1919
      %v4426 = vpop.permute.xlu0 %4425
      %4428 = vset.pattern.permute.xlu0 10
      %4429 = vperm.xlu0 %4428, %v1920
      %v4430 = vpop.permute.xlu0 %4429
      %4432 = vset.pattern.permute.xlu0 10
      %4433 = vperm.xlu0 %4432, %v1921
      %v4434 = vpop.permute.xlu0 %4433
      %4436 = vset.pattern.permute.xlu0 10
      %4437 = vperm.xlu0 %4436, %v1922
      %v4438 = vpop.permute.xlu0 %4437
      %4440 = vset.pattern.permute.xlu0 10
      %4441 = vperm.xlu0 %4440, %v1923
      %v4442 = vpop.permute.xlu0 %4441
      %4444 = vset.pattern.permute.xlu0 10
      %4445 = vperm.xlu0 %4444, %v1924
      %v4446 = vpop.permute.xlu0 %4445
      %4448 = vset.pattern.permute.xlu0 10
      %4449 = vperm.xlu0 %4448, %v1925
      %v4450 = vpop.permute.xlu0 %4449
      %v4452 = vsub.f32 %v1932, %v4422
      %v4453 = vsub.f32 %v1932, %v4426
      %v4454 = vsub.f32 %v1932, %v4430
      %v4455 = vsub.f32 %v1932, %v4434
      %v4456 = vsub.f32 %v1932, %v4438
      %v4457 = vsub.f32 %v1932, %v4442
      %v4458 = vsub.f32 %v1932, %v4446
      %v4459 = vsub.f32 %v1932, %v4450
      %v4460 = vand.u32 2147483647, %v4452
      %v4461 = vand.u32 2147483647, %v4453
      %v4462 = vand.u32 2147483647, %v4454
      %v4463 = vand.u32 2147483647, %v4455
      %v4464 = vand.u32 2147483647, %v4456
      %v4465 = vand.u32 2147483647, %v4457
      %v4466 = vand.u32 2147483647, %v4458
      %v4467 = vand.u32 2147483647, %v4459
      %v4468 = vsub.f32 1.0, %v4460
      %v4469 = vsub.f32 1.0, %v4461
      %v4470 = vsub.f32 1.0, %v4462
      %v4471 = vsub.f32 1.0, %v4463
      %v4472 = vsub.f32 1.0, %v4464
      %v4473 = vsub.f32 1.0, %v4465
      %v4474 = vsub.f32 1.0, %v4466
      %v4475 = vsub.f32 1.0, %v4467
      %v4476 = vmax.f32 %v4468, 0.0
      %v4477 = vmax.f32 %v4469, 0.0
      %v4478 = vmax.f32 %v4470, 0.0
      %v4479 = vmax.f32 %v4471, 0.0
      %v4480 = vmax.f32 %v4472, 0.0
      %v4481 = vmax.f32 %v4473, 0.0
      %v4482 = vmax.f32 %v4474, 0.0
      %v4483 = vmax.f32 %v4475, 0.0
      %v4484 = vpack.c.bf16 %v4477, %v4476
      %v4485 = vpack.c.bf16 %v4479, %v4478
      %v4486 = vpack.c.bf16 %v4481, %v4480
      %v4487 = vpack.c.bf16 %v4483, %v4482
      %4488 = vset.pattern.permute.xlu0 11
      %4489 = vperm.xlu0 %4488, %v1918
      %v4490 = vpop.permute.xlu0 %4489
      %4492 = vset.pattern.permute.xlu0 11
      %4493 = vperm.xlu0 %4492, %v1919
      %v4494 = vpop.permute.xlu0 %4493
      %4496 = vset.pattern.permute.xlu0 11
      %4497 = vperm.xlu0 %4496, %v1920
      %v4498 = vpop.permute.xlu0 %4497
      %4500 = vset.pattern.permute.xlu0 11
      %4501 = vperm.xlu0 %4500, %v1921
      %v4502 = vpop.permute.xlu0 %4501
      %4504 = vset.pattern.permute.xlu0 11
      %4505 = vperm.xlu0 %4504, %v1922
      %v4506 = vpop.permute.xlu0 %4505
      %4508 = vset.pattern.permute.xlu0 11
      %4509 = vperm.xlu0 %4508, %v1923
      %v4510 = vpop.permute.xlu0 %4509
      %4512 = vset.pattern.permute.xlu0 11
      %4513 = vperm.xlu0 %4512, %v1924
      %v4514 = vpop.permute.xlu0 %4513
      %4516 = vset.pattern.permute.xlu0 11
      %4517 = vperm.xlu0 %4516, %v1925
      %v4518 = vpop.permute.xlu0 %4517
      %v4520 = vsub.f32 %v1932, %v4490
      %v4521 = vsub.f32 %v1932, %v4494
      %v4522 = vsub.f32 %v1932, %v4498
      %v4523 = vsub.f32 %v1932, %v4502
      %v4524 = vsub.f32 %v1932, %v4506
      %v4525 = vsub.f32 %v1932, %v4510
      %v4526 = vsub.f32 %v1932, %v4514
      %v4527 = vsub.f32 %v1932, %v4518
      %v4528 = vand.u32 2147483647, %v4520
      %v4529 = vand.u32 2147483647, %v4521
      %v4530 = vand.u32 2147483647, %v4522
      %v4531 = vand.u32 2147483647, %v4523
      %v4532 = vand.u32 2147483647, %v4524
      %v4533 = vand.u32 2147483647, %v4525
      %v4534 = vand.u32 2147483647, %v4526
      %v4535 = vand.u32 2147483647, %v4527
      %v4536 = vsub.f32 1.0, %v4528
      %v4537 = vsub.f32 1.0, %v4529
      %v4538 = vsub.f32 1.0, %v4530
      %v4539 = vsub.f32 1.0, %v4531
      %v4540 = vsub.f32 1.0, %v4532
      %v4541 = vsub.f32 1.0, %v4533
      %v4542 = vsub.f32 1.0, %v4534
      %v4543 = vsub.f32 1.0, %v4535
      %v4544 = vmax.f32 %v4536, 0.0
      %v4545 = vmax.f32 %v4537, 0.0
      %v4546 = vmax.f32 %v4538, 0.0
      %v4547 = vmax.f32 %v4539, 0.0
      %v4548 = vmax.f32 %v4540, 0.0
      %v4549 = vmax.f32 %v4541, 0.0
      %v4550 = vmax.f32 %v4542, 0.0
      %v4551 = vmax.f32 %v4543, 0.0
      %v4552 = vpack.c.bf16 %v4545, %v4544
      %v4553 = vpack.c.bf16 %v4547, %v4546
      %v4554 = vpack.c.bf16 %v4549, %v4548
      %v4555 = vpack.c.bf16 %v4551, %v4550
      %v4557 = vsel %vm2087, %v4484, 0
      %v4560 = vsel %vm2087, %v4485, 0
      %v4563 = vsel %vm2087, %v4486, 0
      %v4566 = vsel %vm2087, %v4487, 0
      %4568 = vmatpush.bf16.msra.mxu0 0
      %4569 = vmatpush.bf16.msra.mxu0 0
      %4570 = vmatpush.bf16.msra.mxu0 0
      %4571 = vmatpush.bf16.msra.mxu0 0
      %4572 = vmatpush.bf16.msra.mxu0 0
      %4573 = vmatpush.bf16.msra.mxu0 0
      %4574 = vmatpush.bf16.msra.mxu0 0
      %4575 = vmatpush.bf16.msra.mxu0 %v2083
      %4576 = vmatmul.bf16.gmra.mxu0 %v4557
      %v4577 = vpop.f32.mrf.mxu0
      %v4578 = vadd.f32 0.0, %v4577
      %v4579 = vpop.f32.mrf.mxu0
      %v4580 = vadd.f32 0.0, %v4579
      %4581 = vmatmul.bf16.gmra.mxu0 %v4560
      %v4582 = vpop.f32.mrf.mxu0
      %v4583 = vadd.f32 0.0, %v4582
      %v4584 = vpop.f32.mrf.mxu0
      %v4585 = vadd.f32 0.0, %v4584
      %4586 = vmatmul.bf16.gmra.mxu0 %v4563
      %v4587 = vpop.f32.mrf.mxu0
      %v4588 = vadd.f32 0.0, %v4587
      %v4589 = vpop.f32.mrf.mxu0
      %v4590 = vadd.f32 0.0, %v4589
      %4591 = vmatmul.bf16.gmra.mxu0 %v4566
      %v4592 = vpop.f32.mrf.mxu0
      %v4593 = vadd.f32 0.0, %v4592
      %v4594 = vpop.f32.mrf.mxu0
      %v4595 = vadd.f32 0.0, %v4594
      %4596 = vdwg.mxu0
      %4597 = vmatpush.bf16.msra.mxu0 0
      %4598 = vmatpush.bf16.msra.mxu0 0
      %4599 = vmatpush.bf16.msra.mxu0 0
      %4600 = vmatpush.bf16.msra.mxu0 0
      %4601 = vmatpush.bf16.msra.mxu0 0
      %4602 = vmatpush.bf16.msra.mxu0 0
      %4603 = vmatpush.bf16.msra.mxu0 0
      %4604 = vmatpush.bf16.msra.mxu0 %v2084
      %4605 = vmatmul.bf16.gmra.mxu0 %v4557
      %v4606 = vpop.f32.mrf.mxu0
      %v4607 = vadd.f32 0.0, %v4606
      %v4608 = vpop.f32.mrf.mxu0
      %v4609 = vadd.f32 0.0, %v4608
      %4610 = vmatmul.bf16.gmra.mxu0 %v4560
      %v4611 = vpop.f32.mrf.mxu0
      %v4612 = vadd.f32 0.0, %v4611
      %v4613 = vpop.f32.mrf.mxu0
      %v4614 = vadd.f32 0.0, %v4613
      %4615 = vmatmul.bf16.gmra.mxu0 %v4563
      %v4616 = vpop.f32.mrf.mxu0
      %v4617 = vadd.f32 0.0, %v4616
      %v4618 = vpop.f32.mrf.mxu0
      %v4619 = vadd.f32 0.0, %v4618
      %4620 = vmatmul.bf16.gmra.mxu0 %v4566
      %v4621 = vpop.f32.mrf.mxu0
      %v4622 = vadd.f32 0.0, %v4621
      %v4623 = vpop.f32.mrf.mxu0
      %v4624 = vadd.f32 0.0, %v4623
      %4625 = vdwg.mxu0
      %v4627 = vsel %vm2087, %v4552, 0
      %v4630 = vsel %vm2087, %v4553, 0
      %v4633 = vsel %vm2087, %v4554, 0
      %v4636 = vsel %vm2087, %v4555, 0
      %4638 = vmatpush.bf16.msra.mxu0 0
      %4639 = vmatpush.bf16.msra.mxu0 0
      %4640 = vmatpush.bf16.msra.mxu0 0
      %4641 = vmatpush.bf16.msra.mxu0 0
      %4642 = vmatpush.bf16.msra.mxu0 0
      %4643 = vmatpush.bf16.msra.mxu0 0
      %4644 = vmatpush.bf16.msra.mxu0 0
      %4645 = vmatpush.bf16.msra.mxu0 %v2164
      %4646 = vmatmul.bf16.gmra.mxu0 %v4627
      %v4647 = vpop.f32.mrf.mxu0
      %v4648 = vadd.f32 0.0, %v4647
      %v4649 = vpop.f32.mrf.mxu0
      %v4650 = vadd.f32 0.0, %v4649
      %4651 = vmatmul.bf16.gmra.mxu0 %v4630
      %v4652 = vpop.f32.mrf.mxu0
      %v4653 = vadd.f32 0.0, %v4652
      %v4654 = vpop.f32.mrf.mxu0
      %v4655 = vadd.f32 0.0, %v4654
      %4656 = vmatmul.bf16.gmra.mxu0 %v4633
      %v4657 = vpop.f32.mrf.mxu0
      %v4658 = vadd.f32 0.0, %v4657
      %v4659 = vpop.f32.mrf.mxu0
      %v4660 = vadd.f32 0.0, %v4659
      %4661 = vmatmul.bf16.gmra.mxu0 %v4636
      %v4662 = vpop.f32.mrf.mxu0
      %v4663 = vadd.f32 0.0, %v4662
      %v4664 = vpop.f32.mrf.mxu0
      %v4665 = vadd.f32 0.0, %v4664
      %4666 = vdwg.mxu0
      %4667 = vmatpush.bf16.msra.mxu0 0
      %4668 = vmatpush.bf16.msra.mxu0 0
      %4669 = vmatpush.bf16.msra.mxu0 0
      %4670 = vmatpush.bf16.msra.mxu0 0
      %4671 = vmatpush.bf16.msra.mxu0 0
      %4672 = vmatpush.bf16.msra.mxu0 0
      %4673 = vmatpush.bf16.msra.mxu0 0
      %4674 = vmatpush.bf16.msra.mxu0 %v2165
      %4675 = vmatmul.bf16.gmra.mxu0 %v4627
      %v4676 = vpop.f32.mrf.mxu0
      %v4677 = vadd.f32 0.0, %v4676
      %v4678 = vpop.f32.mrf.mxu0
      %v4679 = vadd.f32 0.0, %v4678
      %4680 = vmatmul.bf16.gmra.mxu0 %v4630
      %v4681 = vpop.f32.mrf.mxu0
      %v4682 = vadd.f32 0.0, %v4681
      %v4683 = vpop.f32.mrf.mxu0
      %v4684 = vadd.f32 0.0, %v4683
      %4685 = vmatmul.bf16.gmra.mxu0 %v4633
      %v4686 = vpop.f32.mrf.mxu0
      %v4687 = vadd.f32 0.0, %v4686
      %v4688 = vpop.f32.mrf.mxu0
      %v4689 = vadd.f32 0.0, %v4688
      %4690 = vmatmul.bf16.gmra.mxu0 %v4636
      %v4691 = vpop.f32.mrf.mxu0
      %v4692 = vadd.f32 0.0, %v4691
      %v4693 = vpop.f32.mrf.mxu0
      %v4694 = vadd.f32 0.0, %v4693
      %4695 = vdwg.mxu0
      %v4696 = vmul.f32 %v4578, %v4648
      %v4697 = vmul.f32 %v4607, %v4677
      %v4698 = vmul.f32 %v4580, %v4650
      %v4699 = vmul.f32 %v4609, %v4679
      %v4700 = vmul.f32 %v4583, %v4653
      %v4701 = vmul.f32 %v4612, %v4682
      %v4702 = vmul.f32 %v4585, %v4655
      %v4703 = vmul.f32 %v4614, %v4684
      %v4704 = vmul.f32 %v4588, %v4658
      %v4705 = vmul.f32 %v4617, %v4687
      %v4706 = vmul.f32 %v4590, %v4660
      %v4707 = vmul.f32 %v4619, %v4689
      %v4708 = vmul.f32 %v4593, %v4663
      %v4709 = vmul.f32 %v4622, %v4692
      %v4710 = vmul.f32 %v4595, %v4665
      %v4711 = vmul.f32 %v4624, %v4694
      %v4712 = vpack.c.bf16 %v4698, %v4696
      %v4713 = vpack.c.bf16 %v4699, %v4697
      %v4714 = vpack.c.bf16 %v4702, %v4700
      %v4715 = vpack.c.bf16 %v4703, %v4701
      %v4716 = vpack.c.bf16 %v4706, %v4704
      %v4717 = vpack.c.bf16 %v4707, %v4705
      %v4718 = vpack.c.bf16 %v4710, %v4708
      %v4719 = vpack.c.bf16 %v4711, %v4709
      %s4720 = scalar_lea.vmem [#allocation2], 640
      %v4721 = vld [vmem:[%s4720] sm:$0xf]
      %v4722 = vld [vmem:[%s4720 + $0x4] sm:$0xf]
      %v4723 = vld [vmem:[%s4720 + $0x8] sm:$0xf]
      %v4724 = vld [vmem:[%s4720 + $0xc] sm:$0xf]
      %v4725 = vld [vmem:[%s4720 + $0x10] sm:$0xf]
      %v4726 = vld [vmem:[%s4720 + $0x14] sm:$0xf]
      %v4727 = vld [vmem:[%s4720 + $0x18] sm:$0xf]
      %v4728 = vld [vmem:[%s4720 + $0x1c] sm:$0xf]
      %v4729 = vld [vmem:[%s4720 + $0x20] sm:$0xf]
      %v4730 = vld [vmem:[%s4720 + $0x24] sm:$0xf]
      %v4731 = vld [vmem:[%s4720 + $0x28] sm:$0xf]
      %v4732 = vld [vmem:[%s4720 + $0x2c] sm:$0xf]
      %v4733 = vld [vmem:[%s4720 + $0x30] sm:$0xf]
      %v4734 = vld [vmem:[%s4720 + $0x34] sm:$0xf]
      %v4735 = vld [vmem:[%s4720 + $0x38] sm:$0xf]
      %v4736 = vld [vmem:[%s4720 + $0x3c] sm:$0xf]
      %v4737 = vld [vmem:[%s4720 + $0x40] sm:$0xf]
      %v4738 = vld [vmem:[%s4720 + $0x44] sm:$0xf]
      %v4739 = vld [vmem:[%s4720 + $0x48] sm:$0xf]
      %v4740 = vld [vmem:[%s4720 + $0x4c] sm:$0xf]
      %v4741 = vld [vmem:[%s4720 + $0x50] sm:$0xf]
      %v4742 = vld [vmem:[%s4720 + $0x54] sm:$0xf]
      %v4743 = vld [vmem:[%s4720 + $0x58] sm:$0xf]
      %v4744 = vld [vmem:[%s4720 + $0x5c] sm:$0xf]
      %v4745 = vld [vmem:[%s4720 + $0x60] sm:$0xf]
      %v4746 = vld [vmem:[%s4720 + $0x64] sm:$0xf]
      %v4747 = vld [vmem:[%s4720 + $0x68] sm:$0xf]
      %v4748 = vld [vmem:[%s4720 + $0x6c] sm:$0xf]
      %v4749 = vld [vmem:[%s4720 + $0x70] sm:$0xf]
      %v4750 = vld [vmem:[%s4720 + $0x74] sm:$0xf]
      %v4751 = vld [vmem:[%s4720 + $0x78] sm:$0xf]
      %v4752 = vld [vmem:[%s4720 + $0x7c] sm:$0xf]
      %v4785 = vunpack.c.l.b16 %v4721
      %v4786 = vunpack.c.l.b16 %v4722
      %v4787 = vunpack.c.l.b16 %v4723
      %v4788 = vunpack.c.l.b16 %v4724
      %v4789 = vunpack.c.l.b16 %v4725
      %v4790 = vunpack.c.l.b16 %v4726
      %v4791 = vunpack.c.l.b16 %v4727
      %v4792 = vunpack.c.l.b16 %v4728
      %v4793 = vunpack.c.l.b16 %v4729
      %v4794 = vunpack.c.l.b16 %v4730
      %v4795 = vunpack.c.l.b16 %v4731
      %v4796 = vunpack.c.l.b16 %v4732
      %v4797 = vunpack.c.l.b16 %v4733
      %v4798 = vunpack.c.l.b16 %v4734
      %v4799 = vunpack.c.l.b16 %v4735
      %v4800 = vunpack.c.l.b16 %v4736
      %v4801 = vunpack.c.l.b16 %v4737
      %v4802 = vunpack.c.l.b16 %v4738
      %v4803 = vunpack.c.l.b16 %v4739
      %v4804 = vunpack.c.l.b16 %v4740
      %v4805 = vunpack.c.l.b16 %v4741
      %v4806 = vunpack.c.l.b16 %v4742
      %v4807 = vunpack.c.l.b16 %v4743
      %v4808 = vunpack.c.l.b16 %v4744
      %v4809 = vunpack.c.l.b16 %v4745
      %v4810 = vunpack.c.l.b16 %v4746
      %v4811 = vunpack.c.l.b16 %v4747
      %v4812 = vunpack.c.l.b16 %v4748
      %v4813 = vunpack.c.l.b16 %v4749
      %v4814 = vunpack.c.l.b16 %v4750
      %v4815 = vunpack.c.l.b16 %v4751
      %v4816 = vunpack.c.l.b16 %v4752
      %v4817 = vpack.c.b16 %v4786, %v4785
      %v4818 = vpack.c.b16 %v4788, %v4787
      %v4819 = vpack.c.b16 %v4790, %v4789
      %v4820 = vpack.c.b16 %v4792, %v4791
      %v4821 = vpack.c.b16 %v4794, %v4793
      %v4822 = vpack.c.b16 %v4796, %v4795
      %v4823 = vpack.c.b16 %v4798, %v4797
      %v4824 = vpack.c.b16 %v4800, %v4799
      %v4825 = vpack.c.b16 %v4802, %v4801
      %v4826 = vpack.c.b16 %v4804, %v4803
      %v4827 = vpack.c.b16 %v4806, %v4805
      %v4828 = vpack.c.b16 %v4808, %v4807
      %v4829 = vpack.c.b16 %v4810, %v4809
      %v4830 = vpack.c.b16 %v4812, %v4811
      %v4831 = vpack.c.b16 %v4814, %v4813
      %v4832 = vpack.c.b16 %v4816, %v4815
      %4849 = vmatpush.bf16.msra.mxu0 %v4824
      %4850 = vmatpush.bf16.msra.mxu0 %v4823
      %4851 = vmatpush.bf16.msra.mxu0 %v4822
      %4852 = vmatpush.bf16.msra.mxu0 %v4821
      %4853 = vmatpush.bf16.msra.mxu0 %v4820
      %4854 = vmatpush.bf16.msra.mxu0 %v4819
      %4855 = vmatpush.bf16.msra.mxu0 %v4818
      %4856 = vmatpush.bf16.msra.mxu0 %v4817
      %4857 = vmatmul.bf16.gmra.mxu0 %v4712
      %v4858 = vpop.f32.mrf.mxu0
      %v4859 = vadd.f32 0.0, %v4858
      %v4860 = vpop.f32.mrf.mxu0
      %v4861 = vadd.f32 0.0, %v4860
      %4862 = vmatmul.bf16.gmra.mxu0 %v4714
      %v4863 = vpop.f32.mrf.mxu0
      %v4864 = vadd.f32 0.0, %v4863
      %v4865 = vpop.f32.mrf.mxu0
      %v4866 = vadd.f32 0.0, %v4865
      %4867 = vmatmul.bf16.gmra.mxu0 %v4716
      %v4868 = vpop.f32.mrf.mxu0
      %v4869 = vadd.f32 0.0, %v4868
      %v4870 = vpop.f32.mrf.mxu0
      %v4871 = vadd.f32 0.0, %v4870
      %4872 = vmatmul.bf16.gmra.mxu0 %v4718
      %v4873 = vpop.f32.mrf.mxu0
      %v4874 = vadd.f32 0.0, %v4873
      %v4875 = vpop.f32.mrf.mxu0
      %v4876 = vadd.f32 0.0, %v4875
      %4877 = vdwg.mxu0
      %4878 = vmatpush.bf16.msra.mxu0 %v4832
      %4879 = vmatpush.bf16.msra.mxu0 %v4831
      %4880 = vmatpush.bf16.msra.mxu0 %v4830
      %4881 = vmatpush.bf16.msra.mxu0 %v4829
      %4882 = vmatpush.bf16.msra.mxu0 %v4828
      %4883 = vmatpush.bf16.msra.mxu0 %v4827
      %4884 = vmatpush.bf16.msra.mxu0 %v4826
      %4885 = vmatpush.bf16.msra.mxu0 %v4825
      %4886 = vmatmul.bf16.gmra.mxu0 %v4713
      %v4887 = vpop.f32.mrf.mxu0
      %v4888 = vadd.f32 %v4859, %v4887
      %v4889 = vpop.f32.mrf.mxu0
      %v4890 = vadd.f32 %v4861, %v4889
      %4891 = vmatmul.bf16.gmra.mxu0 %v4715
      %v4892 = vpop.f32.mrf.mxu0
      %v4893 = vadd.f32 %v4864, %v4892
      %v4894 = vpop.f32.mrf.mxu0
      %v4895 = vadd.f32 %v4866, %v4894
      %4896 = vmatmul.bf16.gmra.mxu0 %v4717
      %v4897 = vpop.f32.mrf.mxu0
      %v4898 = vadd.f32 %v4869, %v4897
      %v4899 = vpop.f32.mrf.mxu0
      %v4900 = vadd.f32 %v4871, %v4899
      %4901 = vmatmul.bf16.gmra.mxu0 %v4719
      %v4902 = vpop.f32.mrf.mxu0
      %v4903 = vadd.f32 %v4874, %v4902
      %v4904 = vpop.f32.mrf.mxu0
      %v4905 = vadd.f32 %v4876, %v4904
      %4906 = vdwg.mxu0
      %v4907 = vadd.f32 %v4412, %v4888
      %v4908 = vadd.f32 %v4413, %v4890
      %v4909 = vadd.f32 %v4414, %v4893
      %v4910 = vadd.f32 %v4415, %v4895
      %v4911 = vadd.f32 %v4416, %v4898
      %v4912 = vadd.f32 %v4417, %v4900
      %v4913 = vadd.f32 %v4418, %v4903
      %v4914 = vadd.f32 %v4419, %v4905
      %4915 = vset.pattern.permute.xlu0 12
      %4916 = vperm.xlu0 %4915, %v1918
      %v4917 = vpop.permute.xlu0 %4916
      %4919 = vset.pattern.permute.xlu0 12
      %4920 = vperm.xlu0 %4919, %v1919
      %v4921 = vpop.permute.xlu0 %4920
      %4923 = vset.pattern.permute.xlu0 12
      %4924 = vperm.xlu0 %4923, %v1920
      %v4925 = vpop.permute.xlu0 %4924
      %4927 = vset.pattern.permute.xlu0 12
      %4928 = vperm.xlu0 %4927, %v1921
      %v4929 = vpop.permute.xlu0 %4928
      %4931 = vset.pattern.permute.xlu0 12
      %4932 = vperm.xlu0 %4931, %v1922
      %v4933 = vpop.permute.xlu0 %4932
      %4935 = vset.pattern.permute.xlu0 12
      %4936 = vperm.xlu0 %4935, %v1923
      %v4937 = vpop.permute.xlu0 %4936
      %4939 = vset.pattern.permute.xlu0 12
      %4940 = vperm.xlu0 %4939, %v1924
      %v4941 = vpop.permute.xlu0 %4940
      %4943 = vset.pattern.permute.xlu0 12
      %4944 = vperm.xlu0 %4943, %v1925
      %v4945 = vpop.permute.xlu0 %4944
      %v4947 = vsub.f32 %v1932, %v4917
      %v4948 = vsub.f32 %v1932, %v4921
      %v4949 = vsub.f32 %v1932, %v4925
      %v4950 = vsub.f32 %v1932, %v4929
      %v4951 = vsub.f32 %v1932, %v4933
      %v4952 = vsub.f32 %v1932, %v4937
      %v4953 = vsub.f32 %v1932, %v4941
      %v4954 = vsub.f32 %v1932, %v4945
      %v4955 = vand.u32 2147483647, %v4947
      %v4956 = vand.u32 2147483647, %v4948
      %v4957 = vand.u32 2147483647, %v4949
      %v4958 = vand.u32 2147483647, %v4950
      %v4959 = vand.u32 2147483647, %v4951
      %v4960 = vand.u32 2147483647, %v4952
      %v4961 = vand.u32 2147483647, %v4953
      %v4962 = vand.u32 2147483647, %v4954
      %v4963 = vsub.f32 1.0, %v4955
      %v4964 = vsub.f32 1.0, %v4956
      %v4965 = vsub.f32 1.0, %v4957
      %v4966 = vsub.f32 1.0, %v4958
      %v4967 = vsub.f32 1.0, %v4959
      %v4968 = vsub.f32 1.0, %v4960
      %v4969 = vsub.f32 1.0, %v4961
      %v4970 = vsub.f32 1.0, %v4962
      %v4971 = vmax.f32 %v4963, 0.0
      %v4972 = vmax.f32 %v4964, 0.0
      %v4973 = vmax.f32 %v4965, 0.0
      %v4974 = vmax.f32 %v4966, 0.0
      %v4975 = vmax.f32 %v4967, 0.0
      %v4976 = vmax.f32 %v4968, 0.0
      %v4977 = vmax.f32 %v4969, 0.0
      %v4978 = vmax.f32 %v4970, 0.0
      %v4979 = vpack.c.bf16 %v4972, %v4971
      %v4980 = vpack.c.bf16 %v4974, %v4973
      %v4981 = vpack.c.bf16 %v4976, %v4975
      %v4982 = vpack.c.bf16 %v4978, %v4977
      %4983 = vset.pattern.permute.xlu0 13
      %4984 = vperm.xlu0 %4983, %v1918
      %v4985 = vpop.permute.xlu0 %4984
      %4987 = vset.pattern.permute.xlu0 13
      %4988 = vperm.xlu0 %4987, %v1919
      %v4989 = vpop.permute.xlu0 %4988
      %4991 = vset.pattern.permute.xlu0 13
      %4992 = vperm.xlu0 %4991, %v1920
      %v4993 = vpop.permute.xlu0 %4992
      %4995 = vset.pattern.permute.xlu0 13
      %4996 = vperm.xlu0 %4995, %v1921
      %v4997 = vpop.permute.xlu0 %4996
      %4999 = vset.pattern.permute.xlu0 13
      %5000 = vperm.xlu0 %4999, %v1922
      %v5001 = vpop.permute.xlu0 %5000
      %5003 = vset.pattern.permute.xlu0 13
      %5004 = vperm.xlu0 %5003, %v1923
      %v5005 = vpop.permute.xlu0 %5004
      %5007 = vset.pattern.permute.xlu0 13
      %5008 = vperm.xlu0 %5007, %v1924
      %v5009 = vpop.permute.xlu0 %5008
      %5011 = vset.pattern.permute.xlu0 13
      %5012 = vperm.xlu0 %5011, %v1925
      %v5013 = vpop.permute.xlu0 %5012
      %v5015 = vsub.f32 %v1932, %v4985
      %v5016 = vsub.f32 %v1932, %v4989
      %v5017 = vsub.f32 %v1932, %v4993
      %v5018 = vsub.f32 %v1932, %v4997
      %v5019 = vsub.f32 %v1932, %v5001
      %v5020 = vsub.f32 %v1932, %v5005
      %v5021 = vsub.f32 %v1932, %v5009
      %v5022 = vsub.f32 %v1932, %v5013
      %v5023 = vand.u32 2147483647, %v5015
      %v5024 = vand.u32 2147483647, %v5016
      %v5025 = vand.u32 2147483647, %v5017
      %v5026 = vand.u32 2147483647, %v5018
      %v5027 = vand.u32 2147483647, %v5019
      %v5028 = vand.u32 2147483647, %v5020
      %v5029 = vand.u32 2147483647, %v5021
      %v5030 = vand.u32 2147483647, %v5022
      %v5031 = vsub.f32 1.0, %v5023
      %v5032 = vsub.f32 1.0, %v5024
      %v5033 = vsub.f32 1.0, %v5025
      %v5034 = vsub.f32 1.0, %v5026
      %v5035 = vsub.f32 1.0, %v5027
      %v5036 = vsub.f32 1.0, %v5028
      %v5037 = vsub.f32 1.0, %v5029
      %v5038 = vsub.f32 1.0, %v5030
      %v5039 = vmax.f32 %v5031, 0.0
      %v5040 = vmax.f32 %v5032, 0.0
      %v5041 = vmax.f32 %v5033, 0.0
      %v5042 = vmax.f32 %v5034, 0.0
      %v5043 = vmax.f32 %v5035, 0.0
      %v5044 = vmax.f32 %v5036, 0.0
      %v5045 = vmax.f32 %v5037, 0.0
      %v5046 = vmax.f32 %v5038, 0.0
      %v5047 = vpack.c.bf16 %v5040, %v5039
      %v5048 = vpack.c.bf16 %v5042, %v5041
      %v5049 = vpack.c.bf16 %v5044, %v5043
      %v5050 = vpack.c.bf16 %v5046, %v5045
      %v5052 = vsel %vm2087, %v4979, 0
      %v5055 = vsel %vm2087, %v4980, 0
      %v5058 = vsel %vm2087, %v4981, 0
      %v5061 = vsel %vm2087, %v4982, 0
      %5063 = vmatpush.bf16.msra.mxu0 0
      %5064 = vmatpush.bf16.msra.mxu0 0
      %5065 = vmatpush.bf16.msra.mxu0 0
      %5066 = vmatpush.bf16.msra.mxu0 0
      %5067 = vmatpush.bf16.msra.mxu0 0
      %5068 = vmatpush.bf16.msra.mxu0 0
      %5069 = vmatpush.bf16.msra.mxu0 0
      %5070 = vmatpush.bf16.msra.mxu0 %v2083
      %5071 = vmatmul.bf16.gmra.mxu0 %v5052
      %v5072 = vpop.f32.mrf.mxu0
      %v5073 = vadd.f32 0.0, %v5072
      %v5074 = vpop.f32.mrf.mxu0
      %v5075 = vadd.f32 0.0, %v5074
      %5076 = vmatmul.bf16.gmra.mxu0 %v5055
      %v5077 = vpop.f32.mrf.mxu0
      %v5078 = vadd.f32 0.0, %v5077
      %v5079 = vpop.f32.mrf.mxu0
      %v5080 = vadd.f32 0.0, %v5079
      %5081 = vmatmul.bf16.gmra.mxu0 %v5058
      %v5082 = vpop.f32.mrf.mxu0
      %v5083 = vadd.f32 0.0, %v5082
      %v5084 = vpop.f32.mrf.mxu0
      %v5085 = vadd.f32 0.0, %v5084
      %5086 = vmatmul.bf16.gmra.mxu0 %v5061
      %v5087 = vpop.f32.mrf.mxu0
      %v5088 = vadd.f32 0.0, %v5087
      %v5089 = vpop.f32.mrf.mxu0
      %v5090 = vadd.f32 0.0, %v5089
      %5091 = vdwg.mxu0
      %5092 = vmatpush.bf16.msra.mxu0 0
      %5093 = vmatpush.bf16.msra.mxu0 0
      %5094 = vmatpush.bf16.msra.mxu0 0
      %5095 = vmatpush.bf16.msra.mxu0 0
      %5096 = vmatpush.bf16.msra.mxu0 0
      %5097 = vmatpush.bf16.msra.mxu0 0
      %5098 = vmatpush.bf16.msra.mxu0 0
      %5099 = vmatpush.bf16.msra.mxu0 %v2084
      %5100 = vmatmul.bf16.gmra.mxu0 %v5052
      %v5101 = vpop.f32.mrf.mxu0
      %v5102 = vadd.f32 0.0, %v5101
      %v5103 = vpop.f32.mrf.mxu0
      %v5104 = vadd.f32 0.0, %v5103
      %5105 = vmatmul.bf16.gmra.mxu0 %v5055
      %v5106 = vpop.f32.mrf.mxu0
      %v5107 = vadd.f32 0.0, %v5106
      %v5108 = vpop.f32.mrf.mxu0
      %v5109 = vadd.f32 0.0, %v5108
      %5110 = vmatmul.bf16.gmra.mxu0 %v5058
      %v5111 = vpop.f32.mrf.mxu0
      %v5112 = vadd.f32 0.0, %v5111
      %v5113 = vpop.f32.mrf.mxu0
      %v5114 = vadd.f32 0.0, %v5113
      %5115 = vmatmul.bf16.gmra.mxu0 %v5061
      %v5116 = vpop.f32.mrf.mxu0
      %v5117 = vadd.f32 0.0, %v5116
      %v5118 = vpop.f32.mrf.mxu0
      %v5119 = vadd.f32 0.0, %v5118
      %5120 = vdwg.mxu0
      %v5122 = vsel %vm2087, %v5047, 0
      %v5125 = vsel %vm2087, %v5048, 0
      %v5128 = vsel %vm2087, %v5049, 0
      %v5131 = vsel %vm2087, %v5050, 0
      %5133 = vmatpush.bf16.msra.mxu0 0
      %5134 = vmatpush.bf16.msra.mxu0 0
      %5135 = vmatpush.bf16.msra.mxu0 0
      %5136 = vmatpush.bf16.msra.mxu0 0
      %5137 = vmatpush.bf16.msra.mxu0 0
      %5138 = vmatpush.bf16.msra.mxu0 0
      %5139 = vmatpush.bf16.msra.mxu0 0
      %5140 = vmatpush.bf16.msra.mxu0 %v2164
      %5141 = vmatmul.bf16.gmra.mxu0 %v5122
      %v5142 = vpop.f32.mrf.mxu0
      %v5143 = vadd.f32 0.0, %v5142
      %v5144 = vpop.f32.mrf.mxu0
      %v5145 = vadd.f32 0.0, %v5144
      %5146 = vmatmul.bf16.gmra.mxu0 %v5125
      %v5147 = vpop.f32.mrf.mxu0
      %v5148 = vadd.f32 0.0, %v5147
      %v5149 = vpop.f32.mrf.mxu0
      %v5150 = vadd.f32 0.0, %v5149
      %5151 = vmatmul.bf16.gmra.mxu0 %v5128
      %v5152 = vpop.f32.mrf.mxu0
      %v5153 = vadd.f32 0.0, %v5152
      %v5154 = vpop.f32.mrf.mxu0
      %v5155 = vadd.f32 0.0, %v5154
      %5156 = vmatmul.bf16.gmra.mxu0 %v5131
      %v5157 = vpop.f32.mrf.mxu0
      %v5158 = vadd.f32 0.0, %v5157
      %v5159 = vpop.f32.mrf.mxu0
      %v5160 = vadd.f32 0.0, %v5159
      %5161 = vdwg.mxu0
      %5162 = vmatpush.bf16.msra.mxu0 0
      %5163 = vmatpush.bf16.msra.mxu0 0
      %5164 = vmatpush.bf16.msra.mxu0 0
      %5165 = vmatpush.bf16.msra.mxu0 0
      %5166 = vmatpush.bf16.msra.mxu0 0
      %5167 = vmatpush.bf16.msra.mxu0 0
      %5168 = vmatpush.bf16.msra.mxu0 0
      %5169 = vmatpush.bf16.msra.mxu0 %v2165
      %5170 = vmatmul.bf16.gmra.mxu0 %v5122
      %v5171 = vpop.f32.mrf.mxu0
      %v5172 = vadd.f32 0.0, %v5171
      %v5173 = vpop.f32.mrf.mxu0
      %v5174 = vadd.f32 0.0, %v5173
      %5175 = vmatmul.bf16.gmra.mxu0 %v5125
      %v5176 = vpop.f32.mrf.mxu0
      %v5177 = vadd.f32 0.0, %v5176
      %v5178 = vpop.f32.mrf.mxu0
      %v5179 = vadd.f32 0.0, %v5178
      %5180 = vmatmul.bf16.gmra.mxu0 %v5128
      %v5181 = vpop.f32.mrf.mxu0
      %v5182 = vadd.f32 0.0, %v5181
      %v5183 = vpop.f32.mrf.mxu0
      %v5184 = vadd.f32 0.0, %v5183
      %5185 = vmatmul.bf16.gmra.mxu0 %v5131
      %v5186 = vpop.f32.mrf.mxu0
      %v5187 = vadd.f32 0.0, %v5186
      %v5188 = vpop.f32.mrf.mxu0
      %v5189 = vadd.f32 0.0, %v5188
      %5190 = vdwg.mxu0
      %v5191 = vmul.f32 %v5073, %v5143
      %v5192 = vmul.f32 %v5102, %v5172
      %v5193 = vmul.f32 %v5075, %v5145
      %v5194 = vmul.f32 %v5104, %v5174
      %v5195 = vmul.f32 %v5078, %v5148
      %v5196 = vmul.f32 %v5107, %v5177
      %v5197 = vmul.f32 %v5080, %v5150
      %v5198 = vmul.f32 %v5109, %v5179
      %v5199 = vmul.f32 %v5083, %v5153
      %v5200 = vmul.f32 %v5112, %v5182
      %v5201 = vmul.f32 %v5085, %v5155
      %v5202 = vmul.f32 %v5114, %v5184
      %v5203 = vmul.f32 %v5088, %v5158
      %v5204 = vmul.f32 %v5117, %v5187
      %v5205 = vmul.f32 %v5090, %v5160
      %v5206 = vmul.f32 %v5119, %v5189
      %v5207 = vpack.c.bf16 %v5193, %v5191
      %v5208 = vpack.c.bf16 %v5194, %v5192
      %v5209 = vpack.c.bf16 %v5197, %v5195
      %v5210 = vpack.c.bf16 %v5198, %v5196
      %v5211 = vpack.c.bf16 %v5201, %v5199
      %v5212 = vpack.c.bf16 %v5202, %v5200
      %v5213 = vpack.c.bf16 %v5205, %v5203
      %v5214 = vpack.c.bf16 %v5206, %v5204
      %s5215 = scalar_lea.vmem [#allocation2], 768
      %v5216 = vld [vmem:[%s5215] sm:$0xf]
      %v5217 = vld [vmem:[%s5215 + $0x4] sm:$0xf]
      %v5218 = vld [vmem:[%s5215 + $0x8] sm:$0xf]
      %v5219 = vld [vmem:[%s5215 + $0xc] sm:$0xf]
      %v5220 = vld [vmem:[%s5215 + $0x10] sm:$0xf]
      %v5221 = vld [vmem:[%s5215 + $0x14] sm:$0xf]
      %v5222 = vld [vmem:[%s5215 + $0x18] sm:$0xf]
      %v5223 = vld [vmem:[%s5215 + $0x1c] sm:$0xf]
      %v5224 = vld [vmem:[%s5215 + $0x20] sm:$0xf]
      %v5225 = vld [vmem:[%s5215 + $0x24] sm:$0xf]
      %v5226 = vld [vmem:[%s5215 + $0x28] sm:$0xf]
      %v5227 = vld [vmem:[%s5215 + $0x2c] sm:$0xf]
      %v5228 = vld [vmem:[%s5215 + $0x30] sm:$0xf]
      %v5229 = vld [vmem:[%s5215 + $0x34] sm:$0xf]
      %v5230 = vld [vmem:[%s5215 + $0x38] sm:$0xf]
      %v5231 = vld [vmem:[%s5215 + $0x3c] sm:$0xf]
      %v5232 = vld [vmem:[%s5215 + $0x40] sm:$0xf]
      %v5233 = vld [vmem:[%s5215 + $0x44] sm:$0xf]
      %v5234 = vld [vmem:[%s5215 + $0x48] sm:$0xf]
      %v5235 = vld [vmem:[%s5215 + $0x4c] sm:$0xf]
      %v5236 = vld [vmem:[%s5215 + $0x50] sm:$0xf]
      %v5237 = vld [vmem:[%s5215 + $0x54] sm:$0xf]
      %v5238 = vld [vmem:[%s5215 + $0x58] sm:$0xf]
      %v5239 = vld [vmem:[%s5215 + $0x5c] sm:$0xf]
      %v5240 = vld [vmem:[%s5215 + $0x60] sm:$0xf]
      %v5241 = vld [vmem:[%s5215 + $0x64] sm:$0xf]
      %v5242 = vld [vmem:[%s5215 + $0x68] sm:$0xf]
      %v5243 = vld [vmem:[%s5215 + $0x6c] sm:$0xf]
      %v5244 = vld [vmem:[%s5215 + $0x70] sm:$0xf]
      %v5245 = vld [vmem:[%s5215 + $0x74] sm:$0xf]
      %v5246 = vld [vmem:[%s5215 + $0x78] sm:$0xf]
      %v5247 = vld [vmem:[%s5215 + $0x7c] sm:$0xf]
      %v5280 = vunpack.c.l.b16 %v5216
      %v5281 = vunpack.c.l.b16 %v5217
      %v5282 = vunpack.c.l.b16 %v5218
      %v5283 = vunpack.c.l.b16 %v5219
      %v5284 = vunpack.c.l.b16 %v5220
      %v5285 = vunpack.c.l.b16 %v5221
      %v5286 = vunpack.c.l.b16 %v5222
      %v5287 = vunpack.c.l.b16 %v5223
      %v5288 = vunpack.c.l.b16 %v5224
      %v5289 = vunpack.c.l.b16 %v5225
      %v5290 = vunpack.c.l.b16 %v5226
      %v5291 = vunpack.c.l.b16 %v5227
      %v5292 = vunpack.c.l.b16 %v5228
      %v5293 = vunpack.c.l.b16 %v5229
      %v5294 = vunpack.c.l.b16 %v5230
      %v5295 = vunpack.c.l.b16 %v5231
      %v5296 = vunpack.c.l.b16 %v5232
      %v5297 = vunpack.c.l.b16 %v5233
      %v5298 = vunpack.c.l.b16 %v5234
      %v5299 = vunpack.c.l.b16 %v5235
      %v5300 = vunpack.c.l.b16 %v5236
      %v5301 = vunpack.c.l.b16 %v5237
      %v5302 = vunpack.c.l.b16 %v5238
      %v5303 = vunpack.c.l.b16 %v5239
      %v5304 = vunpack.c.l.b16 %v5240
      %v5305 = vunpack.c.l.b16 %v5241
      %v5306 = vunpack.c.l.b16 %v5242
      %v5307 = vunpack.c.l.b16 %v5243
      %v5308 = vunpack.c.l.b16 %v5244
      %v5309 = vunpack.c.l.b16 %v5245
      %v5310 = vunpack.c.l.b16 %v5246
      %v5311 = vunpack.c.l.b16 %v5247
      %v5312 = vpack.c.b16 %v5281, %v5280
      %v5313 = vpack.c.b16 %v5283, %v5282
      %v5314 = vpack.c.b16 %v5285, %v5284
      %v5315 = vpack.c.b16 %v5287, %v5286
      %v5316 = vpack.c.b16 %v5289, %v5288
      %v5317 = vpack.c.b16 %v5291, %v5290
      %v5318 = vpack.c.b16 %v5293, %v5292
      %v5319 = vpack.c.b16 %v5295, %v5294
      %v5320 = vpack.c.b16 %v5297, %v5296
      %v5321 = vpack.c.b16 %v5299, %v5298
      %v5322 = vpack.c.b16 %v5301, %v5300
      %v5323 = vpack.c.b16 %v5303, %v5302
      %v5324 = vpack.c.b16 %v5305, %v5304
      %v5325 = vpack.c.b16 %v5307, %v5306
      %v5326 = vpack.c.b16 %v5309, %v5308
      %v5327 = vpack.c.b16 %v5311, %v5310
      %5344 = vmatpush.bf16.msra.mxu0 %v5319
      %5345 = vmatpush.bf16.msra.mxu0 %v5318
      %5346 = vmatpush.bf16.msra.mxu0 %v5317
      %5347 = vmatpush.bf16.msra.mxu0 %v5316
      %5348 = vmatpush.bf16.msra.mxu0 %v5315
      %5349 = vmatpush.bf16.msra.mxu0 %v5314
      %5350 = vmatpush.bf16.msra.mxu0 %v5313
      %5351 = vmatpush.bf16.msra.mxu0 %v5312
      %5352 = vmatmul.bf16.gmra.mxu0 %v5207
      %v5353 = vpop.f32.mrf.mxu0
      %v5354 = vadd.f32 0.0, %v5353
      %v5355 = vpop.f32.mrf.mxu0
      %v5356 = vadd.f32 0.0, %v5355
      %5357 = vmatmul.bf16.gmra.mxu0 %v5209
      %v5358 = vpop.f32.mrf.mxu0
      %v5359 = vadd.f32 0.0, %v5358
      %v5360 = vpop.f32.mrf.mxu0
      %v5361 = vadd.f32 0.0, %v5360
      %5362 = vmatmul.bf16.gmra.mxu0 %v5211
      %v5363 = vpop.f32.mrf.mxu0
      %v5364 = vadd.f32 0.0, %v5363
      %v5365 = vpop.f32.mrf.mxu0
      %v5366 = vadd.f32 0.0, %v5365
      %5367 = vmatmul.bf16.gmra.mxu0 %v5213
      %v5368 = vpop.f32.mrf.mxu0
      %v5369 = vadd.f32 0.0, %v5368
      %v5370 = vpop.f32.mrf.mxu0
      %v5371 = vadd.f32 0.0, %v5370
      %5372 = vdwg.mxu0
      %5373 = vmatpush.bf16.msra.mxu0 %v5327
      %5374 = vmatpush.bf16.msra.mxu0 %v5326
      %5375 = vmatpush.bf16.msra.mxu0 %v5325
      %5376 = vmatpush.bf16.msra.mxu0 %v5324
      %5377 = vmatpush.bf16.msra.mxu0 %v5323
      %5378 = vmatpush.bf16.msra.mxu0 %v5322
      %5379 = vmatpush.bf16.msra.mxu0 %v5321
      %5380 = vmatpush.bf16.msra.mxu0 %v5320
      %5381 = vmatmul.bf16.gmra.mxu0 %v5208
      %v5382 = vpop.f32.mrf.mxu0
      %v5383 = vadd.f32 %v5354, %v5382
      %v5384 = vpop.f32.mrf.mxu0
      %v5385 = vadd.f32 %v5356, %v5384
      %5386 = vmatmul.bf16.gmra.mxu0 %v5210
      %v5387 = vpop.f32.mrf.mxu0
      %v5388 = vadd.f32 %v5359, %v5387
      %v5389 = vpop.f32.mrf.mxu0
      %v5390 = vadd.f32 %v5361, %v5389
      %5391 = vmatmul.bf16.gmra.mxu0 %v5212
      %v5392 = vpop.f32.mrf.mxu0
      %v5393 = vadd.f32 %v5364, %v5392
      %v5394 = vpop.f32.mrf.mxu0
      %v5395 = vadd.f32 %v5366, %v5394
      %5396 = vmatmul.bf16.gmra.mxu0 %v5214
      %v5397 = vpop.f32.mrf.mxu0
      %v5398 = vadd.f32 %v5369, %v5397
      %v5399 = vpop.f32.mrf.mxu0
      %v5400 = vadd.f32 %v5371, %v5399
      %5401 = vdwg.mxu0
      %v5402 = vadd.f32 %v4907, %v5383
      %v5403 = vadd.f32 %v4908, %v5385
      %v5404 = vadd.f32 %v4909, %v5388
      %v5405 = vadd.f32 %v4910, %v5390
      %v5406 = vadd.f32 %v4911, %v5393
      %v5407 = vadd.f32 %v4912, %v5395
      %v5408 = vadd.f32 %v4913, %v5398
      %v5409 = vadd.f32 %v4914, %v5400
      %5410 = vset.pattern.permute.xlu0 14
      %5411 = vperm.xlu0 %5410, %v1918
      %v5412 = vpop.permute.xlu0 %5411
      %5414 = vset.pattern.permute.xlu0 14
      %5415 = vperm.xlu0 %5414, %v1919
      %v5416 = vpop.permute.xlu0 %5415
      %5418 = vset.pattern.permute.xlu0 14
      %5419 = vperm.xlu0 %5418, %v1920
      %v5420 = vpop.permute.xlu0 %5419
      %5422 = vset.pattern.permute.xlu0 14
      %5423 = vperm.xlu0 %5422, %v1921
      %v5424 = vpop.permute.xlu0 %5423
      %5426 = vset.pattern.permute.xlu0 14
      %5427 = vperm.xlu0 %5426, %v1922
      %v5428 = vpop.permute.xlu0 %5427
      %5430 = vset.pattern.permute.xlu0 14
      %5431 = vperm.xlu0 %5430, %v1923
      %v5432 = vpop.permute.xlu0 %5431
      %5434 = vset.pattern.permute.xlu0 14
      %5435 = vperm.xlu0 %5434, %v1924
      %v5436 = vpop.permute.xlu0 %5435
      %5438 = vset.pattern.permute.xlu0 14
      %5439 = vperm.xlu0 %5438, %v1925
      %v5440 = vpop.permute.xlu0 %5439
      %v5442 = vsub.f32 %v1932, %v5412
      %v5443 = vsub.f32 %v1932, %v5416
      %v5444 = vsub.f32 %v1932, %v5420
      %v5445 = vsub.f32 %v1932, %v5424
      %v5446 = vsub.f32 %v1932, %v5428
      %v5447 = vsub.f32 %v1932, %v5432
      %v5448 = vsub.f32 %v1932, %v5436
      %v5449 = vsub.f32 %v1932, %v5440
      %v5450 = vand.u32 2147483647, %v5442
      %v5451 = vand.u32 2147483647, %v5443
      %v5452 = vand.u32 2147483647, %v5444
      %v5453 = vand.u32 2147483647, %v5445
      %v5454 = vand.u32 2147483647, %v5446
      %v5455 = vand.u32 2147483647, %v5447
      %v5456 = vand.u32 2147483647, %v5448
      %v5457 = vand.u32 2147483647, %v5449
      %v5458 = vsub.f32 1.0, %v5450
      %v5459 = vsub.f32 1.0, %v5451
      %v5460 = vsub.f32 1.0, %v5452
      %v5461 = vsub.f32 1.0, %v5453
      %v5462 = vsub.f32 1.0, %v5454
      %v5463 = vsub.f32 1.0, %v5455
      %v5464 = vsub.f32 1.0, %v5456
      %v5465 = vsub.f32 1.0, %v5457
      %v5466 = vmax.f32 %v5458, 0.0
      %v5467 = vmax.f32 %v5459, 0.0
      %v5468 = vmax.f32 %v5460, 0.0
      %v5469 = vmax.f32 %v5461, 0.0
      %v5470 = vmax.f32 %v5462, 0.0
      %v5471 = vmax.f32 %v5463, 0.0
      %v5472 = vmax.f32 %v5464, 0.0
      %v5473 = vmax.f32 %v5465, 0.0
      %v5474 = vpack.c.bf16 %v5467, %v5466
      %v5475 = vpack.c.bf16 %v5469, %v5468
      %v5476 = vpack.c.bf16 %v5471, %v5470
      %v5477 = vpack.c.bf16 %v5473, %v5472
      %5478 = vset.pattern.permute.xlu0 15
      %5479 = vperm.xlu0 %5478, %v1918
      %v5480 = vpop.permute.xlu0 %5479
      %5482 = vset.pattern.permute.xlu0 15
      %5483 = vperm.xlu0 %5482, %v1919
      %v5484 = vpop.permute.xlu0 %5483
      %5486 = vset.pattern.permute.xlu0 15
      %5487 = vperm.xlu0 %5486, %v1920
      %v5488 = vpop.permute.xlu0 %5487
      %5490 = vset.pattern.permute.xlu0 15
      %5491 = vperm.xlu0 %5490, %v1921
      %v5492 = vpop.permute.xlu0 %5491
      %5494 = vset.pattern.permute.xlu0 15
      %5495 = vperm.xlu0 %5494, %v1922
      %v5496 = vpop.permute.xlu0 %5495
      %5498 = vset.pattern.permute.xlu0 15
      %5499 = vperm.xlu0 %5498, %v1923
      %v5500 = vpop.permute.xlu0 %5499
      %5502 = vset.pattern.permute.xlu0 15
      %5503 = vperm.xlu0 %5502, %v1924
      %v5504 = vpop.permute.xlu0 %5503
      %5506 = vset.pattern.permute.xlu0 15
      %5507 = vperm.xlu0 %5506, %v1925
      %v5508 = vpop.permute.xlu0 %5507
      %v5510 = vsub.f32 %v1932, %v5480
      %v5511 = vsub.f32 %v1932, %v5484
      %v5512 = vsub.f32 %v1932, %v5488
      %v5513 = vsub.f32 %v1932, %v5492
      %v5514 = vsub.f32 %v1932, %v5496
      %v5515 = vsub.f32 %v1932, %v5500
      %v5516 = vsub.f32 %v1932, %v5504
      %v5517 = vsub.f32 %v1932, %v5508
      %v5518 = vand.u32 2147483647, %v5510
      %v5519 = vand.u32 2147483647, %v5511
      %v5520 = vand.u32 2147483647, %v5512
      %v5521 = vand.u32 2147483647, %v5513
      %v5522 = vand.u32 2147483647, %v5514
      %v5523 = vand.u32 2147483647, %v5515
      %v5524 = vand.u32 2147483647, %v5516
      %v5525 = vand.u32 2147483647, %v5517
      %v5526 = vsub.f32 1.0, %v5518
      %v5527 = vsub.f32 1.0, %v5519
      %v5528 = vsub.f32 1.0, %v5520
      %v5529 = vsub.f32 1.0, %v5521
      %v5530 = vsub.f32 1.0, %v5522
      %v5531 = vsub.f32 1.0, %v5523
      %v5532 = vsub.f32 1.0, %v5524
      %v5533 = vsub.f32 1.0, %v5525
      %v5534 = vmax.f32 %v5526, 0.0
      %v5535 = vmax.f32 %v5527, 0.0
      %v5536 = vmax.f32 %v5528, 0.0
      %v5537 = vmax.f32 %v5529, 0.0
      %v5538 = vmax.f32 %v5530, 0.0
      %v5539 = vmax.f32 %v5531, 0.0
      %v5540 = vmax.f32 %v5532, 0.0
      %v5541 = vmax.f32 %v5533, 0.0
      %v5542 = vpack.c.bf16 %v5535, %v5534
      %v5543 = vpack.c.bf16 %v5537, %v5536
      %v5544 = vpack.c.bf16 %v5539, %v5538
      %v5545 = vpack.c.bf16 %v5541, %v5540
      %v5547 = vsel %vm2087, %v5474, 0
      %v5550 = vsel %vm2087, %v5475, 0
      %v5553 = vsel %vm2087, %v5476, 0
      %v5556 = vsel %vm2087, %v5477, 0
      %5558 = vmatpush.bf16.msra.mxu0 0
      %5559 = vmatpush.bf16.msra.mxu0 0
      %5560 = vmatpush.bf16.msra.mxu0 0
      %5561 = vmatpush.bf16.msra.mxu0 0
      %5562 = vmatpush.bf16.msra.mxu0 0
      %5563 = vmatpush.bf16.msra.mxu0 0
      %5564 = vmatpush.bf16.msra.mxu0 0
      %5565 = vmatpush.bf16.msra.mxu0 %v2083
      %5566 = vmatmul.bf16.gmra.mxu0 %v5547
      %v5567 = vpop.f32.mrf.mxu0
      %v5568 = vadd.f32 0.0, %v5567
      %v5569 = vpop.f32.mrf.mxu0
      %v5570 = vadd.f32 0.0, %v5569
      %5571 = vmatmul.bf16.gmra.mxu0 %v5550
      %v5572 = vpop.f32.mrf.mxu0
      %v5573 = vadd.f32 0.0, %v5572
      %v5574 = vpop.f32.mrf.mxu0
      %v5575 = vadd.f32 0.0, %v5574
      %5576 = vmatmul.bf16.gmra.mxu0 %v5553
      %v5577 = vpop.f32.mrf.mxu0
      %v5578 = vadd.f32 0.0, %v5577
      %v5579 = vpop.f32.mrf.mxu0
      %v5580 = vadd.f32 0.0, %v5579
      %5581 = vmatmul.bf16.gmra.mxu0 %v5556
      %v5582 = vpop.f32.mrf.mxu0
      %v5583 = vadd.f32 0.0, %v5582
      %v5584 = vpop.f32.mrf.mxu0
      %v5585 = vadd.f32 0.0, %v5584
      %5586 = vdwg.mxu0
      %5587 = vmatpush.bf16.msra.mxu0 0
      %5588 = vmatpush.bf16.msra.mxu0 0
      %5589 = vmatpush.bf16.msra.mxu0 0
      %5590 = vmatpush.bf16.msra.mxu0 0
      %5591 = vmatpush.bf16.msra.mxu0 0
      %5592 = vmatpush.bf16.msra.mxu0 0
      %5593 = vmatpush.bf16.msra.mxu0 0
      %5594 = vmatpush.bf16.msra.mxu0 %v2084
      %5595 = vmatmul.bf16.gmra.mxu0 %v5547
      %v5596 = vpop.f32.mrf.mxu0
      %v5597 = vadd.f32 0.0, %v5596
      %v5598 = vpop.f32.mrf.mxu0
      %v5599 = vadd.f32 0.0, %v5598
      %5600 = vmatmul.bf16.gmra.mxu0 %v5550
      %v5601 = vpop.f32.mrf.mxu0
      %v5602 = vadd.f32 0.0, %v5601
      %v5603 = vpop.f32.mrf.mxu0
      %v5604 = vadd.f32 0.0, %v5603
      %5605 = vmatmul.bf16.gmra.mxu0 %v5553
      %v5606 = vpop.f32.mrf.mxu0
      %v5607 = vadd.f32 0.0, %v5606
      %v5608 = vpop.f32.mrf.mxu0
      %v5609 = vadd.f32 0.0, %v5608
      %5610 = vmatmul.bf16.gmra.mxu0 %v5556
      %v5611 = vpop.f32.mrf.mxu0
      %v5612 = vadd.f32 0.0, %v5611
      %v5613 = vpop.f32.mrf.mxu0
      %v5614 = vadd.f32 0.0, %v5613
      %5615 = vdwg.mxu0
      %v5617 = vsel %vm2087, %v5542, 0
      %v5620 = vsel %vm2087, %v5543, 0
      %v5623 = vsel %vm2087, %v5544, 0
      %v5626 = vsel %vm2087, %v5545, 0
      %5628 = vmatpush.bf16.msra.mxu0 0
      %5629 = vmatpush.bf16.msra.mxu0 0
      %5630 = vmatpush.bf16.msra.mxu0 0
      %5631 = vmatpush.bf16.msra.mxu0 0
      %5632 = vmatpush.bf16.msra.mxu0 0
      %5633 = vmatpush.bf16.msra.mxu0 0
      %5634 = vmatpush.bf16.msra.mxu0 0
      %5635 = vmatpush.bf16.msra.mxu0 %v2164
      %5636 = vmatmul.bf16.gmra.mxu0 %v5617
      %v5637 = vpop.f32.mrf.mxu0
      %v5638 = vadd.f32 0.0, %v5637
      %v5639 = vpop.f32.mrf.mxu0
      %v5640 = vadd.f32 0.0, %v5639
      %5641 = vmatmul.bf16.gmra.mxu0 %v5620
      %v5642 = vpop.f32.mrf.mxu0
      %v5643 = vadd.f32 0.0, %v5642
      %v5644 = vpop.f32.mrf.mxu0
      %v5645 = vadd.f32 0.0, %v5644
      %5646 = vmatmul.bf16.gmra.mxu0 %v5623
      %v5647 = vpop.f32.mrf.mxu0
      %v5648 = vadd.f32 0.0, %v5647
      %v5649 = vpop.f32.mrf.mxu0
      %v5650 = vadd.f32 0.0, %v5649
      %5651 = vmatmul.bf16.gmra.mxu0 %v5626
      %v5652 = vpop.f32.mrf.mxu0
      %v5653 = vadd.f32 0.0, %v5652
      %v5654 = vpop.f32.mrf.mxu0
      %v5655 = vadd.f32 0.0, %v5654
      %5656 = vdwg.mxu0
      %5657 = vmatpush.bf16.msra.mxu0 0
      %5658 = vmatpush.bf16.msra.mxu0 0
      %5659 = vmatpush.bf16.msra.mxu0 0
      %5660 = vmatpush.bf16.msra.mxu0 0
      %5661 = vmatpush.bf16.msra.mxu0 0
      %5662 = vmatpush.bf16.msra.mxu0 0
      %5663 = vmatpush.bf16.msra.mxu0 0
      %5664 = vmatpush.bf16.msra.mxu0 %v2165
      %5665 = vmatmul.bf16.gmra.mxu0 %v5617
      %v5666 = vpop.f32.mrf.mxu0
      %v5667 = vadd.f32 0.0, %v5666
      %v5668 = vpop.f32.mrf.mxu0
      %v5669 = vadd.f32 0.0, %v5668
      %5670 = vmatmul.bf16.gmra.mxu0 %v5620
      %v5671 = vpop.f32.mrf.mxu0
      %v5672 = vadd.f32 0.0, %v5671
      %v5673 = vpop.f32.mrf.mxu0
      %v5674 = vadd.f32 0.0, %v5673
      %5675 = vmatmul.bf16.gmra.mxu0 %v5623
      %v5676 = vpop.f32.mrf.mxu0
      %v5677 = vadd.f32 0.0, %v5676
      %v5678 = vpop.f32.mrf.mxu0
      %v5679 = vadd.f32 0.0, %v5678
      %5680 = vmatmul.bf16.gmra.mxu0 %v5626
      %v5681 = vpop.f32.mrf.mxu0
      %v5682 = vadd.f32 0.0, %v5681
      %v5683 = vpop.f32.mrf.mxu0
      %v5684 = vadd.f32 0.0, %v5683
      %5685 = vdwg.mxu0
      %v5686 = vmul.f32 %v5568, %v5638
      %v5687 = vmul.f32 %v5597, %v5667
      %v5688 = vmul.f32 %v5570, %v5640
      %v5689 = vmul.f32 %v5599, %v5669
      %v5690 = vmul.f32 %v5573, %v5643
      %v5691 = vmul.f32 %v5602, %v5672
      %v5692 = vmul.f32 %v5575, %v5645
      %v5693 = vmul.f32 %v5604, %v5674
      %v5694 = vmul.f32 %v5578, %v5648
      %v5695 = vmul.f32 %v5607, %v5677
      %v5696 = vmul.f32 %v5580, %v5650
      %v5697 = vmul.f32 %v5609, %v5679
      %v5698 = vmul.f32 %v5583, %v5653
      %v5699 = vmul.f32 %v5612, %v5682
      %v5700 = vmul.f32 %v5585, %v5655
      %v5701 = vmul.f32 %v5614, %v5684
      %v5702 = vpack.c.bf16 %v5688, %v5686
      %v5703 = vpack.c.bf16 %v5689, %v5687
      %v5704 = vpack.c.bf16 %v5692, %v5690
      %v5705 = vpack.c.bf16 %v5693, %v5691
      %v5706 = vpack.c.bf16 %v5696, %v5694
      %v5707 = vpack.c.bf16 %v5697, %v5695
      %v5708 = vpack.c.bf16 %v5700, %v5698
      %v5709 = vpack.c.bf16 %v5701, %v5699
      %s5710 = scalar_lea.vmem [#allocation2], 896
      %v5711 = vld [vmem:[%s5710] sm:$0xf]
      %v5712 = vld [vmem:[%s5710 + $0x4] sm:$0xf]
      %v5713 = vld [vmem:[%s5710 + $0x8] sm:$0xf]
      %v5714 = vld [vmem:[%s5710 + $0xc] sm:$0xf]
      %v5715 = vld [vmem:[%s5710 + $0x10] sm:$0xf]
      %v5716 = vld [vmem:[%s5710 + $0x14] sm:$0xf]
      %v5717 = vld [vmem:[%s5710 + $0x18] sm:$0xf]
      %v5718 = vld [vmem:[%s5710 + $0x1c] sm:$0xf]
      %v5719 = vld [vmem:[%s5710 + $0x20] sm:$0xf]
      %v5720 = vld [vmem:[%s5710 + $0x24] sm:$0xf]
      %v5721 = vld [vmem:[%s5710 + $0x28] sm:$0xf]
      %v5722 = vld [vmem:[%s5710 + $0x2c] sm:$0xf]
      %v5723 = vld [vmem:[%s5710 + $0x30] sm:$0xf]
      %v5724 = vld [vmem:[%s5710 + $0x34] sm:$0xf]
      %v5725 = vld [vmem:[%s5710 + $0x38] sm:$0xf]
      %v5726 = vld [vmem:[%s5710 + $0x3c] sm:$0xf]
      %v5727 = vld [vmem:[%s5710 + $0x40] sm:$0xf]
      %v5728 = vld [vmem:[%s5710 + $0x44] sm:$0xf]
      %v5729 = vld [vmem:[%s5710 + $0x48] sm:$0xf]
      %v5730 = vld [vmem:[%s5710 + $0x4c] sm:$0xf]
      %v5731 = vld [vmem:[%s5710 + $0x50] sm:$0xf]
      %v5732 = vld [vmem:[%s5710 + $0x54] sm:$0xf]
      %v5733 = vld [vmem:[%s5710 + $0x58] sm:$0xf]
      %v5734 = vld [vmem:[%s5710 + $0x5c] sm:$0xf]
      %v5735 = vld [vmem:[%s5710 + $0x60] sm:$0xf]
      %v5736 = vld [vmem:[%s5710 + $0x64] sm:$0xf]
      %v5737 = vld [vmem:[%s5710 + $0x68] sm:$0xf]
      %v5738 = vld [vmem:[%s5710 + $0x6c] sm:$0xf]
      %v5739 = vld [vmem:[%s5710 + $0x70] sm:$0xf]
      %v5740 = vld [vmem:[%s5710 + $0x74] sm:$0xf]
      %v5741 = vld [vmem:[%s5710 + $0x78] sm:$0xf]
      %v5742 = vld [vmem:[%s5710 + $0x7c] sm:$0xf]
      %v5775 = vunpack.c.l.b16 %v5711
      %v5776 = vunpack.c.l.b16 %v5712
      %v5777 = vunpack.c.l.b16 %v5713
      %v5778 = vunpack.c.l.b16 %v5714
      %v5779 = vunpack.c.l.b16 %v5715
      %v5780 = vunpack.c.l.b16 %v5716
      %v5781 = vunpack.c.l.b16 %v5717
      %v5782 = vunpack.c.l.b16 %v5718
      %v5783 = vunpack.c.l.b16 %v5719
      %v5784 = vunpack.c.l.b16 %v5720
      %v5785 = vunpack.c.l.b16 %v5721
      %v5786 = vunpack.c.l.b16 %v5722
      %v5787 = vunpack.c.l.b16 %v5723
      %v5788 = vunpack.c.l.b16 %v5724
      %v5789 = vunpack.c.l.b16 %v5725
      %v5790 = vunpack.c.l.b16 %v5726
      %v5791 = vunpack.c.l.b16 %v5727
      %v5792 = vunpack.c.l.b16 %v5728
      %v5793 = vunpack.c.l.b16 %v5729
      %v5794 = vunpack.c.l.b16 %v5730
      %v5795 = vunpack.c.l.b16 %v5731
      %v5796 = vunpack.c.l.b16 %v5732
      %v5797 = vunpack.c.l.b16 %v5733
      %v5798 = vunpack.c.l.b16 %v5734
      %v5799 = vunpack.c.l.b16 %v5735
      %v5800 = vunpack.c.l.b16 %v5736
      %v5801 = vunpack.c.l.b16 %v5737
      %v5802 = vunpack.c.l.b16 %v5738
      %v5803 = vunpack.c.l.b16 %v5739
      %v5804 = vunpack.c.l.b16 %v5740
      %v5805 = vunpack.c.l.b16 %v5741
      %v5806 = vunpack.c.l.b16 %v5742
      %v5807 = vpack.c.b16 %v5776, %v5775
      %v5808 = vpack.c.b16 %v5778, %v5777
      %v5809 = vpack.c.b16 %v5780, %v5779
      %v5810 = vpack.c.b16 %v5782, %v5781
      %v5811 = vpack.c.b16 %v5784, %v5783
      %v5812 = vpack.c.b16 %v5786, %v5785
      %v5813 = vpack.c.b16 %v5788, %v5787
      %v5814 = vpack.c.b16 %v5790, %v5789
      %v5815 = vpack.c.b16 %v5792, %v5791
      %v5816 = vpack.c.b16 %v5794, %v5793
      %v5817 = vpack.c.b16 %v5796, %v5795
      %v5818 = vpack.c.b16 %v5798, %v5797
      %v5819 = vpack.c.b16 %v5800, %v5799
      %v5820 = vpack.c.b16 %v5802, %v5801
      %v5821 = vpack.c.b16 %v5804, %v5803
      %v5822 = vpack.c.b16 %v5806, %v5805
      %5839 = vmatpush.bf16.msra.mxu0 %v5814
      %5840 = vmatpush.bf16.msra.mxu0 %v5813
      %5841 = vmatpush.bf16.msra.mxu0 %v5812
      %5842 = vmatpush.bf16.msra.mxu0 %v5811
      %5843 = vmatpush.bf16.msra.mxu0 %v5810
      %5844 = vmatpush.bf16.msra.mxu0 %v5809
      %5845 = vmatpush.bf16.msra.mxu0 %v5808
      %5846 = vmatpush.bf16.msra.mxu0 %v5807
      %5847 = vmatmul.bf16.gmra.mxu0 %v5702
      %v5848 = vpop.f32.mrf.mxu0
      %v5849 = vadd.f32 0.0, %v5848
      %v5850 = vpop.f32.mrf.mxu0
      %v5851 = vadd.f32 0.0, %v5850
      %5852 = vmatmul.bf16.gmra.mxu0 %v5704
      %v5853 = vpop.f32.mrf.mxu0
      %v5854 = vadd.f32 0.0, %v5853
      %v5855 = vpop.f32.mrf.mxu0
      %v5856 = vadd.f32 0.0, %v5855
      %5857 = vmatmul.bf16.gmra.mxu0 %v5706
      %v5858 = vpop.f32.mrf.mxu0
      %v5859 = vadd.f32 0.0, %v5858
      %v5860 = vpop.f32.mrf.mxu0
      %v5861 = vadd.f32 0.0, %v5860
      %5862 = vmatmul.bf16.gmra.mxu0 %v5708
      %v5863 = vpop.f32.mrf.mxu0
      %v5864 = vadd.f32 0.0, %v5863
      %v5865 = vpop.f32.mrf.mxu0
      %v5866 = vadd.f32 0.0, %v5865
      %5867 = vdwg.mxu0
      %5868 = vmatpush.bf16.msra.mxu0 %v5822
      %5869 = vmatpush.bf16.msra.mxu0 %v5821
      %5870 = vmatpush.bf16.msra.mxu0 %v5820
      %5871 = vmatpush.bf16.msra.mxu0 %v5819
      %5872 = vmatpush.bf16.msra.mxu0 %v5818
      %5873 = vmatpush.bf16.msra.mxu0 %v5817
      %5874 = vmatpush.bf16.msra.mxu0 %v5816
      %5875 = vmatpush.bf16.msra.mxu0 %v5815
      %5876 = vmatmul.bf16.gmra.mxu0 %v5703
      %v5877 = vpop.f32.mrf.mxu0
      %v5878 = vadd.f32 %v5849, %v5877
      %v5879 = vpop.f32.mrf.mxu0
      %v5880 = vadd.f32 %v5851, %v5879
      %5881 = vmatmul.bf16.gmra.mxu0 %v5705
      %v5882 = vpop.f32.mrf.mxu0
      %v5883 = vadd.f32 %v5854, %v5882
      %v5884 = vpop.f32.mrf.mxu0
      %v5885 = vadd.f32 %v5856, %v5884
      %5886 = vmatmul.bf16.gmra.mxu0 %v5707
      %v5887 = vpop.f32.mrf.mxu0
      %v5888 = vadd.f32 %v5859, %v5887
      %v5889 = vpop.f32.mrf.mxu0
      %v5890 = vadd.f32 %v5861, %v5889
      %5891 = vmatmul.bf16.gmra.mxu0 %v5709
      %v5892 = vpop.f32.mrf.mxu0
      %v5893 = vadd.f32 %v5864, %v5892
      %v5894 = vpop.f32.mrf.mxu0
      %v5895 = vadd.f32 %v5866, %v5894
      %5896 = vdwg.mxu0
      %v5897 = vadd.f32 %v5402, %v5878
      %v5898 = vadd.f32 %v5403, %v5880
      %v5899 = vadd.f32 %v5404, %v5883
      %v5900 = vadd.f32 %v5405, %v5885
      %v5901 = vadd.f32 %v5406, %v5888
      %v5902 = vadd.f32 %v5407, %v5890
      %v5903 = vadd.f32 %v5408, %v5893
      %v5904 = vadd.f32 %v5409, %v5895
      %5905 = vset.pattern.permute.xlu0 16
      %5906 = vperm.xlu0 %5905, %v1918
      %v5907 = vpop.permute.xlu0 %5906
      %5909 = vset.pattern.permute.xlu0 16
      %5910 = vperm.xlu0 %5909, %v1919
      %v5911 = vpop.permute.xlu0 %5910
      %5913 = vset.pattern.permute.xlu0 16
      %5914 = vperm.xlu0 %5913, %v1920
      %v5915 = vpop.permute.xlu0 %5914
      %5917 = vset.pattern.permute.xlu0 16
      %5918 = vperm.xlu0 %5917, %v1921
      %v5919 = vpop.permute.xlu0 %5918
      %5921 = vset.pattern.permute.xlu0 16
      %5922 = vperm.xlu0 %5921, %v1922
      %v5923 = vpop.permute.xlu0 %5922
      %5925 = vset.pattern.permute.xlu0 16
      %5926 = vperm.xlu0 %5925, %v1923
      %v5927 = vpop.permute.xlu0 %5926
      %5929 = vset.pattern.permute.xlu0 16
      %5930 = vperm.xlu0 %5929, %v1924
      %v5931 = vpop.permute.xlu0 %5930
      %5933 = vset.pattern.permute.xlu0 16
      %5934 = vperm.xlu0 %5933, %v1925
      %v5935 = vpop.permute.xlu0 %5934
      %v5937 = vsub.f32 %v1932, %v5907
      %v5938 = vsub.f32 %v1932, %v5911
      %v5939 = vsub.f32 %v1932, %v5915
      %v5940 = vsub.f32 %v1932, %v5919
      %v5941 = vsub.f32 %v1932, %v5923
      %v5942 = vsub.f32 %v1932, %v5927
      %v5943 = vsub.f32 %v1932, %v5931
      %v5944 = vsub.f32 %v1932, %v5935
      %v5945 = vand.u32 2147483647, %v5937
      %v5946 = vand.u32 2147483647, %v5938
      %v5947 = vand.u32 2147483647, %v5939
      %v5948 = vand.u32 2147483647, %v5940
      %v5949 = vand.u32 2147483647, %v5941
      %v5950 = vand.u32 2147483647, %v5942
      %v5951 = vand.u32 2147483647, %v5943
      %v5952 = vand.u32 2147483647, %v5944
      %v5953 = vsub.f32 1.0, %v5945
      %v5954 = vsub.f32 1.0, %v5946
      %v5955 = vsub.f32 1.0, %v5947
      %v5956 = vsub.f32 1.0, %v5948
      %v5957 = vsub.f32 1.0, %v5949
      %v5958 = vsub.f32 1.0, %v5950
      %v5959 = vsub.f32 1.0, %v5951
      %v5960 = vsub.f32 1.0, %v5952
      %v5961 = vmax.f32 %v5953, 0.0
      %v5962 = vmax.f32 %v5954, 0.0
      %v5963 = vmax.f32 %v5955, 0.0
      %v5964 = vmax.f32 %v5956, 0.0
      %v5965 = vmax.f32 %v5957, 0.0
      %v5966 = vmax.f32 %v5958, 0.0
      %v5967 = vmax.f32 %v5959, 0.0
      %v5968 = vmax.f32 %v5960, 0.0
      %v5969 = vpack.c.bf16 %v5962, %v5961
      %v5970 = vpack.c.bf16 %v5964, %v5963
      %v5971 = vpack.c.bf16 %v5966, %v5965
      %v5972 = vpack.c.bf16 %v5968, %v5967
      %5973 = vset.pattern.permute.xlu0 17
      %5974 = vperm.xlu0 %5973, %v1918
      %v5975 = vpop.permute.xlu0 %5974
      %5977 = vset.pattern.permute.xlu0 17
      %5978 = vperm.xlu0 %5977, %v1919
      %v5979 = vpop.permute.xlu0 %5978
      %5981 = vset.pattern.permute.xlu0 17
      %5982 = vperm.xlu0 %5981, %v1920
      %v5983 = vpop.permute.xlu0 %5982
      %5985 = vset.pattern.permute.xlu0 17
      %5986 = vperm.xlu0 %5985, %v1921
      %v5987 = vpop.permute.xlu0 %5986
      %5989 = vset.pattern.permute.xlu0 17
      %5990 = vperm.xlu0 %5989, %v1922
      %v5991 = vpop.permute.xlu0 %5990
      %5993 = vset.pattern.permute.xlu0 17
      %5994 = vperm.xlu0 %5993, %v1923
      %v5995 = vpop.permute.xlu0 %5994
      %5997 = vset.pattern.permute.xlu0 17
      %5998 = vperm.xlu0 %5997, %v1924
      %v5999 = vpop.permute.xlu0 %5998
      %6001 = vset.pattern.permute.xlu0 17
      %6002 = vperm.xlu0 %6001, %v1925
      %v6003 = vpop.permute.xlu0 %6002
      %v6005 = vsub.f32 %v1932, %v5975
      %v6006 = vsub.f32 %v1932, %v5979
      %v6007 = vsub.f32 %v1932, %v5983
      %v6008 = vsub.f32 %v1932, %v5987
      %v6009 = vsub.f32 %v1932, %v5991
      %v6010 = vsub.f32 %v1932, %v5995
      %v6011 = vsub.f32 %v1932, %v5999
      %v6012 = vsub.f32 %v1932, %v6003
      %v6013 = vand.u32 2147483647, %v6005
      %v6014 = vand.u32 2147483647, %v6006
      %v6015 = vand.u32 2147483647, %v6007
      %v6016 = vand.u32 2147483647, %v6008
      %v6017 = vand.u32 2147483647, %v6009
      %v6018 = vand.u32 2147483647, %v6010
      %v6019 = vand.u32 2147483647, %v6011
      %v6020 = vand.u32 2147483647, %v6012
      %v6021 = vsub.f32 1.0, %v6013
      %v6022 = vsub.f32 1.0, %v6014
      %v6023 = vsub.f32 1.0, %v6015
      %v6024 = vsub.f32 1.0, %v6016
      %v6025 = vsub.f32 1.0, %v6017
      %v6026 = vsub.f32 1.0, %v6018
      %v6027 = vsub.f32 1.0, %v6019
      %v6028 = vsub.f32 1.0, %v6020
      %v6029 = vmax.f32 %v6021, 0.0
      %v6030 = vmax.f32 %v6022, 0.0
      %v6031 = vmax.f32 %v6023, 0.0
      %v6032 = vmax.f32 %v6024, 0.0
      %v6033 = vmax.f32 %v6025, 0.0
      %v6034 = vmax.f32 %v6026, 0.0
      %v6035 = vmax.f32 %v6027, 0.0
      %v6036 = vmax.f32 %v6028, 0.0
      %v6037 = vpack.c.bf16 %v6030, %v6029
      %v6038 = vpack.c.bf16 %v6032, %v6031
      %v6039 = vpack.c.bf16 %v6034, %v6033
      %v6040 = vpack.c.bf16 %v6036, %v6035
      %v6042 = vsel %vm2087, %v5969, 0
      %v6045 = vsel %vm2087, %v5970, 0
      %v6048 = vsel %vm2087, %v5971, 0
      %v6051 = vsel %vm2087, %v5972, 0
      %6053 = vmatpush.bf16.msra.mxu0 0
      %6054 = vmatpush.bf16.msra.mxu0 0
      %6055 = vmatpush.bf16.msra.mxu0 0
      %6056 = vmatpush.bf16.msra.mxu0 0
      %6057 = vmatpush.bf16.msra.mxu0 0
      %6058 = vmatpush.bf16.msra.mxu0 0
      %6059 = vmatpush.bf16.msra.mxu0 0
      %6060 = vmatpush.bf16.msra.mxu0 %v2083
      %6061 = vmatmul.bf16.gmra.mxu0 %v6042
      %v6062 = vpop.f32.mrf.mxu0
      %v6063 = vadd.f32 0.0, %v6062
      %v6064 = vpop.f32.mrf.mxu0
      %v6065 = vadd.f32 0.0, %v6064
      %6066 = vmatmul.bf16.gmra.mxu0 %v6045
      %v6067 = vpop.f32.mrf.mxu0
      %v6068 = vadd.f32 0.0, %v6067
      %v6069 = vpop.f32.mrf.mxu0
      %v6070 = vadd.f32 0.0, %v6069
      %6071 = vmatmul.bf16.gmra.mxu0 %v6048
      %v6072 = vpop.f32.mrf.mxu0
      %v6073 = vadd.f32 0.0, %v6072
      %v6074 = vpop.f32.mrf.mxu0
      %v6075 = vadd.f32 0.0, %v6074
      %6076 = vmatmul.bf16.gmra.mxu0 %v6051
      %v6077 = vpop.f32.mrf.mxu0
      %v6078 = vadd.f32 0.0, %v6077
      %v6079 = vpop.f32.mrf.mxu0
      %v6080 = vadd.f32 0.0, %v6079
      %6081 = vdwg.mxu0
      %6082 = vmatpush.bf16.msra.mxu0 0
      %6083 = vmatpush.bf16.msra.mxu0 0
      %6084 = vmatpush.bf16.msra.mxu0 0
      %6085 = vmatpush.bf16.msra.mxu0 0
      %6086 = vmatpush.bf16.msra.mxu0 0
      %6087 = vmatpush.bf16.msra.mxu0 0
      %6088 = vmatpush.bf16.msra.mxu0 0
      %6089 = vmatpush.bf16.msra.mxu0 %v2084
      %6090 = vmatmul.bf16.gmra.mxu0 %v6042
      %v6091 = vpop.f32.mrf.mxu0
      %v6092 = vadd.f32 0.0, %v6091
      %v6093 = vpop.f32.mrf.mxu0
      %v6094 = vadd.f32 0.0, %v6093
      %6095 = vmatmul.bf16.gmra.mxu0 %v6045
      %v6096 = vpop.f32.mrf.mxu0
      %v6097 = vadd.f32 0.0, %v6096
      %v6098 = vpop.f32.mrf.mxu0
      %v6099 = vadd.f32 0.0, %v6098
      %6100 = vmatmul.bf16.gmra.mxu0 %v6048
      %v6101 = vpop.f32.mrf.mxu0
      %v6102 = vadd.f32 0.0, %v6101
      %v6103 = vpop.f32.mrf.mxu0
      %v6104 = vadd.f32 0.0, %v6103
      %6105 = vmatmul.bf16.gmra.mxu0 %v6051
      %v6106 = vpop.f32.mrf.mxu0
      %v6107 = vadd.f32 0.0, %v6106
      %v6108 = vpop.f32.mrf.mxu0
      %v6109 = vadd.f32 0.0, %v6108
      %6110 = vdwg.mxu0
      %v6112 = vsel %vm2087, %v6037, 0
      %v6115 = vsel %vm2087, %v6038, 0
      %v6118 = vsel %vm2087, %v6039, 0
      %v6121 = vsel %vm2087, %v6040, 0
      %6123 = vmatpush.bf16.msra.mxu0 0
      %6124 = vmatpush.bf16.msra.mxu0 0
      %6125 = vmatpush.bf16.msra.mxu0 0
      %6126 = vmatpush.bf16.msra.mxu0 0
      %6127 = vmatpush.bf16.msra.mxu0 0
      %6128 = vmatpush.bf16.msra.mxu0 0
      %6129 = vmatpush.bf16.msra.mxu0 0
      %6130 = vmatpush.bf16.msra.mxu0 %v2164
      %6131 = vmatmul.bf16.gmra.mxu0 %v6112
      %v6132 = vpop.f32.mrf.mxu0
      %v6133 = vadd.f32 0.0, %v6132
      %v6134 = vpop.f32.mrf.mxu0
      %v6135 = vadd.f32 0.0, %v6134
      %6136 = vmatmul.bf16.gmra.mxu0 %v6115
      %v6137 = vpop.f32.mrf.mxu0
      %v6138 = vadd.f32 0.0, %v6137
      %v6139 = vpop.f32.mrf.mxu0
      %v6140 = vadd.f32 0.0, %v6139
      %6141 = vmatmul.bf16.gmra.mxu0 %v6118
      %v6142 = vpop.f32.mrf.mxu0
      %v6143 = vadd.f32 0.0, %v6142
      %v6144 = vpop.f32.mrf.mxu0
      %v6145 = vadd.f32 0.0, %v6144
      %6146 = vmatmul.bf16.gmra.mxu0 %v6121
      %v6147 = vpop.f32.mrf.mxu0
      %v6148 = vadd.f32 0.0, %v6147
      %v6149 = vpop.f32.mrf.mxu0
      %v6150 = vadd.f32 0.0, %v6149
      %6151 = vdwg.mxu0
      %6152 = vmatpush.bf16.msra.mxu0 0
      %6153 = vmatpush.bf16.msra.mxu0 0
      %6154 = vmatpush.bf16.msra.mxu0 0
      %6155 = vmatpush.bf16.msra.mxu0 0
      %6156 = vmatpush.bf16.msra.mxu0 0
      %6157 = vmatpush.bf16.msra.mxu0 0
      %6158 = vmatpush.bf16.msra.mxu0 0
      %6159 = vmatpush.bf16.msra.mxu0 %v2165
      %6160 = vmatmul.bf16.gmra.mxu0 %v6112
      %v6161 = vpop.f32.mrf.mxu0
      %v6162 = vadd.f32 0.0, %v6161
      %v6163 = vpop.f32.mrf.mxu0
      %v6164 = vadd.f32 0.0, %v6163
      %6165 = vmatmul.bf16.gmra.mxu0 %v6115
      %v6166 = vpop.f32.mrf.mxu0
      %v6167 = vadd.f32 0.0, %v6166
      %v6168 = vpop.f32.mrf.mxu0
      %v6169 = vadd.f32 0.0, %v6168
      %6170 = vmatmul.bf16.gmra.mxu0 %v6118
      %v6171 = vpop.f32.mrf.mxu0
      %v6172 = vadd.f32 0.0, %v6171
      %v6173 = vpop.f32.mrf.mxu0
      %v6174 = vadd.f32 0.0, %v6173
      %6175 = vmatmul.bf16.gmra.mxu0 %v6121
      %v6176 = vpop.f32.mrf.mxu0
      %v6177 = vadd.f32 0.0, %v6176
      %v6178 = vpop.f32.mrf.mxu0
      %v6179 = vadd.f32 0.0, %v6178
      %6180 = vdwg.mxu0
      %v6181 = vmul.f32 %v6063, %v6133
      %v6182 = vmul.f32 %v6092, %v6162
      %v6183 = vmul.f32 %v6065, %v6135
      %v6184 = vmul.f32 %v6094, %v6164
      %v6185 = vmul.f32 %v6068, %v6138
      %v6186 = vmul.f32 %v6097, %v6167
      %v6187 = vmul.f32 %v6070, %v6140
      %v6188 = vmul.f32 %v6099, %v6169
      %v6189 = vmul.f32 %v6073, %v6143
      %v6190 = vmul.f32 %v6102, %v6172
      %v6191 = vmul.f32 %v6075, %v6145
      %v6192 = vmul.f32 %v6104, %v6174
      %v6193 = vmul.f32 %v6078, %v6148
      %v6194 = vmul.f32 %v6107, %v6177
      %v6195 = vmul.f32 %v6080, %v6150
      %v6196 = vmul.f32 %v6109, %v6179
      %v6197 = vpack.c.bf16 %v6183, %v6181
      %v6198 = vpack.c.bf16 %v6184, %v6182
      %v6199 = vpack.c.bf16 %v6187, %v6185
      %v6200 = vpack.c.bf16 %v6188, %v6186
      %v6201 = vpack.c.bf16 %v6191, %v6189
      %v6202 = vpack.c.bf16 %v6192, %v6190
      %v6203 = vpack.c.bf16 %v6195, %v6193
      %v6204 = vpack.c.bf16 %v6196, %v6194
      %s6205 = scalar_lea.vmem [#allocation2], 1024
      %v6206 = vld [vmem:[%s6205] sm:$0xf]
      %v6207 = vld [vmem:[%s6205 + $0x4] sm:$0xf]
      %v6208 = vld [vmem:[%s6205 + $0x8] sm:$0xf]
      %v6209 = vld [vmem:[%s6205 + $0xc] sm:$0xf]
      %v6210 = vld [vmem:[%s6205 + $0x10] sm:$0xf]
      %v6211 = vld [vmem:[%s6205 + $0x14] sm:$0xf]
      %v6212 = vld [vmem:[%s6205 + $0x18] sm:$0xf]
      %v6213 = vld [vmem:[%s6205 + $0x1c] sm:$0xf]
      %v6214 = vld [vmem:[%s6205 + $0x20] sm:$0xf]
      %v6215 = vld [vmem:[%s6205 + $0x24] sm:$0xf]
      %v6216 = vld [vmem:[%s6205 + $0x28] sm:$0xf]
      %v6217 = vld [vmem:[%s6205 + $0x2c] sm:$0xf]
      %v6218 = vld [vmem:[%s6205 + $0x30] sm:$0xf]
      %v6219 = vld [vmem:[%s6205 + $0x34] sm:$0xf]
      %v6220 = vld [vmem:[%s6205 + $0x38] sm:$0xf]
      %v6221 = vld [vmem:[%s6205 + $0x3c] sm:$0xf]
      %v6222 = vld [vmem:[%s6205 + $0x40] sm:$0xf]
      %v6223 = vld [vmem:[%s6205 + $0x44] sm:$0xf]
      %v6224 = vld [vmem:[%s6205 + $0x48] sm:$0xf]
      %v6225 = vld [vmem:[%s6205 + $0x4c] sm:$0xf]
      %v6226 = vld [vmem:[%s6205 + $0x50] sm:$0xf]
      %v6227 = vld [vmem:[%s6205 + $0x54] sm:$0xf]
      %v6228 = vld [vmem:[%s6205 + $0x58] sm:$0xf]
      %v6229 = vld [vmem:[%s6205 + $0x5c] sm:$0xf]
      %v6230 = vld [vmem:[%s6205 + $0x60] sm:$0xf]
      %v6231 = vld [vmem:[%s6205 + $0x64] sm:$0xf]
      %v6232 = vld [vmem:[%s6205 + $0x68] sm:$0xf]
      %v6233 = vld [vmem:[%s6205 + $0x6c] sm:$0xf]
      %v6234 = vld [vmem:[%s6205 + $0x70] sm:$0xf]
      %v6235 = vld [vmem:[%s6205 + $0x74] sm:$0xf]
      %v6236 = vld [vmem:[%s6205 + $0x78] sm:$0xf]
      %v6237 = vld [vmem:[%s6205 + $0x7c] sm:$0xf]
      %v6270 = vunpack.c.l.b16 %v6206
      %v6271 = vunpack.c.l.b16 %v6207
      %v6272 = vunpack.c.l.b16 %v6208
      %v6273 = vunpack.c.l.b16 %v6209
      %v6274 = vunpack.c.l.b16 %v6210
      %v6275 = vunpack.c.l.b16 %v6211
      %v6276 = vunpack.c.l.b16 %v6212
      %v6277 = vunpack.c.l.b16 %v6213
      %v6278 = vunpack.c.l.b16 %v6214
      %v6279 = vunpack.c.l.b16 %v6215
      %v6280 = vunpack.c.l.b16 %v6216
      %v6281 = vunpack.c.l.b16 %v6217
      %v6282 = vunpack.c.l.b16 %v6218
      %v6283 = vunpack.c.l.b16 %v6219
      %v6284 = vunpack.c.l.b16 %v6220
      %v6285 = vunpack.c.l.b16 %v6221
      %v6286 = vunpack.c.l.b16 %v6222
      %v6287 = vunpack.c.l.b16 %v6223
      %v6288 = vunpack.c.l.b16 %v6224
      %v6289 = vunpack.c.l.b16 %v6225
      %v6290 = vunpack.c.l.b16 %v6226
      %v6291 = vunpack.c.l.b16 %v6227
      %v6292 = vunpack.c.l.b16 %v6228
      %v6293 = vunpack.c.l.b16 %v6229
      %v6294 = vunpack.c.l.b16 %v6230
      %v6295 = vunpack.c.l.b16 %v6231
      %v6296 = vunpack.c.l.b16 %v6232
      %v6297 = vunpack.c.l.b16 %v6233
      %v6298 = vunpack.c.l.b16 %v6234
      %v6299 = vunpack.c.l.b16 %v6235
      %v6300 = vunpack.c.l.b16 %v6236
      %v6301 = vunpack.c.l.b16 %v6237
      %v6302 = vpack.c.b16 %v6271, %v6270
      %v6303 = vpack.c.b16 %v6273, %v6272
      %v6304 = vpack.c.b16 %v6275, %v6274
      %v6305 = vpack.c.b16 %v6277, %v6276
      %v6306 = vpack.c.b16 %v6279, %v6278
      %v6307 = vpack.c.b16 %v6281, %v6280
      %v6308 = vpack.c.b16 %v6283, %v6282
      %v6309 = vpack.c.b16 %v6285, %v6284
      %v6310 = vpack.c.b16 %v6287, %v6286
      %v6311 = vpack.c.b16 %v6289, %v6288
      %v6312 = vpack.c.b16 %v6291, %v6290
      %v6313 = vpack.c.b16 %v6293, %v6292
      %v6314 = vpack.c.b16 %v6295, %v6294
      %v6315 = vpack.c.b16 %v6297, %v6296
      %v6316 = vpack.c.b16 %v6299, %v6298
      %v6317 = vpack.c.b16 %v6301, %v6300
      %6334 = vmatpush.bf16.msra.mxu0 %v6309
      %6335 = vmatpush.bf16.msra.mxu0 %v6308
      %6336 = vmatpush.bf16.msra.mxu0 %v6307
      %6337 = vmatpush.bf16.msra.mxu0 %v6306
      %6338 = vmatpush.bf16.msra.mxu0 %v6305
      %6339 = vmatpush.bf16.msra.mxu0 %v6304
      %6340 = vmatpush.bf16.msra.mxu0 %v6303
      %6341 = vmatpush.bf16.msra.mxu0 %v6302
      %6342 = vmatmul.bf16.gmra.mxu0 %v6197
      %v6343 = vpop.f32.mrf.mxu0
      %v6344 = vadd.f32 0.0, %v6343
      %v6345 = vpop.f32.mrf.mxu0
      %v6346 = vadd.f32 0.0, %v6345
      %6347 = vmatmul.bf16.gmra.mxu0 %v6199
      %v6348 = vpop.f32.mrf.mxu0
      %v6349 = vadd.f32 0.0, %v6348
      %v6350 = vpop.f32.mrf.mxu0
      %v6351 = vadd.f32 0.0, %v6350
      %6352 = vmatmul.bf16.gmra.mxu0 %v6201
      %v6353 = vpop.f32.mrf.mxu0
      %v6354 = vadd.f32 0.0, %v6353
      %v6355 = vpop.f32.mrf.mxu0
      %v6356 = vadd.f32 0.0, %v6355
      %6357 = vmatmul.bf16.gmra.mxu0 %v6203
      %v6358 = vpop.f32.mrf.mxu0
      %v6359 = vadd.f32 0.0, %v6358
      %v6360 = vpop.f32.mrf.mxu0
      %v6361 = vadd.f32 0.0, %v6360
      %6362 = vdwg.mxu0
      %6363 = vmatpush.bf16.msra.mxu0 %v6317
      %6364 = vmatpush.bf16.msra.mxu0 %v6316
      %6365 = vmatpush.bf16.msra.mxu0 %v6315
      %6366 = vmatpush.bf16.msra.mxu0 %v6314
      %6367 = vmatpush.bf16.msra.mxu0 %v6313
      %6368 = vmatpush.bf16.msra.mxu0 %v6312
      %6369 = vmatpush.bf16.msra.mxu0 %v6311
      %6370 = vmatpush.bf16.msra.mxu0 %v6310
      %6371 = vmatmul.bf16.gmra.mxu0 %v6198
      %v6372 = vpop.f32.mrf.mxu0
      %v6373 = vadd.f32 %v6344, %v6372
      %v6374 = vpop.f32.mrf.mxu0
      %v6375 = vadd.f32 %v6346, %v6374
      %6376 = vmatmul.bf16.gmra.mxu0 %v6200
      %v6377 = vpop.f32.mrf.mxu0
      %v6378 = vadd.f32 %v6349, %v6377
      %v6379 = vpop.f32.mrf.mxu0
      %v6380 = vadd.f32 %v6351, %v6379
      %6381 = vmatmul.bf16.gmra.mxu0 %v6202
      %v6382 = vpop.f32.mrf.mxu0
      %v6383 = vadd.f32 %v6354, %v6382
      %v6384 = vpop.f32.mrf.mxu0
      %v6385 = vadd.f32 %v6356, %v6384
      %6386 = vmatmul.bf16.gmra.mxu0 %v6204
      %v6387 = vpop.f32.mrf.mxu0
      %v6388 = vadd.f32 %v6359, %v6387
      %v6389 = vpop.f32.mrf.mxu0
      %v6390 = vadd.f32 %v6361, %v6389
      %6391 = vdwg.mxu0
      %v6392 = vadd.f32 %v5897, %v6373
      %v6393 = vadd.f32 %v5898, %v6375
      %v6394 = vadd.f32 %v5899, %v6378
      %v6395 = vadd.f32 %v5900, %v6380
      %v6396 = vadd.f32 %v5901, %v6383
      %v6397 = vadd.f32 %v5902, %v6385
      %v6398 = vadd.f32 %v5903, %v6388
      %v6399 = vadd.f32 %v5904, %v6390
      %v6400 = vpack.c.bf16 %v6392, %v6392
      %v6401 = vpack.c.bf16 %v6393, %v6393
      %v6402 = vpack.c.bf16 %v6394, %v6394
      %v6403 = vpack.c.bf16 %v6395, %v6395
      %v6404 = vpack.c.bf16 %v6396, %v6396
      %v6405 = vpack.c.bf16 %v6397, %v6397
      %v6406 = vpack.c.bf16 %v6398, %v6398
      %v6407 = vpack.c.bf16 %v6399, %v6399
      %6408 = vst [vmem:[%s316] sm:$0xf] %v6400
      %6409 = vst [vmem:[%s316 + $0x4] sm:$0xf] %v6401
      %6410 = vst [vmem:[%s316 + $0x8] sm:$0xf] %v6402
      %6411 = vst [vmem:[%s316 + $0xc] sm:$0xf] %v6403
      %6412 = vst [vmem:[%s316 + $0x10] sm:$0xf] %v6404
      %6413 = vst [vmem:[%s316 + $0x14] sm:$0xf] %v6405
      %6414 = vst [vmem:[%s316 + $0x18] sm:$0xf] %v6406
      %6415 = vst [vmem:[%s316 + $0x1c] sm:$0xf] %v6407
      %v6416 = vadd.f32 %v6392, %v6393
      %v6417 = vadd.f32 %v6416, %v6394
      %v6418 = vadd.f32 %v6417, %v6395
      %v6419 = vadd.f32 %v6418, %v6396
      %v6420 = vadd.f32 %v6419, %v6397
      %v6421 = vadd.f32 %v6420, %v6398
      %v6422 = vadd.f32 %v6421, %v6399
      %v6423 = vrot.slane %v6422, 4
      %v6424 = vadd.f32 %v6422, %v6423
      %v6425 = vrot.slane %v6424, 2
      %v6426 = vadd.f32 %v6424, %v6425
      %v6427 = vrot.slane %v6426, 1
      %v6428 = vadd.f32 %v6426, %v6427
      %v6429 = vmul.f32 %v6392, %v6392
      %v6430 = vmul.f32 %v6393, %v6393
      %v6431 = vmul.f32 %v6394, %v6394
      %v6432 = vmul.f32 %v6395, %v6395
      %v6433 = vmul.f32 %v6396, %v6396
      %v6434 = vmul.f32 %v6397, %v6397
      %v6435 = vmul.f32 %v6398, %v6398
      %v6436 = vmul.f32 %v6399, %v6399
      %v6437 = vadd.f32 %v6429, %v6430
      %v6438 = vadd.f32 %v6437, %v6431
      %v6439 = vadd.f32 %v6438, %v6432
      %v6440 = vadd.f32 %v6439, %v6433
      %v6441 = vadd.f32 %v6440, %v6434
      %v6442 = vadd.f32 %v6441, %v6435
      %v6443 = vadd.f32 %v6442, %v6436
      %v6444 = vrot.slane %v6443, 4
      %v6445 = vadd.f32 %v6443, %v6444
      %v6446 = vrot.slane %v6445, 2
      %v6447 = vadd.f32 %v6445, %v6446
      %v6448 = vrot.slane %v6447, 1
      %v6449 = vadd.f32 %v6447, %v6448
      %vm6450 = vcmask 1040384
      %v6451 = vsel %vm6450, %v6428, %v6449
      // Predicated region
      $region45: #{dtm_forward.2} parent=39 // pred_check
        %p6452 = pneg %p323
      $region46: #{dtm_forward.2} parent=39 // pred_check_branch
        %6454 = sbr.rel (%p6452) target = $region48
      $region47: #{dtm_forward.2} parent=39 // pred_region
        %6455 = vst [vmem:[%s321] sm:$0x3] %v6451
      $region48: #{dtm_forward.2} parent=39 // pred_fallthru
        _
      %p6456 = scmp.ne.s32.totalorder %s23, 0
      // Predicated region
      $region49: #{dtm_forward.2} parent=39 // pred_check
        %p6457 = pneg %p6456
      $region50: #{dtm_forward.2} parent=39 // pred_check_branch
        %6459 = sbr.rel (%p6457) target = $region52
      $region51: #{dtm_forward.2} parent=39 // pred_region
        %v6460 = vld [vmem:[%s321] sm:$0x3]
        %v6461 = vadd.f32 %v6460, %v6451
        %6462 = vst [vmem:[%s321] sm:$0x3] %v6461
      $region52: #{dtm_forward.2} parent=39 // pred_fallthru
        _
      %s6463 = smul.u32 8, %s23
      %p6464 = scmp.lt.s32.totalorder %s22, 1
      %s6465 = scalar_select %p6464, %s22, 1
      %p6466 = scmp.lt.s32.totalorder %s6463, 7
      %s6467 = scalar_select %p6466, %s6463, 7
      %s6468 = smul.addr %s6465, 8
      %s6469 = sadd.s32 %s6467, %s6468
      %s6470 = smul.addr %s6469, 4
      %s6471 = scalar_lea.vmem %s5, %s6470
      %p6472 = scmp.lt.s32.totalorder %s22, 1
      %s6473 = scalar_select %p6472, %s22, 1
      %s6474 = smul.addr %s6473, 2
      %s6475 = scalar_lea.vmem %s6, %s6474
      // Predicated region
      $region53: #{dtm_forward.2} parent=39 // pred_check
        %p6476 = pneg %p167
      $region54: #{dtm_forward.2} parent=39 // pred_check_branch
        %6478 = sbr.rel (%p6476) target = $region56
      $region55: #{dtm_forward.2} parent=39 // pred_region
        %s6479 = smul.u32 8, %s23
      $region56: #{dtm_forward.2} parent=39 // pred_fallthru
        _
      // Predicated region
      $region57: #{dtm_forward.2} parent=39 // pred_check
        %p6480 = pneg %p193
      $region58: #{dtm_forward.2} parent=39 // pred_check_branch
        %6482 = sbr.rel (%p6480) target = $region60
      $region59: #{dtm_forward.2} parent=39 // pred_region
        _
      $region60: #{dtm_forward.2} parent=39 // pred_fallthru
        _
    $region40: #{dtm_forward.2} parent=5 // pred_fallthru
      _
    %p6483 = scmp.le.s32.totalorder 2, %s13
    // Predicated region
    $region61: #{dtm_forward.2} parent=5 // pred_check
      %p6484 = pneg %p6483
    $region62: #{dtm_forward.2} parent=5 // pred_check_branch
      %6486 = sbr.rel (%p6484) target = $region64
    $region63: #{dtm_forward.2} parent=5 // pred_region
      %s6487 = ssub.s32 %s13, 2
      // Predicated region
      $region65: #{dtm_forward.2} parent=63 // pred_check
        %p6488 = pneg %p173
      $region66: #{dtm_forward.2} parent=63 // pred_check_branch
        %6490 = sbr.rel (%p6488) target = $region68
      $region67: #{dtm_forward.2} parent=63 // pred_region
        %s6491 = smul.u32 8, %s25
        %p6492 = scmp.lt.s32.totalorder %s24, 1
        %s6493 = scalar_select %p6492, %s24, 1
        %p6494 = scmp.lt.s32.totalorder %s6491, 7
        %s6495 = scalar_select %p6494, %s6491, 7
        %s6496 = smul.addr %s6493, 8
        %s6497 = sadd.s32 %s6495, %s6496
        %s6498 = smul.addr %s6497, 4
        %s6499 = scalar_lea.vmem %s5, %s6498
      $region68: #{dtm_forward.2} parent=63 // pred_fallthru
        _
      // Predicated region
      $region69: #{dtm_forward.2} parent=63 // pred_check
        %p6500 = pneg %p199
      $region70: #{dtm_forward.2} parent=63 // pred_check_branch
        %6502 = sbr.rel (%p6500) target = $region72
      $region71: #{dtm_forward.2} parent=63 // pred_region
        %p6503 = scmp.lt.s32.totalorder %s24, 1
        %s6504 = scalar_select %p6503, %s24, 1
        %s6505 = smul.addr %s6504, 2
        %s6506 = scalar_lea.vmem %s6, %s6505
      $region72: #{dtm_forward.2} parent=63 // pred_fallthru
        _
    $region64: #{dtm_forward.2} parent=5 // pred_fallthru
      _
  $region6: #{dtm_forward.2} parent=0 // loop_footer
    %s17 = sadd.s32 1, %s13
  $region7: #{dtm_forward.2} parent=0 // loop_footer_branch
    %12 = sbr.rel target = $region3
  $region8: #{dtm_forward.2} parent=0 // loop_exit
    _

</llo_original>
